<compile_context>
chip_gen: v7x
topology: tpu7x:2x2x1
jax: 0.10.0
libtpu: 0.0.40
codegen_flags: <defaults>
</compile_context>

<pallas_src>
import functools

import jax
import jax.numpy as jnp
from jax.experimental import pallas as pl
from jax.experimental.pallas import tpu as pltpu

BN_EPS = 1e-5
TM_CAP = 512                      # row-tile cap (fits v5e 16 MiB scoped VMEM)
VMEM_LIMIT = 48 * 1024 * 1024     # < 64 MiB (v7x physical), > v5e/v6e defaults

_COMPILER_PARAMS = pltpu.CompilerParams(
    dimension_semantics=("parallel",),
    vmem_limit_bytes=VMEM_LIMIT,
)


def _round_up(x, m):
    return ((x + m - 1) // m) * m


def _row_tiling(M):
    """Pick a row tile (multiple of 8) and padded M that it divides."""
    tm = TM_CAP if M >= TM_CAP else _round_up(max(M, 8), 8)
    Mp = _round_up(M, tm)
    return tm, Mp


def _pad_rows(P, Mp):
    M = P.shape[0]
    if Mp != M:
        P = jnp.pad(P, ((0, Mp - M), (0, 0)))
    return P


# ---------------------------------------------------------------------------
# Pallas kernels
# ---------------------------------------------------------------------------
def _mm_stats_kernel(p_ref, w_ref, y_ref, s_ref):
    # Y tile = P tile @ W2 (bf16 operands, f32 MXU accumulation).
    y = jnp.dot(p_ref[...], w_ref[...], preferred_element_type=jnp.float32)
    y_ref[...] = y.astype(y_ref.dtype)
    # Per-tile per-channel partial sums for exact batch statistics.
    ssum = jnp.sum(y, axis=0, keepdims=True)        # (1, Cpad)
    ssq = jnp.sum(y * y, axis=0, keepdims=True)     # (1, Cpad)
    row = jax.lax.broadcasted_iota(jnp.int32, s_ref.shape, 0)
    s_ref[...] = jnp.where(row == 0, ssum, 0.0) + jnp.where(row == 1, ssq, 0.0)


def _bn_relu_kernel(y_ref, scale_ref, shift_ref, o_ref):
    y = y_ref[...].astype(jnp.float32)
    o_ref[...] = jnp.maximum(y * scale_ref[...] + shift_ref[...], 0.0).astype(o_ref.dtype)


def _mm_tanh_kernel(p_ref, w_ref, o_ref):
    y = jnp.dot(p_ref[...], w_ref[...], preferred_element_type=jnp.float32)
    o_ref[...] = jnp.tanh(y).astype(o_ref.dtype)


# ---------------------------------------------------------------------------
# Fused layer wrappers
# ---------------------------------------------------------------------------
def fused_convT_bn_relu(P, w2_pad, gamma_pad, beta_pad, cout):
    M, K = P.shape
    cpad = w2_pad.shape[1]
    tm, Mp = _row_tiling(M)
    nt = Mp // tm
    Pp = _pad_rows(P, Mp)

    # Pass 1: tiled matmul + per-tile channel statistics.
    y, stats = pl.pallas_call(
        _mm_stats_kernel,
        out_shape=(
            jax.ShapeDtypeStruct((Mp, cpad), jnp.bfloat16),
            jax.ShapeDtypeStruct((nt * 8, cpad), jnp.float32),
        ),
        grid=(nt,),
        in_specs=[
            pl.BlockSpec((tm, K), lambda i: (i, 0)),
            pl.BlockSpec((K, cpad), lambda i: (0, 0)),
        ],
        out_specs=[
            pl.BlockSpec((tm, cpad), lambda i: (i, 0)),
            pl.BlockSpec((8, cpad), lambda i: (i, 0)),
        ],
        compiler_params=_COMPILER_PARAMS,
    )(Pp, w2_pad)

    # Exact batch statistics (padded rows/channels contribute zero; divide by
    # the true M).  Biased variance matches PyTorch training-mode forward.
    stats = stats.reshape(nt, 8, cpad)
    ssum = jnp.sum(stats[:, 0, :], axis=0)
    ssq = jnp.sum(stats[:, 1, :], axis=0)
    mean = ssum / M
    var = jnp.maximum(ssq / M - mean * mean, 0.0)
    scale = gamma_pad * jax.lax.rsqrt(var + BN_EPS)   # padded gamma = 0 -> safe
    shift = beta_pad - mean * scale

    # Pass 2: tiled scale/shift + ReLU.
    out = pl.pallas_call(
        _bn_relu_kernel,
        out_shape=jax.ShapeDtypeStruct((Mp, cpad), jnp.bfloat16),
        grid=(nt,),
        in_specs=[
            pl.BlockSpec((tm, cpad), lambda i: (i, 0)),
            pl.BlockSpec((1, cpad), lambda i: (0, 0)),
            pl.BlockSpec((1, cpad), lambda i: (0, 0)),
        ],
        out_specs=pl.BlockSpec((tm, cpad), lambda i: (i, 0)),
        compiler_params=_COMPILER_PARAMS,
    )(y, scale.reshape(1, cpad), shift.reshape(1, cpad))

    return out[:M, :cout]


def fused_convT_tanh(P, w2_pad, cout):
    M, K = P.shape
    cpad = w2_pad.shape[1]
    tm, Mp = _row_tiling(M)
    nt = Mp // tm
    Pp = _pad_rows(P, Mp)

    out = pl.pallas_call(
        _mm_tanh_kernel,
        out_shape=jax.ShapeDtypeStruct((Mp, cpad), jnp.float32),
        grid=(nt,),
        in_specs=[
            pl.BlockSpec((tm, K), lambda i: (i, 0)),
            pl.BlockSpec((K, cpad), lambda i: (0, 0)),
        ],
        out_specs=pl.BlockSpec((tm, cpad), lambda i: (i, 0)),
        compiler_params=_COMPILER_PARAMS,
    )(Pp, w2_pad)
    return out[:M, :cout]


# ---------------------------------------------------------------------------
# JAX glue: ConvTranspose2d -> (dilate, pad, im2col) in NHWC
# ---------------------------------------------------------------------------
def _im2col_nhwc_convT(x, k, stride, padding):
    """x: (N, H, W, C) NHWC.  Returns patches (N*Hout*Wout, k*k*C)."""
    N, H, W, C = x.shape
    if stride > 1:
        Hd, Wd = (H - 1) * stride + 1, (W - 1) * stride + 1
        xd = jnp.zeros((N, Hd, Wd, C), x.dtype).at[:, ::stride, ::stride, :].set(x)
    else:
        xd = x
    pad = k - 1 - padding
    xp = jnp.pad(xd, ((0, 0), (pad, pad), (pad, pad), (0, 0)))
    Hout = (H - 1) * stride + k - 2 * padding
    Wout = (W - 1) * stride + k - 2 * padding
    cols = [xp[:, kh:kh + Hout, kw:kw + Wout, :] for kh in range(k) for kw in range(k)]
    patches = jnp.stack(cols, axis=3)                    # (N, Hout, Wout, k*k, C)
    P = patches.reshape(N * Hout * Wout, k * k * C)      # col idx = (kh*k+kw)*C + ci
    return P, Hout, Wout


def _convT_weight_to_matmul(W):
    """W: (Cin, Cout, k, k) PyTorch ConvTranspose2d layout -> (k*k*Cin, Cout)."""
    Cin, Cout, k, _ = W.shape
    Wf = W[:, :, ::-1, ::-1]                              # kernel flip
    return jnp.transpose(Wf, (2, 3, 0, 1)).reshape(k * k * Cin, Cout)


def prepare_generator_params(layers):
    """One-time weight prep: flip + reshape + lane-dense pad + bf16 cast."""
    params, config = [], []
    for layer in layers:
        W = layer["weight"]
        Cin, Cout, k, _ = W.shape
        cpad = _round_up(Cout, 128)
        W2 = _convT_weight_to_matmul(W)
        W2 = jnp.pad(W2, ((0, 0), (0, cpad - Cout))).astype(jnp.bfloat16)
        entry = {"w2": W2}
        if layer["bn"]:
            entry["gamma"] = jnp.pad(layer["gamma"], (0, cpad - Cout))  # pad=0 -> safe
            entry["beta"] = jnp.pad(layer["beta"], (0, cpad - Cout))
        params.append(entry)
        config.append((k, layer["stride"], layer["padding"], Cout, layer["bn"]))
    return tuple(params), tuple(config)


@functools.partial(jax.jit, static_argnums=(2,))
def generator_forward(x_nchw, params, config):
    """x_nchw: (N, nz, 1, 1).  Activations stay NHWC/bf16 between layers."""
    N = x_nchw.shape[0]
    h = jnp.transpose(x_nchw, (0, 2, 3, 1)).astype(jnp.bfloat16)
    for p, (k, stride, padding, cout, bn) in zip(params, config):
        P, Hout, Wout = _im2col_nhwc_convT(h, k, stride, padding)
        if bn:
            y = fused_convT_bn_relu(P, p["w2"], p["gamma"], p["beta"], cout)
        else:
            y = fused_convT_tanh(P, p["w2"], cout)
        h = y.reshape(N, Hout, Wout, cout)                # NHWC, no per-layer transpose
    return jnp.transpose(h, (0, 3, 1, 2)).astype(jnp.float32)  # NCHW at the interface


# ---------------------------------------------------------------------------
# Deterministic parameter construction (shapes follow the nn.Module __init__)
# ---------------------------------------------------------------------------
def make_generator_params(key, nz, ngf, nc):
    specs = [
        # (Cin, Cout, k, stride, padding, has_bn)
        (nz,      ngf * 8, 4, 1, 0, True),
        (ngf * 8, ngf * 4, 4, 2, 1, True),
        (ngf * 4, ngf * 2, 4, 2, 1, True),
        (ngf * 2, ngf,     4, 2, 1, True),
        (ngf,     nc,      4, 2, 1, False),
    ]
    layers = []
    for (cin, cout, k, s, p, bn) in specs:
        key, kw, kg, kb = jax.random.split(key, 4)
        W = 0.02 * jax.random.normal(kw, (cin, cout, k, k), jnp.float32)
        layer = {"weight": W, "stride": s, "padding": p, "bn": bn}
        if bn:
            layer["gamma"] = 1.0 + 0.02 * jax.random.normal(kg, (cout,), jnp.float32)
            layer["beta"] = 0.02 * jax.random.normal(kb, (cout,), jnp.float32)
        layers.append(layer)
    return layers


if __name__ == "__main__":
    # Small DCGAN-like configuration: nz=16, ngf=8, nc=3, batch=2.
    nz, ngf, nc, batch = 16, 8, 3, 2
    key = jax.random.PRNGKey(0)
    key_p, key_x = jax.random.split(key)
    layers = make_generator_params(key_p, nz, ngf, nc)
    params, config = prepare_generator_params(layers)
    x = jax.random.normal(key_x, (batch, nz, 1, 1), jnp.float32)

    out = generator_forward(x, params, config)
    out = jax.block_until_ready(out)

    assert out.shape == (batch, nc, 64, 64), out.shape
    assert bool(jnp.all(jnp.isfinite(out)))
    assert bool(jnp.all(jnp.abs(out) <= 1.0 + 1e-6))  # tanh range
    print("KERNEL_OK")
</pallas_src>

<mosaic_0001>
module attributes {stable_mosaic.version = 11 : i64} {
  func.func @_mm_stats_kernel(%arg0: i32, %arg1: memref<32x256xbf16, #tpu.memory_space<vmem>>, %arg2: memref<256x128xbf16, #tpu.memory_space<vmem>>, %arg3: memref<32x128xbf16, #tpu.memory_space<vmem>>, %arg4: memref<8x128xf32, #tpu.memory_space<vmem>>) attributes {dimension_semantics = [#tpu.dimension_semantics<parallel>], iteration_bounds = array<i64: 1>, scalar_prefetch = 0 : i64, scratch_operands = 0 : i64, tpu.core_type = #tpu.core_type<tc>, window_params = [{transform_indices = @transform_0, window_bounds = array<i64: 32, 256>}, {pipeline_mode = #tpu.pipeline_mode<synchronous>, transform_indices = @transform_1, window_bounds = array<i64: 256, 128>}, {transform_indices = @transform_2, window_bounds = array<i64: 32, 128>}, {transform_indices = @transform_3, window_bounds = array<i64: 8, 128>}]} {
    %c0 = arith.constant 0 : index
    %c0_0 = arith.constant 0 : index
    %0 = vector.load %arg1[%c0, %c0_0] : memref<32x256xbf16, #tpu.memory_space<vmem>>, vector<32x256xbf16>
    %c0_1 = arith.constant 0 : index
    %c0_2 = arith.constant 0 : index
    %1 = vector.load %arg2[%c0_1, %c0_2] : memref<256x128xbf16, #tpu.memory_space<vmem>>, vector<256x128xbf16>
    %cst = arith.constant dense<0.000000e+00> : vector<32x128xf32>
    %2 = tpu.matmul %0, %1, %cst {dimension_numbers = #tpu.dot_dimension_numbers<[1], [0], [0], [1], [0, 0, 1, 1], [], []>} : vector<32x256xbf16>, vector<256x128xbf16>, vector<32x128xf32> -> vector<32x128xf32>
    %3 = arith.truncf %2 : vector<32x128xf32> to vector<32x128xbf16>
    %c0_3 = arith.constant 0 : index
    %c0_4 = arith.constant 0 : index
    %4 = vector.load %arg3[%c0_3, %c0_4] : memref<32x128xbf16, #tpu.memory_space<vmem>>, vector<32x128xbf16>
    tpu.vector_store %arg3[%c0_3, %c0_4], %3 {strides = array<i32>} : memref<32x128xbf16, #tpu.memory_space<vmem>>, vector<32x128xbf16>,
    %cst_5 = arith.constant dense<0.000000e+00> : vector<128xf32>
    %5 = vector.multi_reduction <add>, %2, %cst_5 [0] : vector<32x128xf32> to vector<128xf32>
    %6 = vector.shape_cast %5 : vector<128xf32> to vector<1x128xf32>
    %7 = arith.mulf %2, %2 : vector<32x128xf32>
    %cst_6 = arith.constant dense<0.000000e+00> : vector<128xf32>
    %8 = vector.multi_reduction <add>, %7, %cst_6 [0] : vector<32x128xf32> to vector<128xf32>
    %9 = vector.shape_cast %8 : vector<128xf32> to vector<1x128xf32>
    %10 = tpu.iota {dimensions = array<i32: 0>} : vector<8x128xi32>
    %c0_i32 = arith.constant 0 : i32
    %11 = vector.broadcast %c0_i32 : i32 to vector<8x128xi32>
    %12 = arith.cmpi eq, %10, %11 : vector<8x128xi32>
    %cst_7 = arith.constant 0.000000e+00 : f32
    %13 = vector.shape_cast %6 : vector<1x128xf32> to vector<1x128xf32>
    %14 = vector.broadcast %13 : vector<1x128xf32> to vector<8x128xf32>
    %15 = vector.broadcast %cst_7 : f32 to vector<8x128xf32>
    %16 = arith.select %12, %14, %15 : vector<8x128xi1>, vector<8x128xf32>
    %c1_i32 = arith.constant 1 : i32
    %17 = vector.broadcast %c1_i32 : i32 to vector<8x128xi32>
    %18 = arith.cmpi eq, %10, %17 : vector<8x128xi32>
    %cst_8 = arith.constant 0.000000e+00 : f32
    %19 = vector.shape_cast %9 : vector<1x128xf32> to vector<1x128xf32>
    %20 = vector.broadcast %19 : vector<1x128xf32> to vector<8x128xf32>
    %21 = vector.broadcast %cst_8 : f32 to vector<8x128xf32>
    %22 = arith.select %18, %20, %21 : vector<8x128xi1>, vector<8x128xf32>
    %23 = arith.addf %16, %22 : vector<8x128xf32>
    %c0_9 = arith.constant 0 : index
    %c0_10 = arith.constant 0 : index
    %24 = vector.load %arg4[%c0_9, %c0_10] : memref<8x128xf32, #tpu.memory_space<vmem>>, vector<8x128xf32>
    tpu.vector_store %arg4[%c0_9, %c0_10], %23 {strides = array<i32>} : memref<8x128xf32, #tpu.memory_space<vmem>>, vector<8x128xf32>,
    return
  }
  func.func @transform_0(%arg0: i32) -> (i32, i32) {
    %c0_i32 = arith.constant 0 : i32
    %c0_i32_0 = arith.constant 0 : i32
    return %arg0, %c0_i32 : i32, i32
  }
  func.func @transform_1(%arg0: i32) -> (i32, i32) {
    %c0_i32 = arith.constant 0 : i32
    %c0_i32_0 = arith.constant 0 : i32
    %c0_i32_1 = arith.constant 0 : i32
    return %c0_i32, %c0_i32_0 : i32, i32
  }
  func.func @transform_2(%arg0: i32) -> (i32, i32) {
    %c0_i32 = arith.constant 0 : i32
    %c0_i32_0 = arith.constant 0 : i32
    return %arg0, %c0_i32 : i32, i32
  }
  func.func @transform_3(%arg0: i32) -> (i32, i32) {
    %c0_i32 = arith.constant 0 : i32
    %c0_i32_0 = arith.constant 0 : i32
    return %arg0, %c0_i32 : i32, i32
  }
}

module attributes {stable_mosaic.version = 11 : i64} {
  func.func @_bn_relu_kernel(%arg0: i32, %arg1: memref<32x128xbf16, #tpu.memory_space<vmem>>, %arg2: memref<1x128xf32, #tpu.memory_space<vmem>>, %arg3: memref<1x128xf32, #tpu.memory_space<vmem>>, %arg4: memref<32x128xbf16, #tpu.memory_space<vmem>>) attributes {dimension_semantics = [#tpu.dimension_semantics<parallel>], iteration_bounds = array<i64: 1>, scalar_prefetch = 0 : i64, scratch_operands = 0 : i64, tpu.core_type = #tpu.core_type<tc>, window_params = [{transform_indices = @transform_0, window_bounds = array<i64: 32, 128>}, {pipeline_mode = #tpu.pipeline_mode<synchronous>, transform_indices = @transform_1, window_bounds = array<i64: 1, 128>}, {pipeline_mode = #tpu.pipeline_mode<synchronous>, transform_indices = @transform_2, window_bounds = array<i64: 1, 128>}, {transform_indices = @transform_3, window_bounds = array<i64: 32, 128>}]} {
    %c0 = arith.constant 0 : index
    %c0_0 = arith.constant 0 : index
    %0 = vector.load %arg1[%c0, %c0_0] : memref<32x128xbf16, #tpu.memory_space<vmem>>, vector<32x128xbf16>
    %1 = arith.extf %0 : vector<32x128xbf16> to vector<32x128xf32>
    %c0_1 = arith.constant 0 : index
    %c0_2 = arith.constant 0 : index
    %2 = vector.load %arg2[%c0_1, %c0_2] : memref<1x128xf32, #tpu.memory_space<vmem>>, vector<1x128xf32>
    %3 = vector.broadcast %2 : vector<1x128xf32> to vector<32x128xf32>
    %4 = arith.mulf %1, %3 : vector<32x128xf32>
    %c0_3 = arith.constant 0 : index
    %c0_4 = arith.constant 0 : index
    %5 = vector.load %arg3[%c0_3, %c0_4] : memref<1x128xf32, #tpu.memory_space<vmem>>, vector<1x128xf32>
    %6 = vector.broadcast %5 : vector<1x128xf32> to vector<32x128xf32>
    %7 = arith.addf %4, %6 : vector<32x128xf32>
    %cst = arith.constant 0.000000e+00 : f32
    %8 = vector.broadcast %cst : f32 to vector<32x128xf32>
    %9 = arith.maximumf %7, %8 : vector<32x128xf32>
    %10 = arith.truncf %9 : vector<32x128xf32> to vector<32x128xbf16>
    %c0_5 = arith.constant 0 : index
    %c0_6 = arith.constant 0 : index
    %11 = vector.load %arg4[%c0_5, %c0_6] : memref<32x128xbf16, #tpu.memory_space<vmem>>, vector<32x128xbf16>
    tpu.vector_store %arg4[%c0_5, %c0_6], %10 {strides = array<i32>} : memref<32x128xbf16, #tpu.memory_space<vmem>>, vector<32x128xbf16>,
    return
  }
  func.func @transform_0(%arg0: i32) -> (i32, i32) {
    %c0_i32 = arith.constant 0 : i32
    %c0_i32_0 = arith.constant 0 : i32
    return %arg0, %c0_i32 : i32, i32
  }
  func.func @transform_1(%arg0: i32) -> (i32, i32) {
    %c0_i32 = arith.constant 0 : i32
    %c0_i32_0 = arith.constant 0 : i32
    %c0_i32_1 = arith.constant 0 : i32
    return %c0_i32, %c0_i32_0 : i32, i32
  }
  func.func @transform_2(%arg0: i32) -> (i32, i32) {
    %c0_i32 = arith.constant 0 : i32
    %c0_i32_0 = arith.constant 0 : i32
    %c0_i32_1 = arith.constant 0 : i32
    return %c0_i32, %c0_i32_0 : i32, i32
  }
  func.func @transform_3(%arg0: i32) -> (i32, i32) {
    %c0_i32 = arith.constant 0 : i32
    %c0_i32_0 = arith.constant 0 : i32
    return %arg0, %c0_i32 : i32, i32
  }
}

module attributes {stable_mosaic.version = 11 : i64} {
  func.func @_mm_stats_kernel(%arg0: i32, %arg1: memref<128x1024xbf16, #tpu.memory_space<vmem>>, %arg2: memref<1024x128xbf16, #tpu.memory_space<vmem>>, %arg3: memref<128x128xbf16, #tpu.memory_space<vmem>>, %arg4: memref<8x128xf32, #tpu.memory_space<vmem>>) attributes {dimension_semantics = [#tpu.dimension_semantics<parallel>], iteration_bounds = array<i64: 1>, scalar_prefetch = 0 : i64, scratch_operands = 0 : i64, tpu.core_type = #tpu.core_type<tc>, window_params = [{transform_indices = @transform_0, window_bounds = array<i64: 128, 1024>}, {pipeline_mode = #tpu.pipeline_mode<synchronous>, transform_indices = @transform_1, window_bounds = array<i64: 1024, 128>}, {transform_indices = @transform_2, window_bounds = array<i64: 128, 128>}, {transform_indices = @transform_3, window_bounds = array<i64: 8, 128>}]} {
    %c0 = arith.constant 0 : index
    %c0_0 = arith.constant 0 : index
    %0 = vector.load %arg1[%c0, %c0_0] : memref<128x1024xbf16, #tpu.memory_space<vmem>>, vector<128x1024xbf16>
    %c0_1 = arith.constant 0 : index
    %c0_2 = arith.constant 0 : index
    %1 = vector.load %arg2[%c0_1, %c0_2] : memref<1024x128xbf16, #tpu.memory_space<vmem>>, vector<1024x128xbf16>
    %cst = arith.constant dense<0.000000e+00> : vector<128x128xf32>
    %2 = tpu.matmul %0, %1, %cst {dimension_numbers = #tpu.dot_dimension_numbers<[1], [0], [0], [1], [0, 0, 1, 1], [], []>} : vector<128x1024xbf16>, vector<1024x128xbf16>, vector<128x128xf32> -> vector<128x128xf32>
    %3 = arith.truncf %2 : vector<128x128xf32> to vector<128x128xbf16>
    %c0_3 = arith.constant 0 : index
    %c0_4 = arith.constant 0 : index
    %4 = vector.load %arg3[%c0_3, %c0_4] : memref<128x128xbf16, #tpu.memory_space<vmem>>, vector<128x128xbf16>
    tpu.vector_store %arg3[%c0_3, %c0_4], %3 {strides = array<i32>} : memref<128x128xbf16, #tpu.memory_space<vmem>>, vector<128x128xbf16>,
    %cst_5 = arith.constant dense<0.000000e+00> : vector<128xf32>
    %5 = vector.multi_reduction <add>, %2, %cst_5 [0] : vector<128x128xf32> to vector<128xf32>
    %6 = vector.shape_cast %5 : vector<128xf32> to vector<1x128xf32>
    %7 = arith.mulf %2, %2 : vector<128x128xf32>
    %cst_6 = arith.constant dense<0.000000e+00> : vector<128xf32>
    %8 = vector.multi_reduction <add>, %7, %cst_6 [0] : vector<128x128xf32> to vector<128xf32>
    %9 = vector.shape_cast %8 : vector<128xf32> to vector<1x128xf32>
    %10 = tpu.iota {dimensions = array<i32: 0>} : vector<8x128xi32>
    %c0_i32 = arith.constant 0 : i32
    %11 = vector.broadcast %c0_i32 : i32 to vector<8x128xi32>
    %12 = arith.cmpi eq, %10, %11 : vector<8x128xi32>
    %cst_7 = arith.constant 0.000000e+00 : f32
    %13 = vector.shape_cast %6 : vector<1x128xf32> to vector<1x128xf32>
    %14 = vector.broadcast %13 : vector<1x128xf32> to vector<8x128xf32>
    %15 = vector.broadcast %cst_7 : f32 to vector<8x128xf32>
    %16 = arith.select %12, %14, %15 : vector<8x128xi1>, vector<8x128xf32>
    %c1_i32 = arith.constant 1 : i32
    %17 = vector.broadcast %c1_i32 : i32 to vector<8x128xi32>
    %18 = arith.cmpi eq, %10, %17 : vector<8x128xi32>
    %cst_8 = arith.constant 0.000000e+00 : f32
    %19 = vector.shape_cast %9 : vector<1x128xf32> to vector<1x128xf32>
    %20 = vector.broadcast %19 : vector<1x128xf32> to vector<8x128xf32>
    %21 = vector.broadcast %cst_8 : f32 to vector<8x128xf32>
    %22 = arith.select %18, %20, %21 : vector<8x128xi1>, vector<8x128xf32>
    %23 = arith.addf %16, %22 : vector<8x128xf32>
    %c0_9 = arith.constant 0 : index
    %c0_10 = arith.constant 0 : index
    %24 = vector.load %arg4[%c0_9, %c0_10] : memref<8x128xf32, #tpu.memory_space<vmem>>, vector<8x128xf32>
    tpu.vector_store %arg4[%c0_9, %c0_10], %23 {strides = array<i32>} : memref<8x128xf32, #tpu.memory_space<vmem>>, vector<8x128xf32>,
    return
  }
  func.func @transform_0(%arg0: i32) -> (i32, i32) {
    %c0_i32 = arith.constant 0 : i32
    %c0_i32_0 = arith.constant 0 : i32
    return %arg0, %c0_i32 : i32, i32
  }
  func.func @transform_1(%arg0: i32) -> (i32, i32) {
    %c0_i32 = arith.constant 0 : i32
    %c0_i32_0 = arith.constant 0 : i32
    %c0_i32_1 = arith.constant 0 : i32
    return %c0_i32, %c0_i32_0 : i32, i32
  }
  func.func @transform_2(%arg0: i32) -> (i32, i32) {
    %c0_i32 = arith.constant 0 : i32
    %c0_i32_0 = arith.constant 0 : i32
    return %arg0, %c0_i32 : i32, i32
  }
  func.func @transform_3(%arg0: i32) -> (i32, i32) {
    %c0_i32 = arith.constant 0 : i32
    %c0_i32_0 = arith.constant 0 : i32
    return %arg0, %c0_i32 : i32, i32
  }
}

module attributes {stable_mosaic.version = 11 : i64} {
  func.func @_bn_relu_kernel(%arg0: i32, %arg1: memref<128x128xbf16, #tpu.memory_space<vmem>>, %arg2: memref<1x128xf32, #tpu.memory_space<vmem>>, %arg3: memref<1x128xf32, #tpu.memory_space<vmem>>, %arg4: memref<128x128xbf16, #tpu.memory_space<vmem>>) attributes {dimension_semantics = [#tpu.dimension_semantics<parallel>], iteration_bounds = array<i64: 1>, scalar_prefetch = 0 : i64, scratch_operands = 0 : i64, tpu.core_type = #tpu.core_type<tc>, window_params = [{transform_indices = @transform_0, window_bounds = array<i64: 128, 128>}, {pipeline_mode = #tpu.pipeline_mode<synchronous>, transform_indices = @transform_1, window_bounds = array<i64: 1, 128>}, {pipeline_mode = #tpu.pipeline_mode<synchronous>, transform_indices = @transform_2, window_bounds = array<i64: 1, 128>}, {transform_indices = @transform_3, window_bounds = array<i64: 128, 128>}]} {
    %c0 = arith.constant 0 : index
    %c0_0 = arith.constant 0 : index
    %0 = vector.load %arg1[%c0, %c0_0] : memref<128x128xbf16, #tpu.memory_space<vmem>>, vector<128x128xbf16>
    %1 = arith.extf %0 : vector<128x128xbf16> to vector<128x128xf32>
    %c0_1 = arith.constant 0 : index
    %c0_2 = arith.constant 0 : index
    %2 = vector.load %arg2[%c0_1, %c0_2] : memref<1x128xf32, #tpu.memory_space<vmem>>, vector<1x128xf32>
    %3 = vector.broadcast %2 : vector<1x128xf32> to vector<128x128xf32>
    %4 = arith.mulf %1, %3 : vector<128x128xf32>
    %c0_3 = arith.constant 0 : index
    %c0_4 = arith.constant 0 : index
    %5 = vector.load %arg3[%c0_3, %c0_4] : memref<1x128xf32, #tpu.memory_space<vmem>>, vector<1x128xf32>
    %6 = vector.broadcast %5 : vector<1x128xf32> to vector<128x128xf32>
    %7 = arith.addf %4, %6 : vector<128x128xf32>
    %cst = arith.constant 0.000000e+00 : f32
    %8 = vector.broadcast %cst : f32 to vector<128x128xf32>
    %9 = arith.maximumf %7, %8 : vector<128x128xf32>
    %10 = arith.truncf %9 : vector<128x128xf32> to vector<128x128xbf16>
    %c0_5 = arith.constant 0 : index
    %c0_6 = arith.constant 0 : index
    %11 = vector.load %arg4[%c0_5, %c0_6] : memref<128x128xbf16, #tpu.memory_space<vmem>>, vector<128x128xbf16>
    tpu.vector_store %arg4[%c0_5, %c0_6], %10 {strides = array<i32>} : memref<128x128xbf16, #tpu.memory_space<vmem>>, vector<128x128xbf16>,
    return
  }
  func.func @transform_0(%arg0: i32) -> (i32, i32) {
    %c0_i32 = arith.constant 0 : i32
    %c0_i32_0 = arith.constant 0 : i32
    return %arg0, %c0_i32 : i32, i32
  }
  func.func @transform_1(%arg0: i32) -> (i32, i32) {
    %c0_i32 = arith.constant 0 : i32
    %c0_i32_0 = arith.constant 0 : i32
    %c0_i32_1 = arith.constant 0 : i32
    return %c0_i32, %c0_i32_0 : i32, i32
  }
  func.func @transform_2(%arg0: i32) -> (i32, i32) {
    %c0_i32 = arith.constant 0 : i32
    %c0_i32_0 = arith.constant 0 : i32
    %c0_i32_1 = arith.constant 0 : i32
    return %c0_i32, %c0_i32_0 : i32, i32
  }
  func.func @transform_3(%arg0: i32) -> (i32, i32) {
    %c0_i32 = arith.constant 0 : i32
    %c0_i32_0 = arith.constant 0 : i32
    return %arg0, %c0_i32 : i32, i32
  }
}

module attributes {stable_mosaic.version = 11 : i64} {
  func.func @_mm_stats_kernel(%arg0: i32, %arg1: memref<512x512xbf16, #tpu.memory_space<vmem>>, %arg2: memref<512x128xbf16, #tpu.memory_space<vmem>>, %arg3: memref<512x128xbf16, #tpu.memory_space<vmem>>, %arg4: memref<8x128xf32, #tpu.memory_space<vmem>>) attributes {dimension_semantics = [#tpu.dimension_semantics<parallel>], iteration_bounds = array<i64: 1>, scalar_prefetch = 0 : i64, scratch_operands = 0 : i64, tpu.core_type = #tpu.core_type<tc>, window_params = [{transform_indices = @transform_0, window_bounds = array<i64: 512, 512>}, {pipeline_mode = #tpu.pipeline_mode<synchronous>, transform_indices = @transform_1, window_bounds = array<i64: 512, 128>}, {transform_indices = @transform_2, window_bounds = array<i64: 512, 128>}, {transform_indices = @transform_3, window_bounds = array<i64: 8, 128>}]} {
    %c0 = arith.constant 0 : index
    %c0_0 = arith.constant 0 : index
    %0 = vector.load %arg1[%c0, %c0_0] : memref<512x512xbf16, #tpu.memory_space<vmem>>, vector<512x512xbf16>
    %c0_1 = arith.constant 0 : index
    %c0_2 = arith.constant 0 : index
    %1 = vector.load %arg2[%c0_1, %c0_2] : memref<512x128xbf16, #tpu.memory_space<vmem>>, vector<512x128xbf16>
    %cst = arith.constant dense<0.000000e+00> : vector<512x128xf32>
    %2 = tpu.matmul %0, %1, %cst {dimension_numbers = #tpu.dot_dimension_numbers<[1], [0], [0], [1], [0, 0, 1, 1], [], []>} : vector<512x512xbf16>, vector<512x128xbf16>, vector<512x128xf32> -> vector<512x128xf32>
    %3 = arith.truncf %2 : vector<512x128xf32> to vector<512x128xbf16>
    %c0_3 = arith.constant 0 : index
    %c0_4 = arith.constant 0 : index
    %4 = vector.load %arg3[%c0_3, %c0_4] : memref<512x128xbf16, #tpu.memory_space<vmem>>, vector<512x128xbf16>
    tpu.vector_store %arg3[%c0_3, %c0_4], %3 {strides = array<i32>} : memref<512x128xbf16, #tpu.memory_space<vmem>>, vector<512x128xbf16>,
    %cst_5 = arith.constant dense<0.000000e+00> : vector<128xf32>
    %5 = vector.multi_reduction <add>, %2, %cst_5 [0] : vector<512x128xf32> to vector<128xf32>
    %6 = vector.shape_cast %5 : vector<128xf32> to vector<1x128xf32>
    %7 = arith.mulf %2, %2 : vector<512x128xf32>
    %cst_6 = arith.constant dense<0.000000e+00> : vector<128xf32>
    %8 = vector.multi_reduction <add>, %7, %cst_6 [0] : vector<512x128xf32> to vector<128xf32>
    %9 = vector.shape_cast %8 : vector<128xf32> to vector<1x128xf32>
    %10 = tpu.iota {dimensions = array<i32: 0>} : vector<8x128xi32>
    %c0_i32 = arith.constant 0 : i32
    %11 = vector.broadcast %c0_i32 : i32 to vector<8x128xi32>
    %12 = arith.cmpi eq, %10, %11 : vector<8x128xi32>
    %cst_7 = arith.constant 0.000000e+00 : f32
    %13 = vector.shape_cast %6 : vector<1x128xf32> to vector<1x128xf32>
    %14 = vector.broadcast %13 : vector<1x128xf32> to vector<8x128xf32>
    %15 = vector.broadcast %cst_7 : f32 to vector<8x128xf32>
    %16 = arith.select %12, %14, %15 : vector<8x128xi1>, vector<8x128xf32>
    %c1_i32 = arith.constant 1 : i32
    %17 = vector.broadcast %c1_i32 : i32 to vector<8x128xi32>
    %18 = arith.cmpi eq, %10, %17 : vector<8x128xi32>
    %cst_8 = arith.constant 0.000000e+00 : f32
    %19 = vector.shape_cast %9 : vector<1x128xf32> to vector<1x128xf32>
    %20 = vector.broadcast %19 : vector<1x128xf32> to vector<8x128xf32>
    %21 = vector.broadcast %cst_8 : f32 to vector<8x128xf32>
    %22 = arith.select %18, %20, %21 : vector<8x128xi1>, vector<8x128xf32>
    %23 = arith.addf %16, %22 : vector<8x128xf32>
    %c0_9 = arith.constant 0 : index
    %c0_10 = arith.constant 0 : index
    %24 = vector.load %arg4[%c0_9, %c0_10] : memref<8x128xf32, #tpu.memory_space<vmem>>, vector<8x128xf32>
    tpu.vector_store %arg4[%c0_9, %c0_10], %23 {strides = array<i32>} : memref<8x128xf32, #tpu.memory_space<vmem>>, vector<8x128xf32>,
    return
  }
  func.func @transform_0(%arg0: i32) -> (i32, i32) {
    %c0_i32 = arith.constant 0 : i32
    %c0_i32_0 = arith.constant 0 : i32
    return %arg0, %c0_i32 : i32, i32
  }
  func.func @transform_1(%arg0: i32) -> (i32, i32) {
    %c0_i32 = arith.constant 0 : i32
    %c0_i32_0 = arith.constant 0 : i32
    %c0_i32_1 = arith.constant 0 : i32
    return %c0_i32, %c0_i32_0 : i32, i32
  }
  func.func @transform_2(%arg0: i32) -> (i32, i32) {
    %c0_i32 = arith.constant 0 : i32
    %c0_i32_0 = arith.constant 0 : i32
    return %arg0, %c0_i32 : i32, i32
  }
  func.func @transform_3(%arg0: i32) -> (i32, i32) {
    %c0_i32 = arith.constant 0 : i32
    %c0_i32_0 = arith.constant 0 : i32
    return %arg0, %c0_i32 : i32, i32
  }
}

module attributes {stable_mosaic.version = 11 : i64} {
  func.func @_bn_relu_kernel(%arg0: i32, %arg1: memref<512x128xbf16, #tpu.memory_space<vmem>>, %arg2: memref<1x128xf32, #tpu.memory_space<vmem>>, %arg3: memref<1x128xf32, #tpu.memory_space<vmem>>, %arg4: memref<512x128xbf16, #tpu.memory_space<vmem>>) attributes {dimension_semantics = [#tpu.dimension_semantics<parallel>], iteration_bounds = array<i64: 1>, scalar_prefetch = 0 : i64, scratch_operands = 0 : i64, tpu.core_type = #tpu.core_type<tc>, window_params = [{transform_indices = @transform_0, window_bounds = array<i64: 512, 128>}, {pipeline_mode = #tpu.pipeline_mode<synchronous>, transform_indices = @transform_1, window_bounds = array<i64: 1, 128>}, {pipeline_mode = #tpu.pipeline_mode<synchronous>, transform_indices = @transform_2, window_bounds = array<i64: 1, 128>}, {transform_indices = @transform_3, window_bounds = array<i64: 512, 128>}]} {
    %c0 = arith.constant 0 : index
    %c0_0 = arith.constant 0 : index
    %0 = vector.load %arg1[%c0, %c0_0] : memref<512x128xbf16, #tpu.memory_space<vmem>>, vector<512x128xbf16>
    %1 = arith.extf %0 : vector<512x128xbf16> to vector<512x128xf32>
    %c0_1 = arith.constant 0 : index
    %c0_2 = arith.constant 0 : index
    %2 = vector.load %arg2[%c0_1, %c0_2] : memref<1x128xf32, #tpu.memory_space<vmem>>, vector<1x128xf32>
    %3 = vector.broadcast %2 : vector<1x128xf32> to vector<512x128xf32>
    %4 = arith.mulf %1, %3 : vector<512x128xf32>
    %c0_3 = arith.constant 0 : index
    %c0_4 = arith.constant 0 : index
    %5 = vector.load %arg3[%c0_3, %c0_4] : memref<1x128xf32, #tpu.memory_space<vmem>>, vector<1x128xf32>
    %6 = vector.broadcast %5 : vector<1x128xf32> to vector<512x128xf32>
    %7 = arith.addf %4, %6 : vector<512x128xf32>
    %cst = arith.constant 0.000000e+00 : f32
    %8 = vector.broadcast %cst : f32 to vector<512x128xf32>
    %9 = arith.maximumf %7, %8 : vector<512x128xf32>
    %10 = arith.truncf %9 : vector<512x128xf32> to vector<512x128xbf16>
    %c0_5 = arith.constant 0 : index
    %c0_6 = arith.constant 0 : index
    %11 = vector.load %arg4[%c0_5, %c0_6] : memref<512x128xbf16, #tpu.memory_space<vmem>>, vector<512x128xbf16>
    tpu.vector_store %arg4[%c0_5, %c0_6], %10 {strides = array<i32>} : memref<512x128xbf16, #tpu.memory_space<vmem>>, vector<512x128xbf16>,
    return
  }
  func.func @transform_0(%arg0: i32) -> (i32, i32) {
    %c0_i32 = arith.constant 0 : i32
    %c0_i32_0 = arith.constant 0 : i32
    return %arg0, %c0_i32 : i32, i32
  }
  func.func @transform_1(%arg0: i32) -> (i32, i32) {
    %c0_i32 = arith.constant 0 : i32
    %c0_i32_0 = arith.constant 0 : i32
    %c0_i32_1 = arith.constant 0 : i32
    return %c0_i32, %c0_i32_0 : i32, i32
  }
  func.func @transform_2(%arg0: i32) -> (i32, i32) {
    %c0_i32 = arith.constant 0 : i32
    %c0_i32_0 = arith.constant 0 : i32
    %c0_i32_1 = arith.constant 0 : i32
    return %c0_i32, %c0_i32_0 : i32, i32
  }
  func.func @transform_3(%arg0: i32) -> (i32, i32) {
    %c0_i32 = arith.constant 0 : i32
    %c0_i32_0 = arith.constant 0 : i32
    return %arg0, %c0_i32 : i32, i32
  }
}

module attributes {stable_mosaic.version = 11 : i64} {
  func.func @_mm_stats_kernel(%arg0: i32, %arg1: memref<512x256xbf16, #tpu.memory_space<vmem>>, %arg2: memref<256x128xbf16, #tpu.memory_space<vmem>>, %arg3: memref<512x128xbf16, #tpu.memory_space<vmem>>, %arg4: memref<8x128xf32, #tpu.memory_space<vmem>>) attributes {dimension_semantics = [#tpu.dimension_semantics<parallel>], iteration_bounds = array<i64: 4>, scalar_prefetch = 0 : i64, scratch_operands = 0 : i64, tpu.core_type = #tpu.core_type<tc>, window_params = [{transform_indices = @transform_0, window_bounds = array<i64: 512, 256>}, {pipeline_mode = #tpu.pipeline_mode<synchronous>, transform_indices = @transform_1, window_bounds = array<i64: 256, 128>}, {transform_indices = @transform_2, window_bounds = array<i64: 512, 128>}, {transform_indices = @transform_3, window_bounds = array<i64: 8, 128>}]} {
    %c0 = arith.constant 0 : index
    %c0_0 = arith.constant 0 : index
    %0 = vector.load %arg1[%c0, %c0_0] : memref<512x256xbf16, #tpu.memory_space<vmem>>, vector<512x256xbf16>
    %c0_1 = arith.constant 0 : index
    %c0_2 = arith.constant 0 : index
    %1 = vector.load %arg2[%c0_1, %c0_2] : memref<256x128xbf16, #tpu.memory_space<vmem>>, vector<256x128xbf16>
    %cst = arith.constant dense<0.000000e+00> : vector<512x128xf32>
    %2 = tpu.matmul %0, %1, %cst {dimension_numbers = #tpu.dot_dimension_numbers<[1], [0], [0], [1], [0, 0, 1, 1], [], []>} : vector<512x256xbf16>, vector<256x128xbf16>, vector<512x128xf32> -> vector<512x128xf32>
    %3 = arith.truncf %2 : vector<512x128xf32> to vector<512x128xbf16>
    %c0_3 = arith.constant 0 : index
    %c0_4 = arith.constant 0 : index
    %4 = vector.load %arg3[%c0_3, %c0_4] : memref<512x128xbf16, #tpu.memory_space<vmem>>, vector<512x128xbf16>
    tpu.vector_store %arg3[%c0_3, %c0_4], %3 {strides = array<i32>} : memref<512x128xbf16, #tpu.memory_space<vmem>>, vector<512x128xbf16>,
    %cst_5 = arith.constant dense<0.000000e+00> : vector<128xf32>
    %5 = vector.multi_reduction <add>, %2, %cst_5 [0] : vector<512x128xf32> to vector<128xf32>
    %6 = vector.shape_cast %5 : vector<128xf32> to vector<1x128xf32>
    %7 = arith.mulf %2, %2 : vector<512x128xf32>
    %cst_6 = arith.constant dense<0.000000e+00> : vector<128xf32>
    %8 = vector.multi_reduction <add>, %7, %cst_6 [0] : vector<512x128xf32> to vector<128xf32>
    %9 = vector.shape_cast %8 : vector<128xf32> to vector<1x128xf32>
    %10 = tpu.iota {dimensions = array<i32: 0>} : vector<8x128xi32>
    %c0_i32 = arith.constant 0 : i32
    %11 = vector.broadcast %c0_i32 : i32 to vector<8x128xi32>
    %12 = arith.cmpi eq, %10, %11 : vector<8x128xi32>
    %cst_7 = arith.constant 0.000000e+00 : f32
    %13 = vector.shape_cast %6 : vector<1x128xf32> to vector<1x128xf32>
    %14 = vector.broadcast %13 : vector<1x128xf32> to vector<8x128xf32>
    %15 = vector.broadcast %cst_7 : f32 to vector<8x128xf32>
    %16 = arith.select %12, %14, %15 : vector<8x128xi1>, vector<8x128xf32>
    %c1_i32 = arith.constant 1 : i32
    %17 = vector.broadcast %c1_i32 : i32 to vector<8x128xi32>
    %18 = arith.cmpi eq, %10, %17 : vector<8x128xi32>
    %cst_8 = arith.constant 0.000000e+00 : f32
    %19 = vector.shape_cast %9 : vector<1x128xf32> to vector<1x128xf32>
    %20 = vector.broadcast %19 : vector<1x128xf32> to vector<8x128xf32>
    %21 = vector.broadcast %cst_8 : f32 to vector<8x128xf32>
    %22 = arith.select %18, %20, %21 : vector<8x128xi1>, vector<8x128xf32>
    %23 = arith.addf %16, %22 : vector<8x128xf32>
    %c0_9 = arith.constant 0 : index
    %c0_10 = arith.constant 0 : index
    %24 = vector.load %arg4[%c0_9, %c0_10] : memref<8x128xf32, #tpu.memory_space<vmem>>, vector<8x128xf32>
    tpu.vector_store %arg4[%c0_9, %c0_10], %23 {strides = array<i32>} : memref<8x128xf32, #tpu.memory_space<vmem>>, vector<8x128xf32>,
    return
  }
  func.func @transform_0(%arg0: i32) -> (i32, i32) {
    %c0_i32 = arith.constant 0 : i32
    %c0_i32_0 = arith.constant 0 : i32
    return %arg0, %c0_i32 : i32, i32
  }
  func.func @transform_1(%arg0: i32) -> (i32, i32) {
    %c0_i32 = arith.constant 0 : i32
    %c0_i32_0 = arith.constant 0 : i32
    %c0_i32_1 = arith.constant 0 : i32
    return %c0_i32, %c0_i32_0 : i32, i32
  }
  func.func @transform_2(%arg0: i32) -> (i32, i32) {
    %c0_i32 = arith.constant 0 : i32
    %c0_i32_0 = arith.constant 0 : i32
    return %arg0, %c0_i32 : i32, i32
  }
  func.func @transform_3(%arg0: i32) -> (i32, i32) {
    %c0_i32 = arith.constant 0 : i32
    %c0_i32_0 = arith.constant 0 : i32
    return %arg0, %c0_i32 : i32, i32
  }
}

module attributes {stable_mosaic.version = 11 : i64} {
  func.func @_bn_relu_kernel(%arg0: i32, %arg1: memref<512x128xbf16, #tpu.memory_space<vmem>>, %arg2: memref<1x128xf32, #tpu.memory_space<vmem>>, %arg3: memref<1x128xf32, #tpu.memory_space<vmem>>, %arg4: memref<512x128xbf16, #tpu.memory_space<vmem>>) attributes {dimension_semantics = [#tpu.dimension_semantics<parallel>], iteration_bounds = array<i64: 4>, scalar_prefetch = 0 : i64, scratch_operands = 0 : i64, tpu.core_type = #tpu.core_type<tc>, window_params = [{transform_indices = @transform_0, window_bounds = array<i64: 512, 128>}, {pipeline_mode = #tpu.pipeline_mode<synchronous>, transform_indices = @transform_1, window_bounds = array<i64: 1, 128>}, {pipeline_mode = #tpu.pipeline_mode<synchronous>, transform_indices = @transform_2, window_bounds = array<i64: 1, 128>}, {transform_indices = @transform_3, window_bounds = array<i64: 512, 128>}]} {
    %c0 = arith.constant 0 : index
    %c0_0 = arith.constant 0 : index
    %0 = vector.load %arg1[%c0, %c0_0] : memref<512x128xbf16, #tpu.memory_space<vmem>>, vector<512x128xbf16>
    %1 = arith.extf %0 : vector<512x128xbf16> to vector<512x128xf32>
    %c0_1 = arith.constant 0 : index
    %c0_2 = arith.constant 0 : index
    %2 = vector.load %arg2[%c0_1, %c0_2] : memref<1x128xf32, #tpu.memory_space<vmem>>, vector<1x128xf32>
    %3 = vector.broadcast %2 : vector<1x128xf32> to vector<512x128xf32>
    %4 = arith.mulf %1, %3 : vector<512x128xf32>
    %c0_3 = arith.constant 0 : index
    %c0_4 = arith.constant 0 : index
    %5 = vector.load %arg3[%c0_3, %c0_4] : memref<1x128xf32, #tpu.memory_space<vmem>>, vector<1x128xf32>
    %6 = vector.broadcast %5 : vector<1x128xf32> to vector<512x128xf32>
    %7 = arith.addf %4, %6 : vector<512x128xf32>
    %cst = arith.constant 0.000000e+00 : f32
    %8 = vector.broadcast %cst : f32 to vector<512x128xf32>
    %9 = arith.maximumf %7, %8 : vector<512x128xf32>
    %10 = arith.truncf %9 : vector<512x128xf32> to vector<512x128xbf16>
    %c0_5 = arith.constant 0 : index
    %c0_6 = arith.constant 0 : index
    %11 = vector.load %arg4[%c0_5, %c0_6] : memref<512x128xbf16, #tpu.memory_space<vmem>>, vector<512x128xbf16>
    tpu.vector_store %arg4[%c0_5, %c0_6], %10 {strides = array<i32>} : memref<512x128xbf16, #tpu.memory_space<vmem>>, vector<512x128xbf16>,
    return
  }
  func.func @transform_0(%arg0: i32) -> (i32, i32) {
    %c0_i32 = arith.constant 0 : i32
    %c0_i32_0 = arith.constant 0 : i32
    return %arg0, %c0_i32 : i32, i32
  }
  func.func @transform_1(%arg0: i32) -> (i32, i32) {
    %c0_i32 = arith.constant 0 : i32
    %c0_i32_0 = arith.constant 0 : i32
    %c0_i32_1 = arith.constant 0 : i32
    return %c0_i32, %c0_i32_0 : i32, i32
  }
  func.func @transform_2(%arg0: i32) -> (i32, i32) {
    %c0_i32 = arith.constant 0 : i32
    %c0_i32_0 = arith.constant 0 : i32
    %c0_i32_1 = arith.constant 0 : i32
    return %c0_i32, %c0_i32_0 : i32, i32
  }
  func.func @transform_3(%arg0: i32) -> (i32, i32) {
    %c0_i32 = arith.constant 0 : i32
    %c0_i32_0 = arith.constant 0 : i32
    return %arg0, %c0_i32 : i32, i32
  }
}

module attributes {stable_mosaic.version = 11 : i64} {
  func.func @_mm_tanh_kernel(%arg0: i32, %arg1: memref<512x128xbf16, #tpu.memory_space<vmem>>, %arg2: memref<128x128xbf16, #tpu.memory_space<vmem>>, %arg3: memref<512x128xf32, #tpu.memory_space<vmem>>) attributes {dimension_semantics = [#tpu.dimension_semantics<parallel>], iteration_bounds = array<i64: 16>, scalar_prefetch = 0 : i64, scratch_operands = 0 : i64, tpu.core_type = #tpu.core_type<tc>, window_params = [{transform_indices = @transform_0, window_bounds = array<i64: 512, 128>}, {pipeline_mode = #tpu.pipeline_mode<synchronous>, transform_indices = @transform_1, window_bounds = array<i64: 128, 128>}, {transform_indices = @transform_2, window_bounds = array<i64: 512, 128>}]} {
    %c0 = arith.constant 0 : index
    %c0_0 = arith.constant 0 : index
    %0 = vector.load %arg1[%c0, %c0_0] : memref<512x128xbf16, #tpu.memory_space<vmem>>, vector<512x128xbf16>
    %c0_1 = arith.constant 0 : index
    %c0_2 = arith.constant 0 : index
    %1 = vector.load %arg2[%c0_1, %c0_2] : memref<128x128xbf16, #tpu.memory_space<vmem>>, vector<128x128xbf16>
    %cst = arith.constant dense<0.000000e+00> : vector<512x128xf32>
    %2 = tpu.matmul %0, %1, %cst {dimension_numbers = #tpu.dot_dimension_numbers<[1], [0], [0], [1], [0, 0, 1, 1], [], []>} : vector<512x128xbf16>, vector<128x128xbf16>, vector<512x128xf32> -> vector<512x128xf32>
    %3 = math.tanh %2 : vector<512x128xf32>
    %c0_3 = arith.constant 0 : index
    %c0_4 = arith.constant 0 : index
    %4 = vector.load %arg3[%c0_3, %c0_4] : memref<512x128xf32, #tpu.memory_space<vmem>>, vector<512x128xf32>
    tpu.vector_store %arg3[%c0_3, %c0_4], %3 {strides = array<i32>} : memref<512x128xf32, #tpu.memory_space<vmem>>, vector<512x128xf32>,
    return
  }
  func.func @transform_0(%arg0: i32) -> (i32, i32) {
    %c0_i32 = arith.constant 0 : i32
    %c0_i32_0 = arith.constant 0 : i32
    return %arg0, %c0_i32 : i32, i32
  }
  func.func @transform_1(%arg0: i32) -> (i32, i32) {
    %c0_i32 = arith.constant 0 : i32
    %c0_i32_0 = arith.constant 0 : i32
    %c0_i32_1 = arith.constant 0 : i32
    return %c0_i32, %c0_i32_0 : i32, i32
  }
  func.func @transform_2(%arg0: i32) -> (i32, i32) {
    %c0_i32 = arith.constant 0 : i32
    %c0_i32_0 = arith.constant 0 : i32
    return %arg0, %c0_i32 : i32, i32
  }
}

</mosaic_0001>

<llo_original>
// kernel: generator_forward.10
$region0: #{generator_forward.10}
  #allocation0 [shape = 'u32[]', space=smem, size = 0x4, offset = 0x4, fixed_abs, tag = 'smem constant byte address 0x4 - core index']
  #allocation1 [shape = 'u32[144,128]{1,0:T(1,128)}', space=vmem, size = 0x12000, scoped, tag = 'internal scratch']
  %s0 = inlined_call_operand.vmem [shape: bf16[32,128], index: 0, kind: input, shape index: {}]
  %s1 = inlined_call_operand.vmem [shape: f32[1,128], index: 1, kind: input, shape index: {}]
  %s2 = inlined_call_operand.vmem [shape: f32[1,128], index: 2, kind: input, shape index: {}]
  %s3 = inlined_call_operand.vmem [shape: bf16[32,128], index: 3, kind: output, shape index: {}]
  %s4 = sld [smem:[#allocation0]]
  $region22: #{generator_forward.10} parent=0
    _
  %s6 = ssub.s32 1, %s4
  %s7 = scalar_select 0, %s6, %s4
  // Predicated region
  $region2: #{generator_forward.10} parent=0 // pred_check
    _
  $region3: #{generator_forward.10} parent=0 // pred_check_branch
    %9 = sbr.rel (0) target = $region5
  $region4: #{generator_forward.10} parent=0 // pred_region
    _
  $region5: #{generator_forward.10} parent=0 // pred_fallthru
    _
  // Predicated region
  $region6: #{generator_forward.10} parent=0 // pred_check
    _
  $region7: #{generator_forward.10} parent=0 // pred_check_branch
    %11 = sbr.rel (0) target = $region9
  $region8: #{generator_forward.10} parent=0 // pred_region
    _
  $region9: #{generator_forward.10} parent=0 // pred_fallthru
    _
  // Predicated region
  $region10: #{generator_forward.10} parent=0 // pred_check
    _
  $region11: #{generator_forward.10} parent=0 // pred_check_branch
    %13 = sbr.rel (0) target = $region13
  $region12: #{generator_forward.10} parent=0 // pred_region
    _
  $region13: #{generator_forward.10} parent=0 // pred_fallthru
    _
  %v14 = vld [vmem:[%s0] sm:$0xf]
  %v15 = vld [vmem:[%s0 + $0x4] sm:$0xf]
  %v16 = vld [vmem:[%s0 + $0x8] sm:$0xf]
  %v17 = vld [vmem:[%s0 + $0xc] sm:$0xf]
  %v18 = vunpack.c.l.bf16 %v14
  %v19 = vunpack.c.l.bf16 %v15
  %v20 = vunpack.c.l.bf16 %v16
  %v21 = vunpack.c.l.bf16 %v17
  %v22 = vld [vmem:[%s1] sm:$0x1]
  %v24 = vlaneseq
  %v25 = vshrl.u32 %v24, 7
  %v26 = vsub.s32 0, %v25
  %v27 = vrot.slane %v22, %v26
  %v29 = vmul.f32 %v18, %v27
  %v30 = vmul.f32 %v19, %v27
  %v31 = vmul.f32 %v20, %v27
  %v32 = vmul.f32 %v21, %v27
  %v33 = vld [vmem:[%s2] sm:$0x1]
  %v35 = vlaneseq
  %v36 = vshrl.u32 %v35, 7
  %v37 = vsub.s32 0, %v36
  %v38 = vrot.slane %v33, %v37
  %v40 = vadd.f32 %v29, %v38
  %v41 = vadd.f32 %v30, %v38
  %v42 = vadd.f32 %v31, %v38
  %v43 = vadd.f32 %v32, %v38
  %v44 = vmax.f32 %v40, 0.0
  %v45 = vmax.f32 %v41, 0.0
  %v46 = vmax.f32 %v42, 0.0
  %v47 = vmax.f32 %v43, 0.0
  %v48 = vpack.c.bf16 %v45, %v44
  %v49 = vpack.c.bf16 %v47, %v46
  %v52 = vunpack.c.l.b16 %v48
  %v53 = vunpack.c.h.b16 %v48
  %v54 = vunpack.c.l.b16 %v49
  %v55 = vunpack.c.h.b16 %v49
  %v56 = vpack.c.b16 %v52, %v52
  %v57 = vpack.c.b16 %v53, %v53
  %v58 = vpack.c.b16 %v54, %v54
  %v59 = vpack.c.b16 %v55, %v55
  %64 = vst [vmem:[%s3] sm:$0xf] %v56
  %65 = vst [vmem:[%s3 + $0x4] sm:$0xf] %v57
  %66 = vst [vmem:[%s3 + $0x8] sm:$0xf] %v58
  %67 = vst [vmem:[%s3 + $0xc] sm:$0xf] %v59
  // Predicated region
  $region14: #{generator_forward.10} parent=0 // pred_check
    _
  $region15: #{generator_forward.10} parent=0 // pred_check_branch
    %69 = sbr.rel (0) target = $region17
  $region16: #{generator_forward.10} parent=0 // pred_region
    _
  $region17: #{generator_forward.10} parent=0 // pred_fallthru
    _
  // Predicated region
  $region18: #{generator_forward.10} parent=0 // pred_check
    _
  $region19: #{generator_forward.10} parent=0 // pred_check_branch
    %71 = sbr.rel (0) target = $region21
  $region20: #{generator_forward.10} parent=0 // pred_region
    _
  $region21: #{generator_forward.10} parent=0 // pred_fallthru
    _

// kernel: generator_forward.9
$region0: #{generator_forward.9}
  #allocation0 [shape = 'u32[]', space=smem, size = 0x4, offset = 0x4, fixed_abs, tag = 'smem constant byte address 0x4 - core index']
  #allocation1 [shape = 'u32[144,128]{1,0:T(1,128)}', space=vmem, size = 0x12000, scoped, tag = 'internal scratch']
  %s0 = inlined_call_operand.vmem [shape: bf16[32,256], index: 0, kind: input, shape index: {}]
  %s1 = inlined_call_operand.hbm [shape: bf16[256,128], index: 1, kind: input, shape index: {}]
  %s2 = inlined_call_operand.vmem [shape: bf16[32,128], index: 2, kind: output, shape index: {0}]
  %s3 = inlined_call_operand.vmem [shape: f32[8,128], index: 3, kind: output, shape index: {1}]
  %4 = xla_tuple %s2, %s3
  %s5 = sld [smem:[#allocation0]]
  $region30: #{generator_forward.9} parent=0
    _
  %s7 = ssub.s32 1, %s5
  %s8 = scalar_select 0, %s7, %s5
  $region1: #{generator_forward.9} parent=0
    #allocation2 [shape = 'u8[65536]{0}', space=vmem, size = 0x10000, scoped, tag = 'input window, operand 1, single buffered']
    #allocation3 [shape = 's32[1]{0}', space=sflag, size = 0x4, scoped, tag = 'scoped memory for generator_forward.9']
    %9 = vsyncpa [#allocation3], 0
    // Predicated region
    $region2: #{generator_forward.9} parent=1 // pred_check
      _
    $region3: #{generator_forward.9} parent=1 // pred_check_branch
      %11 = sbr.rel (0) target = $region5
    $region4: #{generator_forward.9} parent=1 // pred_region
      _
    $region5: #{generator_forward.9} parent=1 // pred_fallthru
      _
    // Predicated region
    $region6: #{generator_forward.9} parent=1 // pred_check
      _
    $region7: #{generator_forward.9} parent=1 // pred_check_branch
      %13 = sbr.rel (0) target = $region9
    $region8: #{generator_forward.9} parent=1 // pred_region
      %s15 = ssub.s32 2048, 2048
      %16 = vsyncadd [#allocation3], %s15
      %s17 = sshll.u32 [#allocation2], 4
      %s18 = int_to_ptr.vmem [resolvable:$true] %s17
      %23 = dma.hbm_to_vmem [thread:$0]  %s1, 2048, %s18, [#allocation3], 64, 64, 4
    $region9: #{generator_forward.9} parent=1 // pred_fallthru
      _
    // Predicated region
    $region10: #{generator_forward.9} parent=1 // pred_check
      _
    $region11: #{generator_forward.9} parent=1 // pred_check_branch
      %25 = sbr.rel (0) target = $region13
    $region12: #{generator_forward.9} parent=1 // pred_region
      %26 = dma.done [#allocation3], 2048
    $region13: #{generator_forward.9} parent=1 // pred_fallthru
      _
    %v28 = vld [vmem:[%s0] sm:$0xff]
    %v29 = vld [vmem:[%s0 + $0x8] sm:$0xff]
    %v30 = vld [vmem:[%s0 + $0x10] sm:$0xff]
    %v31 = vld [vmem:[%s0 + $0x18] sm:$0xff]
    %v32 = vld [vmem:[#allocation2] sm:$0xf]
    %v33 = vld [vmem:[#allocation2 + $0x4] sm:$0xf]
    %v34 = vld [vmem:[#allocation2 + $0x8] sm:$0xf]
    %v35 = vld [vmem:[#allocation2 + $0xc] sm:$0xf]
    %v36 = vld [vmem:[#allocation2 + $0x10] sm:$0xf]
    %v37 = vld [vmem:[#allocation2 + $0x14] sm:$0xf]
    %v38 = vld [vmem:[#allocation2 + $0x18] sm:$0xf]
    %v39 = vld [vmem:[#allocation2 + $0x1c] sm:$0xf]
    %v40 = vld [vmem:[#allocation2 + $0x20] sm:$0xf]
    %v41 = vld [vmem:[#allocation2 + $0x24] sm:$0xf]
    %v42 = vld [vmem:[#allocation2 + $0x28] sm:$0xf]
    %v43 = vld [vmem:[#allocation2 + $0x2c] sm:$0xf]
    %v44 = vld [vmem:[#allocation2 + $0x30] sm:$0xf]
    %v45 = vld [vmem:[#allocation2 + $0x34] sm:$0xf]
    %v46 = vld [vmem:[#allocation2 + $0x38] sm:$0xf]
    %v47 = vld [vmem:[#allocation2 + $0x3c] sm:$0xf]
    %v48 = vld [vmem:[#allocation2 + $0x40] sm:$0xf]
    %v49 = vld [vmem:[#allocation2 + $0x44] sm:$0xf]
    %v50 = vld [vmem:[#allocation2 + $0x48] sm:$0xf]
    %v51 = vld [vmem:[#allocation2 + $0x4c] sm:$0xf]
    %v52 = vld [vmem:[#allocation2 + $0x50] sm:$0xf]
    %v53 = vld [vmem:[#allocation2 + $0x54] sm:$0xf]
    %v54 = vld [vmem:[#allocation2 + $0x58] sm:$0xf]
    %v55 = vld [vmem:[#allocation2 + $0x5c] sm:$0xf]
    %v56 = vld [vmem:[#allocation2 + $0x60] sm:$0xf]
    %v57 = vld [vmem:[#allocation2 + $0x64] sm:$0xf]
    %v58 = vld [vmem:[#allocation2 + $0x68] sm:$0xf]
    %v59 = vld [vmem:[#allocation2 + $0x6c] sm:$0xf]
    %v60 = vld [vmem:[#allocation2 + $0x70] sm:$0xf]
    %v61 = vld [vmem:[#allocation2 + $0x74] sm:$0xf]
    %v62 = vld [vmem:[#allocation2 + $0x78] sm:$0xf]
    %v63 = vld [vmem:[#allocation2 + $0x7c] sm:$0xf]
    %v68 = vunpack.c.l.b16 %v28
    %v69 = vunpack.c.h.b16 %v28
    %v70 = vunpack.c.l.b16 %v29
    %v71 = vunpack.c.h.b16 %v29
    %v72 = vunpack.c.l.b16 %v30
    %v73 = vunpack.c.h.b16 %v30
    %v74 = vunpack.c.l.b16 %v31
    %v75 = vunpack.c.h.b16 %v31
    %v76 = vpack.c.b16 %v70, %v68
    %v77 = vpack.c.b16 %v71, %v69
    %v78 = vpack.c.b16 %v74, %v72
    %v79 = vpack.c.b16 %v75, %v73
    %v116 = vunpack.c.l.b16 %v32
    %v117 = vunpack.c.l.b16 %v33
    %v118 = vunpack.c.l.b16 %v34
    %v119 = vunpack.c.l.b16 %v35
    %v120 = vunpack.c.l.b16 %v36
    %v121 = vunpack.c.l.b16 %v37
    %v122 = vunpack.c.l.b16 %v38
    %v123 = vunpack.c.l.b16 %v39
    %v124 = vunpack.c.l.b16 %v40
    %v125 = vunpack.c.l.b16 %v41
    %v126 = vunpack.c.l.b16 %v42
    %v127 = vunpack.c.l.b16 %v43
    %v128 = vunpack.c.l.b16 %v44
    %v129 = vunpack.c.l.b16 %v45
    %v130 = vunpack.c.l.b16 %v46
    %v131 = vunpack.c.l.b16 %v47
    %v132 = vunpack.c.l.b16 %v48
    %v133 = vunpack.c.l.b16 %v49
    %v134 = vunpack.c.l.b16 %v50
    %v135 = vunpack.c.l.b16 %v51
    %v136 = vunpack.c.l.b16 %v52
    %v137 = vunpack.c.l.b16 %v53
    %v138 = vunpack.c.l.b16 %v54
    %v139 = vunpack.c.l.b16 %v55
    %v140 = vunpack.c.l.b16 %v56
    %v141 = vunpack.c.l.b16 %v57
    %v142 = vunpack.c.l.b16 %v58
    %v143 = vunpack.c.l.b16 %v59
    %v144 = vunpack.c.l.b16 %v60
    %v145 = vunpack.c.l.b16 %v61
    %v146 = vunpack.c.l.b16 %v62
    %v147 = vunpack.c.l.b16 %v63
    %v148 = vpack.c.b16 %v117, %v116
    %v149 = vpack.c.b16 %v119, %v118
    %v150 = vpack.c.b16 %v121, %v120
    %v151 = vpack.c.b16 %v123, %v122
    %v152 = vpack.c.b16 %v125, %v124
    %v153 = vpack.c.b16 %v127, %v126
    %v154 = vpack.c.b16 %v129, %v128
    %v155 = vpack.c.b16 %v131, %v130
    %v156 = vpack.c.b16 %v133, %v132
    %v157 = vpack.c.b16 %v135, %v134
    %v158 = vpack.c.b16 %v137, %v136
    %v159 = vpack.c.b16 %v139, %v138
    %v160 = vpack.c.b16 %v141, %v140
    %v161 = vpack.c.b16 %v143, %v142
    %v162 = vpack.c.b16 %v145, %v144
    %v163 = vpack.c.b16 %v147, %v146
    %180 = vmatprep.subr.bf16.mxu0 0
    %181 = vmatpush1.bf16.msra.mxu0 %v148
    %182 = vmatprep.subr.bf16.mxu0 0
    %183 = vmatpush1.bf16.msra.mxu0 %v149
    %184 = vmatprep.subr.bf16.mxu0 0
    %185 = vmatpush1.bf16.msra.mxu0 %v150
    %186 = vmatprep.subr.bf16.mxu0 0
    %187 = vmatpush1.bf16.msra.mxu0 %v151
    %188 = vmatprep.subr.bf16.mxu0 0
    %189 = vmatpush1.bf16.msra.mxu0 %v152
    %190 = vmatprep.subr.bf16.mxu0 0
    %191 = vmatpush1.bf16.msra.mxu0 %v153
    %192 = vmatprep.subr.bf16.mxu0 0
    %193 = vmatpush1.bf16.msra.mxu0 %v154
    %194 = vmatprep.subr.bf16.mxu0 0
    %195 = vmatpush1.bf16.msra.mxu0 %v155
    %196 = vmatprep.subr.bf16.mxu0 0
    %197 = vmatpush1.bf16.msra.mxu0 %v156
    %198 = vmatprep.subr.bf16.mxu0 0
    %199 = vmatpush1.bf16.msra.mxu0 %v157
    %200 = vmatprep.subr.bf16.mxu0 0
    %201 = vmatpush1.bf16.msra.mxu0 %v158
    %202 = vmatprep.subr.bf16.mxu0 0
    %203 = vmatpush1.bf16.msra.mxu0 %v159
    %204 = vmatprep.subr.bf16.mxu0 0
    %205 = vmatpush1.bf16.msra.mxu0 %v160
    %206 = vmatprep.subr.bf16.mxu0 0
    %207 = vmatpush1.bf16.msra.mxu0 %v161
    %208 = vmatprep.subr.bf16.mxu0 0
    %209 = vmatpush1.bf16.msra.mxu0 %v162
    %210 = vmatprep.subr.bf16.mxu0 0
    %211 = vmatpush1.bf16.msra.mxu0 %v163
    %212 = vmatprep.mubr.bf16.mxu0 %v77
    %213 = vmatmul.mubr.bf16.gmra.mrb[0].mxu0 %v76
    %v214 = vpop.f32.mrb[0].mxu0
    %v215 = vadd.f32 0.0, %v214
    %v216 = vpop.f32.mrb[0].mxu0
    %v217 = vpop.f32.mrb[0].mxu0
    %v218 = vadd.f32 0.0, %v217
    %v219 = vpop.f32.mrb[0].mxu0
    %220 = vmatprep.mubr.bf16.mxu0 %v79
    %221 = vmatmul.mubr.bf16.gmra.mrb[0].mxu0 %v78
    %v222 = vpop.f32.mrb[0].mxu0
    %v223 = vadd.f32 0.0, %v222
    %v224 = vpop.f32.mrb[0].mxu0
    %v225 = vpop.f32.mrb[0].mxu0
    %v226 = vadd.f32 0.0, %v225
    %v227 = vpop.f32.mrb[0].mxu0
    %228 = vdwg.mxu0
    %v229 = vpack.c.bf16 %v218, %v215
    %v230 = vpack.c.bf16 %v226, %v223
    %v233 = vunpack.c.l.b16 %v229
    %v234 = vunpack.c.h.b16 %v229
    %v235 = vunpack.c.l.b16 %v230
    %v236 = vunpack.c.h.b16 %v230
    %v237 = vpack.c.b16 %v233, %v233
    %v238 = vpack.c.b16 %v234, %v234
    %v239 = vpack.c.b16 %v235, %v235
    %v240 = vpack.c.b16 %v236, %v236
    %245 = vst [vmem:[%s2] sm:$0xf] %v237
    %246 = vst [vmem:[%s2 + $0x4] sm:$0xf] %v238
    %247 = vst [vmem:[%s2 + $0x8] sm:$0xf] %v239
    %248 = vst [vmem:[%s2 + $0xc] sm:$0xf] %v240
    %v249 = vadd.f32 %v215, %v218
    %v250 = vadd.f32 %v249, %v223
    %v251 = vadd.f32 %v250, %v226
    %v252 = vrot.slane %v251, 4
    %v253 = vadd.f32 %v251, %v252
    %v254 = vrot.slane %v253, 2
    %v255 = vadd.f32 %v253, %v254
    %v256 = vrot.slane %v255, 1
    %v257 = vadd.f32 %v255, %v256
    %v258 = vmul.f32 %v215, %v215
    %v259 = vmul.f32 %v218, %v218
    %v260 = vmul.f32 %v223, %v223
    %v261 = vmul.f32 %v226, %v226
    %v262 = vadd.f32 %v258, %v259
    %v263 = vadd.f32 %v262, %v260
    %v264 = vadd.f32 %v263, %v261
    %v265 = vrot.slane %v264, 4
    %v266 = vadd.f32 %v264, %v265
    %v267 = vrot.slane %v266, 2
    %v268 = vadd.f32 %v266, %v267
    %v269 = vrot.slane %v268, 1
    %v270 = vadd.f32 %v268, %v269
    %v271 = vlaneseq
    %v272 = vshrl.u32 %v271, 7
    %vm273 = vcmp.eq.s32.totalorder %v272, 0
    %v274 = vsel %vm273, %v257, 0.0
    %vm275 = vcmp.eq.s32.totalorder %v272, 1
    %v276 = vsel %vm275, %v270, 0.0
    %v277 = vadd.f32 %v274, %v276
    %278 = vst [vmem:[%s3] sm:$0xff] %v277
    // Predicated region
    $region14: #{generator_forward.9} parent=1 // pred_check
      _
    $region15: #{generator_forward.9} parent=1 // pred_check_branch
      %280 = sbr.rel (0) target = $region17
    $region16: #{generator_forward.9} parent=1 // pred_region
      _
    $region17: #{generator_forward.9} parent=1 // pred_fallthru
      _
    // Predicated region
    $region18: #{generator_forward.9} parent=1 // pred_check
      _
    $region19: #{generator_forward.9} parent=1 // pred_check_branch
      %282 = sbr.rel (0) target = $region21
    $region20: #{generator_forward.9} parent=1 // pred_region
      _
    $region21: #{generator_forward.9} parent=1 // pred_fallthru
      _
    // Predicated region
    $region22: #{generator_forward.9} parent=1 // pred_check
      _
    $region23: #{generator_forward.9} parent=1 // pred_check_branch
      %284 = sbr.rel (0) target = $region25
    $region24: #{generator_forward.9} parent=1 // pred_region
      _
    $region25: #{generator_forward.9} parent=1 // pred_fallthru
      _
    // Predicated region
    $region26: #{generator_forward.9} parent=1 // pred_check
      _
    $region27: #{generator_forward.9} parent=1 // pred_check_branch
      %286 = sbr.rel (0) target = $region29
    $region28: #{generator_forward.9} parent=1 // pred_region
      _
    $region29: #{generator_forward.9} parent=1 // pred_fallthru
      _
    %287 = vsyncpa [#allocation3], 1

// kernel: generator_forward.12
$region0: #{generator_forward.12}
  #allocation0 [shape = 'u32[]', space=smem, size = 0x4, offset = 0x4, fixed_abs, tag = 'smem constant byte address 0x4 - core index']
  #allocation1 [shape = 'u32[144,128]{1,0:T(1,128)}', space=vmem, size = 0x12000, scoped, tag = 'internal scratch']
  %s0 = inlined_call_operand.vmem [shape: bf16[128,128], index: 0, kind: input, shape index: {}]
  %s1 = inlined_call_operand.vmem [shape: f32[1,128], index: 1, kind: input, shape index: {}]
  %s2 = inlined_call_operand.vmem [shape: f32[1,128], index: 2, kind: input, shape index: {}]
  %s3 = inlined_call_operand.vmem [shape: bf16[128,128], index: 3, kind: output, shape index: {}]
  %s4 = sld [smem:[#allocation0]]
  $region22: #{generator_forward.12} parent=0
    _
  %s6 = ssub.s32 1, %s4
  %s7 = scalar_select 0, %s6, %s4
  // Predicated region
  $region2: #{generator_forward.12} parent=0 // pred_check
    _
  $region3: #{generator_forward.12} parent=0 // pred_check_branch
    %9 = sbr.rel (0) target = $region5
  $region4: #{generator_forward.12} parent=0 // pred_region
    _
  $region5: #{generator_forward.12} parent=0 // pred_fallthru
    _
  // Predicated region
  $region6: #{generator_forward.12} parent=0 // pred_check
    _
  $region7: #{generator_forward.12} parent=0 // pred_check_branch
    %11 = sbr.rel (0) target = $region9
  $region8: #{generator_forward.12} parent=0 // pred_region
    _
  $region9: #{generator_forward.12} parent=0 // pred_fallthru
    _
  // Predicated region
  $region10: #{generator_forward.12} parent=0 // pred_check
    _
  $region11: #{generator_forward.12} parent=0 // pred_check_branch
    %13 = sbr.rel (0) target = $region13
  $region12: #{generator_forward.12} parent=0 // pred_region
    _
  $region13: #{generator_forward.12} parent=0 // pred_fallthru
    _
  %v14 = vld [vmem:[%s0] sm:$0xf]
  %v15 = vld [vmem:[%s0 + $0x4] sm:$0xf]
  %v16 = vld [vmem:[%s0 + $0x8] sm:$0xf]
  %v17 = vld [vmem:[%s0 + $0xc] sm:$0xf]
  %v18 = vld [vmem:[%s0 + $0x10] sm:$0xf]
  %v19 = vld [vmem:[%s0 + $0x14] sm:$0xf]
  %v20 = vld [vmem:[%s0 + $0x18] sm:$0xf]
  %v21 = vld [vmem:[%s0 + $0x1c] sm:$0xf]
  %v22 = vld [vmem:[%s0 + $0x20] sm:$0xf]
  %v23 = vld [vmem:[%s0 + $0x24] sm:$0xf]
  %v24 = vld [vmem:[%s0 + $0x28] sm:$0xf]
  %v25 = vld [vmem:[%s0 + $0x2c] sm:$0xf]
  %v26 = vld [vmem:[%s0 + $0x30] sm:$0xf]
  %v27 = vld [vmem:[%s0 + $0x34] sm:$0xf]
  %v28 = vld [vmem:[%s0 + $0x38] sm:$0xf]
  %v29 = vld [vmem:[%s0 + $0x3c] sm:$0xf]
  %v30 = vunpack.c.l.bf16 %v14
  %v31 = vunpack.c.l.bf16 %v15
  %v32 = vunpack.c.l.bf16 %v16
  %v33 = vunpack.c.l.bf16 %v17
  %v34 = vunpack.c.l.bf16 %v18
  %v35 = vunpack.c.l.bf16 %v19
  %v36 = vunpack.c.l.bf16 %v20
  %v37 = vunpack.c.l.bf16 %v21
  %v38 = vunpack.c.l.bf16 %v22
  %v39 = vunpack.c.l.bf16 %v23
  %v40 = vunpack.c.l.bf16 %v24
  %v41 = vunpack.c.l.bf16 %v25
  %v42 = vunpack.c.l.bf16 %v26
  %v43 = vunpack.c.l.bf16 %v27
  %v44 = vunpack.c.l.bf16 %v28
  %v45 = vunpack.c.l.bf16 %v29
  %v46 = vld [vmem:[%s1] sm:$0x1]
  %v48 = vlaneseq
  %v49 = vshrl.u32 %v48, 7
  %v50 = vsub.s32 0, %v49
  %v51 = vrot.slane %v46, %v50
  %v53 = vmul.f32 %v30, %v51
  %v54 = vmul.f32 %v31, %v51
  %v55 = vmul.f32 %v32, %v51
  %v56 = vmul.f32 %v33, %v51
  %v57 = vmul.f32 %v34, %v51
  %v58 = vmul.f32 %v35, %v51
  %v59 = vmul.f32 %v36, %v51
  %v60 = vmul.f32 %v37, %v51
  %v61 = vmul.f32 %v38, %v51
  %v62 = vmul.f32 %v39, %v51
  %v63 = vmul.f32 %v40, %v51
  %v64 = vmul.f32 %v41, %v51
  %v65 = vmul.f32 %v42, %v51
  %v66 = vmul.f32 %v43, %v51
  %v67 = vmul.f32 %v44, %v51
  %v68 = vmul.f32 %v45, %v51
  %v69 = vld [vmem:[%s2] sm:$0x1]
  %v71 = vlaneseq
  %v72 = vshrl.u32 %v71, 7
  %v73 = vsub.s32 0, %v72
  %v74 = vrot.slane %v69, %v73
  %v76 = vadd.f32 %v53, %v74
  %v77 = vadd.f32 %v54, %v74
  %v78 = vadd.f32 %v55, %v74
  %v79 = vadd.f32 %v56, %v74
  %v80 = vadd.f32 %v57, %v74
  %v81 = vadd.f32 %v58, %v74
  %v82 = vadd.f32 %v59, %v74
  %v83 = vadd.f32 %v60, %v74
  %v84 = vadd.f32 %v61, %v74
  %v85 = vadd.f32 %v62, %v74
  %v86 = vadd.f32 %v63, %v74
  %v87 = vadd.f32 %v64, %v74
  %v88 = vadd.f32 %v65, %v74
  %v89 = vadd.f32 %v66, %v74
  %v90 = vadd.f32 %v67, %v74
  %v91 = vadd.f32 %v68, %v74
  %v92 = vmax.f32 %v76, 0.0
  %v93 = vmax.f32 %v77, 0.0
  %v94 = vmax.f32 %v78, 0.0
  %v95 = vmax.f32 %v79, 0.0
  %v96 = vmax.f32 %v80, 0.0
  %v97 = vmax.f32 %v81, 0.0
  %v98 = vmax.f32 %v82, 0.0
  %v99 = vmax.f32 %v83, 0.0
  %v100 = vmax.f32 %v84, 0.0
  %v101 = vmax.f32 %v85, 0.0
  %v102 = vmax.f32 %v86, 0.0
  %v103 = vmax.f32 %v87, 0.0
  %v104 = vmax.f32 %v88, 0.0
  %v105 = vmax.f32 %v89, 0.0
  %v106 = vmax.f32 %v90, 0.0
  %v107 = vmax.f32 %v91, 0.0
  %v108 = vpack.c.bf16 %v93, %v92
  %v109 = vpack.c.bf16 %v95, %v94
  %v110 = vpack.c.bf16 %v97, %v96
  %v111 = vpack.c.bf16 %v99, %v98
  %v112 = vpack.c.bf16 %v101, %v100
  %v113 = vpack.c.bf16 %v103, %v102
  %v114 = vpack.c.bf16 %v105, %v104
  %v115 = vpack.c.bf16 %v107, %v106
  %v124 = vunpack.c.l.b16 %v108
  %v125 = vunpack.c.h.b16 %v108
  %v126 = vunpack.c.l.b16 %v109
  %v127 = vunpack.c.h.b16 %v109
  %v128 = vunpack.c.l.b16 %v110
  %v129 = vunpack.c.h.b16 %v110
  %v130 = vunpack.c.l.b16 %v111
  %v131 = vunpack.c.h.b16 %v111
  %v132 = vunpack.c.l.b16 %v112
  %v133 = vunpack.c.h.b16 %v112
  %v134 = vunpack.c.l.b16 %v113
  %v135 = vunpack.c.h.b16 %v113
  %v136 = vunpack.c.l.b16 %v114
  %v137 = vunpack.c.h.b16 %v114
  %v138 = vunpack.c.l.b16 %v115
  %v139 = vunpack.c.h.b16 %v115
  %v140 = vpack.c.b16 %v124, %v124
  %v141 = vpack.c.b16 %v125, %v125
  %v142 = vpack.c.b16 %v126, %v126
  %v143 = vpack.c.b16 %v127, %v127
  %v144 = vpack.c.b16 %v128, %v128
  %v145 = vpack.c.b16 %v129, %v129
  %v146 = vpack.c.b16 %v130, %v130
  %v147 = vpack.c.b16 %v131, %v131
  %v148 = vpack.c.b16 %v132, %v132
  %v149 = vpack.c.b16 %v133, %v133
  %v150 = vpack.c.b16 %v134, %v134
  %v151 = vpack.c.b16 %v135, %v135
  %v152 = vpack.c.b16 %v136, %v136
  %v153 = vpack.c.b16 %v137, %v137
  %v154 = vpack.c.b16 %v138, %v138
  %v155 = vpack.c.b16 %v139, %v139
  %172 = vst [vmem:[%s3] sm:$0xf] %v140
  %173 = vst [vmem:[%s3 + $0x4] sm:$0xf] %v141
  %174 = vst [vmem:[%s3 + $0x8] sm:$0xf] %v142
  %175 = vst [vmem:[%s3 + $0xc] sm:$0xf] %v143
  %176 = vst [vmem:[%s3 + $0x10] sm:$0xf] %v144
  %177 = vst [vmem:[%s3 + $0x14] sm:$0xf] %v145
  %178 = vst [vmem:[%s3 + $0x18] sm:$0xf] %v146
  %179 = vst [vmem:[%s3 + $0x1c] sm:$0xf] %v147
  %180 = vst [vmem:[%s3 + $0x20] sm:$0xf] %v148
  %181 = vst [vmem:[%s3 + $0x24] sm:$0xf] %v149
  %182 = vst [vmem:[%s3 + $0x28] sm:$0xf] %v150
  %183 = vst [vmem:[%s3 + $0x2c] sm:$0xf] %v151
  %184 = vst [vmem:[%s3 + $0x30] sm:$0xf] %v152
  %185 = vst [vmem:[%s3 + $0x34] sm:$0xf] %v153
  %186 = vst [vmem:[%s3 + $0x38] sm:$0xf] %v154
  %187 = vst [vmem:[%s3 + $0x3c] sm:$0xf] %v155
  // Predicated region
  $region14: #{generator_forward.12} parent=0 // pred_check
    _
  $region15: #{generator_forward.12} parent=0 // pred_check_branch
    %189 = sbr.rel (0) target = $region17
  $region16: #{generator_forward.12} parent=0 // pred_region
    _
  $region17: #{generator_forward.12} parent=0 // pred_fallthru
    _
  // Predicated region
  $region18: #{generator_forward.12} parent=0 // pred_check
    _
  $region19: #{generator_forward.12} parent=0 // pred_check_branch
    %191 = sbr.rel (0) target = $region21
  $region20: #{generator_forward.12} parent=0 // pred_region
    _
  $region21: #{generator_forward.12} parent=0 // pred_fallthru
    _

// kernel: generator_forward.11
$region0: #{generator_forward.11}
  #allocation0 [shape = 'u32[]', space=smem, size = 0x4, offset = 0x4, fixed_abs, tag = 'smem constant byte address 0x4 - core index']
  #allocation1 [shape = 'u32[144,128]{1,0:T(1,128)}', space=vmem, size = 0x12000, scoped, tag = 'internal scratch']
  %s0 = inlined_call_operand.vmem [shape: bf16[128,1024], index: 0, kind: input, shape index: {}]
  %s1 = inlined_call_operand.hbm [shape: bf16[1024,128], index: 1, kind: input, shape index: {}]
  %s2 = inlined_call_operand.vmem [shape: bf16[128,128], index: 2, kind: output, shape index: {0}]
  %s3 = inlined_call_operand.vmem [shape: f32[8,128], index: 3, kind: output, shape index: {1}]
  %4 = xla_tuple %s2, %s3
  %s5 = sld [smem:[#allocation0]]
  $region30: #{generator_forward.11} parent=0
    _
  %s7 = ssub.s32 1, %s5
  %s8 = scalar_select 0, %s7, %s5
  $region1: #{generator_forward.11} parent=0
    #allocation2 [shape = 'u8[262144]{0}', space=vmem, size = 0x40000, scoped, tag = 'input window, operand 1, single buffered']
    #allocation3 [shape = 's32[1]{0}', space=sflag, size = 0x4, scoped, tag = 'scoped memory for generator_forward.11']
    %9 = vsyncpa [#allocation3], 0
    // Predicated region
    $region2: #{generator_forward.11} parent=1 // pred_check
      _
    $region3: #{generator_forward.11} parent=1 // pred_check_branch
      %11 = sbr.rel (0) target = $region5
    $region4: #{generator_forward.11} parent=1 // pred_region
      _
    $region5: #{generator_forward.11} parent=1 // pred_fallthru
      _
    // Predicated region
    $region6: #{generator_forward.11} parent=1 // pred_check
      _
    $region7: #{generator_forward.11} parent=1 // pred_check_branch
      %13 = sbr.rel (0) target = $region9
    $region8: #{generator_forward.11} parent=1 // pred_region
      %s15 = ssub.s32 8192, 8192
      %16 = vsyncadd [#allocation3], %s15
      %s17 = sshll.u32 [#allocation2], 4
      %s18 = int_to_ptr.vmem [resolvable:$true] %s17
      %23 = dma.hbm_to_vmem [thread:$0]  %s1, 8192, %s18, [#allocation3], 64, 64, 4
    $region9: #{generator_forward.11} parent=1 // pred_fallthru
      _
    // Predicated region
    $region10: #{generator_forward.11} parent=1 // pred_check
      _
    $region11: #{generator_forward.11} parent=1 // pred_check_branch
      %25 = sbr.rel (0) target = $region13
    $region12: #{generator_forward.11} parent=1 // pred_region
      %26 = dma.done [#allocation3], 8192
    $region13: #{generator_forward.11} parent=1 // pred_fallthru
      _
    %v28 = vld [vmem:[%s0] sm:$0xff]
    %v29 = vld [vmem:[%s0 + $0x8] sm:$0xff]
    %v30 = vld [vmem:[%s0 + $0x10] sm:$0xff]
    %v31 = vld [vmem:[%s0 + $0x18] sm:$0xff]
    %v32 = vld [vmem:[%s0 + $0x20] sm:$0xff]
    %v33 = vld [vmem:[%s0 + $0x28] sm:$0xff]
    %v34 = vld [vmem:[%s0 + $0x30] sm:$0xff]
    %v35 = vld [vmem:[%s0 + $0x38] sm:$0xff]
    %v36 = vld [vmem:[%s0 + $0x40] sm:$0xff]
    %v37 = vld [vmem:[%s0 + $0x48] sm:$0xff]
    %v38 = vld [vmem:[%s0 + $0x50] sm:$0xff]
    %v39 = vld [vmem:[%s0 + $0x58] sm:$0xff]
    %v40 = vld [vmem:[%s0 + $0x60] sm:$0xff]
    %v41 = vld [vmem:[%s0 + $0x68] sm:$0xff]
    %v42 = vld [vmem:[%s0 + $0x70] sm:$0xff]
    %v43 = vld [vmem:[%s0 + $0x78] sm:$0xff]
    %v44 = vld [vmem:[%s0 + $0x80] sm:$0xff]
    %v45 = vld [vmem:[%s0 + $0x88] sm:$0xff]
    %v46 = vld [vmem:[%s0 + $0x90] sm:$0xff]
    %v47 = vld [vmem:[%s0 + $0x98] sm:$0xff]
    %v48 = vld [vmem:[%s0 + $0xa0] sm:$0xff]
    %v49 = vld [vmem:[%s0 + $0xa8] sm:$0xff]
    %v50 = vld [vmem:[%s0 + $0xb0] sm:$0xff]
    %v51 = vld [vmem:[%s0 + $0xb8] sm:$0xff]
    %v52 = vld [vmem:[%s0 + $0xc0] sm:$0xff]
    %v53 = vld [vmem:[%s0 + $0xc8] sm:$0xff]
    %v54 = vld [vmem:[%s0 + $0xd0] sm:$0xff]
    %v55 = vld [vmem:[%s0 + $0xd8] sm:$0xff]
    %v56 = vld [vmem:[%s0 + $0xe0] sm:$0xff]
    %v57 = vld [vmem:[%s0 + $0xe8] sm:$0xff]
    %v58 = vld [vmem:[%s0 + $0xf0] sm:$0xff]
    %v59 = vld [vmem:[%s0 + $0xf8] sm:$0xff]
    %v60 = vld [vmem:[%s0 + $0x100] sm:$0xff]
    %v61 = vld [vmem:[%s0 + $0x108] sm:$0xff]
    %v62 = vld [vmem:[%s0 + $0x110] sm:$0xff]
    %v63 = vld [vmem:[%s0 + $0x118] sm:$0xff]
    %v64 = vld [vmem:[%s0 + $0x120] sm:$0xff]
    %v65 = vld [vmem:[%s0 + $0x128] sm:$0xff]
    %v66 = vld [vmem:[%s0 + $0x130] sm:$0xff]
    %v67 = vld [vmem:[%s0 + $0x138] sm:$0xff]
    %v68 = vld [vmem:[%s0 + $0x140] sm:$0xff]
    %v69 = vld [vmem:[%s0 + $0x148] sm:$0xff]
    %v70 = vld [vmem:[%s0 + $0x150] sm:$0xff]
    %v71 = vld [vmem:[%s0 + $0x158] sm:$0xff]
    %v72 = vld [vmem:[%s0 + $0x160] sm:$0xff]
    %v73 = vld [vmem:[%s0 + $0x168] sm:$0xff]
    %v74 = vld [vmem:[%s0 + $0x170] sm:$0xff]
    %v75 = vld [vmem:[%s0 + $0x178] sm:$0xff]
    %v76 = vld [vmem:[%s0 + $0x180] sm:$0xff]
    %v77 = vld [vmem:[%s0 + $0x188] sm:$0xff]
    %v78 = vld [vmem:[%s0 + $0x190] sm:$0xff]
    %v79 = vld [vmem:[%s0 + $0x198] sm:$0xff]
    %v80 = vld [vmem:[%s0 + $0x1a0] sm:$0xff]
    %v81 = vld [vmem:[%s0 + $0x1a8] sm:$0xff]
    %v82 = vld [vmem:[%s0 + $0x1b0] sm:$0xff]
    %v83 = vld [vmem:[%s0 + $0x1b8] sm:$0xff]
    %v84 = vld [vmem:[%s0 + $0x1c0] sm:$0xff]
    %v85 = vld [vmem:[%s0 + $0x1c8] sm:$0xff]
    %v86 = vld [vmem:[%s0 + $0x1d0] sm:$0xff]
    %v87 = vld [vmem:[%s0 + $0x1d8] sm:$0xff]
    %v88 = vld [vmem:[%s0 + $0x1e0] sm:$0xff]
    %v89 = vld [vmem:[%s0 + $0x1e8] sm:$0xff]
    %v90 = vld [vmem:[%s0 + $0x1f0] sm:$0xff]
    %v91 = vld [vmem:[%s0 + $0x1f8] sm:$0xff]
    %v92 = vld [vmem:[#allocation2] sm:$0xf]
    %v93 = vld [vmem:[#allocation2 + $0x4] sm:$0xf]
    %v94 = vld [vmem:[#allocation2 + $0x8] sm:$0xf]
    %v95 = vld [vmem:[#allocation2 + $0xc] sm:$0xf]
    %v96 = vld [vmem:[#allocation2 + $0x10] sm:$0xf]
    %v97 = vld [vmem:[#allocation2 + $0x14] sm:$0xf]
    %v98 = vld [vmem:[#allocation2 + $0x18] sm:$0xf]
    %v99 = vld [vmem:[#allocation2 + $0x1c] sm:$0xf]
    %v100 = vld [vmem:[#allocation2 + $0x20] sm:$0xf]
    %v101 = vld [vmem:[#allocation2 + $0x24] sm:$0xf]
    %v102 = vld [vmem:[#allocation2 + $0x28] sm:$0xf]
    %v103 = vld [vmem:[#allocation2 + $0x2c] sm:$0xf]
    %v104 = vld [vmem:[#allocation2 + $0x30] sm:$0xf]
    %v105 = vld [vmem:[#allocation2 + $0x34] sm:$0xf]
    %v106 = vld [vmem:[#allocation2 + $0x38] sm:$0xf]
    %v107 = vld [vmem:[#allocation2 + $0x3c] sm:$0xf]
    %v108 = vld [vmem:[#allocation2 + $0x40] sm:$0xf]
    %v109 = vld [vmem:[#allocation2 + $0x44] sm:$0xf]
    %v110 = vld [vmem:[#allocation2 + $0x48] sm:$0xf]
    %v111 = vld [vmem:[#allocation2 + $0x4c] sm:$0xf]
    %v112 = vld [vmem:[#allocation2 + $0x50] sm:$0xf]
    %v113 = vld [vmem:[#allocation2 + $0x54] sm:$0xf]
    %v114 = vld [vmem:[#allocation2 + $0x58] sm:$0xf]
    %v115 = vld [vmem:[#allocation2 + $0x5c] sm:$0xf]
    %v116 = vld [vmem:[#allocation2 + $0x60] sm:$0xf]
    %v117 = vld [vmem:[#allocation2 + $0x64] sm:$0xf]
    %v118 = vld [vmem:[#allocation2 + $0x68] sm:$0xf]
    %v119 = vld [vmem:[#allocation2 + $0x6c] sm:$0xf]
    %v120 = vld [vmem:[#allocation2 + $0x70] sm:$0xf]
    %v121 = vld [vmem:[#allocation2 + $0x74] sm:$0xf]
    %v122 = vld [vmem:[#allocation2 + $0x78] sm:$0xf]
    %v123 = vld [vmem:[#allocation2 + $0x7c] sm:$0xf]
    %v124 = vld [vmem:[#allocation2 + $0x80] sm:$0xf]
    %v125 = vld [vmem:[#allocation2 + $0x84] sm:$0xf]
    %v126 = vld [vmem:[#allocation2 + $0x88] sm:$0xf]
    %v127 = vld [vmem:[#allocation2 + $0x8c] sm:$0xf]
    %v128 = vld [vmem:[#allocation2 + $0x90] sm:$0xf]
    %v129 = vld [vmem:[#allocation2 + $0x94] sm:$0xf]
    %v130 = vld [vmem:[#allocation2 + $0x98] sm:$0xf]
    %v131 = vld [vmem:[#allocation2 + $0x9c] sm:$0xf]
    %v132 = vld [vmem:[#allocation2 + $0xa0] sm:$0xf]
    %v133 = vld [vmem:[#allocation2 + $0xa4] sm:$0xf]
    %v134 = vld [vmem:[#allocation2 + $0xa8] sm:$0xf]
    %v135 = vld [vmem:[#allocation2 + $0xac] sm:$0xf]
    %v136 = vld [vmem:[#allocation2 + $0xb0] sm:$0xf]
    %v137 = vld [vmem:[#allocation2 + $0xb4] sm:$0xf]
    %v138 = vld [vmem:[#allocation2 + $0xb8] sm:$0xf]
    %v139 = vld [vmem:[#allocation2 + $0xbc] sm:$0xf]
    %v140 = vld [vmem:[#allocation2 + $0xc0] sm:$0xf]
    %v141 = vld [vmem:[#allocation2 + $0xc4] sm:$0xf]
    %v142 = vld [vmem:[#allocation2 + $0xc8] sm:$0xf]
    %v143 = vld [vmem:[#allocation2 + $0xcc] sm:$0xf]
    %v144 = vld [vmem:[#allocation2 + $0xd0] sm:$0xf]
    %v145 = vld [vmem:[#allocation2 + $0xd4] sm:$0xf]
    %v146 = vld [vmem:[#allocation2 + $0xd8] sm:$0xf]
    %v147 = vld [vmem:[#allocation2 + $0xdc] sm:$0xf]
    %v148 = vld [vmem:[#allocation2 + $0xe0] sm:$0xf]
    %v149 = vld [vmem:[#allocation2 + $0xe4] sm:$0xf]
    %v150 = vld [vmem:[#allocation2 + $0xe8] sm:$0xf]
    %v151 = vld [vmem:[#allocation2 + $0xec] sm:$0xf]
    %v152 = vld [vmem:[#allocation2 + $0xf0] sm:$0xf]
    %v153 = vld [vmem:[#allocation2 + $0xf4] sm:$0xf]
    %v154 = vld [vmem:[#allocation2 + $0xf8] sm:$0xf]
    %v155 = vld [vmem:[#allocation2 + $0xfc] sm:$0xf]
    %v156 = vld [vmem:[#allocation2 + $0x100] sm:$0xf]
    %v157 = vld [vmem:[#allocation2 + $0x104] sm:$0xf]
    %v158 = vld [vmem:[#allocation2 + $0x108] sm:$0xf]
    %v159 = vld [vmem:[#allocation2 + $0x10c] sm:$0xf]
    %v160 = vld [vmem:[#allocation2 + $0x110] sm:$0xf]
    %v161 = vld [vmem:[#allocation2 + $0x114] sm:$0xf]
    %v162 = vld [vmem:[#allocation2 + $0x118] sm:$0xf]
    %v163 = vld [vmem:[#allocation2 + $0x11c] sm:$0xf]
    %v164 = vld [vmem:[#allocation2 + $0x120] sm:$0xf]
    %v165 = vld [vmem:[#allocation2 + $0x124] sm:$0xf]
    %v166 = vld [vmem:[#allocation2 + $0x128] sm:$0xf]
    %v167 = vld [vmem:[#allocation2 + $0x12c] sm:$0xf]
    %v168 = vld [vmem:[#allocation2 + $0x130] sm:$0xf]
    %v169 = vld [vmem:[#allocation2 + $0x134] sm:$0xf]
    %v170 = vld [vmem:[#allocation2 + $0x138] sm:$0xf]
    %v171 = vld [vmem:[#allocation2 + $0x13c] sm:$0xf]
    %v172 = vld [vmem:[#allocation2 + $0x140] sm:$0xf]
    %v173 = vld [vmem:[#allocation2 + $0x144] sm:$0xf]
    %v174 = vld [vmem:[#allocation2 + $0x148] sm:$0xf]
    %v175 = vld [vmem:[#allocation2 + $0x14c] sm:$0xf]
    %v176 = vld [vmem:[#allocation2 + $0x150] sm:$0xf]
    %v177 = vld [vmem:[#allocation2 + $0x154] sm:$0xf]
    %v178 = vld [vmem:[#allocation2 + $0x158] sm:$0xf]
    %v179 = vld [vmem:[#allocation2 + $0x15c] sm:$0xf]
    %v180 = vld [vmem:[#allocation2 + $0x160] sm:$0xf]
    %v181 = vld [vmem:[#allocation2 + $0x164] sm:$0xf]
    %v182 = vld [vmem:[#allocation2 + $0x168] sm:$0xf]
    %v183 = vld [vmem:[#allocation2 + $0x16c] sm:$0xf]
    %v184 = vld [vmem:[#allocation2 + $0x170] sm:$0xf]
    %v185 = vld [vmem:[#allocation2 + $0x174] sm:$0xf]
    %v186 = vld [vmem:[#allocation2 + $0x178] sm:$0xf]
    %v187 = vld [vmem:[#allocation2 + $0x17c] sm:$0xf]
    %v188 = vld [vmem:[#allocation2 + $0x180] sm:$0xf]
    %v189 = vld [vmem:[#allocation2 + $0x184] sm:$0xf]
    %v190 = vld [vmem:[#allocation2 + $0x188] sm:$0xf]
    %v191 = vld [vmem:[#allocation2 + $0x18c] sm:$0xf]
    %v192 = vld [vmem:[#allocation2 + $0x190] sm:$0xf]
    %v193 = vld [vmem:[#allocation2 + $0x194] sm:$0xf]
    %v194 = vld [vmem:[#allocation2 + $0x198] sm:$0xf]
    %v195 = vld [vmem:[#allocation2 + $0x19c] sm:$0xf]
    %v196 = vld [vmem:[#allocation2 + $0x1a0] sm:$0xf]
    %v197 = vld [vmem:[#allocation2 + $0x1a4] sm:$0xf]
    %v198 = vld [vmem:[#allocation2 + $0x1a8] sm:$0xf]
    %v199 = vld [vmem:[#allocation2 + $0x1ac] sm:$0xf]
    %v200 = vld [vmem:[#allocation2 + $0x1b0] sm:$0xf]
    %v201 = vld [vmem:[#allocation2 + $0x1b4] sm:$0xf]
    %v202 = vld [vmem:[#allocation2 + $0x1b8] sm:$0xf]
    %v203 = vld [vmem:[#allocation2 + $0x1bc] sm:$0xf]
    %v204 = vld [vmem:[#allocation2 + $0x1c0] sm:$0xf]
    %v205 = vld [vmem:[#allocation2 + $0x1c4] sm:$0xf]
    %v206 = vld [vmem:[#allocation2 + $0x1c8] sm:$0xf]
    %v207 = vld [vmem:[#allocation2 + $0x1cc] sm:$0xf]
    %v208 = vld [vmem:[#allocation2 + $0x1d0] sm:$0xf]
    %v209 = vld [vmem:[#allocation2 + $0x1d4] sm:$0xf]
    %v210 = vld [vmem:[#allocation2 + $0x1d8] sm:$0xf]
    %v211 = vld [vmem:[#allocation2 + $0x1dc] sm:$0xf]
    %v212 = vld [vmem:[#allocation2 + $0x1e0] sm:$0xf]
    %v213 = vld [vmem:[#allocation2 + $0x1e4] sm:$0xf]
    %v214 = vld [vmem:[#allocation2 + $0x1e8] sm:$0xf]
    %v215 = vld [vmem:[#allocation2 + $0x1ec] sm:$0xf]
    %v216 = vld [vmem:[#allocation2 + $0x1f0] sm:$0xf]
    %v217 = vld [vmem:[#allocation2 + $0x1f4] sm:$0xf]
    %v218 = vld [vmem:[#allocation2 + $0x1f8] sm:$0xf]
    %v219 = vld [vmem:[#allocation2 + $0x1fc] sm:$0xf]
    %v284 = vunpack.c.l.b16 %v28
    %v285 = vunpack.c.h.b16 %v28
    %v286 = vunpack.c.l.b16 %v29
    %v287 = vunpack.c.h.b16 %v29
    %v288 = vunpack.c.l.b16 %v30
    %v289 = vunpack.c.h.b16 %v30
    %v290 = vunpack.c.l.b16 %v31
    %v291 = vunpack.c.h.b16 %v31
    %v292 = vunpack.c.l.b16 %v32
    %v293 = vunpack.c.h.b16 %v32
    %v294 = vunpack.c.l.b16 %v33
    %v295 = vunpack.c.h.b16 %v33
    %v296 = vunpack.c.l.b16 %v34
    %v297 = vunpack.c.h.b16 %v34
    %v298 = vunpack.c.l.b16 %v35
    %v299 = vunpack.c.h.b16 %v35
    %v300 = vunpack.c.l.b16 %v36
    %v301 = vunpack.c.h.b16 %v36
    %v302 = vunpack.c.l.b16 %v37
    %v303 = vunpack.c.h.b16 %v37
    %v304 = vunpack.c.l.b16 %v38
    %v305 = vunpack.c.h.b16 %v38
    %v306 = vunpack.c.l.b16 %v39
    %v307 = vunpack.c.h.b16 %v39
    %v308 = vunpack.c.l.b16 %v40
    %v309 = vunpack.c.h.b16 %v40
    %v310 = vunpack.c.l.b16 %v41
    %v311 = vunpack.c.h.b16 %v41
    %v312 = vunpack.c.l.b16 %v42
    %v313 = vunpack.c.h.b16 %v42
    %v314 = vunpack.c.l.b16 %v43
    %v315 = vunpack.c.h.b16 %v43
    %v316 = vunpack.c.l.b16 %v44
    %v317 = vunpack.c.h.b16 %v44
    %v318 = vunpack.c.l.b16 %v45
    %v319 = vunpack.c.h.b16 %v45
    %v320 = vunpack.c.l.b16 %v46
    %v321 = vunpack.c.h.b16 %v46
    %v322 = vunpack.c.l.b16 %v47
    %v323 = vunpack.c.h.b16 %v47
    %v324 = vunpack.c.l.b16 %v48
    %v325 = vunpack.c.h.b16 %v48
    %v326 = vunpack.c.l.b16 %v49
    %v327 = vunpack.c.h.b16 %v49
    %v328 = vunpack.c.l.b16 %v50
    %v329 = vunpack.c.h.b16 %v50
    %v330 = vunpack.c.l.b16 %v51
    %v331 = vunpack.c.h.b16 %v51
    %v332 = vunpack.c.l.b16 %v52
    %v333 = vunpack.c.h.b16 %v52
    %v334 = vunpack.c.l.b16 %v53
    %v335 = vunpack.c.h.b16 %v53
    %v336 = vunpack.c.l.b16 %v54
    %v337 = vunpack.c.h.b16 %v54
    %v338 = vunpack.c.l.b16 %v55
    %v339 = vunpack.c.h.b16 %v55
    %v340 = vunpack.c.l.b16 %v56
    %v341 = vunpack.c.h.b16 %v56
    %v342 = vunpack.c.l.b16 %v57
    %v343 = vunpack.c.h.b16 %v57
    %v344 = vunpack.c.l.b16 %v58
    %v345 = vunpack.c.h.b16 %v58
    %v346 = vunpack.c.l.b16 %v59
    %v347 = vunpack.c.h.b16 %v59
    %v348 = vunpack.c.l.b16 %v60
    %v349 = vunpack.c.h.b16 %v60
    %v350 = vunpack.c.l.b16 %v61
    %v351 = vunpack.c.h.b16 %v61
    %v352 = vunpack.c.l.b16 %v62
    %v353 = vunpack.c.h.b16 %v62
    %v354 = vunpack.c.l.b16 %v63
    %v355 = vunpack.c.h.b16 %v63
    %v356 = vunpack.c.l.b16 %v64
    %v357 = vunpack.c.h.b16 %v64
    %v358 = vunpack.c.l.b16 %v65
    %v359 = vunpack.c.h.b16 %v65
    %v360 = vunpack.c.l.b16 %v66
    %v361 = vunpack.c.h.b16 %v66
    %v362 = vunpack.c.l.b16 %v67
    %v363 = vunpack.c.h.b16 %v67
    %v364 = vunpack.c.l.b16 %v68
    %v365 = vunpack.c.h.b16 %v68
    %v366 = vunpack.c.l.b16 %v69
    %v367 = vunpack.c.h.b16 %v69
    %v368 = vunpack.c.l.b16 %v70
    %v369 = vunpack.c.h.b16 %v70
    %v370 = vunpack.c.l.b16 %v71
    %v371 = vunpack.c.h.b16 %v71
    %v372 = vunpack.c.l.b16 %v72
    %v373 = vunpack.c.h.b16 %v72
    %v374 = vunpack.c.l.b16 %v73
    %v375 = vunpack.c.h.b16 %v73
    %v376 = vunpack.c.l.b16 %v74
    %v377 = vunpack.c.h.b16 %v74
    %v378 = vunpack.c.l.b16 %v75
    %v379 = vunpack.c.h.b16 %v75
    %v380 = vunpack.c.l.b16 %v76
    %v381 = vunpack.c.h.b16 %v76
    %v382 = vunpack.c.l.b16 %v77
    %v383 = vunpack.c.h.b16 %v77
    %v384 = vunpack.c.l.b16 %v78
    %v385 = vunpack.c.h.b16 %v78
    %v386 = vunpack.c.l.b16 %v79
    %v387 = vunpack.c.h.b16 %v79
    %v388 = vunpack.c.l.b16 %v80
    %v389 = vunpack.c.h.b16 %v80
    %v390 = vunpack.c.l.b16 %v81
    %v391 = vunpack.c.h.b16 %v81
    %v392 = vunpack.c.l.b16 %v82
    %v393 = vunpack.c.h.b16 %v82
    %v394 = vunpack.c.l.b16 %v83
    %v395 = vunpack.c.h.b16 %v83
    %v396 = vunpack.c.l.b16 %v84
    %v397 = vunpack.c.h.b16 %v84
    %v398 = vunpack.c.l.b16 %v85
    %v399 = vunpack.c.h.b16 %v85
    %v400 = vunpack.c.l.b16 %v86
    %v401 = vunpack.c.h.b16 %v86
    %v402 = vunpack.c.l.b16 %v87
    %v403 = vunpack.c.h.b16 %v87
    %v404 = vunpack.c.l.b16 %v88
    %v405 = vunpack.c.h.b16 %v88
    %v406 = vunpack.c.l.b16 %v89
    %v407 = vunpack.c.h.b16 %v89
    %v408 = vunpack.c.l.b16 %v90
    %v409 = vunpack.c.h.b16 %v90
    %v410 = vunpack.c.l.b16 %v91
    %v411 = vunpack.c.h.b16 %v91
    %v412 = vpack.c.b16 %v292, %v284
    %v413 = vpack.c.b16 %v293, %v285
    %v414 = vpack.c.b16 %v294, %v286
    %v415 = vpack.c.b16 %v295, %v287
    %v416 = vpack.c.b16 %v296, %v288
    %v417 = vpack.c.b16 %v297, %v289
    %v418 = vpack.c.b16 %v298, %v290
    %v419 = vpack.c.b16 %v299, %v291
    %v420 = vpack.c.b16 %v308, %v300
    %v421 = vpack.c.b16 %v309, %v301
    %v422 = vpack.c.b16 %v310, %v302
    %v423 = vpack.c.b16 %v311, %v303
    %v424 = vpack.c.b16 %v312, %v304
    %v425 = vpack.c.b16 %v313, %v305
    %v426 = vpack.c.b16 %v314, %v306
    %v427 = vpack.c.b16 %v315, %v307
    %v428 = vpack.c.b16 %v324, %v316
    %v429 = vpack.c.b16 %v325, %v317
    %v430 = vpack.c.b16 %v326, %v318
    %v431 = vpack.c.b16 %v327, %v319
    %v432 = vpack.c.b16 %v328, %v320
    %v433 = vpack.c.b16 %v329, %v321
    %v434 = vpack.c.b16 %v330, %v322
    %v435 = vpack.c.b16 %v331, %v323
    %v436 = vpack.c.b16 %v340, %v332
    %v437 = vpack.c.b16 %v341, %v333
    %v438 = vpack.c.b16 %v342, %v334
    %v439 = vpack.c.b16 %v343, %v335
    %v440 = vpack.c.b16 %v344, %v336
    %v441 = vpack.c.b16 %v345, %v337
    %v442 = vpack.c.b16 %v346, %v338
    %v443 = vpack.c.b16 %v347, %v339
    %v444 = vpack.c.b16 %v356, %v348
    %v445 = vpack.c.b16 %v357, %v349
    %v446 = vpack.c.b16 %v358, %v350
    %v447 = vpack.c.b16 %v359, %v351
    %v448 = vpack.c.b16 %v360, %v352
    %v449 = vpack.c.b16 %v361, %v353
    %v450 = vpack.c.b16 %v362, %v354
    %v451 = vpack.c.b16 %v363, %v355
    %v452 = vpack.c.b16 %v372, %v364
    %v453 = vpack.c.b16 %v373, %v365
    %v454 = vpack.c.b16 %v374, %v366
    %v455 = vpack.c.b16 %v375, %v367
    %v456 = vpack.c.b16 %v376, %v368
    %v457 = vpack.c.b16 %v377, %v369
    %v458 = vpack.c.b16 %v378, %v370
    %v459 = vpack.c.b16 %v379, %v371
    %v460 = vpack.c.b16 %v388, %v380
    %v461 = vpack.c.b16 %v389, %v381
    %v462 = vpack.c.b16 %v390, %v382
    %v463 = vpack.c.b16 %v391, %v383
    %v464 = vpack.c.b16 %v392, %v384
    %v465 = vpack.c.b16 %v393, %v385
    %v466 = vpack.c.b16 %v394, %v386
    %v467 = vpack.c.b16 %v395, %v387
    %v468 = vpack.c.b16 %v404, %v396
    %v469 = vpack.c.b16 %v405, %v397
    %v470 = vpack.c.b16 %v406, %v398
    %v471 = vpack.c.b16 %v407, %v399
    %v472 = vpack.c.b16 %v408, %v400
    %v473 = vpack.c.b16 %v409, %v401
    %v474 = vpack.c.b16 %v410, %v402
    %v475 = vpack.c.b16 %v411, %v403
    %v668 = vunpack.c.l.b16 %v92
    %v669 = vunpack.c.l.b16 %v93
    %v670 = vunpack.c.l.b16 %v94
    %v671 = vunpack.c.l.b16 %v95
    %v672 = vunpack.c.l.b16 %v96
    %v673 = vunpack.c.l.b16 %v97
    %v674 = vunpack.c.l.b16 %v98
    %v675 = vunpack.c.l.b16 %v99
    %v676 = vunpack.c.l.b16 %v100
    %v677 = vunpack.c.l.b16 %v101
    %v678 = vunpack.c.l.b16 %v102
    %v679 = vunpack.c.l.b16 %v103
    %v680 = vunpack.c.l.b16 %v104
    %v681 = vunpack.c.l.b16 %v105
    %v682 = vunpack.c.l.b16 %v106
    %v683 = vunpack.c.l.b16 %v107
    %v684 = vunpack.c.l.b16 %v108
    %v685 = vunpack.c.l.b16 %v109
    %v686 = vunpack.c.l.b16 %v110
    %v687 = vunpack.c.l.b16 %v111
    %v688 = vunpack.c.l.b16 %v112
    %v689 = vunpack.c.l.b16 %v113
    %v690 = vunpack.c.l.b16 %v114
    %v691 = vunpack.c.l.b16 %v115
    %v692 = vunpack.c.l.b16 %v116
    %v693 = vunpack.c.l.b16 %v117
    %v694 = vunpack.c.l.b16 %v118
    %v695 = vunpack.c.l.b16 %v119
    %v696 = vunpack.c.l.b16 %v120
    %v697 = vunpack.c.l.b16 %v121
    %v698 = vunpack.c.l.b16 %v122
    %v699 = vunpack.c.l.b16 %v123
    %v700 = vunpack.c.l.b16 %v124
    %v701 = vunpack.c.l.b16 %v125
    %v702 = vunpack.c.l.b16 %v126
    %v703 = vunpack.c.l.b16 %v127
    %v704 = vunpack.c.l.b16 %v128
    %v705 = vunpack.c.l.b16 %v129
    %v706 = vunpack.c.l.b16 %v130
    %v707 = vunpack.c.l.b16 %v131
    %v708 = vunpack.c.l.b16 %v132
    %v709 = vunpack.c.l.b16 %v133
    %v710 = vunpack.c.l.b16 %v134
    %v711 = vunpack.c.l.b16 %v135
    %v712 = vunpack.c.l.b16 %v136
    %v713 = vunpack.c.l.b16 %v137
    %v714 = vunpack.c.l.b16 %v138
    %v715 = vunpack.c.l.b16 %v139
    %v716 = vunpack.c.l.b16 %v140
    %v717 = vunpack.c.l.b16 %v141
    %v718 = vunpack.c.l.b16 %v142
    %v719 = vunpack.c.l.b16 %v143
    %v720 = vunpack.c.l.b16 %v144
    %v721 = vunpack.c.l.b16 %v145
    %v722 = vunpack.c.l.b16 %v146
    %v723 = vunpack.c.l.b16 %v147
    %v724 = vunpack.c.l.b16 %v148
    %v725 = vunpack.c.l.b16 %v149
    %v726 = vunpack.c.l.b16 %v150
    %v727 = vunpack.c.l.b16 %v151
    %v728 = vunpack.c.l.b16 %v152
    %v729 = vunpack.c.l.b16 %v153
    %v730 = vunpack.c.l.b16 %v154
    %v731 = vunpack.c.l.b16 %v155
    %v732 = vunpack.c.l.b16 %v156
    %v733 = vunpack.c.l.b16 %v157
    %v734 = vunpack.c.l.b16 %v158
    %v735 = vunpack.c.l.b16 %v159
    %v736 = vunpack.c.l.b16 %v160
    %v737 = vunpack.c.l.b16 %v161
    %v738 = vunpack.c.l.b16 %v162
    %v739 = vunpack.c.l.b16 %v163
    %v740 = vunpack.c.l.b16 %v164
    %v741 = vunpack.c.l.b16 %v165
    %v742 = vunpack.c.l.b16 %v166
    %v743 = vunpack.c.l.b16 %v167
    %v744 = vunpack.c.l.b16 %v168
    %v745 = vunpack.c.l.b16 %v169
    %v746 = vunpack.c.l.b16 %v170
    %v747 = vunpack.c.l.b16 %v171
    %v748 = vunpack.c.l.b16 %v172
    %v749 = vunpack.c.l.b16 %v173
    %v750 = vunpack.c.l.b16 %v174
    %v751 = vunpack.c.l.b16 %v175
    %v752 = vunpack.c.l.b16 %v176
    %v753 = vunpack.c.l.b16 %v177
    %v754 = vunpack.c.l.b16 %v178
    %v755 = vunpack.c.l.b16 %v179
    %v756 = vunpack.c.l.b16 %v180
    %v757 = vunpack.c.l.b16 %v181
    %v758 = vunpack.c.l.b16 %v182
    %v759 = vunpack.c.l.b16 %v183
    %v760 = vunpack.c.l.b16 %v184
    %v761 = vunpack.c.l.b16 %v185
    %v762 = vunpack.c.l.b16 %v186
    %v763 = vunpack.c.l.b16 %v187
    %v764 = vunpack.c.l.b16 %v188
    %v765 = vunpack.c.l.b16 %v189
    %v766 = vunpack.c.l.b16 %v190
    %v767 = vunpack.c.l.b16 %v191
    %v768 = vunpack.c.l.b16 %v192
    %v769 = vunpack.c.l.b16 %v193
    %v770 = vunpack.c.l.b16 %v194
    %v771 = vunpack.c.l.b16 %v195
    %v772 = vunpack.c.l.b16 %v196
    %v773 = vunpack.c.l.b16 %v197
    %v774 = vunpack.c.l.b16 %v198
    %v775 = vunpack.c.l.b16 %v199
    %v776 = vunpack.c.l.b16 %v200
    %v777 = vunpack.c.l.b16 %v201
    %v778 = vunpack.c.l.b16 %v202
    %v779 = vunpack.c.l.b16 %v203
    %v780 = vunpack.c.l.b16 %v204
    %v781 = vunpack.c.l.b16 %v205
    %v782 = vunpack.c.l.b16 %v206
    %v783 = vunpack.c.l.b16 %v207
    %v784 = vunpack.c.l.b16 %v208
    %v785 = vunpack.c.l.b16 %v209
    %v786 = vunpack.c.l.b16 %v210
    %v787 = vunpack.c.l.b16 %v211
    %v788 = vunpack.c.l.b16 %v212
    %v789 = vunpack.c.l.b16 %v213
    %v790 = vunpack.c.l.b16 %v214
    %v791 = vunpack.c.l.b16 %v215
    %v792 = vunpack.c.l.b16 %v216
    %v793 = vunpack.c.l.b16 %v217
    %v794 = vunpack.c.l.b16 %v218
    %v795 = vunpack.c.l.b16 %v219
    %v796 = vpack.c.b16 %v669, %v668
    %v797 = vpack.c.b16 %v671, %v670
    %v798 = vpack.c.b16 %v673, %v672
    %v799 = vpack.c.b16 %v675, %v674
    %v800 = vpack.c.b16 %v677, %v676
    %v801 = vpack.c.b16 %v679, %v678
    %v802 = vpack.c.b16 %v681, %v680
    %v803 = vpack.c.b16 %v683, %v682
    %v804 = vpack.c.b16 %v685, %v684
    %v805 = vpack.c.b16 %v687, %v686
    %v806 = vpack.c.b16 %v689, %v688
    %v807 = vpack.c.b16 %v691, %v690
    %v808 = vpack.c.b16 %v693, %v692
    %v809 = vpack.c.b16 %v695, %v694
    %v810 = vpack.c.b16 %v697, %v696
    %v811 = vpack.c.b16 %v699, %v698
    %v812 = vpack.c.b16 %v701, %v700
    %v813 = vpack.c.b16 %v703, %v702
    %v814 = vpack.c.b16 %v705, %v704
    %v815 = vpack.c.b16 %v707, %v706
    %v816 = vpack.c.b16 %v709, %v708
    %v817 = vpack.c.b16 %v711, %v710
    %v818 = vpack.c.b16 %v713, %v712
    %v819 = vpack.c.b16 %v715, %v714
    %v820 = vpack.c.b16 %v717, %v716
    %v821 = vpack.c.b16 %v719, %v718
    %v822 = vpack.c.b16 %v721, %v720
    %v823 = vpack.c.b16 %v723, %v722
    %v824 = vpack.c.b16 %v725, %v724
    %v825 = vpack.c.b16 %v727, %v726
    %v826 = vpack.c.b16 %v729, %v728
    %v827 = vpack.c.b16 %v731, %v730
    %v828 = vpack.c.b16 %v733, %v732
    %v829 = vpack.c.b16 %v735, %v734
    %v830 = vpack.c.b16 %v737, %v736
    %v831 = vpack.c.b16 %v739, %v738
    %v832 = vpack.c.b16 %v741, %v740
    %v833 = vpack.c.b16 %v743, %v742
    %v834 = vpack.c.b16 %v745, %v744
    %v835 = vpack.c.b16 %v747, %v746
    %v836 = vpack.c.b16 %v749, %v748
    %v837 = vpack.c.b16 %v751, %v750
    %v838 = vpack.c.b16 %v753, %v752
    %v839 = vpack.c.b16 %v755, %v754
    %v840 = vpack.c.b16 %v757, %v756
    %v841 = vpack.c.b16 %v759, %v758
    %v842 = vpack.c.b16 %v761, %v760
    %v843 = vpack.c.b16 %v763, %v762
    %v844 = vpack.c.b16 %v765, %v764
    %v845 = vpack.c.b16 %v767, %v766
    %v846 = vpack.c.b16 %v769, %v768
    %v847 = vpack.c.b16 %v771, %v770
    %v848 = vpack.c.b16 %v773, %v772
    %v849 = vpack.c.b16 %v775, %v774
    %v850 = vpack.c.b16 %v777, %v776
    %v851 = vpack.c.b16 %v779, %v778
    %v852 = vpack.c.b16 %v781, %v780
    %v853 = vpack.c.b16 %v783, %v782
    %v854 = vpack.c.b16 %v785, %v784
    %v855 = vpack.c.b16 %v787, %v786
    %v856 = vpack.c.b16 %v789, %v788
    %v857 = vpack.c.b16 %v791, %v790
    %v858 = vpack.c.b16 %v793, %v792
    %v859 = vpack.c.b16 %v795, %v794
    %924 = vmatprep.subr.bf16.mxu0 0
    %925 = vmatpush1.bf16.msra.mxu0 %v796
    %926 = vmatprep.subr.bf16.mxu0 0
    %927 = vmatpush1.bf16.msra.mxu0 %v797
    %928 = vmatprep.subr.bf16.mxu0 0
    %929 = vmatpush1.bf16.msra.mxu0 %v798
    %930 = vmatprep.subr.bf16.mxu0 0
    %931 = vmatpush1.bf16.msra.mxu0 %v799
    %932 = vmatprep.subr.bf16.mxu0 0
    %933 = vmatpush1.bf16.msra.mxu0 %v800
    %934 = vmatprep.subr.bf16.mxu0 0
    %935 = vmatpush1.bf16.msra.mxu0 %v801
    %936 = vmatprep.subr.bf16.mxu0 0
    %937 = vmatpush1.bf16.msra.mxu0 %v802
    %938 = vmatprep.subr.bf16.mxu0 0
    %939 = vmatpush1.bf16.msra.mxu0 %v803
    %940 = vmatprep.subr.bf16.mxu0 0
    %941 = vmatpush1.bf16.msra.mxu0 %v804
    %942 = vmatprep.subr.bf16.mxu0 0
    %943 = vmatpush1.bf16.msra.mxu0 %v805
    %944 = vmatprep.subr.bf16.mxu0 0
    %945 = vmatpush1.bf16.msra.mxu0 %v806
    %946 = vmatprep.subr.bf16.mxu0 0
    %947 = vmatpush1.bf16.msra.mxu0 %v807
    %948 = vmatprep.subr.bf16.mxu0 0
    %949 = vmatpush1.bf16.msra.mxu0 %v808
    %950 = vmatprep.subr.bf16.mxu0 0
    %951 = vmatpush1.bf16.msra.mxu0 %v809
    %952 = vmatprep.subr.bf16.mxu0 0
    %953 = vmatpush1.bf16.msra.mxu0 %v810
    %954 = vmatprep.subr.bf16.mxu0 0
    %955 = vmatpush1.bf16.msra.mxu0 %v811
    %956 = vmatprep.mubr.bf16.mxu0 %v413
    %957 = vmatmul.mubr.bf16.gmra.mrb[0].mxu0 %v412
    %v958 = vpop.f32.mrb[0].mxu0
    %v959 = vadd.f32 0.0, %v958
    %v960 = vpop.f32.mrb[0].mxu0
    %v961 = vpop.f32.mrb[0].mxu0
    %v962 = vadd.f32 0.0, %v961
    %v963 = vpop.f32.mrb[0].mxu0
    %964 = vmatprep.mubr.bf16.mxu0 %v421
    %965 = vmatmul.mubr.bf16.gmra.mrb[0].mxu0 %v420
    %v966 = vpop.f32.mrb[0].mxu0
    %v967 = vadd.f32 0.0, %v966
    %v968 = vpop.f32.mrb[0].mxu0
    %v969 = vpop.f32.mrb[0].mxu0
    %v970 = vadd.f32 0.0, %v969
    %v971 = vpop.f32.mrb[0].mxu0
    %972 = vmatprep.mubr.bf16.mxu0 %v429
    %973 = vmatmul.mubr.bf16.gmra.mrb[0].mxu0 %v428
    %v974 = vpop.f32.mrb[0].mxu0
    %v975 = vadd.f32 0.0, %v974
    %v976 = vpop.f32.mrb[0].mxu0
    %v977 = vpop.f32.mrb[0].mxu0
    %v978 = vadd.f32 0.0, %v977
    %v979 = vpop.f32.mrb[0].mxu0
    %980 = vmatprep.mubr.bf16.mxu0 %v437
    %981 = vmatmul.mubr.bf16.gmra.mrb[0].mxu0 %v436
    %v982 = vpop.f32.mrb[0].mxu0
    %v983 = vadd.f32 0.0, %v982
    %v984 = vpop.f32.mrb[0].mxu0
    %v985 = vpop.f32.mrb[0].mxu0
    %v986 = vadd.f32 0.0, %v985
    %v987 = vpop.f32.mrb[0].mxu0
    %988 = vmatprep.mubr.bf16.mxu0 %v445
    %989 = vmatmul.mubr.bf16.gmra.mrb[0].mxu0 %v444
    %v990 = vpop.f32.mrb[0].mxu0
    %v991 = vadd.f32 0.0, %v990
    %v992 = vpop.f32.mrb[0].mxu0
    %v993 = vpop.f32.mrb[0].mxu0
    %v994 = vadd.f32 0.0, %v993
    %v995 = vpop.f32.mrb[0].mxu0
    %996 = vmatprep.mubr.bf16.mxu0 %v453
    %997 = vmatmul.mubr.bf16.gmra.mrb[0].mxu0 %v452
    %v998 = vpop.f32.mrb[0].mxu0
    %v999 = vadd.f32 0.0, %v998
    %v1000 = vpop.f32.mrb[0].mxu0
    %v1001 = vpop.f32.mrb[0].mxu0
    %v1002 = vadd.f32 0.0, %v1001
    %v1003 = vpop.f32.mrb[0].mxu0
    %1004 = vmatprep.mubr.bf16.mxu0 %v461
    %1005 = vmatmul.mubr.bf16.gmra.mrb[0].mxu0 %v460
    %v1006 = vpop.f32.mrb[0].mxu0
    %v1007 = vadd.f32 0.0, %v1006
    %v1008 = vpop.f32.mrb[0].mxu0
    %v1009 = vpop.f32.mrb[0].mxu0
    %v1010 = vadd.f32 0.0, %v1009
    %v1011 = vpop.f32.mrb[0].mxu0
    %1012 = vmatprep.mubr.bf16.mxu0 %v469
    %1013 = vmatmul.mubr.bf16.gmra.mrb[0].mxu0 %v468
    %v1014 = vpop.f32.mrb[0].mxu0
    %v1015 = vadd.f32 0.0, %v1014
    %v1016 = vpop.f32.mrb[0].mxu0
    %v1017 = vpop.f32.mrb[0].mxu0
    %v1018 = vadd.f32 0.0, %v1017
    %v1019 = vpop.f32.mrb[0].mxu0
    %1020 = vdwg.mxu0
    %1021 = vmatprep.subr.bf16.mxu0 0
    %1022 = vmatpush1.bf16.msra.mxu0 %v812
    %1023 = vmatprep.subr.bf16.mxu0 0
    %1024 = vmatpush1.bf16.msra.mxu0 %v813
    %1025 = vmatprep.subr.bf16.mxu0 0
    %1026 = vmatpush1.bf16.msra.mxu0 %v814
    %1027 = vmatprep.subr.bf16.mxu0 0
    %1028 = vmatpush1.bf16.msra.mxu0 %v815
    %1029 = vmatprep.subr.bf16.mxu0 0
    %1030 = vmatpush1.bf16.msra.mxu0 %v816
    %1031 = vmatprep.subr.bf16.mxu0 0
    %1032 = vmatpush1.bf16.msra.mxu0 %v817
    %1033 = vmatprep.subr.bf16.mxu0 0
    %1034 = vmatpush1.bf16.msra.mxu0 %v818
    %1035 = vmatprep.subr.bf16.mxu0 0
    %1036 = vmatpush1.bf16.msra.mxu0 %v819
    %1037 = vmatprep.subr.bf16.mxu0 0
    %1038 = vmatpush1.bf16.msra.mxu0 %v820
    %1039 = vmatprep.subr.bf16.mxu0 0
    %1040 = vmatpush1.bf16.msra.mxu0 %v821
    %1041 = vmatprep.subr.bf16.mxu0 0
    %1042 = vmatpush1.bf16.msra.mxu0 %v822
    %1043 = vmatprep.subr.bf16.mxu0 0
    %1044 = vmatpush1.bf16.msra.mxu0 %v823
    %1045 = vmatprep.subr.bf16.mxu0 0
    %1046 = vmatpush1.bf16.msra.mxu0 %v824
    %1047 = vmatprep.subr.bf16.mxu0 0
    %1048 = vmatpush1.bf16.msra.mxu0 %v825
    %1049 = vmatprep.subr.bf16.mxu0 0
    %1050 = vmatpush1.bf16.msra.mxu0 %v826
    %1051 = vmatprep.subr.bf16.mxu0 0
    %1052 = vmatpush1.bf16.msra.mxu0 %v827
    %1053 = vmatprep.mubr.bf16.mxu0 %v415
    %1054 = vmatmul.mubr.bf16.gmra.mrb[0].mxu0 %v414
    %v1055 = vpop.f32.mrb[0].mxu0
    %v1056 = vadd.f32 %v959, %v1055
    %v1057 = vpop.f32.mrb[0].mxu0
    %v1058 = vpop.f32.mrb[0].mxu0
    %v1059 = vadd.f32 %v962, %v1058
    %v1060 = vpop.f32.mrb[0].mxu0
    %1061 = vmatprep.mubr.bf16.mxu0 %v423
    %1062 = vmatmul.mubr.bf16.gmra.mrb[0].mxu0 %v422
    %v1063 = vpop.f32.mrb[0].mxu0
    %v1064 = vadd.f32 %v967, %v1063
    %v1065 = vpop.f32.mrb[0].mxu0
    %v1066 = vpop.f32.mrb[0].mxu0
    %v1067 = vadd.f32 %v970, %v1066
    %v1068 = vpop.f32.mrb[0].mxu0
    %1069 = vmatprep.mubr.bf16.mxu0 %v431
    %1070 = vmatmul.mubr.bf16.gmra.mrb[0].mxu0 %v430
    %v1071 = vpop.f32.mrb[0].mxu0
    %v1072 = vadd.f32 %v975, %v1071
    %v1073 = vpop.f32.mrb[0].mxu0
    %v1074 = vpop.f32.mrb[0].mxu0
    %v1075 = vadd.f32 %v978, %v1074
    %v1076 = vpop.f32.mrb[0].mxu0
    %1077 = vmatprep.mubr.bf16.mxu0 %v439
    %1078 = vmatmul.mubr.bf16.gmra.mrb[0].mxu0 %v438
    %v1079 = vpop.f32.mrb[0].mxu0
    %v1080 = vadd.f32 %v983, %v1079
    %v1081 = vpop.f32.mrb[0].mxu0
    %v1082 = vpop.f32.mrb[0].mxu0
    %v1083 = vadd.f32 %v986, %v1082
    %v1084 = vpop.f32.mrb[0].mxu0
    %1085 = vmatprep.mubr.bf16.mxu0 %v447
    %1086 = vmatmul.mubr.bf16.gmra.mrb[0].mxu0 %v446
    %v1087 = vpop.f32.mrb[0].mxu0
    %v1088 = vadd.f32 %v991, %v1087
    %v1089 = vpop.f32.mrb[0].mxu0
    %v1090 = vpop.f32.mrb[0].mxu0
    %v1091 = vadd.f32 %v994, %v1090
    %v1092 = vpop.f32.mrb[0].mxu0
    %1093 = vmatprep.mubr.bf16.mxu0 %v455
    %1094 = vmatmul.mubr.bf16.gmra.mrb[0].mxu0 %v454
    %v1095 = vpop.f32.mrb[0].mxu0
    %v1096 = vadd.f32 %v999, %v1095
    %v1097 = vpop.f32.mrb[0].mxu0
    %v1098 = vpop.f32.mrb[0].mxu0
    %v1099 = vadd.f32 %v1002, %v1098
    %v1100 = vpop.f32.mrb[0].mxu0
    %1101 = vmatprep.mubr.bf16.mxu0 %v463
    %1102 = vmatmul.mubr.bf16.gmra.mrb[0].mxu0 %v462
    %v1103 = vpop.f32.mrb[0].mxu0
    %v1104 = vadd.f32 %v1007, %v1103
    %v1105 = vpop.f32.mrb[0].mxu0
    %v1106 = vpop.f32.mrb[0].mxu0
    %v1107 = vadd.f32 %v1010, %v1106
    %v1108 = vpop.f32.mrb[0].mxu0
    %1109 = vmatprep.mubr.bf16.mxu0 %v471
    %1110 = vmatmul.mubr.bf16.gmra.mrb[0].mxu0 %v470
    %v1111 = vpop.f32.mrb[0].mxu0
    %v1112 = vadd.f32 %v1015, %v1111
    %v1113 = vpop.f32.mrb[0].mxu0
    %v1114 = vpop.f32.mrb[0].mxu0
    %v1115 = vadd.f32 %v1018, %v1114
    %v1116 = vpop.f32.mrb[0].mxu0
    %1117 = vdwg.mxu0
    %1118 = vmatprep.subr.bf16.mxu0 0
    %1119 = vmatpush1.bf16.msra.mxu0 %v828
    %1120 = vmatprep.subr.bf16.mxu0 0
    %1121 = vmatpush1.bf16.msra.mxu0 %v829
    %1122 = vmatprep.subr.bf16.mxu0 0
    %1123 = vmatpush1.bf16.msra.mxu0 %v830
    %1124 = vmatprep.subr.bf16.mxu0 0
    %1125 = vmatpush1.bf16.msra.mxu0 %v831
    %1126 = vmatprep.subr.bf16.mxu0 0
    %1127 = vmatpush1.bf16.msra.mxu0 %v832
    %1128 = vmatprep.subr.bf16.mxu0 0
    %1129 = vmatpush1.bf16.msra.mxu0 %v833
    %1130 = vmatprep.subr.bf16.mxu0 0
    %1131 = vmatpush1.bf16.msra.mxu0 %v834
    %1132 = vmatprep.subr.bf16.mxu0 0
    %1133 = vmatpush1.bf16.msra.mxu0 %v835
    %1134 = vmatprep.subr.bf16.mxu0 0
    %1135 = vmatpush1.bf16.msra.mxu0 %v836
    %1136 = vmatprep.subr.bf16.mxu0 0
    %1137 = vmatpush1.bf16.msra.mxu0 %v837
    %1138 = vmatprep.subr.bf16.mxu0 0
    %1139 = vmatpush1.bf16.msra.mxu0 %v838
    %1140 = vmatprep.subr.bf16.mxu0 0
    %1141 = vmatpush1.bf16.msra.mxu0 %v839
    %1142 = vmatprep.subr.bf16.mxu0 0
    %1143 = vmatpush1.bf16.msra.mxu0 %v840
    %1144 = vmatprep.subr.bf16.mxu0 0
    %1145 = vmatpush1.bf16.msra.mxu0 %v841
    %1146 = vmatprep.subr.bf16.mxu0 0
    %1147 = vmatpush1.bf16.msra.mxu0 %v842
    %1148 = vmatprep.subr.bf16.mxu0 0
    %1149 = vmatpush1.bf16.msra.mxu0 %v843
    %1150 = vmatprep.mubr.bf16.mxu0 %v417
    %1151 = vmatmul.mubr.bf16.gmra.mrb[0].mxu0 %v416
    %v1152 = vpop.f32.mrb[0].mxu0
    %v1153 = vadd.f32 %v1056, %v1152
    %v1154 = vpop.f32.mrb[0].mxu0
    %v1155 = vpop.f32.mrb[0].mxu0
    %v1156 = vadd.f32 %v1059, %v1155
    %v1157 = vpop.f32.mrb[0].mxu0
    %1158 = vmatprep.mubr.bf16.mxu0 %v425
    %1159 = vmatmul.mubr.bf16.gmra.mrb[0].mxu0 %v424
    %v1160 = vpop.f32.mrb[0].mxu0
    %v1161 = vadd.f32 %v1064, %v1160
    %v1162 = vpop.f32.mrb[0].mxu0
    %v1163 = vpop.f32.mrb[0].mxu0
    %v1164 = vadd.f32 %v1067, %v1163
    %v1165 = vpop.f32.mrb[0].mxu0
    %1166 = vmatprep.mubr.bf16.mxu0 %v433
    %1167 = vmatmul.mubr.bf16.gmra.mrb[0].mxu0 %v432
    %v1168 = vpop.f32.mrb[0].mxu0
    %v1169 = vadd.f32 %v1072, %v1168
    %v1170 = vpop.f32.mrb[0].mxu0
    %v1171 = vpop.f32.mrb[0].mxu0
    %v1172 = vadd.f32 %v1075, %v1171
    %v1173 = vpop.f32.mrb[0].mxu0
    %1174 = vmatprep.mubr.bf16.mxu0 %v441
    %1175 = vmatmul.mubr.bf16.gmra.mrb[0].mxu0 %v440
    %v1176 = vpop.f32.mrb[0].mxu0
    %v1177 = vadd.f32 %v1080, %v1176
    %v1178 = vpop.f32.mrb[0].mxu0
    %v1179 = vpop.f32.mrb[0].mxu0
    %v1180 = vadd.f32 %v1083, %v1179
    %v1181 = vpop.f32.mrb[0].mxu0
    %1182 = vmatprep.mubr.bf16.mxu0 %v449
    %1183 = vmatmul.mubr.bf16.gmra.mrb[0].mxu0 %v448
    %v1184 = vpop.f32.mrb[0].mxu0
    %v1185 = vadd.f32 %v1088, %v1184
    %v1186 = vpop.f32.mrb[0].mxu0
    %v1187 = vpop.f32.mrb[0].mxu0
    %v1188 = vadd.f32 %v1091, %v1187
    %v1189 = vpop.f32.mrb[0].mxu0
    %1190 = vmatprep.mubr.bf16.mxu0 %v457
    %1191 = vmatmul.mubr.bf16.gmra.mrb[0].mxu0 %v456
    %v1192 = vpop.f32.mrb[0].mxu0
    %v1193 = vadd.f32 %v1096, %v1192
    %v1194 = vpop.f32.mrb[0].mxu0
    %v1195 = vpop.f32.mrb[0].mxu0
    %v1196 = vadd.f32 %v1099, %v1195
    %v1197 = vpop.f32.mrb[0].mxu0
    %1198 = vmatprep.mubr.bf16.mxu0 %v465
    %1199 = vmatmul.mubr.bf16.gmra.mrb[0].mxu0 %v464
    %v1200 = vpop.f32.mrb[0].mxu0
    %v1201 = vadd.f32 %v1104, %v1200
    %v1202 = vpop.f32.mrb[0].mxu0
    %v1203 = vpop.f32.mrb[0].mxu0
    %v1204 = vadd.f32 %v1107, %v1203
    %v1205 = vpop.f32.mrb[0].mxu0
    %1206 = vmatprep.mubr.bf16.mxu0 %v473
    %1207 = vmatmul.mubr.bf16.gmra.mrb[0].mxu0 %v472
    %v1208 = vpop.f32.mrb[0].mxu0
    %v1209 = vadd.f32 %v1112, %v1208
    %v1210 = vpop.f32.mrb[0].mxu0
    %v1211 = vpop.f32.mrb[0].mxu0
    %v1212 = vadd.f32 %v1115, %v1211
    %v1213 = vpop.f32.mrb[0].mxu0
    %1214 = vdwg.mxu0
    %1215 = vmatprep.subr.bf16.mxu0 0
    %1216 = vmatpush1.bf16.msra.mxu0 %v844
    %1217 = vmatprep.subr.bf16.mxu0 0
    %1218 = vmatpush1.bf16.msra.mxu0 %v845
    %1219 = vmatprep.subr.bf16.mxu0 0
    %1220 = vmatpush1.bf16.msra.mxu0 %v846
    %1221 = vmatprep.subr.bf16.mxu0 0
    %1222 = vmatpush1.bf16.msra.mxu0 %v847
    %1223 = vmatprep.subr.bf16.mxu0 0
    %1224 = vmatpush1.bf16.msra.mxu0 %v848
    %1225 = vmatprep.subr.bf16.mxu0 0
    %1226 = vmatpush1.bf16.msra.mxu0 %v849
    %1227 = vmatprep.subr.bf16.mxu0 0
    %1228 = vmatpush1.bf16.msra.mxu0 %v850
    %1229 = vmatprep.subr.bf16.mxu0 0
    %1230 = vmatpush1.bf16.msra.mxu0 %v851
    %1231 = vmatprep.subr.bf16.mxu0 0
    %1232 = vmatpush1.bf16.msra.mxu0 %v852
    %1233 = vmatprep.subr.bf16.mxu0 0
    %1234 = vmatpush1.bf16.msra.mxu0 %v853
    %1235 = vmatprep.subr.bf16.mxu0 0
    %1236 = vmatpush1.bf16.msra.mxu0 %v854
    %1237 = vmatprep.subr.bf16.mxu0 0
    %1238 = vmatpush1.bf16.msra.mxu0 %v855
    %1239 = vmatprep.subr.bf16.mxu0 0
    %1240 = vmatpush1.bf16.msra.mxu0 %v856
    %1241 = vmatprep.subr.bf16.mxu0 0
    %1242 = vmatpush1.bf16.msra.mxu0 %v857
    %1243 = vmatprep.subr.bf16.mxu0 0
    %1244 = vmatpush1.bf16.msra.mxu0 %v858
    %1245 = vmatprep.subr.bf16.mxu0 0
    %1246 = vmatpush1.bf16.msra.mxu0 %v859
    %1247 = vmatprep.mubr.bf16.mxu0 %v419
    %1248 = vmatmul.mubr.bf16.gmra.mrb[0].mxu0 %v418
    %v1249 = vpop.f32.mrb[0].mxu0
    %v1250 = vadd.f32 %v1153, %v1249
    %v1251 = vpop.f32.mrb[0].mxu0
    %v1252 = vpop.f32.mrb[0].mxu0
    %v1253 = vadd.f32 %v1156, %v1252
    %v1254 = vpop.f32.mrb[0].mxu0
    %1255 = vmatprep.mubr.bf16.mxu0 %v427
    %1256 = vmatmul.mubr.bf16.gmra.mrb[0].mxu0 %v426
    %v1257 = vpop.f32.mrb[0].mxu0
    %v1258 = vadd.f32 %v1161, %v1257
    %v1259 = vpop.f32.mrb[0].mxu0
    %v1260 = vpop.f32.mrb[0].mxu0
    %v1261 = vadd.f32 %v1164, %v1260
    %v1262 = vpop.f32.mrb[0].mxu0
    %1263 = vmatprep.mubr.bf16.mxu0 %v435
    %1264 = vmatmul.mubr.bf16.gmra.mrb[0].mxu0 %v434
    %v1265 = vpop.f32.mrb[0].mxu0
    %v1266 = vadd.f32 %v1169, %v1265
    %v1267 = vpop.f32.mrb[0].mxu0
    %v1268 = vpop.f32.mrb[0].mxu0
    %v1269 = vadd.f32 %v1172, %v1268
    %v1270 = vpop.f32.mrb[0].mxu0
    %1271 = vmatprep.mubr.bf16.mxu0 %v443
    %1272 = vmatmul.mubr.bf16.gmra.mrb[0].mxu0 %v442
    %v1273 = vpop.f32.mrb[0].mxu0
    %v1274 = vadd.f32 %v1177, %v1273
    %v1275 = vpop.f32.mrb[0].mxu0
    %v1276 = vpop.f32.mrb[0].mxu0
    %v1277 = vadd.f32 %v1180, %v1276
    %v1278 = vpop.f32.mrb[0].mxu0
    %1279 = vmatprep.mubr.bf16.mxu0 %v451
    %1280 = vmatmul.mubr.bf16.gmra.mrb[0].mxu0 %v450
    %v1281 = vpop.f32.mrb[0].mxu0
    %v1282 = vadd.f32 %v1185, %v1281
    %v1283 = vpop.f32.mrb[0].mxu0
    %v1284 = vpop.f32.mrb[0].mxu0
    %v1285 = vadd.f32 %v1188, %v1284
    %v1286 = vpop.f32.mrb[0].mxu0
    %1287 = vmatprep.mubr.bf16.mxu0 %v459
    %1288 = vmatmul.mubr.bf16.gmra.mrb[0].mxu0 %v458
    %v1289 = vpop.f32.mrb[0].mxu0
    %v1290 = vadd.f32 %v1193, %v1289
    %v1291 = vpop.f32.mrb[0].mxu0
    %v1292 = vpop.f32.mrb[0].mxu0
    %v1293 = vadd.f32 %v1196, %v1292
    %v1294 = vpop.f32.mrb[0].mxu0
    %1295 = vmatprep.mubr.bf16.mxu0 %v467
    %1296 = vmatmul.mubr.bf16.gmra.mrb[0].mxu0 %v466
    %v1297 = vpop.f32.mrb[0].mxu0
    %v1298 = vadd.f32 %v1201, %v1297
    %v1299 = vpop.f32.mrb[0].mxu0
    %v1300 = vpop.f32.mrb[0].mxu0
    %v1301 = vadd.f32 %v1204, %v1300
    %v1302 = vpop.f32.mrb[0].mxu0
    %1303 = vmatprep.mubr.bf16.mxu0 %v475
    %1304 = vmatmul.mubr.bf16.gmra.mrb[0].mxu0 %v474
    %v1305 = vpop.f32.mrb[0].mxu0
    %v1306 = vadd.f32 %v1209, %v1305
    %v1307 = vpop.f32.mrb[0].mxu0
    %v1308 = vpop.f32.mrb[0].mxu0
    %v1309 = vadd.f32 %v1212, %v1308
    %v1310 = vpop.f32.mrb[0].mxu0
    %1311 = vdwg.mxu0
    %v1312 = vpack.c.bf16 %v1253, %v1250
    %v1313 = vpack.c.bf16 %v1261, %v1258
    %v1314 = vpack.c.bf16 %v1269, %v1266
    %v1315 = vpack.c.bf16 %v1277, %v1274
    %v1316 = vpack.c.bf16 %v1285, %v1282
    %v1317 = vpack.c.bf16 %v1293, %v1290
    %v1318 = vpack.c.bf16 %v1301, %v1298
    %v1319 = vpack.c.bf16 %v1309, %v1306
    %v1328 = vunpack.c.l.b16 %v1312
    %v1329 = vunpack.c.h.b16 %v1312
    %v1330 = vunpack.c.l.b16 %v1313
    %v1331 = vunpack.c.h.b16 %v1313
    %v1332 = vunpack.c.l.b16 %v1314
    %v1333 = vunpack.c.h.b16 %v1314
    %v1334 = vunpack.c.l.b16 %v1315
    %v1335 = vunpack.c.h.b16 %v1315
    %v1336 = vunpack.c.l.b16 %v1316
    %v1337 = vunpack.c.h.b16 %v1316
    %v1338 = vunpack.c.l.b16 %v1317
    %v1339 = vunpack.c.h.b16 %v1317
    %v1340 = vunpack.c.l.b16 %v1318
    %v1341 = vunpack.c.h.b16 %v1318
    %v1342 = vunpack.c.l.b16 %v1319
    %v1343 = vunpack.c.h.b16 %v1319
    %v1344 = vpack.c.b16 %v1328, %v1328
    %v1345 = vpack.c.b16 %v1329, %v1329
    %v1346 = vpack.c.b16 %v1330, %v1330
    %v1347 = vpack.c.b16 %v1331, %v1331
    %v1348 = vpack.c.b16 %v1332, %v1332
    %v1349 = vpack.c.b16 %v1333, %v1333
    %v1350 = vpack.c.b16 %v1334, %v1334
    %v1351 = vpack.c.b16 %v1335, %v1335
    %v1352 = vpack.c.b16 %v1336, %v1336
    %v1353 = vpack.c.b16 %v1337, %v1337
    %v1354 = vpack.c.b16 %v1338, %v1338
    %v1355 = vpack.c.b16 %v1339, %v1339
    %v1356 = vpack.c.b16 %v1340, %v1340
    %v1357 = vpack.c.b16 %v1341, %v1341
    %v1358 = vpack.c.b16 %v1342, %v1342
    %v1359 = vpack.c.b16 %v1343, %v1343
    %1376 = vst [vmem:[%s2] sm:$0xf] %v1344
    %1377 = vst [vmem:[%s2 + $0x4] sm:$0xf] %v1345
    %1378 = vst [vmem:[%s2 + $0x8] sm:$0xf] %v1346
    %1379 = vst [vmem:[%s2 + $0xc] sm:$0xf] %v1347
    %1380 = vst [vmem:[%s2 + $0x10] sm:$0xf] %v1348
    %1381 = vst [vmem:[%s2 + $0x14] sm:$0xf] %v1349
    %1382 = vst [vmem:[%s2 + $0x18] sm:$0xf] %v1350
    %1383 = vst [vmem:[%s2 + $0x1c] sm:$0xf] %v1351
    %1384 = vst [vmem:[%s2 + $0x20] sm:$0xf] %v1352
    %1385 = vst [vmem:[%s2 + $0x24] sm:$0xf] %v1353
    %1386 = vst [vmem:[%s2 + $0x28] sm:$0xf] %v1354
    %1387 = vst [vmem:[%s2 + $0x2c] sm:$0xf] %v1355
    %1388 = vst [vmem:[%s2 + $0x30] sm:$0xf] %v1356
    %1389 = vst [vmem:[%s2 + $0x34] sm:$0xf] %v1357
    %1390 = vst [vmem:[%s2 + $0x38] sm:$0xf] %v1358
    %1391 = vst [vmem:[%s2 + $0x3c] sm:$0xf] %v1359
    %v1392 = vadd.f32 %v1250, %v1253
    %v1393 = vadd.f32 %v1392, %v1258
    %v1394 = vadd.f32 %v1393, %v1261
    %v1395 = vadd.f32 %v1394, %v1266
    %v1396 = vadd.f32 %v1395, %v1269
    %v1397 = vadd.f32 %v1396, %v1274
    %v1398 = vadd.f32 %v1397, %v1277
    %v1399 = vadd.f32 %v1398, %v1282
    %v1400 = vadd.f32 %v1399, %v1285
    %v1401 = vadd.f32 %v1400, %v1290
    %v1402 = vadd.f32 %v1401, %v1293
    %v1403 = vadd.f32 %v1402, %v1298
    %v1404 = vadd.f32 %v1403, %v1301
    %v1405 = vadd.f32 %v1404, %v1306
    %v1406 = vadd.f32 %v1405, %v1309
    %v1407 = vrot.slane %v1406, 4
    %v1408 = vadd.f32 %v1406, %v1407
    %v1409 = vrot.slane %v1408, 2
    %v1410 = vadd.f32 %v1408, %v1409
    %v1411 = vrot.slane %v1410, 1
    %v1412 = vadd.f32 %v1410, %v1411
    %v1413 = vmul.f32 %v1250, %v1250
    %v1414 = vmul.f32 %v1253, %v1253
    %v1415 = vmul.f32 %v1258, %v1258
    %v1416 = vmul.f32 %v1261, %v1261
    %v1417 = vmul.f32 %v1266, %v1266
    %v1418 = vmul.f32 %v1269, %v1269
    %v1419 = vmul.f32 %v1274, %v1274
    %v1420 = vmul.f32 %v1277, %v1277
    %v1421 = vmul.f32 %v1282, %v1282
    %v1422 = vmul.f32 %v1285, %v1285
    %v1423 = vmul.f32 %v1290, %v1290
    %v1424 = vmul.f32 %v1293, %v1293
    %v1425 = vmul.f32 %v1298, %v1298
    %v1426 = vmul.f32 %v1301, %v1301
    %v1427 = vmul.f32 %v1306, %v1306
    %v1428 = vmul.f32 %v1309, %v1309
    %v1429 = vadd.f32 %v1413, %v1414
    %v1430 = vadd.f32 %v1429, %v1415
    %v1431 = vadd.f32 %v1430, %v1416
    %v1432 = vadd.f32 %v1431, %v1417
    %v1433 = vadd.f32 %v1432, %v1418
    %v1434 = vadd.f32 %v1433, %v1419
    %v1435 = vadd.f32 %v1434, %v1420
    %v1436 = vadd.f32 %v1435, %v1421
    %v1437 = vadd.f32 %v1436, %v1422
    %v1438 = vadd.f32 %v1437, %v1423
    %v1439 = vadd.f32 %v1438, %v1424
    %v1440 = vadd.f32 %v1439, %v1425
    %v1441 = vadd.f32 %v1440, %v1426
    %v1442 = vadd.f32 %v1441, %v1427
    %v1443 = vadd.f32 %v1442, %v1428
    %v1444 = vrot.slane %v1443, 4
    %v1445 = vadd.f32 %v1443, %v1444
    %v1446 = vrot.slane %v1445, 2
    %v1447 = vadd.f32 %v1445, %v1446
    %v1448 = vrot.slane %v1447, 1
    %v1449 = vadd.f32 %v1447, %v1448
    %v1450 = vlaneseq
    %v1451 = vshrl.u32 %v1450, 7
    %vm1452 = vcmp.eq.s32.totalorder %v1451, 0
    %v1453 = vsel %vm1452, %v1412, 0.0
    %vm1454 = vcmp.eq.s32.totalorder %v1451, 1
    %v1455 = vsel %vm1454, %v1449, 0.0
    %v1456 = vadd.f32 %v1453, %v1455
    %1457 = vst [vmem:[%s3] sm:$0xff] %v1456
    // Predicated region
    $region14: #{generator_forward.11} parent=1 // pred_check
      _
    $region15: #{generator_forward.11} parent=1 // pred_check_branch
      %1459 = sbr.rel (0) target = $region17
    $region16: #{generator_forward.11} parent=1 // pred_region
      _
    $region17: #{generator_forward.11} parent=1 // pred_fallthru
      _
    // Predicated region
    $region18: #{generator_forward.11} parent=1 // pred_check
      _
    $region19: #{generator_forward.11} parent=1 // pred_check_branch
      %1461 = sbr.rel (0) target = $region21
    $region20: #{generator_forward.11} parent=1 // pred_region
      _
    $region21: #{generator_forward.11} parent=1 // pred_fallthru
      _
    // Predicated region
    $region22: #{generator_forward.11} parent=1 // pred_check
      _
    $region23: #{generator_forward.11} parent=1 // pred_check_branch
      %1463 = sbr.rel (0) target = $region25
    $region24: #{generator_forward.11} parent=1 // pred_region
      _
    $region25: #{generator_forward.11} parent=1 // pred_fallthru
      _
    // Predicated region
    $region26: #{generator_forward.11} parent=1 // pred_check
      _
    $region27: #{generator_forward.11} parent=1 // pred_check_branch
      %1465 = sbr.rel (0) target = $region29
    $region28: #{generator_forward.11} parent=1 // pred_region
      _
    $region29: #{generator_forward.11} parent=1 // pred_fallthru
      _
    %1466 = vsyncpa [#allocation3], 1

// kernel: generator_forward.14
$region0: #{generator_forward.14}
  #allocation0 [shape = 'u32[]', space=smem, size = 0x4, offset = 0x4, fixed_abs, tag = 'smem constant byte address 0x4 - core index']
  #allocation1 [shape = 'u32[144,128]{1,0:T(1,128)}', space=vmem, size = 0x12000, scoped, tag = 'internal scratch']
  %s0 = inlined_call_operand.vmem [shape: bf16[512,128], index: 0, kind: input, shape index: {}]
  %s1 = inlined_call_operand.vmem [shape: f32[1,128], index: 1, kind: input, shape index: {}]
  %s2 = inlined_call_operand.vmem [shape: f32[1,128], index: 2, kind: input, shape index: {}]
  %s3 = inlined_call_operand.vmem [shape: bf16[512,128], index: 3, kind: output, shape index: {}]
  %s4 = sld [smem:[#allocation0]]
  $region22: #{generator_forward.14} parent=0
    _
  %s6 = ssub.s32 1, %s4
  %s7 = scalar_select 0, %s6, %s4
  // Predicated region
  $region2: #{generator_forward.14} parent=0 // pred_check
    _
  $region3: #{generator_forward.14} parent=0 // pred_check_branch
    %9 = sbr.rel (0) target = $region5
  $region4: #{generator_forward.14} parent=0 // pred_region
    _
  $region5: #{generator_forward.14} parent=0 // pred_fallthru
    _
  // Predicated region
  $region6: #{generator_forward.14} parent=0 // pred_check
    _
  $region7: #{generator_forward.14} parent=0 // pred_check_branch
    %11 = sbr.rel (0) target = $region9
  $region8: #{generator_forward.14} parent=0 // pred_region
    _
  $region9: #{generator_forward.14} parent=0 // pred_fallthru
    _
  // Predicated region
  $region10: #{generator_forward.14} parent=0 // pred_check
    _
  $region11: #{generator_forward.14} parent=0 // pred_check_branch
    %13 = sbr.rel (0) target = $region13
  $region12: #{generator_forward.14} parent=0 // pred_region
    _
  $region13: #{generator_forward.14} parent=0 // pred_fallthru
    _
  %v14 = vld [vmem:[%s0] sm:$0xf]
  %v15 = vld [vmem:[%s0 + $0x4] sm:$0xf]
  %v16 = vld [vmem:[%s0 + $0x8] sm:$0xf]
  %v17 = vld [vmem:[%s0 + $0xc] sm:$0xf]
  %v18 = vld [vmem:[%s0 + $0x10] sm:$0xf]
  %v19 = vld [vmem:[%s0 + $0x14] sm:$0xf]
  %v20 = vld [vmem:[%s0 + $0x18] sm:$0xf]
  %v21 = vld [vmem:[%s0 + $0x1c] sm:$0xf]
  %v22 = vld [vmem:[%s0 + $0x20] sm:$0xf]
  %v23 = vld [vmem:[%s0 + $0x24] sm:$0xf]
  %v24 = vld [vmem:[%s0 + $0x28] sm:$0xf]
  %v25 = vld [vmem:[%s0 + $0x2c] sm:$0xf]
  %v26 = vld [vmem:[%s0 + $0x30] sm:$0xf]
  %v27 = vld [vmem:[%s0 + $0x34] sm:$0xf]
  %v28 = vld [vmem:[%s0 + $0x38] sm:$0xf]
  %v29 = vld [vmem:[%s0 + $0x3c] sm:$0xf]
  %v30 = vld [vmem:[%s0 + $0x40] sm:$0xf]
  %v31 = vld [vmem:[%s0 + $0x44] sm:$0xf]
  %v32 = vld [vmem:[%s0 + $0x48] sm:$0xf]
  %v33 = vld [vmem:[%s0 + $0x4c] sm:$0xf]
  %v34 = vld [vmem:[%s0 + $0x50] sm:$0xf]
  %v35 = vld [vmem:[%s0 + $0x54] sm:$0xf]
  %v36 = vld [vmem:[%s0 + $0x58] sm:$0xf]
  %v37 = vld [vmem:[%s0 + $0x5c] sm:$0xf]
  %v38 = vld [vmem:[%s0 + $0x60] sm:$0xf]
  %v39 = vld [vmem:[%s0 + $0x64] sm:$0xf]
  %v40 = vld [vmem:[%s0 + $0x68] sm:$0xf]
  %v41 = vld [vmem:[%s0 + $0x6c] sm:$0xf]
  %v42 = vld [vmem:[%s0 + $0x70] sm:$0xf]
  %v43 = vld [vmem:[%s0 + $0x74] sm:$0xf]
  %v44 = vld [vmem:[%s0 + $0x78] sm:$0xf]
  %v45 = vld [vmem:[%s0 + $0x7c] sm:$0xf]
  %v46 = vld [vmem:[%s0 + $0x80] sm:$0xf]
  %v47 = vld [vmem:[%s0 + $0x84] sm:$0xf]
  %v48 = vld [vmem:[%s0 + $0x88] sm:$0xf]
  %v49 = vld [vmem:[%s0 + $0x8c] sm:$0xf]
  %v50 = vld [vmem:[%s0 + $0x90] sm:$0xf]
  %v51 = vld [vmem:[%s0 + $0x94] sm:$0xf]
  %v52 = vld [vmem:[%s0 + $0x98] sm:$0xf]
  %v53 = vld [vmem:[%s0 + $0x9c] sm:$0xf]
  %v54 = vld [vmem:[%s0 + $0xa0] sm:$0xf]
  %v55 = vld [vmem:[%s0 + $0xa4] sm:$0xf]
  %v56 = vld [vmem:[%s0 + $0xa8] sm:$0xf]
  %v57 = vld [vmem:[%s0 + $0xac] sm:$0xf]
  %v58 = vld [vmem:[%s0 + $0xb0] sm:$0xf]
  %v59 = vld [vmem:[%s0 + $0xb4] sm:$0xf]
  %v60 = vld [vmem:[%s0 + $0xb8] sm:$0xf]
  %v61 = vld [vmem:[%s0 + $0xbc] sm:$0xf]
  %v62 = vld [vmem:[%s0 + $0xc0] sm:$0xf]
  %v63 = vld [vmem:[%s0 + $0xc4] sm:$0xf]
  %v64 = vld [vmem:[%s0 + $0xc8] sm:$0xf]
  %v65 = vld [vmem:[%s0 + $0xcc] sm:$0xf]
  %v66 = vld [vmem:[%s0 + $0xd0] sm:$0xf]
  %v67 = vld [vmem:[%s0 + $0xd4] sm:$0xf]
  %v68 = vld [vmem:[%s0 + $0xd8] sm:$0xf]
  %v69 = vld [vmem:[%s0 + $0xdc] sm:$0xf]
  %v70 = vld [vmem:[%s0 + $0xe0] sm:$0xf]
  %v71 = vld [vmem:[%s0 + $0xe4] sm:$0xf]
  %v72 = vld [vmem:[%s0 + $0xe8] sm:$0xf]
  %v73 = vld [vmem:[%s0 + $0xec] sm:$0xf]
  %v74 = vld [vmem:[%s0 + $0xf0] sm:$0xf]
  %v75 = vld [vmem:[%s0 + $0xf4] sm:$0xf]
  %v76 = vld [vmem:[%s0 + $0xf8] sm:$0xf]
  %v77 = vld [vmem:[%s0 + $0xfc] sm:$0xf]
  %v78 = vunpack.c.l.bf16 %v14
  %v79 = vunpack.c.l.bf16 %v15
  %v80 = vunpack.c.l.bf16 %v16
  %v81 = vunpack.c.l.bf16 %v17
  %v82 = vunpack.c.l.bf16 %v18
  %v83 = vunpack.c.l.bf16 %v19
  %v84 = vunpack.c.l.bf16 %v20
  %v85 = vunpack.c.l.bf16 %v21
  %v86 = vunpack.c.l.bf16 %v22
  %v87 = vunpack.c.l.bf16 %v23
  %v88 = vunpack.c.l.bf16 %v24
  %v89 = vunpack.c.l.bf16 %v25
  %v90 = vunpack.c.l.bf16 %v26
  %v91 = vunpack.c.l.bf16 %v27
  %v92 = vunpack.c.l.bf16 %v28
  %v93 = vunpack.c.l.bf16 %v29
  %v94 = vunpack.c.l.bf16 %v30
  %v95 = vunpack.c.l.bf16 %v31
  %v96 = vunpack.c.l.bf16 %v32
  %v97 = vunpack.c.l.bf16 %v33
  %v98 = vunpack.c.l.bf16 %v34
  %v99 = vunpack.c.l.bf16 %v35
  %v100 = vunpack.c.l.bf16 %v36
  %v101 = vunpack.c.l.bf16 %v37
  %v102 = vunpack.c.l.bf16 %v38
  %v103 = vunpack.c.l.bf16 %v39
  %v104 = vunpack.c.l.bf16 %v40
  %v105 = vunpack.c.l.bf16 %v41
  %v106 = vunpack.c.l.bf16 %v42
  %v107 = vunpack.c.l.bf16 %v43
  %v108 = vunpack.c.l.bf16 %v44
  %v109 = vunpack.c.l.bf16 %v45
  %v110 = vunpack.c.l.bf16 %v46
  %v111 = vunpack.c.l.bf16 %v47
  %v112 = vunpack.c.l.bf16 %v48
  %v113 = vunpack.c.l.bf16 %v49
  %v114 = vunpack.c.l.bf16 %v50
  %v115 = vunpack.c.l.bf16 %v51
  %v116 = vunpack.c.l.bf16 %v52
  %v117 = vunpack.c.l.bf16 %v53
  %v118 = vunpack.c.l.bf16 %v54
  %v119 = vunpack.c.l.bf16 %v55
  %v120 = vunpack.c.l.bf16 %v56
  %v121 = vunpack.c.l.bf16 %v57
  %v122 = vunpack.c.l.bf16 %v58
  %v123 = vunpack.c.l.bf16 %v59
  %v124 = vunpack.c.l.bf16 %v60
  %v125 = vunpack.c.l.bf16 %v61
  %v126 = vunpack.c.l.bf16 %v62
  %v127 = vunpack.c.l.bf16 %v63
  %v128 = vunpack.c.l.bf16 %v64
  %v129 = vunpack.c.l.bf16 %v65
  %v130 = vunpack.c.l.bf16 %v66
  %v131 = vunpack.c.l.bf16 %v67
  %v132 = vunpack.c.l.bf16 %v68
  %v133 = vunpack.c.l.bf16 %v69
  %v134 = vunpack.c.l.bf16 %v70
  %v135 = vunpack.c.l.bf16 %v71
  %v136 = vunpack.c.l.bf16 %v72
  %v137 = vunpack.c.l.bf16 %v73
  %v138 = vunpack.c.l.bf16 %v74
  %v139 = vunpack.c.l.bf16 %v75
  %v140 = vunpack.c.l.bf16 %v76
  %v141 = vunpack.c.l.bf16 %v77
  %v142 = vld [vmem:[%s1] sm:$0x1]
  %v144 = vlaneseq
  %v145 = vshrl.u32 %v144, 7
  %v146 = vsub.s32 0, %v145
  %v147 = vrot.slane %v142, %v146
  %v149 = vmul.f32 %v78, %v147
  %v150 = vmul.f32 %v79, %v147
  %v151 = vmul.f32 %v80, %v147
  %v152 = vmul.f32 %v81, %v147
  %v153 = vmul.f32 %v82, %v147
  %v154 = vmul.f32 %v83, %v147
  %v155 = vmul.f32 %v84, %v147
  %v156 = vmul.f32 %v85, %v147
  %v157 = vmul.f32 %v86, %v147
  %v158 = vmul.f32 %v87, %v147
  %v159 = vmul.f32 %v88, %v147
  %v160 = vmul.f32 %v89, %v147
  %v161 = vmul.f32 %v90, %v147
  %v162 = vmul.f32 %v91, %v147
  %v163 = vmul.f32 %v92, %v147
  %v164 = vmul.f32 %v93, %v147
  %v165 = vmul.f32 %v94, %v147
  %v166 = vmul.f32 %v95, %v147
  %v167 = vmul.f32 %v96, %v147
  %v168 = vmul.f32 %v97, %v147
  %v169 = vmul.f32 %v98, %v147
  %v170 = vmul.f32 %v99, %v147
  %v171 = vmul.f32 %v100, %v147
  %v172 = vmul.f32 %v101, %v147
  %v173 = vmul.f32 %v102, %v147
  %v174 = vmul.f32 %v103, %v147
  %v175 = vmul.f32 %v104, %v147
  %v176 = vmul.f32 %v105, %v147
  %v177 = vmul.f32 %v106, %v147
  %v178 = vmul.f32 %v107, %v147
  %v179 = vmul.f32 %v108, %v147
  %v180 = vmul.f32 %v109, %v147
  %v181 = vmul.f32 %v110, %v147
  %v182 = vmul.f32 %v111, %v147
  %v183 = vmul.f32 %v112, %v147
  %v184 = vmul.f32 %v113, %v147
  %v185 = vmul.f32 %v114, %v147
  %v186 = vmul.f32 %v115, %v147
  %v187 = vmul.f32 %v116, %v147
  %v188 = vmul.f32 %v117, %v147
  %v189 = vmul.f32 %v118, %v147
  %v190 = vmul.f32 %v119, %v147
  %v191 = vmul.f32 %v120, %v147
  %v192 = vmul.f32 %v121, %v147
  %v193 = vmul.f32 %v122, %v147
  %v194 = vmul.f32 %v123, %v147
  %v195 = vmul.f32 %v124, %v147
  %v196 = vmul.f32 %v125, %v147
  %v197 = vmul.f32 %v126, %v147
  %v198 = vmul.f32 %v127, %v147
  %v199 = vmul.f32 %v128, %v147
  %v200 = vmul.f32 %v129, %v147
  %v201 = vmul.f32 %v130, %v147
  %v202 = vmul.f32 %v131, %v147
  %v203 = vmul.f32 %v132, %v147
  %v204 = vmul.f32 %v133, %v147
  %v205 = vmul.f32 %v134, %v147
  %v206 = vmul.f32 %v135, %v147
  %v207 = vmul.f32 %v136, %v147
  %v208 = vmul.f32 %v137, %v147
  %v209 = vmul.f32 %v138, %v147
  %v210 = vmul.f32 %v139, %v147
  %v211 = vmul.f32 %v140, %v147
  %v212 = vmul.f32 %v141, %v147
  %v213 = vld [vmem:[%s2] sm:$0x1]
  %v215 = vlaneseq
  %v216 = vshrl.u32 %v215, 7
  %v217 = vsub.s32 0, %v216
  %v218 = vrot.slane %v213, %v217
  %v220 = vadd.f32 %v149, %v218
  %v221 = vadd.f32 %v150, %v218
  %v222 = vadd.f32 %v151, %v218
  %v223 = vadd.f32 %v152, %v218
  %v224 = vadd.f32 %v153, %v218
  %v225 = vadd.f32 %v154, %v218
  %v226 = vadd.f32 %v155, %v218
  %v227 = vadd.f32 %v156, %v218
  %v228 = vadd.f32 %v157, %v218
  %v229 = vadd.f32 %v158, %v218
  %v230 = vadd.f32 %v159, %v218
  %v231 = vadd.f32 %v160, %v218
  %v232 = vadd.f32 %v161, %v218
  %v233 = vadd.f32 %v162, %v218
  %v234 = vadd.f32 %v163, %v218
  %v235 = vadd.f32 %v164, %v218
  %v236 = vadd.f32 %v165, %v218
  %v237 = vadd.f32 %v166, %v218
  %v238 = vadd.f32 %v167, %v218
  %v239 = vadd.f32 %v168, %v218
  %v240 = vadd.f32 %v169, %v218
  %v241 = vadd.f32 %v170, %v218
  %v242 = vadd.f32 %v171, %v218
  %v243 = vadd.f32 %v172, %v218
  %v244 = vadd.f32 %v173, %v218
  %v245 = vadd.f32 %v174, %v218
  %v246 = vadd.f32 %v175, %v218
  %v247 = vadd.f32 %v176, %v218
  %v248 = vadd.f32 %v177, %v218
  %v249 = vadd.f32 %v178, %v218
  %v250 = vadd.f32 %v179, %v218
  %v251 = vadd.f32 %v180, %v218
  %v252 = vadd.f32 %v181, %v218
  %v253 = vadd.f32 %v182, %v218
  %v254 = vadd.f32 %v183, %v218
  %v255 = vadd.f32 %v184, %v218
  %v256 = vadd.f32 %v185, %v218
  %v257 = vadd.f32 %v186, %v218
  %v258 = vadd.f32 %v187, %v218
  %v259 = vadd.f32 %v188, %v218
  %v260 = vadd.f32 %v189, %v218
  %v261 = vadd.f32 %v190, %v218
  %v262 = vadd.f32 %v191, %v218
  %v263 = vadd.f32 %v192, %v218
  %v264 = vadd.f32 %v193, %v218
  %v265 = vadd.f32 %v194, %v218
  %v266 = vadd.f32 %v195, %v218
  %v267 = vadd.f32 %v196, %v218
  %v268 = vadd.f32 %v197, %v218
  %v269 = vadd.f32 %v198, %v218
  %v270 = vadd.f32 %v199, %v218
  %v271 = vadd.f32 %v200, %v218
  %v272 = vadd.f32 %v201, %v218
  %v273 = vadd.f32 %v202, %v218
  %v274 = vadd.f32 %v203, %v218
  %v275 = vadd.f32 %v204, %v218
  %v276 = vadd.f32 %v205, %v218
  %v277 = vadd.f32 %v206, %v218
  %v278 = vadd.f32 %v207, %v218
  %v279 = vadd.f32 %v208, %v218
  %v280 = vadd.f32 %v209, %v218
  %v281 = vadd.f32 %v210, %v218
  %v282 = vadd.f32 %v211, %v218
  %v283 = vadd.f32 %v212, %v218
  %v284 = vmax.f32 %v220, 0.0
  %v285 = vmax.f32 %v221, 0.0
  %v286 = vmax.f32 %v222, 0.0
  %v287 = vmax.f32 %v223, 0.0
  %v288 = vmax.f32 %v224, 0.0
  %v289 = vmax.f32 %v225, 0.0
  %v290 = vmax.f32 %v226, 0.0
  %v291 = vmax.f32 %v227, 0.0
  %v292 = vmax.f32 %v228, 0.0
  %v293 = vmax.f32 %v229, 0.0
  %v294 = vmax.f32 %v230, 0.0
  %v295 = vmax.f32 %v231, 0.0
  %v296 = vmax.f32 %v232, 0.0
  %v297 = vmax.f32 %v233, 0.0
  %v298 = vmax.f32 %v234, 0.0
  %v299 = vmax.f32 %v235, 0.0
  %v300 = vmax.f32 %v236, 0.0
  %v301 = vmax.f32 %v237, 0.0
  %v302 = vmax.f32 %v238, 0.0
  %v303 = vmax.f32 %v239, 0.0
  %v304 = vmax.f32 %v240, 0.0
  %v305 = vmax.f32 %v241, 0.0
  %v306 = vmax.f32 %v242, 0.0
  %v307 = vmax.f32 %v243, 0.0
  %v308 = vmax.f32 %v244, 0.0
  %v309 = vmax.f32 %v245, 0.0
  %v310 = vmax.f32 %v246, 0.0
  %v311 = vmax.f32 %v247, 0.0
  %v312 = vmax.f32 %v248, 0.0
  %v313 = vmax.f32 %v249, 0.0
  %v314 = vmax.f32 %v250, 0.0
  %v315 = vmax.f32 %v251, 0.0
  %v316 = vmax.f32 %v252, 0.0
  %v317 = vmax.f32 %v253, 0.0
  %v318 = vmax.f32 %v254, 0.0
  %v319 = vmax.f32 %v255, 0.0
  %v320 = vmax.f32 %v256, 0.0
  %v321 = vmax.f32 %v257, 0.0
  %v322 = vmax.f32 %v258, 0.0
  %v323 = vmax.f32 %v259, 0.0
  %v324 = vmax.f32 %v260, 0.0
  %v325 = vmax.f32 %v261, 0.0
  %v326 = vmax.f32 %v262, 0.0
  %v327 = vmax.f32 %v263, 0.0
  %v328 = vmax.f32 %v264, 0.0
  %v329 = vmax.f32 %v265, 0.0
  %v330 = vmax.f32 %v266, 0.0
  %v331 = vmax.f32 %v267, 0.0
  %v332 = vmax.f32 %v268, 0.0
  %v333 = vmax.f32 %v269, 0.0
  %v334 = vmax.f32 %v270, 0.0
  %v335 = vmax.f32 %v271, 0.0
  %v336 = vmax.f32 %v272, 0.0
  %v337 = vmax.f32 %v273, 0.0
  %v338 = vmax.f32 %v274, 0.0
  %v339 = vmax.f32 %v275, 0.0
  %v340 = vmax.f32 %v276, 0.0
  %v341 = vmax.f32 %v277, 0.0
  %v342 = vmax.f32 %v278, 0.0
  %v343 = vmax.f32 %v279, 0.0
  %v344 = vmax.f32 %v280, 0.0
  %v345 = vmax.f32 %v281, 0.0
  %v346 = vmax.f32 %v282, 0.0
  %v347 = vmax.f32 %v283, 0.0
  %v348 = vpack.c.bf16 %v285, %v284
  %v349 = vpack.c.bf16 %v287, %v286
  %v350 = vpack.c.bf16 %v289, %v288
  %v351 = vpack.c.bf16 %v291, %v290
  %v352 = vpack.c.bf16 %v293, %v292
  %v353 = vpack.c.bf16 %v295, %v294
  %v354 = vpack.c.bf16 %v297, %v296
  %v355 = vpack.c.bf16 %v299, %v298
  %v356 = vpack.c.bf16 %v301, %v300
  %v357 = vpack.c.bf16 %v303, %v302
  %v358 = vpack.c.bf16 %v305, %v304
  %v359 = vpack.c.bf16 %v307, %v306
  %v360 = vpack.c.bf16 %v309, %v308
  %v361 = vpack.c.bf16 %v311, %v310
  %v362 = vpack.c.bf16 %v313, %v312
  %v363 = vpack.c.bf16 %v315, %v314
  %v364 = vpack.c.bf16 %v317, %v316
  %v365 = vpack.c.bf16 %v319, %v318
  %v366 = vpack.c.bf16 %v321, %v320
  %v367 = vpack.c.bf16 %v323, %v322
  %v368 = vpack.c.bf16 %v325, %v324
  %v369 = vpack.c.bf16 %v327, %v326
  %v370 = vpack.c.bf16 %v329, %v328
  %v371 = vpack.c.bf16 %v331, %v330
  %v372 = vpack.c.bf16 %v333, %v332
  %v373 = vpack.c.bf16 %v335, %v334
  %v374 = vpack.c.bf16 %v337, %v336
  %v375 = vpack.c.bf16 %v339, %v338
  %v376 = vpack.c.bf16 %v341, %v340
  %v377 = vpack.c.bf16 %v343, %v342
  %v378 = vpack.c.bf16 %v345, %v344
  %v379 = vpack.c.bf16 %v347, %v346
  %v412 = vunpack.c.l.b16 %v348
  %v413 = vunpack.c.h.b16 %v348
  %v414 = vunpack.c.l.b16 %v349
  %v415 = vunpack.c.h.b16 %v349
  %v416 = vunpack.c.l.b16 %v350
  %v417 = vunpack.c.h.b16 %v350
  %v418 = vunpack.c.l.b16 %v351
  %v419 = vunpack.c.h.b16 %v351
  %v420 = vunpack.c.l.b16 %v352
  %v421 = vunpack.c.h.b16 %v352
  %v422 = vunpack.c.l.b16 %v353
  %v423 = vunpack.c.h.b16 %v353
  %v424 = vunpack.c.l.b16 %v354
  %v425 = vunpack.c.h.b16 %v354
  %v426 = vunpack.c.l.b16 %v355
  %v427 = vunpack.c.h.b16 %v355
  %v428 = vunpack.c.l.b16 %v356
  %v429 = vunpack.c.h.b16 %v356
  %v430 = vunpack.c.l.b16 %v357
  %v431 = vunpack.c.h.b16 %v357
  %v432 = vunpack.c.l.b16 %v358
  %v433 = vunpack.c.h.b16 %v358
  %v434 = vunpack.c.l.b16 %v359
  %v435 = vunpack.c.h.b16 %v359
  %v436 = vunpack.c.l.b16 %v360
  %v437 = vunpack.c.h.b16 %v360
  %v438 = vunpack.c.l.b16 %v361
  %v439 = vunpack.c.h.b16 %v361
  %v440 = vunpack.c.l.b16 %v362
  %v441 = vunpack.c.h.b16 %v362
  %v442 = vunpack.c.l.b16 %v363
  %v443 = vunpack.c.h.b16 %v363
  %v444 = vunpack.c.l.b16 %v364
  %v445 = vunpack.c.h.b16 %v364
  %v446 = vunpack.c.l.b16 %v365
  %v447 = vunpack.c.h.b16 %v365
  %v448 = vunpack.c.l.b16 %v366
  %v449 = vunpack.c.h.b16 %v366
  %v450 = vunpack.c.l.b16 %v367
  %v451 = vunpack.c.h.b16 %v367
  %v452 = vunpack.c.l.b16 %v368
  %v453 = vunpack.c.h.b16 %v368
  %v454 = vunpack.c.l.b16 %v369
  %v455 = vunpack.c.h.b16 %v369
  %v456 = vunpack.c.l.b16 %v370
  %v457 = vunpack.c.h.b16 %v370
  %v458 = vunpack.c.l.b16 %v371
  %v459 = vunpack.c.h.b16 %v371
  %v460 = vunpack.c.l.b16 %v372
  %v461 = vunpack.c.h.b16 %v372
  %v462 = vunpack.c.l.b16 %v373
  %v463 = vunpack.c.h.b16 %v373
  %v464 = vunpack.c.l.b16 %v374
  %v465 = vunpack.c.h.b16 %v374
  %v466 = vunpack.c.l.b16 %v375
  %v467 = vunpack.c.h.b16 %v375
  %v468 = vunpack.c.l.b16 %v376
  %v469 = vunpack.c.h.b16 %v376
  %v470 = vunpack.c.l.b16 %v377
  %v471 = vunpack.c.h.b16 %v377
  %v472 = vunpack.c.l.b16 %v378
  %v473 = vunpack.c.h.b16 %v378
  %v474 = vunpack.c.l.b16 %v379
  %v475 = vunpack.c.h.b16 %v379
  %v476 = vpack.c.b16 %v412, %v412
  %v477 = vpack.c.b16 %v413, %v413
  %v478 = vpack.c.b16 %v414, %v414
  %v479 = vpack.c.b16 %v415, %v415
  %v480 = vpack.c.b16 %v416, %v416
  %v481 = vpack.c.b16 %v417, %v417
  %v482 = vpack.c.b16 %v418, %v418
  %v483 = vpack.c.b16 %v419, %v419
  %v484 = vpack.c.b16 %v420, %v420
  %v485 = vpack.c.b16 %v421, %v421
  %v486 = vpack.c.b16 %v422, %v422
  %v487 = vpack.c.b16 %v423, %v423
  %v488 = vpack.c.b16 %v424, %v424
  %v489 = vpack.c.b16 %v425, %v425
  %v490 = vpack.c.b16 %v426, %v426
  %v491 = vpack.c.b16 %v427, %v427
  %v492 = vpack.c.b16 %v428, %v428
  %v493 = vpack.c.b16 %v429, %v429
  %v494 = vpack.c.b16 %v430, %v430
  %v495 = vpack.c.b16 %v431, %v431
  %v496 = vpack.c.b16 %v432, %v432
  %v497 = vpack.c.b16 %v433, %v433
  %v498 = vpack.c.b16 %v434, %v434
  %v499 = vpack.c.b16 %v435, %v435
  %v500 = vpack.c.b16 %v436, %v436
  %v501 = vpack.c.b16 %v437, %v437
  %v502 = vpack.c.b16 %v438, %v438
  %v503 = vpack.c.b16 %v439, %v439
  %v504 = vpack.c.b16 %v440, %v440
  %v505 = vpack.c.b16 %v441, %v441
  %v506 = vpack.c.b16 %v442, %v442
  %v507 = vpack.c.b16 %v443, %v443
  %v508 = vpack.c.b16 %v444, %v444
  %v509 = vpack.c.b16 %v445, %v445
  %v510 = vpack.c.b16 %v446, %v446
  %v511 = vpack.c.b16 %v447, %v447
  %v512 = vpack.c.b16 %v448, %v448
  %v513 = vpack.c.b16 %v449, %v449
  %v514 = vpack.c.b16 %v450, %v450
  %v515 = vpack.c.b16 %v451, %v451
  %v516 = vpack.c.b16 %v452, %v452
  %v517 = vpack.c.b16 %v453, %v453
  %v518 = vpack.c.b16 %v454, %v454
  %v519 = vpack.c.b16 %v455, %v455
  %v520 = vpack.c.b16 %v456, %v456
  %v521 = vpack.c.b16 %v457, %v457
  %v522 = vpack.c.b16 %v458, %v458
  %v523 = vpack.c.b16 %v459, %v459
  %v524 = vpack.c.b16 %v460, %v460
  %v525 = vpack.c.b16 %v461, %v461
  %v526 = vpack.c.b16 %v462, %v462
  %v527 = vpack.c.b16 %v463, %v463
  %v528 = vpack.c.b16 %v464, %v464
  %v529 = vpack.c.b16 %v465, %v465
  %v530 = vpack.c.b16 %v466, %v466
  %v531 = vpack.c.b16 %v467, %v467
  %v532 = vpack.c.b16 %v468, %v468
  %v533 = vpack.c.b16 %v469, %v469
  %v534 = vpack.c.b16 %v470, %v470
  %v535 = vpack.c.b16 %v471, %v471
  %v536 = vpack.c.b16 %v472, %v472
  %v537 = vpack.c.b16 %v473, %v473
  %v538 = vpack.c.b16 %v474, %v474
  %v539 = vpack.c.b16 %v475, %v475
  %604 = vst [vmem:[%s3] sm:$0xf] %v476
  %605 = vst [vmem:[%s3 + $0x4] sm:$0xf] %v477
  %606 = vst [vmem:[%s3 + $0x8] sm:$0xf] %v478
  %607 = vst [vmem:[%s3 + $0xc] sm:$0xf] %v479
  %608 = vst [vmem:[%s3 + $0x10] sm:$0xf] %v480
  %609 = vst [vmem:[%s3 + $0x14] sm:$0xf] %v481
  %610 = vst [vmem:[%s3 + $0x18] sm:$0xf] %v482
  %611 = vst [vmem:[%s3 + $0x1c] sm:$0xf] %v483
  %612 = vst [vmem:[%s3 + $0x20] sm:$0xf] %v484
  %613 = vst [vmem:[%s3 + $0x24] sm:$0xf] %v485
  %614 = vst [vmem:[%s3 + $0x28] sm:$0xf] %v486
  %615 = vst [vmem:[%s3 + $0x2c] sm:$0xf] %v487
  %616 = vst [vmem:[%s3 + $0x30] sm:$0xf] %v488
  %617 = vst [vmem:[%s3 + $0x34] sm:$0xf] %v489
  %618 = vst [vmem:[%s3 + $0x38] sm:$0xf] %v490
  %619 = vst [vmem:[%s3 + $0x3c] sm:$0xf] %v491
  %620 = vst [vmem:[%s3 + $0x40] sm:$0xf] %v492
  %621 = vst [vmem:[%s3 + $0x44] sm:$0xf] %v493
  %622 = vst [vmem:[%s3 + $0x48] sm:$0xf] %v494
  %623 = vst [vmem:[%s3 + $0x4c] sm:$0xf] %v495
  %624 = vst [vmem:[%s3 + $0x50] sm:$0xf] %v496
  %625 = vst [vmem:[%s3 + $0x54] sm:$0xf] %v497
  %626 = vst [vmem:[%s3 + $0x58] sm:$0xf] %v498
  %627 = vst [vmem:[%s3 + $0x5c] sm:$0xf] %v499
  %628 = vst [vmem:[%s3 + $0x60] sm:$0xf] %v500
  %629 = vst [vmem:[%s3 + $0x64] sm:$0xf] %v501
  %630 = vst [vmem:[%s3 + $0x68] sm:$0xf] %v502
  %631 = vst [vmem:[%s3 + $0x6c] sm:$0xf] %v503
  %632 = vst [vmem:[%s3 + $0x70] sm:$0xf] %v504
  %633 = vst [vmem:[%s3 + $0x74] sm:$0xf] %v505
  %634 = vst [vmem:[%s3 + $0x78] sm:$0xf] %v506
  %635 = vst [vmem:[%s3 + $0x7c] sm:$0xf] %v507
  %636 = vst [vmem:[%s3 + $0x80] sm:$0xf] %v508
  %637 = vst [vmem:[%s3 + $0x84] sm:$0xf] %v509
  %638 = vst [vmem:[%s3 + $0x88] sm:$0xf] %v510
  %639 = vst [vmem:[%s3 + $0x8c] sm:$0xf] %v511
  %640 = vst [vmem:[%s3 + $0x90] sm:$0xf] %v512
  %641 = vst [vmem:[%s3 + $0x94] sm:$0xf] %v513
  %642 = vst [vmem:[%s3 + $0x98] sm:$0xf] %v514
  %643 = vst [vmem:[%s3 + $0x9c] sm:$0xf] %v515
  %644 = vst [vmem:[%s3 + $0xa0] sm:$0xf] %v516
  %645 = vst [vmem:[%s3 + $0xa4] sm:$0xf] %v517
  %646 = vst [vmem:[%s3 + $0xa8] sm:$0xf] %v518
  %647 = vst [vmem:[%s3 + $0xac] sm:$0xf] %v519
  %648 = vst [vmem:[%s3 + $0xb0] sm:$0xf] %v520
  %649 = vst [vmem:[%s3 + $0xb4] sm:$0xf] %v521
  %650 = vst [vmem:[%s3 + $0xb8] sm:$0xf] %v522
  %651 = vst [vmem:[%s3 + $0xbc] sm:$0xf] %v523
  %652 = vst [vmem:[%s3 + $0xc0] sm:$0xf] %v524
  %653 = vst [vmem:[%s3 + $0xc4] sm:$0xf] %v525
  %654 = vst [vmem:[%s3 + $0xc8] sm:$0xf] %v526
  %655 = vst [vmem:[%s3 + $0xcc] sm:$0xf] %v527
  %656 = vst [vmem:[%s3 + $0xd0] sm:$0xf] %v528
  %657 = vst [vmem:[%s3 + $0xd4] sm:$0xf] %v529
  %658 = vst [vmem:[%s3 + $0xd8] sm:$0xf] %v530
  %659 = vst [vmem:[%s3 + $0xdc] sm:$0xf] %v531
  %660 = vst [vmem:[%s3 + $0xe0] sm:$0xf] %v532
  %661 = vst [vmem:[%s3 + $0xe4] sm:$0xf] %v533
  %662 = vst [vmem:[%s3 + $0xe8] sm:$0xf] %v534
  %663 = vst [vmem:[%s3 + $0xec] sm:$0xf] %v535
  %664 = vst [vmem:[%s3 + $0xf0] sm:$0xf] %v536
  %665 = vst [vmem:[%s3 + $0xf4] sm:$0xf] %v537
  %666 = vst [vmem:[%s3 + $0xf8] sm:$0xf] %v538
  %667 = vst [vmem:[%s3 + $0xfc] sm:$0xf] %v539
  // Predicated region
  $region14: #{generator_forward.14} parent=0 // pred_check
    _
  $region15: #{generator_forward.14} parent=0 // pred_check_branch
    %669 = sbr.rel (0) target = $region17
  $region16: #{generator_forward.14} parent=0 // pred_region
    _
  $region17: #{generator_forward.14} parent=0 // pred_fallthru
    _
  // Predicated region
  $region18: #{generator_forward.14} parent=0 // pred_check
    _
  $region19: #{generator_forward.14} parent=0 // pred_check_branch
    %671 = sbr.rel (0) target = $region21
  $region20: #{generator_forward.14} parent=0 // pred_region
    _
  $region21: #{generator_forward.14} parent=0 // pred_fallthru
    _

// kernel: generator_forward.13
$region0: #{generator_forward.13}
  #allocation0 [shape = 'u32[]', space=smem, size = 0x4, offset = 0x4, fixed_abs, tag = 'smem constant byte address 0x4 - core index']
  #allocation1 [shape = 'u32[144,128]{1,0:T(1,128)}', space=vmem, size = 0x12000, scoped, tag = 'internal scratch']
  %s0 = inlined_call_operand.vmem [shape: bf16[512,512], index: 0, kind: input, shape index: {}]
  %s1 = inlined_call_operand.vmem [shape: bf16[512,128], index: 1, kind: input, shape index: {}]
  %s2 = inlined_call_operand.vmem [shape: bf16[512,128], index: 2, kind: output, shape index: {0}]
  %s3 = inlined_call_operand.vmem [shape: f32[8,128], index: 3, kind: output, shape index: {1}]
  %4 = xla_tuple %s2, %s3
  %s5 = sld [smem:[#allocation0]]
  $region26: #{generator_forward.13} parent=0
    _
  %s7 = ssub.s32 1, %s5
  %s8 = scalar_select 0, %s7, %s5
  // Predicated region
  $region2: #{generator_forward.13} parent=0 // pred_check
    _
  $region3: #{generator_forward.13} parent=0 // pred_check_branch
    %10 = sbr.rel (0) target = $region5
  $region4: #{generator_forward.13} parent=0 // pred_region
    _
  $region5: #{generator_forward.13} parent=0 // pred_fallthru
    _
  // Predicated region
  $region6: #{generator_forward.13} parent=0 // pred_check
    _
  $region7: #{generator_forward.13} parent=0 // pred_check_branch
    %12 = sbr.rel (0) target = $region9
  $region8: #{generator_forward.13} parent=0 // pred_region
    _
  $region9: #{generator_forward.13} parent=0 // pred_fallthru
    _
  %v14 = vld [vmem:[%s0] sm:$0xff]
  %v15 = vld [vmem:[%s0 + $0x8] sm:$0xff]
  %v16 = vld [vmem:[%s0 + $0x10] sm:$0xff]
  %v17 = vld [vmem:[%s0 + $0x18] sm:$0xff]
  %v18 = vld [vmem:[%s0 + $0x20] sm:$0xff]
  %v19 = vld [vmem:[%s0 + $0x28] sm:$0xff]
  %v20 = vld [vmem:[%s0 + $0x30] sm:$0xff]
  %v21 = vld [vmem:[%s0 + $0x38] sm:$0xff]
  %v22 = vld [vmem:[%s0 + $0x40] sm:$0xff]
  %v23 = vld [vmem:[%s0 + $0x48] sm:$0xff]
  %v24 = vld [vmem:[%s0 + $0x50] sm:$0xff]
  %v25 = vld [vmem:[%s0 + $0x58] sm:$0xff]
  %v26 = vld [vmem:[%s0 + $0x60] sm:$0xff]
  %v27 = vld [vmem:[%s0 + $0x68] sm:$0xff]
  %v28 = vld [vmem:[%s0 + $0x70] sm:$0xff]
  %v29 = vld [vmem:[%s0 + $0x78] sm:$0xff]
  %v30 = vld [vmem:[%s0 + $0x80] sm:$0xff]
  %v31 = vld [vmem:[%s0 + $0x88] sm:$0xff]
  %v32 = vld [vmem:[%s0 + $0x90] sm:$0xff]
  %v33 = vld [vmem:[%s0 + $0x98] sm:$0xff]
  %v34 = vld [vmem:[%s0 + $0xa0] sm:$0xff]
  %v35 = vld [vmem:[%s0 + $0xa8] sm:$0xff]
  %v36 = vld [vmem:[%s0 + $0xb0] sm:$0xff]
  %v37 = vld [vmem:[%s0 + $0xb8] sm:$0xff]
  %v38 = vld [vmem:[%s0 + $0xc0] sm:$0xff]
  %v39 = vld [vmem:[%s0 + $0xc8] sm:$0xff]
  %v40 = vld [vmem:[%s0 + $0xd0] sm:$0xff]
  %v41 = vld [vmem:[%s0 + $0xd8] sm:$0xff]
  %v42 = vld [vmem:[%s0 + $0xe0] sm:$0xff]
  %v43 = vld [vmem:[%s0 + $0xe8] sm:$0xff]
  %v44 = vld [vmem:[%s0 + $0xf0] sm:$0xff]
  %v45 = vld [vmem:[%s0 + $0xf8] sm:$0xff]
  %v46 = vld [vmem:[%s0 + $0x100] sm:$0xff]
  %v47 = vld [vmem:[%s0 + $0x108] sm:$0xff]
  %v48 = vld [vmem:[%s0 + $0x110] sm:$0xff]
  %v49 = vld [vmem:[%s0 + $0x118] sm:$0xff]
  %v50 = vld [vmem:[%s0 + $0x120] sm:$0xff]
  %v51 = vld [vmem:[%s0 + $0x128] sm:$0xff]
  %v52 = vld [vmem:[%s0 + $0x130] sm:$0xff]
  %v53 = vld [vmem:[%s0 + $0x138] sm:$0xff]
  %v54 = vld [vmem:[%s0 + $0x140] sm:$0xff]
  %v55 = vld [vmem:[%s0 + $0x148] sm:$0xff]
  %v56 = vld [vmem:[%s0 + $0x150] sm:$0xff]
  %v57 = vld [vmem:[%s0 + $0x158] sm:$0xff]
  %v58 = vld [vmem:[%s0 + $0x160] sm:$0xff]
  %v59 = vld [vmem:[%s0 + $0x168] sm:$0xff]
  %v60 = vld [vmem:[%s0 + $0x170] sm:$0xff]
  %v61 = vld [vmem:[%s0 + $0x178] sm:$0xff]
  %v62 = vld [vmem:[%s0 + $0x180] sm:$0xff]
  %v63 = vld [vmem:[%s0 + $0x188] sm:$0xff]
  %v64 = vld [vmem:[%s0 + $0x190] sm:$0xff]
  %v65 = vld [vmem:[%s0 + $0x198] sm:$0xff]
  %v66 = vld [vmem:[%s0 + $0x1a0] sm:$0xff]
  %v67 = vld [vmem:[%s0 + $0x1a8] sm:$0xff]
  %v68 = vld [vmem:[%s0 + $0x1b0] sm:$0xff]
  %v69 = vld [vmem:[%s0 + $0x1b8] sm:$0xff]
  %v70 = vld [vmem:[%s0 + $0x1c0] sm:$0xff]
  %v71 = vld [vmem:[%s0 + $0x1c8] sm:$0xff]
  %v72 = vld [vmem:[%s0 + $0x1d0] sm:$0xff]
  %v73 = vld [vmem:[%s0 + $0x1d8] sm:$0xff]
  %v74 = vld [vmem:[%s0 + $0x1e0] sm:$0xff]
  %v75 = vld [vmem:[%s0 + $0x1e8] sm:$0xff]
  %v76 = vld [vmem:[%s0 + $0x1f0] sm:$0xff]
  %v77 = vld [vmem:[%s0 + $0x1f8] sm:$0xff]
  %v78 = vld [vmem:[%s0 + $0x200] sm:$0xff]
  %v79 = vld [vmem:[%s0 + $0x208] sm:$0xff]
  %v80 = vld [vmem:[%s0 + $0x210] sm:$0xff]
  %v81 = vld [vmem:[%s0 + $0x218] sm:$0xff]
  %v82 = vld [vmem:[%s0 + $0x220] sm:$0xff]
  %v83 = vld [vmem:[%s0 + $0x228] sm:$0xff]
  %v84 = vld [vmem:[%s0 + $0x230] sm:$0xff]
  %v85 = vld [vmem:[%s0 + $0x238] sm:$0xff]
  %v86 = vld [vmem:[%s0 + $0x240] sm:$0xff]
  %v87 = vld [vmem:[%s0 + $0x248] sm:$0xff]
  %v88 = vld [vmem:[%s0 + $0x250] sm:$0xff]
  %v89 = vld [vmem:[%s0 + $0x258] sm:$0xff]
  %v90 = vld [vmem:[%s0 + $0x260] sm:$0xff]
  %v91 = vld [vmem:[%s0 + $0x268] sm:$0xff]
  %v92 = vld [vmem:[%s0 + $0x270] sm:$0xff]
  %v93 = vld [vmem:[%s0 + $0x278] sm:$0xff]
  %v94 = vld [vmem:[%s0 + $0x280] sm:$0xff]
  %v95 = vld [vmem:[%s0 + $0x288] sm:$0xff]
  %v96 = vld [vmem:[%s0 + $0x290] sm:$0xff]
  %v97 = vld [vmem:[%s0 + $0x298] sm:$0xff]
  %v98 = vld [vmem:[%s0 + $0x2a0] sm:$0xff]
  %v99 = vld [vmem:[%s0 + $0x2a8] sm:$0xff]
  %v100 = vld [vmem:[%s0 + $0x2b0] sm:$0xff]
  %v101 = vld [vmem:[%s0 + $0x2b8] sm:$0xff]
  %v102 = vld [vmem:[%s0 + $0x2c0] sm:$0xff]
  %v103 = vld [vmem:[%s0 + $0x2c8] sm:$0xff]
  %v104 = vld [vmem:[%s0 + $0x2d0] sm:$0xff]
  %v105 = vld [vmem:[%s0 + $0x2d8] sm:$0xff]
  %v106 = vld [vmem:[%s0 + $0x2e0] sm:$0xff]
  %v107 = vld [vmem:[%s0 + $0x2e8] sm:$0xff]
  %v108 = vld [vmem:[%s0 + $0x2f0] sm:$0xff]
  %v109 = vld [vmem:[%s0 + $0x2f8] sm:$0xff]
  %v110 = vld [vmem:[%s0 + $0x300] sm:$0xff]
  %v111 = vld [vmem:[%s0 + $0x308] sm:$0xff]
  %v112 = vld [vmem:[%s0 + $0x310] sm:$0xff]
  %v113 = vld [vmem:[%s0 + $0x318] sm:$0xff]
  %v114 = vld [vmem:[%s0 + $0x320] sm:$0xff]
  %v115 = vld [vmem:[%s0 + $0x328] sm:$0xff]
  %v116 = vld [vmem:[%s0 + $0x330] sm:$0xff]
  %v117 = vld [vmem:[%s0 + $0x338] sm:$0xff]
  %v118 = vld [vmem:[%s0 + $0x340] sm:$0xff]
  %v119 = vld [vmem:[%s0 + $0x348] sm:$0xff]
  %v120 = vld [vmem:[%s0 + $0x350] sm:$0xff]
  %v121 = vld [vmem:[%s0 + $0x358] sm:$0xff]
  %v122 = vld [vmem:[%s0 + $0x360] sm:$0xff]
  %v123 = vld [vmem:[%s0 + $0x368] sm:$0xff]
  %v124 = vld [vmem:[%s0 + $0x370] sm:$0xff]
  %v125 = vld [vmem:[%s0 + $0x378] sm:$0xff]
  %v126 = vld [vmem:[%s0 + $0x380] sm:$0xff]
  %v127 = vld [vmem:[%s0 + $0x388] sm:$0xff]
  %v128 = vld [vmem:[%s0 + $0x390] sm:$0xff]
  %v129 = vld [vmem:[%s0 + $0x398] sm:$0xff]
  %v130 = vld [vmem:[%s0 + $0x3a0] sm:$0xff]
  %v131 = vld [vmem:[%s0 + $0x3a8] sm:$0xff]
  %v132 = vld [vmem:[%s0 + $0x3b0] sm:$0xff]
  %v133 = vld [vmem:[%s0 + $0x3b8] sm:$0xff]
  %v134 = vld [vmem:[%s0 + $0x3c0] sm:$0xff]
  %v135 = vld [vmem:[%s0 + $0x3c8] sm:$0xff]
  %v136 = vld [vmem:[%s0 + $0x3d0] sm:$0xff]
  %v137 = vld [vmem:[%s0 + $0x3d8] sm:$0xff]
  %v138 = vld [vmem:[%s0 + $0x3e0] sm:$0xff]
  %v139 = vld [vmem:[%s0 + $0x3e8] sm:$0xff]
  %v140 = vld [vmem:[%s0 + $0x3f0] sm:$0xff]
  %v141 = vld [vmem:[%s0 + $0x3f8] sm:$0xff]
  %v142 = vld [vmem:[%s1] sm:$0xf]
  %v143 = vld [vmem:[%s1 + $0x4] sm:$0xf]
  %v144 = vld [vmem:[%s1 + $0x8] sm:$0xf]
  %v145 = vld [vmem:[%s1 + $0xc] sm:$0xf]
  %v146 = vld [vmem:[%s1 + $0x10] sm:$0xf]
  %v147 = vld [vmem:[%s1 + $0x14] sm:$0xf]
  %v148 = vld [vmem:[%s1 + $0x18] sm:$0xf]
  %v149 = vld [vmem:[%s1 + $0x1c] sm:$0xf]
  %v150 = vld [vmem:[%s1 + $0x20] sm:$0xf]
  %v151 = vld [vmem:[%s1 + $0x24] sm:$0xf]
  %v152 = vld [vmem:[%s1 + $0x28] sm:$0xf]
  %v153 = vld [vmem:[%s1 + $0x2c] sm:$0xf]
  %v154 = vld [vmem:[%s1 + $0x30] sm:$0xf]
  %v155 = vld [vmem:[%s1 + $0x34] sm:$0xf]
  %v156 = vld [vmem:[%s1 + $0x38] sm:$0xf]
  %v157 = vld [vmem:[%s1 + $0x3c] sm:$0xf]
  %v158 = vld [vmem:[%s1 + $0x40] sm:$0xf]
  %v159 = vld [vmem:[%s1 + $0x44] sm:$0xf]
  %v160 = vld [vmem:[%s1 + $0x48] sm:$0xf]
  %v161 = vld [vmem:[%s1 + $0x4c] sm:$0xf]
  %v162 = vld [vmem:[%s1 + $0x50] sm:$0xf]
  %v163 = vld [vmem:[%s1 + $0x54] sm:$0xf]
  %v164 = vld [vmem:[%s1 + $0x58] sm:$0xf]
  %v165 = vld [vmem:[%s1 + $0x5c] sm:$0xf]
  %v166 = vld [vmem:[%s1 + $0x60] sm:$0xf]
  %v167 = vld [vmem:[%s1 + $0x64] sm:$0xf]
  %v168 = vld [vmem:[%s1 + $0x68] sm:$0xf]
  %v169 = vld [vmem:[%s1 + $0x6c] sm:$0xf]
  %v170 = vld [vmem:[%s1 + $0x70] sm:$0xf]
  %v171 = vld [vmem:[%s1 + $0x74] sm:$0xf]
  %v172 = vld [vmem:[%s1 + $0x78] sm:$0xf]
  %v173 = vld [vmem:[%s1 + $0x7c] sm:$0xf]
  %v174 = vld [vmem:[%s1 + $0x80] sm:$0xf]
  %v175 = vld [vmem:[%s1 + $0x84] sm:$0xf]
  %v176 = vld [vmem:[%s1 + $0x88] sm:$0xf]
  %v177 = vld [vmem:[%s1 + $0x8c] sm:$0xf]
  %v178 = vld [vmem:[%s1 + $0x90] sm:$0xf]
  %v179 = vld [vmem:[%s1 + $0x94] sm:$0xf]
  %v180 = vld [vmem:[%s1 + $0x98] sm:$0xf]
  %v181 = vld [vmem:[%s1 + $0x9c] sm:$0xf]
  %v182 = vld [vmem:[%s1 + $0xa0] sm:$0xf]
  %v183 = vld [vmem:[%s1 + $0xa4] sm:$0xf]
  %v184 = vld [vmem:[%s1 + $0xa8] sm:$0xf]
  %v185 = vld [vmem:[%s1 + $0xac] sm:$0xf]
  %v186 = vld [vmem:[%s1 + $0xb0] sm:$0xf]
  %v187 = vld [vmem:[%s1 + $0xb4] sm:$0xf]
  %v188 = vld [vmem:[%s1 + $0xb8] sm:$0xf]
  %v189 = vld [vmem:[%s1 + $0xbc] sm:$0xf]
  %v190 = vld [vmem:[%s1 + $0xc0] sm:$0xf]
  %v191 = vld [vmem:[%s1 + $0xc4] sm:$0xf]
  %v192 = vld [vmem:[%s1 + $0xc8] sm:$0xf]
  %v193 = vld [vmem:[%s1 + $0xcc] sm:$0xf]
  %v194 = vld [vmem:[%s1 + $0xd0] sm:$0xf]
  %v195 = vld [vmem:[%s1 + $0xd4] sm:$0xf]
  %v196 = vld [vmem:[%s1 + $0xd8] sm:$0xf]
  %v197 = vld [vmem:[%s1 + $0xdc] sm:$0xf]
  %v198 = vld [vmem:[%s1 + $0xe0] sm:$0xf]
  %v199 = vld [vmem:[%s1 + $0xe4] sm:$0xf]
  %v200 = vld [vmem:[%s1 + $0xe8] sm:$0xf]
  %v201 = vld [vmem:[%s1 + $0xec] sm:$0xf]
  %v202 = vld [vmem:[%s1 + $0xf0] sm:$0xf]
  %v203 = vld [vmem:[%s1 + $0xf4] sm:$0xf]
  %v204 = vld [vmem:[%s1 + $0xf8] sm:$0xf]
  %v205 = vld [vmem:[%s1 + $0xfc] sm:$0xf]
  %v334 = vunpack.c.l.b16 %v14
  %v335 = vunpack.c.h.b16 %v14
  %v336 = vunpack.c.l.b16 %v15
  %v337 = vunpack.c.h.b16 %v15
  %v338 = vunpack.c.l.b16 %v16
  %v339 = vunpack.c.h.b16 %v16
  %v340 = vunpack.c.l.b16 %v17
  %v341 = vunpack.c.h.b16 %v17
  %v342 = vunpack.c.l.b16 %v18
  %v343 = vunpack.c.h.b16 %v18
  %v344 = vunpack.c.l.b16 %v19
  %v345 = vunpack.c.h.b16 %v19
  %v346 = vunpack.c.l.b16 %v20
  %v347 = vunpack.c.h.b16 %v20
  %v348 = vunpack.c.l.b16 %v21
  %v349 = vunpack.c.h.b16 %v21
  %v350 = vunpack.c.l.b16 %v22
  %v351 = vunpack.c.h.b16 %v22
  %v352 = vunpack.c.l.b16 %v23
  %v353 = vunpack.c.h.b16 %v23
  %v354 = vunpack.c.l.b16 %v24
  %v355 = vunpack.c.h.b16 %v24
  %v356 = vunpack.c.l.b16 %v25
  %v357 = vunpack.c.h.b16 %v25
  %v358 = vunpack.c.l.b16 %v26
  %v359 = vunpack.c.h.b16 %v26
  %v360 = vunpack.c.l.b16 %v27
  %v361 = vunpack.c.h.b16 %v27
  %v362 = vunpack.c.l.b16 %v28
  %v363 = vunpack.c.h.b16 %v28
  %v364 = vunpack.c.l.b16 %v29
  %v365 = vunpack.c.h.b16 %v29
  %v366 = vunpack.c.l.b16 %v30
  %v367 = vunpack.c.h.b16 %v30
  %v368 = vunpack.c.l.b16 %v31
  %v369 = vunpack.c.h.b16 %v31
  %v370 = vunpack.c.l.b16 %v32
  %v371 = vunpack.c.h.b16 %v32
  %v372 = vunpack.c.l.b16 %v33
  %v373 = vunpack.c.h.b16 %v33
  %v374 = vunpack.c.l.b16 %v34
  %v375 = vunpack.c.h.b16 %v34
  %v376 = vunpack.c.l.b16 %v35
  %v377 = vunpack.c.h.b16 %v35
  %v378 = vunpack.c.l.b16 %v36
  %v379 = vunpack.c.h.b16 %v36
  %v380 = vunpack.c.l.b16 %v37
  %v381 = vunpack.c.h.b16 %v37
  %v382 = vunpack.c.l.b16 %v38
  %v383 = vunpack.c.h.b16 %v38
  %v384 = vunpack.c.l.b16 %v39
  %v385 = vunpack.c.h.b16 %v39
  %v386 = vunpack.c.l.b16 %v40
  %v387 = vunpack.c.h.b16 %v40
  %v388 = vunpack.c.l.b16 %v41
  %v389 = vunpack.c.h.b16 %v41
  %v390 = vunpack.c.l.b16 %v42
  %v391 = vunpack.c.h.b16 %v42
  %v392 = vunpack.c.l.b16 %v43
  %v393 = vunpack.c.h.b16 %v43
  %v394 = vunpack.c.l.b16 %v44
  %v395 = vunpack.c.h.b16 %v44
  %v396 = vunpack.c.l.b16 %v45
  %v397 = vunpack.c.h.b16 %v45
  %v398 = vunpack.c.l.b16 %v46
  %v399 = vunpack.c.h.b16 %v46
  %v400 = vunpack.c.l.b16 %v47
  %v401 = vunpack.c.h.b16 %v47
  %v402 = vunpack.c.l.b16 %v48
  %v403 = vunpack.c.h.b16 %v48
  %v404 = vunpack.c.l.b16 %v49
  %v405 = vunpack.c.h.b16 %v49
  %v406 = vunpack.c.l.b16 %v50
  %v407 = vunpack.c.h.b16 %v50
  %v408 = vunpack.c.l.b16 %v51
  %v409 = vunpack.c.h.b16 %v51
  %v410 = vunpack.c.l.b16 %v52
  %v411 = vunpack.c.h.b16 %v52
  %v412 = vunpack.c.l.b16 %v53
  %v413 = vunpack.c.h.b16 %v53
  %v414 = vunpack.c.l.b16 %v54
  %v415 = vunpack.c.h.b16 %v54
  %v416 = vunpack.c.l.b16 %v55
  %v417 = vunpack.c.h.b16 %v55
  %v418 = vunpack.c.l.b16 %v56
  %v419 = vunpack.c.h.b16 %v56
  %v420 = vunpack.c.l.b16 %v57
  %v421 = vunpack.c.h.b16 %v57
  %v422 = vunpack.c.l.b16 %v58
  %v423 = vunpack.c.h.b16 %v58
  %v424 = vunpack.c.l.b16 %v59
  %v425 = vunpack.c.h.b16 %v59
  %v426 = vunpack.c.l.b16 %v60
  %v427 = vunpack.c.h.b16 %v60
  %v428 = vunpack.c.l.b16 %v61
  %v429 = vunpack.c.h.b16 %v61
  %v430 = vunpack.c.l.b16 %v62
  %v431 = vunpack.c.h.b16 %v62
  %v432 = vunpack.c.l.b16 %v63
  %v433 = vunpack.c.h.b16 %v63
  %v434 = vunpack.c.l.b16 %v64
  %v435 = vunpack.c.h.b16 %v64
  %v436 = vunpack.c.l.b16 %v65
  %v437 = vunpack.c.h.b16 %v65
  %v438 = vunpack.c.l.b16 %v66
  %v439 = vunpack.c.h.b16 %v66
  %v440 = vunpack.c.l.b16 %v67
  %v441 = vunpack.c.h.b16 %v67
  %v442 = vunpack.c.l.b16 %v68
  %v443 = vunpack.c.h.b16 %v68
  %v444 = vunpack.c.l.b16 %v69
  %v445 = vunpack.c.h.b16 %v69
  %v446 = vunpack.c.l.b16 %v70
  %v447 = vunpack.c.h.b16 %v70
  %v448 = vunpack.c.l.b16 %v71
  %v449 = vunpack.c.h.b16 %v71
  %v450 = vunpack.c.l.b16 %v72
  %v451 = vunpack.c.h.b16 %v72
  %v452 = vunpack.c.l.b16 %v73
  %v453 = vunpack.c.h.b16 %v73
  %v454 = vunpack.c.l.b16 %v74
  %v455 = vunpack.c.h.b16 %v74
  %v456 = vunpack.c.l.b16 %v75
  %v457 = vunpack.c.h.b16 %v75
  %v458 = vunpack.c.l.b16 %v76
  %v459 = vunpack.c.h.b16 %v76
  %v460 = vunpack.c.l.b16 %v77
  %v461 = vunpack.c.h.b16 %v77
  %v462 = vunpack.c.l.b16 %v78
  %v463 = vunpack.c.h.b16 %v78
  %v464 = vunpack.c.l.b16 %v79
  %v465 = vunpack.c.h.b16 %v79
  %v466 = vunpack.c.l.b16 %v80
  %v467 = vunpack.c.h.b16 %v80
  %v468 = vunpack.c.l.b16 %v81
  %v469 = vunpack.c.h.b16 %v81
  %v470 = vunpack.c.l.b16 %v82
  %v471 = vunpack.c.h.b16 %v82
  %v472 = vunpack.c.l.b16 %v83
  %v473 = vunpack.c.h.b16 %v83
  %v474 = vunpack.c.l.b16 %v84
  %v475 = vunpack.c.h.b16 %v84
  %v476 = vunpack.c.l.b16 %v85
  %v477 = vunpack.c.h.b16 %v85
  %v478 = vunpack.c.l.b16 %v86
  %v479 = vunpack.c.h.b16 %v86
  %v480 = vunpack.c.l.b16 %v87
  %v481 = vunpack.c.h.b16 %v87
  %v482 = vunpack.c.l.b16 %v88
  %v483 = vunpack.c.h.b16 %v88
  %v484 = vunpack.c.l.b16 %v89
  %v485 = vunpack.c.h.b16 %v89
  %v486 = vunpack.c.l.b16 %v90
  %v487 = vunpack.c.h.b16 %v90
  %v488 = vunpack.c.l.b16 %v91
  %v489 = vunpack.c.h.b16 %v91
  %v490 = vunpack.c.l.b16 %v92
  %v491 = vunpack.c.h.b16 %v92
  %v492 = vunpack.c.l.b16 %v93
  %v493 = vunpack.c.h.b16 %v93
  %v494 = vunpack.c.l.b16 %v94
  %v495 = vunpack.c.h.b16 %v94
  %v496 = vunpack.c.l.b16 %v95
  %v497 = vunpack.c.h.b16 %v95
  %v498 = vunpack.c.l.b16 %v96
  %v499 = vunpack.c.h.b16 %v96
  %v500 = vunpack.c.l.b16 %v97
  %v501 = vunpack.c.h.b16 %v97
  %v502 = vunpack.c.l.b16 %v98
  %v503 = vunpack.c.h.b16 %v98
  %v504 = vunpack.c.l.b16 %v99
  %v505 = vunpack.c.h.b16 %v99
  %v506 = vunpack.c.l.b16 %v100
  %v507 = vunpack.c.h.b16 %v100
  %v508 = vunpack.c.l.b16 %v101
  %v509 = vunpack.c.h.b16 %v101
  %v510 = vunpack.c.l.b16 %v102
  %v511 = vunpack.c.h.b16 %v102
  %v512 = vunpack.c.l.b16 %v103
  %v513 = vunpack.c.h.b16 %v103
  %v514 = vunpack.c.l.b16 %v104
  %v515 = vunpack.c.h.b16 %v104
  %v516 = vunpack.c.l.b16 %v105
  %v517 = vunpack.c.h.b16 %v105
  %v518 = vunpack.c.l.b16 %v106
  %v519 = vunpack.c.h.b16 %v106
  %v520 = vunpack.c.l.b16 %v107
  %v521 = vunpack.c.h.b16 %v107
  %v522 = vunpack.c.l.b16 %v108
  %v523 = vunpack.c.h.b16 %v108
  %v524 = vunpack.c.l.b16 %v109
  %v525 = vunpack.c.h.b16 %v109
  %v526 = vunpack.c.l.b16 %v110
  %v527 = vunpack.c.h.b16 %v110
  %v528 = vunpack.c.l.b16 %v111
  %v529 = vunpack.c.h.b16 %v111
  %v530 = vunpack.c.l.b16 %v112
  %v531 = vunpack.c.h.b16 %v112
  %v532 = vunpack.c.l.b16 %v113
  %v533 = vunpack.c.h.b16 %v113
  %v534 = vunpack.c.l.b16 %v114
  %v535 = vunpack.c.h.b16 %v114
  %v536 = vunpack.c.l.b16 %v115
  %v537 = vunpack.c.h.b16 %v115
  %v538 = vunpack.c.l.b16 %v116
  %v539 = vunpack.c.h.b16 %v116
  %v540 = vunpack.c.l.b16 %v117
  %v541 = vunpack.c.h.b16 %v117
  %v542 = vunpack.c.l.b16 %v118
  %v543 = vunpack.c.h.b16 %v118
  %v544 = vunpack.c.l.b16 %v119
  %v545 = vunpack.c.h.b16 %v119
  %v546 = vunpack.c.l.b16 %v120
  %v547 = vunpack.c.h.b16 %v120
  %v548 = vunpack.c.l.b16 %v121
  %v549 = vunpack.c.h.b16 %v121
  %v550 = vunpack.c.l.b16 %v122
  %v551 = vunpack.c.h.b16 %v122
  %v552 = vunpack.c.l.b16 %v123
  %v553 = vunpack.c.h.b16 %v123
  %v554 = vunpack.c.l.b16 %v124
  %v555 = vunpack.c.h.b16 %v124
  %v556 = vunpack.c.l.b16 %v125
  %v557 = vunpack.c.h.b16 %v125
  %v558 = vunpack.c.l.b16 %v126
  %v559 = vunpack.c.h.b16 %v126
  %v560 = vunpack.c.l.b16 %v127
  %v561 = vunpack.c.h.b16 %v127
  %v562 = vunpack.c.l.b16 %v128
  %v563 = vunpack.c.h.b16 %v128
  %v564 = vunpack.c.l.b16 %v129
  %v565 = vunpack.c.h.b16 %v129
  %v566 = vunpack.c.l.b16 %v130
  %v567 = vunpack.c.h.b16 %v130
  %v568 = vunpack.c.l.b16 %v131
  %v569 = vunpack.c.h.b16 %v131
  %v570 = vunpack.c.l.b16 %v132
  %v571 = vunpack.c.h.b16 %v132
  %v572 = vunpack.c.l.b16 %v133
  %v573 = vunpack.c.h.b16 %v133
  %v574 = vunpack.c.l.b16 %v134
  %v575 = vunpack.c.h.b16 %v134
  %v576 = vunpack.c.l.b16 %v135
  %v577 = vunpack.c.h.b16 %v135
  %v578 = vunpack.c.l.b16 %v136
  %v579 = vunpack.c.h.b16 %v136
  %v580 = vunpack.c.l.b16 %v137
  %v581 = vunpack.c.h.b16 %v137
  %v582 = vunpack.c.l.b16 %v138
  %v583 = vunpack.c.h.b16 %v138
  %v584 = vunpack.c.l.b16 %v139
  %v585 = vunpack.c.h.b16 %v139
  %v586 = vunpack.c.l.b16 %v140
  %v587 = vunpack.c.h.b16 %v140
  %v588 = vunpack.c.l.b16 %v141
  %v589 = vunpack.c.h.b16 %v141
  %v590 = vpack.c.b16 %v338, %v334
  %v591 = vpack.c.b16 %v339, %v335
  %v592 = vpack.c.b16 %v340, %v336
  %v593 = vpack.c.b16 %v341, %v337
  %v594 = vpack.c.b16 %v346, %v342
  %v595 = vpack.c.b16 %v347, %v343
  %v596 = vpack.c.b16 %v348, %v344
  %v597 = vpack.c.b16 %v349, %v345
  %v598 = vpack.c.b16 %v354, %v350
  %v599 = vpack.c.b16 %v355, %v351
  %v600 = vpack.c.b16 %v356, %v352
  %v601 = vpack.c.b16 %v357, %v353
  %v602 = vpack.c.b16 %v362, %v358
  %v603 = vpack.c.b16 %v363, %v359
  %v604 = vpack.c.b16 %v364, %v360
  %v605 = vpack.c.b16 %v365, %v361
  %v606 = vpack.c.b16 %v370, %v366
  %v607 = vpack.c.b16 %v371, %v367
  %v608 = vpack.c.b16 %v372, %v368
  %v609 = vpack.c.b16 %v373, %v369
  %v610 = vpack.c.b16 %v378, %v374
  %v611 = vpack.c.b16 %v379, %v375
  %v612 = vpack.c.b16 %v380, %v376
  %v613 = vpack.c.b16 %v381, %v377
  %v614 = vpack.c.b16 %v386, %v382
  %v615 = vpack.c.b16 %v387, %v383
  %v616 = vpack.c.b16 %v388, %v384
  %v617 = vpack.c.b16 %v389, %v385
  %v618 = vpack.c.b16 %v394, %v390
  %v619 = vpack.c.b16 %v395, %v391
  %v620 = vpack.c.b16 %v396, %v392
  %v621 = vpack.c.b16 %v397, %v393
  %v622 = vpack.c.b16 %v402, %v398
  %v623 = vpack.c.b16 %v403, %v399
  %v624 = vpack.c.b16 %v404, %v400
  %v625 = vpack.c.b16 %v405, %v401
  %v626 = vpack.c.b16 %v410, %v406
  %v627 = vpack.c.b16 %v411, %v407
  %v628 = vpack.c.b16 %v412, %v408
  %v629 = vpack.c.b16 %v413, %v409
  %v630 = vpack.c.b16 %v418, %v414
  %v631 = vpack.c.b16 %v419, %v415
  %v632 = vpack.c.b16 %v420, %v416
  %v633 = vpack.c.b16 %v421, %v417
  %v634 = vpack.c.b16 %v426, %v422
  %v635 = vpack.c.b16 %v427, %v423
  %v636 = vpack.c.b16 %v428, %v424
  %v637 = vpack.c.b16 %v429, %v425
  %v638 = vpack.c.b16 %v434, %v430
  %v639 = vpack.c.b16 %v435, %v431
  %v640 = vpack.c.b16 %v436, %v432
  %v641 = vpack.c.b16 %v437, %v433
  %v642 = vpack.c.b16 %v442, %v438
  %v643 = vpack.c.b16 %v443, %v439
  %v644 = vpack.c.b16 %v444, %v440
  %v645 = vpack.c.b16 %v445, %v441
  %v646 = vpack.c.b16 %v450, %v446
  %v647 = vpack.c.b16 %v451, %v447
  %v648 = vpack.c.b16 %v452, %v448
  %v649 = vpack.c.b16 %v453, %v449
  %v650 = vpack.c.b16 %v458, %v454
  %v651 = vpack.c.b16 %v459, %v455
  %v652 = vpack.c.b16 %v460, %v456
  %v653 = vpack.c.b16 %v461, %v457
  %v654 = vpack.c.b16 %v466, %v462
  %v655 = vpack.c.b16 %v467, %v463
  %v656 = vpack.c.b16 %v468, %v464
  %v657 = vpack.c.b16 %v469, %v465
  %v658 = vpack.c.b16 %v474, %v470
  %v659 = vpack.c.b16 %v475, %v471
  %v660 = vpack.c.b16 %v476, %v472
  %v661 = vpack.c.b16 %v477, %v473
  %v662 = vpack.c.b16 %v482, %v478
  %v663 = vpack.c.b16 %v483, %v479
  %v664 = vpack.c.b16 %v484, %v480
  %v665 = vpack.c.b16 %v485, %v481
  %v666 = vpack.c.b16 %v490, %v486
  %v667 = vpack.c.b16 %v491, %v487
  %v668 = vpack.c.b16 %v492, %v488
  %v669 = vpack.c.b16 %v493, %v489
  %v670 = vpack.c.b16 %v498, %v494
  %v671 = vpack.c.b16 %v499, %v495
  %v672 = vpack.c.b16 %v500, %v496
  %v673 = vpack.c.b16 %v501, %v497
  %v674 = vpack.c.b16 %v506, %v502
  %v675 = vpack.c.b16 %v507, %v503
  %v676 = vpack.c.b16 %v508, %v504
  %v677 = vpack.c.b16 %v509, %v505
  %v678 = vpack.c.b16 %v514, %v510
  %v679 = vpack.c.b16 %v515, %v511
  %v680 = vpack.c.b16 %v516, %v512
  %v681 = vpack.c.b16 %v517, %v513
  %v682 = vpack.c.b16 %v522, %v518
  %v683 = vpack.c.b16 %v523, %v519
  %v684 = vpack.c.b16 %v524, %v520
  %v685 = vpack.c.b16 %v525, %v521
  %v686 = vpack.c.b16 %v530, %v526
  %v687 = vpack.c.b16 %v531, %v527
  %v688 = vpack.c.b16 %v532, %v528
  %v689 = vpack.c.b16 %v533, %v529
  %v690 = vpack.c.b16 %v538, %v534
  %v691 = vpack.c.b16 %v539, %v535
  %v692 = vpack.c.b16 %v540, %v536
  %v693 = vpack.c.b16 %v541, %v537
  %v694 = vpack.c.b16 %v546, %v542
  %v695 = vpack.c.b16 %v547, %v543
  %v696 = vpack.c.b16 %v548, %v544
  %v697 = vpack.c.b16 %v549, %v545
  %v698 = vpack.c.b16 %v554, %v550
  %v699 = vpack.c.b16 %v555, %v551
  %v700 = vpack.c.b16 %v556, %v552
  %v701 = vpack.c.b16 %v557, %v553
  %v702 = vpack.c.b16 %v562, %v558
  %v703 = vpack.c.b16 %v563, %v559
  %v704 = vpack.c.b16 %v564, %v560
  %v705 = vpack.c.b16 %v565, %v561
  %v706 = vpack.c.b16 %v570, %v566
  %v707 = vpack.c.b16 %v571, %v567
  %v708 = vpack.c.b16 %v572, %v568
  %v709 = vpack.c.b16 %v573, %v569
  %v710 = vpack.c.b16 %v578, %v574
  %v711 = vpack.c.b16 %v579, %v575
  %v712 = vpack.c.b16 %v580, %v576
  %v713 = vpack.c.b16 %v581, %v577
  %v714 = vpack.c.b16 %v586, %v582
  %v715 = vpack.c.b16 %v587, %v583
  %v716 = vpack.c.b16 %v588, %v584
  %v717 = vpack.c.b16 %v589, %v585
  %v910 = vunpack.c.l.b16 %v142
  %v911 = vunpack.c.l.b16 %v143
  %v912 = vunpack.c.l.b16 %v144
  %v913 = vunpack.c.l.b16 %v145
  %v914 = vunpack.c.l.b16 %v146
  %v915 = vunpack.c.l.b16 %v147
  %v916 = vunpack.c.l.b16 %v148
  %v917 = vunpack.c.l.b16 %v149
  %v918 = vunpack.c.l.b16 %v150
  %v919 = vunpack.c.l.b16 %v151
  %v920 = vunpack.c.l.b16 %v152
  %v921 = vunpack.c.l.b16 %v153
  %v922 = vunpack.c.l.b16 %v154
  %v923 = vunpack.c.l.b16 %v155
  %v924 = vunpack.c.l.b16 %v156
  %v925 = vunpack.c.l.b16 %v157
  %v926 = vunpack.c.l.b16 %v158
  %v927 = vunpack.c.l.b16 %v159
  %v928 = vunpack.c.l.b16 %v160
  %v929 = vunpack.c.l.b16 %v161
  %v930 = vunpack.c.l.b16 %v162
  %v931 = vunpack.c.l.b16 %v163
  %v932 = vunpack.c.l.b16 %v164
  %v933 = vunpack.c.l.b16 %v165
  %v934 = vunpack.c.l.b16 %v166
  %v935 = vunpack.c.l.b16 %v167
  %v936 = vunpack.c.l.b16 %v168
  %v937 = vunpack.c.l.b16 %v169
  %v938 = vunpack.c.l.b16 %v170
  %v939 = vunpack.c.l.b16 %v171
  %v940 = vunpack.c.l.b16 %v172
  %v941 = vunpack.c.l.b16 %v173
  %v942 = vunpack.c.l.b16 %v174
  %v943 = vunpack.c.l.b16 %v175
  %v944 = vunpack.c.l.b16 %v176
  %v945 = vunpack.c.l.b16 %v177
  %v946 = vunpack.c.l.b16 %v178
  %v947 = vunpack.c.l.b16 %v179
  %v948 = vunpack.c.l.b16 %v180
  %v949 = vunpack.c.l.b16 %v181
  %v950 = vunpack.c.l.b16 %v182
  %v951 = vunpack.c.l.b16 %v183
  %v952 = vunpack.c.l.b16 %v184
  %v953 = vunpack.c.l.b16 %v185
  %v954 = vunpack.c.l.b16 %v186
  %v955 = vunpack.c.l.b16 %v187
  %v956 = vunpack.c.l.b16 %v188
  %v957 = vunpack.c.l.b16 %v189
  %v958 = vunpack.c.l.b16 %v190
  %v959 = vunpack.c.l.b16 %v191
  %v960 = vunpack.c.l.b16 %v192
  %v961 = vunpack.c.l.b16 %v193
  %v962 = vunpack.c.l.b16 %v194
  %v963 = vunpack.c.l.b16 %v195
  %v964 = vunpack.c.l.b16 %v196
  %v965 = vunpack.c.l.b16 %v197
  %v966 = vunpack.c.l.b16 %v198
  %v967 = vunpack.c.l.b16 %v199
  %v968 = vunpack.c.l.b16 %v200
  %v969 = vunpack.c.l.b16 %v201
  %v970 = vunpack.c.l.b16 %v202
  %v971 = vunpack.c.l.b16 %v203
  %v972 = vunpack.c.l.b16 %v204
  %v973 = vunpack.c.l.b16 %v205
  %v974 = vpack.c.b16 %v911, %v910
  %v975 = vpack.c.b16 %v913, %v912
  %v976 = vpack.c.b16 %v915, %v914
  %v977 = vpack.c.b16 %v917, %v916
  %v978 = vpack.c.b16 %v919, %v918
  %v979 = vpack.c.b16 %v921, %v920
  %v980 = vpack.c.b16 %v923, %v922
  %v981 = vpack.c.b16 %v925, %v924
  %v982 = vpack.c.b16 %v927, %v926
  %v983 = vpack.c.b16 %v929, %v928
  %v984 = vpack.c.b16 %v931, %v930
  %v985 = vpack.c.b16 %v933, %v932
  %v986 = vpack.c.b16 %v935, %v934
  %v987 = vpack.c.b16 %v937, %v936
  %v988 = vpack.c.b16 %v939, %v938
  %v989 = vpack.c.b16 %v941, %v940
  %v990 = vpack.c.b16 %v943, %v942
  %v991 = vpack.c.b16 %v945, %v944
  %v992 = vpack.c.b16 %v947, %v946
  %v993 = vpack.c.b16 %v949, %v948
  %v994 = vpack.c.b16 %v951, %v950
  %v995 = vpack.c.b16 %v953, %v952
  %v996 = vpack.c.b16 %v955, %v954
  %v997 = vpack.c.b16 %v957, %v956
  %v998 = vpack.c.b16 %v959, %v958
  %v999 = vpack.c.b16 %v961, %v960
  %v1000 = vpack.c.b16 %v963, %v962
  %v1001 = vpack.c.b16 %v965, %v964
  %v1002 = vpack.c.b16 %v967, %v966
  %v1003 = vpack.c.b16 %v969, %v968
  %v1004 = vpack.c.b16 %v971, %v970
  %v1005 = vpack.c.b16 %v973, %v972
  %1038 = vmatprep.subr.bf16.mxu0 0
  %1039 = vmatpush1.bf16.msra.mxu0 %v974
  %1040 = vmatprep.subr.bf16.mxu0 0
  %1041 = vmatpush1.bf16.msra.mxu0 %v975
  %1042 = vmatprep.subr.bf16.mxu0 0
  %1043 = vmatpush1.bf16.msra.mxu0 %v976
  %1044 = vmatprep.subr.bf16.mxu0 0
  %1045 = vmatpush1.bf16.msra.mxu0 %v977
  %1046 = vmatprep.subr.bf16.mxu0 0
  %1047 = vmatpush1.bf16.msra.mxu0 %v978
  %1048 = vmatprep.subr.bf16.mxu0 0
  %1049 = vmatpush1.bf16.msra.mxu0 %v979
  %1050 = vmatprep.subr.bf16.mxu0 0
  %1051 = vmatpush1.bf16.msra.mxu0 %v980
  %1052 = vmatprep.subr.bf16.mxu0 0
  %1053 = vmatpush1.bf16.msra.mxu0 %v981
  %1054 = vmatprep.subr.bf16.mxu0 0
  %1055 = vmatpush1.bf16.msra.mxu0 %v982
  %1056 = vmatprep.subr.bf16.mxu0 0
  %1057 = vmatpush1.bf16.msra.mxu0 %v983
  %1058 = vmatprep.subr.bf16.mxu0 0
  %1059 = vmatpush1.bf16.msra.mxu0 %v984
  %1060 = vmatprep.subr.bf16.mxu0 0
  %1061 = vmatpush1.bf16.msra.mxu0 %v985
  %1062 = vmatprep.subr.bf16.mxu0 0
  %1063 = vmatpush1.bf16.msra.mxu0 %v986
  %1064 = vmatprep.subr.bf16.mxu0 0
  %1065 = vmatpush1.bf16.msra.mxu0 %v987
  %1066 = vmatprep.subr.bf16.mxu0 0
  %1067 = vmatpush1.bf16.msra.mxu0 %v988
  %1068 = vmatprep.subr.bf16.mxu0 0
  %1069 = vmatpush1.bf16.msra.mxu0 %v989
  %1070 = vmatprep.mubr.bf16.mxu0 %v591
  %1071 = vmatmul.mubr.bf16.gmra.mrb[0].mxu0 %v590
  %v1072 = vpop.f32.mrb[0].mxu0
  %v1073 = vadd.f32 0.0, %v1072
  %v1074 = vpop.f32.mrb[0].mxu0
  %v1075 = vpop.f32.mrb[0].mxu0
  %v1076 = vadd.f32 0.0, %v1075
  %v1077 = vpop.f32.mrb[0].mxu0
  %1078 = vmatprep.mubr.bf16.mxu0 %v595
  %1079 = vmatmul.mubr.bf16.gmra.mrb[0].mxu0 %v594
  %v1080 = vpop.f32.mrb[0].mxu0
  %v1081 = vadd.f32 0.0, %v1080
  %v1082 = vpop.f32.mrb[0].mxu0
  %v1083 = vpop.f32.mrb[0].mxu0
  %v1084 = vadd.f32 0.0, %v1083
  %v1085 = vpop.f32.mrb[0].mxu0
  %1086 = vmatprep.mubr.bf16.mxu0 %v599
  %1087 = vmatmul.mubr.bf16.gmra.mrb[0].mxu0 %v598
  %v1088 = vpop.f32.mrb[0].mxu0
  %v1089 = vadd.f32 0.0, %v1088
  %v1090 = vpop.f32.mrb[0].mxu0
  %v1091 = vpop.f32.mrb[0].mxu0
  %v1092 = vadd.f32 0.0, %v1091
  %v1093 = vpop.f32.mrb[0].mxu0
  %1094 = vmatprep.mubr.bf16.mxu0 %v603
  %1095 = vmatmul.mubr.bf16.gmra.mrb[0].mxu0 %v602
  %v1096 = vpop.f32.mrb[0].mxu0
  %v1097 = vadd.f32 0.0, %v1096
  %v1098 = vpop.f32.mrb[0].mxu0
  %v1099 = vpop.f32.mrb[0].mxu0
  %v1100 = vadd.f32 0.0, %v1099
  %v1101 = vpop.f32.mrb[0].mxu0
  %1102 = vmatprep.mubr.bf16.mxu0 %v607
  %1103 = vmatmul.mubr.bf16.gmra.mrb[0].mxu0 %v606
  %v1104 = vpop.f32.mrb[0].mxu0
  %v1105 = vadd.f32 0.0, %v1104
  %v1106 = vpop.f32.mrb[0].mxu0
  %v1107 = vpop.f32.mrb[0].mxu0
  %v1108 = vadd.f32 0.0, %v1107
  %v1109 = vpop.f32.mrb[0].mxu0
  %1110 = vmatprep.mubr.bf16.mxu0 %v611
  %1111 = vmatmul.mubr.bf16.gmra.mrb[0].mxu0 %v610
  %v1112 = vpop.f32.mrb[0].mxu0
  %v1113 = vadd.f32 0.0, %v1112
  %v1114 = vpop.f32.mrb[0].mxu0
  %v1115 = vpop.f32.mrb[0].mxu0
  %v1116 = vadd.f32 0.0, %v1115
  %v1117 = vpop.f32.mrb[0].mxu0
  %1118 = vmatprep.mubr.bf16.mxu0 %v615
  %1119 = vmatmul.mubr.bf16.gmra.mrb[0].mxu0 %v614
  %v1120 = vpop.f32.mrb[0].mxu0
  %v1121 = vadd.f32 0.0, %v1120
  %v1122 = vpop.f32.mrb[0].mxu0
  %v1123 = vpop.f32.mrb[0].mxu0
  %v1124 = vadd.f32 0.0, %v1123
  %v1125 = vpop.f32.mrb[0].mxu0
  %1126 = vmatprep.mubr.bf16.mxu0 %v619
  %1127 = vmatmul.mubr.bf16.gmra.mrb[0].mxu0 %v618
  %v1128 = vpop.f32.mrb[0].mxu0
  %v1129 = vadd.f32 0.0, %v1128
  %v1130 = vpop.f32.mrb[0].mxu0
  %v1131 = vpop.f32.mrb[0].mxu0
  %v1132 = vadd.f32 0.0, %v1131
  %v1133 = vpop.f32.mrb[0].mxu0
  %1134 = vmatprep.mubr.bf16.mxu0 %v623
  %1135 = vmatmul.mubr.bf16.gmra.mrb[0].mxu0 %v622
  %v1136 = vpop.f32.mrb[0].mxu0
  %v1137 = vadd.f32 0.0, %v1136
  %v1138 = vpop.f32.mrb[0].mxu0
  %v1139 = vpop.f32.mrb[0].mxu0
  %v1140 = vadd.f32 0.0, %v1139
  %v1141 = vpop.f32.mrb[0].mxu0
  %1142 = vmatprep.mubr.bf16.mxu0 %v627
  %1143 = vmatmul.mubr.bf16.gmra.mrb[0].mxu0 %v626
  %v1144 = vpop.f32.mrb[0].mxu0
  %v1145 = vadd.f32 0.0, %v1144
  %v1146 = vpop.f32.mrb[0].mxu0
  %v1147 = vpop.f32.mrb[0].mxu0
  %v1148 = vadd.f32 0.0, %v1147
  %v1149 = vpop.f32.mrb[0].mxu0
  %1150 = vmatprep.mubr.bf16.mxu0 %v631
  %1151 = vmatmul.mubr.bf16.gmra.mrb[0].mxu0 %v630
  %v1152 = vpop.f32.mrb[0].mxu0
  %v1153 = vadd.f32 0.0, %v1152
  %v1154 = vpop.f32.mrb[0].mxu0
  %v1155 = vpop.f32.mrb[0].mxu0
  %v1156 = vadd.f32 0.0, %v1155
  %v1157 = vpop.f32.mrb[0].mxu0
  %1158 = vmatprep.mubr.bf16.mxu0 %v635
  %1159 = vmatmul.mubr.bf16.gmra.mrb[0].mxu0 %v634
  %v1160 = vpop.f32.mrb[0].mxu0
  %v1161 = vadd.f32 0.0, %v1160
  %v1162 = vpop.f32.mrb[0].mxu0
  %v1163 = vpop.f32.mrb[0].mxu0
  %v1164 = vadd.f32 0.0, %v1163
  %v1165 = vpop.f32.mrb[0].mxu0
  %1166 = vmatprep.mubr.bf16.mxu0 %v639
  %1167 = vmatmul.mubr.bf16.gmra.mrb[0].mxu0 %v638
  %v1168 = vpop.f32.mrb[0].mxu0
  %v1169 = vadd.f32 0.0, %v1168
  %v1170 = vpop.f32.mrb[0].mxu0
  %v1171 = vpop.f32.mrb[0].mxu0
  %v1172 = vadd.f32 0.0, %v1171
  %v1173 = vpop.f32.mrb[0].mxu0
  %1174 = vmatprep.mubr.bf16.mxu0 %v643
  %1175 = vmatmul.mubr.bf16.gmra.mrb[0].mxu0 %v642
  %v1176 = vpop.f32.mrb[0].mxu0
  %v1177 = vadd.f32 0.0, %v1176
  %v1178 = vpop.f32.mrb[0].mxu0
  %v1179 = vpop.f32.mrb[0].mxu0
  %v1180 = vadd.f32 0.0, %v1179
  %v1181 = vpop.f32.mrb[0].mxu0
  %1182 = vmatprep.mubr.bf16.mxu0 %v647
  %1183 = vmatmul.mubr.bf16.gmra.mrb[0].mxu0 %v646
  %v1184 = vpop.f32.mrb[0].mxu0
  %v1185 = vadd.f32 0.0, %v1184
  %v1186 = vpop.f32.mrb[0].mxu0
  %v1187 = vpop.f32.mrb[0].mxu0
  %v1188 = vadd.f32 0.0, %v1187
  %v1189 = vpop.f32.mrb[0].mxu0
  %1190 = vmatprep.mubr.bf16.mxu0 %v651
  %1191 = vmatmul.mubr.bf16.gmra.mrb[0].mxu0 %v650
  %v1192 = vpop.f32.mrb[0].mxu0
  %v1193 = vadd.f32 0.0, %v1192
  %v1194 = vpop.f32.mrb[0].mxu0
  %v1195 = vpop.f32.mrb[0].mxu0
  %v1196 = vadd.f32 0.0, %v1195
  %v1197 = vpop.f32.mrb[0].mxu0
  %1198 = vmatprep.mubr.bf16.mxu0 %v655
  %1199 = vmatmul.mubr.bf16.gmra.mrb[0].mxu0 %v654
  %v1200 = vpop.f32.mrb[0].mxu0
  %v1201 = vadd.f32 0.0, %v1200
  %v1202 = vpop.f32.mrb[0].mxu0
  %v1203 = vpop.f32.mrb[0].mxu0
  %v1204 = vadd.f32 0.0, %v1203
  %v1205 = vpop.f32.mrb[0].mxu0
  %1206 = vmatprep.mubr.bf16.mxu0 %v659
  %1207 = vmatmul.mubr.bf16.gmra.mrb[0].mxu0 %v658
  %v1208 = vpop.f32.mrb[0].mxu0
  %v1209 = vadd.f32 0.0, %v1208
  %v1210 = vpop.f32.mrb[0].mxu0
  %v1211 = vpop.f32.mrb[0].mxu0
  %v1212 = vadd.f32 0.0, %v1211
  %v1213 = vpop.f32.mrb[0].mxu0
  %1214 = vmatprep.mubr.bf16.mxu0 %v663
  %1215 = vmatmul.mubr.bf16.gmra.mrb[0].mxu0 %v662
  %v1216 = vpop.f32.mrb[0].mxu0
  %v1217 = vadd.f32 0.0, %v1216
  %v1218 = vpop.f32.mrb[0].mxu0
  %v1219 = vpop.f32.mrb[0].mxu0
  %v1220 = vadd.f32 0.0, %v1219
  %v1221 = vpop.f32.mrb[0].mxu0
  %1222 = vmatprep.mubr.bf16.mxu0 %v667
  %1223 = vmatmul.mubr.bf16.gmra.mrb[0].mxu0 %v666
  %v1224 = vpop.f32.mrb[0].mxu0
  %v1225 = vadd.f32 0.0, %v1224
  %v1226 = vpop.f32.mrb[0].mxu0
  %v1227 = vpop.f32.mrb[0].mxu0
  %v1228 = vadd.f32 0.0, %v1227
  %v1229 = vpop.f32.mrb[0].mxu0
  %1230 = vmatprep.mubr.bf16.mxu0 %v671
  %1231 = vmatmul.mubr.bf16.gmra.mrb[0].mxu0 %v670
  %v1232 = vpop.f32.mrb[0].mxu0
  %v1233 = vadd.f32 0.0, %v1232
  %v1234 = vpop.f32.mrb[0].mxu0
  %v1235 = vpop.f32.mrb[0].mxu0
  %v1236 = vadd.f32 0.0, %v1235
  %v1237 = vpop.f32.mrb[0].mxu0
  %1238 = vmatprep.mubr.bf16.mxu0 %v675
  %1239 = vmatmul.mubr.bf16.gmra.mrb[0].mxu0 %v674
  %v1240 = vpop.f32.mrb[0].mxu0
  %v1241 = vadd.f32 0.0, %v1240
  %v1242 = vpop.f32.mrb[0].mxu0
  %v1243 = vpop.f32.mrb[0].mxu0
  %v1244 = vadd.f32 0.0, %v1243
  %v1245 = vpop.f32.mrb[0].mxu0
  %1246 = vmatprep.mubr.bf16.mxu0 %v679
  %1247 = vmatmul.mubr.bf16.gmra.mrb[0].mxu0 %v678
  %v1248 = vpop.f32.mrb[0].mxu0
  %v1249 = vadd.f32 0.0, %v1248
  %v1250 = vpop.f32.mrb[0].mxu0
  %v1251 = vpop.f32.mrb[0].mxu0
  %v1252 = vadd.f32 0.0, %v1251
  %v1253 = vpop.f32.mrb[0].mxu0
  %1254 = vmatprep.mubr.bf16.mxu0 %v683
  %1255 = vmatmul.mubr.bf16.gmra.mrb[0].mxu0 %v682
  %v1256 = vpop.f32.mrb[0].mxu0
  %v1257 = vadd.f32 0.0, %v1256
  %v1258 = vpop.f32.mrb[0].mxu0
  %v1259 = vpop.f32.mrb[0].mxu0
  %v1260 = vadd.f32 0.0, %v1259
  %v1261 = vpop.f32.mrb[0].mxu0
  %1262 = vmatprep.mubr.bf16.mxu0 %v687
  %1263 = vmatmul.mubr.bf16.gmra.mrb[0].mxu0 %v686
  %v1264 = vpop.f32.mrb[0].mxu0
  %v1265 = vadd.f32 0.0, %v1264
  %v1266 = vpop.f32.mrb[0].mxu0
  %v1267 = vpop.f32.mrb[0].mxu0
  %v1268 = vadd.f32 0.0, %v1267
  %v1269 = vpop.f32.mrb[0].mxu0
  %1270 = vmatprep.mubr.bf16.mxu0 %v691
  %1271 = vmatmul.mubr.bf16.gmra.mrb[0].mxu0 %v690
  %v1272 = vpop.f32.mrb[0].mxu0
  %v1273 = vadd.f32 0.0, %v1272
  %v1274 = vpop.f32.mrb[0].mxu0
  %v1275 = vpop.f32.mrb[0].mxu0
  %v1276 = vadd.f32 0.0, %v1275
  %v1277 = vpop.f32.mrb[0].mxu0
  %1278 = vmatprep.mubr.bf16.mxu0 %v695
  %1279 = vmatmul.mubr.bf16.gmra.mrb[0].mxu0 %v694
  %v1280 = vpop.f32.mrb[0].mxu0
  %v1281 = vadd.f32 0.0, %v1280
  %v1282 = vpop.f32.mrb[0].mxu0
  %v1283 = vpop.f32.mrb[0].mxu0
  %v1284 = vadd.f32 0.0, %v1283
  %v1285 = vpop.f32.mrb[0].mxu0
  %1286 = vmatprep.mubr.bf16.mxu0 %v699
  %1287 = vmatmul.mubr.bf16.gmra.mrb[0].mxu0 %v698
  %v1288 = vpop.f32.mrb[0].mxu0
  %v1289 = vadd.f32 0.0, %v1288
  %v1290 = vpop.f32.mrb[0].mxu0
  %v1291 = vpop.f32.mrb[0].mxu0
  %v1292 = vadd.f32 0.0, %v1291
  %v1293 = vpop.f32.mrb[0].mxu0
  %1294 = vmatprep.mubr.bf16.mxu0 %v703
  %1295 = vmatmul.mubr.bf16.gmra.mrb[0].mxu0 %v702
  %v1296 = vpop.f32.mrb[0].mxu0
  %v1297 = vadd.f32 0.0, %v1296
  %v1298 = vpop.f32.mrb[0].mxu0
  %v1299 = vpop.f32.mrb[0].mxu0
  %v1300 = vadd.f32 0.0, %v1299
  %v1301 = vpop.f32.mrb[0].mxu0
  %1302 = vmatprep.mubr.bf16.mxu0 %v707
  %1303 = vmatmul.mubr.bf16.gmra.mrb[0].mxu0 %v706
  %v1304 = vpop.f32.mrb[0].mxu0
  %v1305 = vadd.f32 0.0, %v1304
  %v1306 = vpop.f32.mrb[0].mxu0
  %v1307 = vpop.f32.mrb[0].mxu0
  %v1308 = vadd.f32 0.0, %v1307
  %v1309 = vpop.f32.mrb[0].mxu0
  %1310 = vmatprep.mubr.bf16.mxu0 %v711
  %1311 = vmatmul.mubr.bf16.gmra.mrb[0].mxu0 %v710
  %v1312 = vpop.f32.mrb[0].mxu0
  %v1313 = vadd.f32 0.0, %v1312
  %v1314 = vpop.f32.mrb[0].mxu0
  %v1315 = vpop.f32.mrb[0].mxu0
  %v1316 = vadd.f32 0.0, %v1315
  %v1317 = vpop.f32.mrb[0].mxu0
  %1318 = vmatprep.mubr.bf16.mxu0 %v715
  %1319 = vmatmul.mubr.bf16.gmra.mrb[0].mxu0 %v714
  %v1320 = vpop.f32.mrb[0].mxu0
  %v1321 = vadd.f32 0.0, %v1320
  %v1322 = vpop.f32.mrb[0].mxu0
  %v1323 = vpop.f32.mrb[0].mxu0
  %v1324 = vadd.f32 0.0, %v1323
  %v1325 = vpop.f32.mrb[0].mxu0
  %1326 = vdwg.mxu0
  %1327 = vmatprep.subr.bf16.mxu0 0
  %1328 = vmatpush1.bf16.msra.mxu0 %v990
  %1329 = vmatprep.subr.bf16.mxu0 0
  %1330 = vmatpush1.bf16.msra.mxu0 %v991
  %1331 = vmatprep.subr.bf16.mxu0 0
  %1332 = vmatpush1.bf16.msra.mxu0 %v992
  %1333 = vmatprep.subr.bf16.mxu0 0
  %1334 = vmatpush1.bf16.msra.mxu0 %v993
  %1335 = vmatprep.subr.bf16.mxu0 0
  %1336 = vmatpush1.bf16.msra.mxu0 %v994
  %1337 = vmatprep.subr.bf16.mxu0 0
  %1338 = vmatpush1.bf16.msra.mxu0 %v995
  %1339 = vmatprep.subr.bf16.mxu0 0
  %1340 = vmatpush1.bf16.msra.mxu0 %v996
  %1341 = vmatprep.subr.bf16.mxu0 0
  %1342 = vmatpush1.bf16.msra.mxu0 %v997
  %1343 = vmatprep.subr.bf16.mxu0 0
  %1344 = vmatpush1.bf16.msra.mxu0 %v998
  %1345 = vmatprep.subr.bf16.mxu0 0
  %1346 = vmatpush1.bf16.msra.mxu0 %v999
  %1347 = vmatprep.subr.bf16.mxu0 0
  %1348 = vmatpush1.bf16.msra.mxu0 %v1000
  %1349 = vmatprep.subr.bf16.mxu0 0
  %1350 = vmatpush1.bf16.msra.mxu0 %v1001
  %1351 = vmatprep.subr.bf16.mxu0 0
  %1352 = vmatpush1.bf16.msra.mxu0 %v1002
  %1353 = vmatprep.subr.bf16.mxu0 0
  %1354 = vmatpush1.bf16.msra.mxu0 %v1003
  %1355 = vmatprep.subr.bf16.mxu0 0
  %1356 = vmatpush1.bf16.msra.mxu0 %v1004
  %1357 = vmatprep.subr.bf16.mxu0 0
  %1358 = vmatpush1.bf16.msra.mxu0 %v1005
  %1359 = vmatprep.mubr.bf16.mxu0 %v593
  %1360 = vmatmul.mubr.bf16.gmra.mrb[0].mxu0 %v592
  %v1361 = vpop.f32.mrb[0].mxu0
  %v1362 = vadd.f32 %v1073, %v1361
  %v1363 = vpop.f32.mrb[0].mxu0
  %v1364 = vpop.f32.mrb[0].mxu0
  %v1365 = vadd.f32 %v1076, %v1364
  %v1366 = vpop.f32.mrb[0].mxu0
  %1367 = vmatprep.mubr.bf16.mxu0 %v597
  %1368 = vmatmul.mubr.bf16.gmra.mrb[0].mxu0 %v596
  %v1369 = vpop.f32.mrb[0].mxu0
  %v1370 = vadd.f32 %v1081, %v1369
  %v1371 = vpop.f32.mrb[0].mxu0
  %v1372 = vpop.f32.mrb[0].mxu0
  %v1373 = vadd.f32 %v1084, %v1372
  %v1374 = vpop.f32.mrb[0].mxu0
  %1375 = vmatprep.mubr.bf16.mxu0 %v601
  %1376 = vmatmul.mubr.bf16.gmra.mrb[0].mxu0 %v600
  %v1377 = vpop.f32.mrb[0].mxu0
  %v1378 = vadd.f32 %v1089, %v1377
  %v1379 = vpop.f32.mrb[0].mxu0
  %v1380 = vpop.f32.mrb[0].mxu0
  %v1381 = vadd.f32 %v1092, %v1380
  %v1382 = vpop.f32.mrb[0].mxu0
  %1383 = vmatprep.mubr.bf16.mxu0 %v605
  %1384 = vmatmul.mubr.bf16.gmra.mrb[0].mxu0 %v604
  %v1385 = vpop.f32.mrb[0].mxu0
  %v1386 = vadd.f32 %v1097, %v1385
  %v1387 = vpop.f32.mrb[0].mxu0
  %v1388 = vpop.f32.mrb[0].mxu0
  %v1389 = vadd.f32 %v1100, %v1388
  %v1390 = vpop.f32.mrb[0].mxu0
  %1391 = vmatprep.mubr.bf16.mxu0 %v609
  %1392 = vmatmul.mubr.bf16.gmra.mrb[0].mxu0 %v608
  %v1393 = vpop.f32.mrb[0].mxu0
  %v1394 = vadd.f32 %v1105, %v1393
  %v1395 = vpop.f32.mrb[0].mxu0
  %v1396 = vpop.f32.mrb[0].mxu0
  %v1397 = vadd.f32 %v1108, %v1396
  %v1398 = vpop.f32.mrb[0].mxu0
  %1399 = vmatprep.mubr.bf16.mxu0 %v613
  %1400 = vmatmul.mubr.bf16.gmra.mrb[0].mxu0 %v612
  %v1401 = vpop.f32.mrb[0].mxu0
  %v1402 = vadd.f32 %v1113, %v1401
  %v1403 = vpop.f32.mrb[0].mxu0
  %v1404 = vpop.f32.mrb[0].mxu0
  %v1405 = vadd.f32 %v1116, %v1404
  %v1406 = vpop.f32.mrb[0].mxu0
  %1407 = vmatprep.mubr.bf16.mxu0 %v617
  %1408 = vmatmul.mubr.bf16.gmra.mrb[0].mxu0 %v616
  %v1409 = vpop.f32.mrb[0].mxu0
  %v1410 = vadd.f32 %v1121, %v1409
  %v1411 = vpop.f32.mrb[0].mxu0
  %v1412 = vpop.f32.mrb[0].mxu0
  %v1413 = vadd.f32 %v1124, %v1412
  %v1414 = vpop.f32.mrb[0].mxu0
  %1415 = vmatprep.mubr.bf16.mxu0 %v621
  %1416 = vmatmul.mubr.bf16.gmra.mrb[0].mxu0 %v620
  %v1417 = vpop.f32.mrb[0].mxu0
  %v1418 = vadd.f32 %v1129, %v1417
  %v1419 = vpop.f32.mrb[0].mxu0
  %v1420 = vpop.f32.mrb[0].mxu0
  %v1421 = vadd.f32 %v1132, %v1420
  %v1422 = vpop.f32.mrb[0].mxu0
  %1423 = vmatprep.mubr.bf16.mxu0 %v625
  %1424 = vmatmul.mubr.bf16.gmra.mrb[0].mxu0 %v624
  %v1425 = vpop.f32.mrb[0].mxu0
  %v1426 = vadd.f32 %v1137, %v1425
  %v1427 = vpop.f32.mrb[0].mxu0
  %v1428 = vpop.f32.mrb[0].mxu0
  %v1429 = vadd.f32 %v1140, %v1428
  %v1430 = vpop.f32.mrb[0].mxu0
  %1431 = vmatprep.mubr.bf16.mxu0 %v629
  %1432 = vmatmul.mubr.bf16.gmra.mrb[0].mxu0 %v628
  %v1433 = vpop.f32.mrb[0].mxu0
  %v1434 = vadd.f32 %v1145, %v1433
  %v1435 = vpop.f32.mrb[0].mxu0
  %v1436 = vpop.f32.mrb[0].mxu0
  %v1437 = vadd.f32 %v1148, %v1436
  %v1438 = vpop.f32.mrb[0].mxu0
  %1439 = vmatprep.mubr.bf16.mxu0 %v633
  %1440 = vmatmul.mubr.bf16.gmra.mrb[0].mxu0 %v632
  %v1441 = vpop.f32.mrb[0].mxu0
  %v1442 = vadd.f32 %v1153, %v1441
  %v1443 = vpop.f32.mrb[0].mxu0
  %v1444 = vpop.f32.mrb[0].mxu0
  %v1445 = vadd.f32 %v1156, %v1444
  %v1446 = vpop.f32.mrb[0].mxu0
  %1447 = vmatprep.mubr.bf16.mxu0 %v637
  %1448 = vmatmul.mubr.bf16.gmra.mrb[0].mxu0 %v636
  %v1449 = vpop.f32.mrb[0].mxu0
  %v1450 = vadd.f32 %v1161, %v1449
  %v1451 = vpop.f32.mrb[0].mxu0
  %v1452 = vpop.f32.mrb[0].mxu0
  %v1453 = vadd.f32 %v1164, %v1452
  %v1454 = vpop.f32.mrb[0].mxu0
  %1455 = vmatprep.mubr.bf16.mxu0 %v641
  %1456 = vmatmul.mubr.bf16.gmra.mrb[0].mxu0 %v640
  %v1457 = vpop.f32.mrb[0].mxu0
  %v1458 = vadd.f32 %v1169, %v1457
  %v1459 = vpop.f32.mrb[0].mxu0
  %v1460 = vpop.f32.mrb[0].mxu0
  %v1461 = vadd.f32 %v1172, %v1460
  %v1462 = vpop.f32.mrb[0].mxu0
  %1463 = vmatprep.mubr.bf16.mxu0 %v645
  %1464 = vmatmul.mubr.bf16.gmra.mrb[0].mxu0 %v644
  %v1465 = vpop.f32.mrb[0].mxu0
  %v1466 = vadd.f32 %v1177, %v1465
  %v1467 = vpop.f32.mrb[0].mxu0
  %v1468 = vpop.f32.mrb[0].mxu0
  %v1469 = vadd.f32 %v1180, %v1468
  %v1470 = vpop.f32.mrb[0].mxu0
  %1471 = vmatprep.mubr.bf16.mxu0 %v649
  %1472 = vmatmul.mubr.bf16.gmra.mrb[0].mxu0 %v648
  %v1473 = vpop.f32.mrb[0].mxu0
  %v1474 = vadd.f32 %v1185, %v1473
  %v1475 = vpop.f32.mrb[0].mxu0
  %v1476 = vpop.f32.mrb[0].mxu0
  %v1477 = vadd.f32 %v1188, %v1476
  %v1478 = vpop.f32.mrb[0].mxu0
  %1479 = vmatprep.mubr.bf16.mxu0 %v653
  %1480 = vmatmul.mubr.bf16.gmra.mrb[0].mxu0 %v652
  %v1481 = vpop.f32.mrb[0].mxu0
  %v1482 = vadd.f32 %v1193, %v1481
  %v1483 = vpop.f32.mrb[0].mxu0
  %v1484 = vpop.f32.mrb[0].mxu0
  %v1485 = vadd.f32 %v1196, %v1484
  %v1486 = vpop.f32.mrb[0].mxu0
  %1487 = vmatprep.mubr.bf16.mxu0 %v657
  %1488 = vmatmul.mubr.bf16.gmra.mrb[0].mxu0 %v656
  %v1489 = vpop.f32.mrb[0].mxu0
  %v1490 = vadd.f32 %v1201, %v1489
  %v1491 = vpop.f32.mrb[0].mxu0
  %v1492 = vpop.f32.mrb[0].mxu0
  %v1493 = vadd.f32 %v1204, %v1492
  %v1494 = vpop.f32.mrb[0].mxu0
  %1495 = vmatprep.mubr.bf16.mxu0 %v661
  %1496 = vmatmul.mubr.bf16.gmra.mrb[0].mxu0 %v660
  %v1497 = vpop.f32.mrb[0].mxu0
  %v1498 = vadd.f32 %v1209, %v1497
  %v1499 = vpop.f32.mrb[0].mxu0
  %v1500 = vpop.f32.mrb[0].mxu0
  %v1501 = vadd.f32 %v1212, %v1500
  %v1502 = vpop.f32.mrb[0].mxu0
  %1503 = vmatprep.mubr.bf16.mxu0 %v665
  %1504 = vmatmul.mubr.bf16.gmra.mrb[0].mxu0 %v664
  %v1505 = vpop.f32.mrb[0].mxu0
  %v1506 = vadd.f32 %v1217, %v1505
  %v1507 = vpop.f32.mrb[0].mxu0
  %v1508 = vpop.f32.mrb[0].mxu0
  %v1509 = vadd.f32 %v1220, %v1508
  %v1510 = vpop.f32.mrb[0].mxu0
  %1511 = vmatprep.mubr.bf16.mxu0 %v669
  %1512 = vmatmul.mubr.bf16.gmra.mrb[0].mxu0 %v668
  %v1513 = vpop.f32.mrb[0].mxu0
  %v1514 = vadd.f32 %v1225, %v1513
  %v1515 = vpop.f32.mrb[0].mxu0
  %v1516 = vpop.f32.mrb[0].mxu0
  %v1517 = vadd.f32 %v1228, %v1516
  %v1518 = vpop.f32.mrb[0].mxu0
  %1519 = vmatprep.mubr.bf16.mxu0 %v673
  %1520 = vmatmul.mubr.bf16.gmra.mrb[0].mxu0 %v672
  %v1521 = vpop.f32.mrb[0].mxu0
  %v1522 = vadd.f32 %v1233, %v1521
  %v1523 = vpop.f32.mrb[0].mxu0
  %v1524 = vpop.f32.mrb[0].mxu0
  %v1525 = vadd.f32 %v1236, %v1524
  %v1526 = vpop.f32.mrb[0].mxu0
  %1527 = vmatprep.mubr.bf16.mxu0 %v677
  %1528 = vmatmul.mubr.bf16.gmra.mrb[0].mxu0 %v676
  %v1529 = vpop.f32.mrb[0].mxu0
  %v1530 = vadd.f32 %v1241, %v1529
  %v1531 = vpop.f32.mrb[0].mxu0
  %v1532 = vpop.f32.mrb[0].mxu0
  %v1533 = vadd.f32 %v1244, %v1532
  %v1534 = vpop.f32.mrb[0].mxu0
  %1535 = vmatprep.mubr.bf16.mxu0 %v681
  %1536 = vmatmul.mubr.bf16.gmra.mrb[0].mxu0 %v680
  %v1537 = vpop.f32.mrb[0].mxu0
  %v1538 = vadd.f32 %v1249, %v1537
  %v1539 = vpop.f32.mrb[0].mxu0
  %v1540 = vpop.f32.mrb[0].mxu0
  %v1541 = vadd.f32 %v1252, %v1540
  %v1542 = vpop.f32.mrb[0].mxu0
  %1543 = vmatprep.mubr.bf16.mxu0 %v685
  %1544 = vmatmul.mubr.bf16.gmra.mrb[0].mxu0 %v684
  %v1545 = vpop.f32.mrb[0].mxu0
  %v1546 = vadd.f32 %v1257, %v1545
  %v1547 = vpop.f32.mrb[0].mxu0
  %v1548 = vpop.f32.mrb[0].mxu0
  %v1549 = vadd.f32 %v1260, %v1548
  %v1550 = vpop.f32.mrb[0].mxu0
  %1551 = vmatprep.mubr.bf16.mxu0 %v689
  %1552 = vmatmul.mubr.bf16.gmra.mrb[0].mxu0 %v688
  %v1553 = vpop.f32.mrb[0].mxu0
  %v1554 = vadd.f32 %v1265, %v1553
  %v1555 = vpop.f32.mrb[0].mxu0
  %v1556 = vpop.f32.mrb[0].mxu0
  %v1557 = vadd.f32 %v1268, %v1556
  %v1558 = vpop.f32.mrb[0].mxu0
  %1559 = vmatprep.mubr.bf16.mxu0 %v693
  %1560 = vmatmul.mubr.bf16.gmra.mrb[0].mxu0 %v692
  %v1561 = vpop.f32.mrb[0].mxu0
  %v1562 = vadd.f32 %v1273, %v1561
  %v1563 = vpop.f32.mrb[0].mxu0
  %v1564 = vpop.f32.mrb[0].mxu0
  %v1565 = vadd.f32 %v1276, %v1564
  %v1566 = vpop.f32.mrb[0].mxu0
  %1567 = vmatprep.mubr.bf16.mxu0 %v697
  %1568 = vmatmul.mubr.bf16.gmra.mrb[0].mxu0 %v696
  %v1569 = vpop.f32.mrb[0].mxu0
  %v1570 = vadd.f32 %v1281, %v1569
  %v1571 = vpop.f32.mrb[0].mxu0
  %v1572 = vpop.f32.mrb[0].mxu0
  %v1573 = vadd.f32 %v1284, %v1572
  %v1574 = vpop.f32.mrb[0].mxu0
  %1575 = vmatprep.mubr.bf16.mxu0 %v701
  %1576 = vmatmul.mubr.bf16.gmra.mrb[0].mxu0 %v700
  %v1577 = vpop.f32.mrb[0].mxu0
  %v1578 = vadd.f32 %v1289, %v1577
  %v1579 = vpop.f32.mrb[0].mxu0
  %v1580 = vpop.f32.mrb[0].mxu0
  %v1581 = vadd.f32 %v1292, %v1580
  %v1582 = vpop.f32.mrb[0].mxu0
  %1583 = vmatprep.mubr.bf16.mxu0 %v705
  %1584 = vmatmul.mubr.bf16.gmra.mrb[0].mxu0 %v704
  %v1585 = vpop.f32.mrb[0].mxu0
  %v1586 = vadd.f32 %v1297, %v1585
  %v1587 = vpop.f32.mrb[0].mxu0
  %v1588 = vpop.f32.mrb[0].mxu0
  %v1589 = vadd.f32 %v1300, %v1588
  %v1590 = vpop.f32.mrb[0].mxu0
  %1591 = vmatprep.mubr.bf16.mxu0 %v709
  %1592 = vmatmul.mubr.bf16.gmra.mrb[0].mxu0 %v708
  %v1593 = vpop.f32.mrb[0].mxu0
  %v1594 = vadd.f32 %v1305, %v1593
  %v1595 = vpop.f32.mrb[0].mxu0
  %v1596 = vpop.f32.mrb[0].mxu0
  %v1597 = vadd.f32 %v1308, %v1596
  %v1598 = vpop.f32.mrb[0].mxu0
  %1599 = vmatprep.mubr.bf16.mxu0 %v713
  %1600 = vmatmul.mubr.bf16.gmra.mrb[0].mxu0 %v712
  %v1601 = vpop.f32.mrb[0].mxu0
  %v1602 = vadd.f32 %v1313, %v1601
  %v1603 = vpop.f32.mrb[0].mxu0
  %v1604 = vpop.f32.mrb[0].mxu0
  %v1605 = vadd.f32 %v1316, %v1604
  %v1606 = vpop.f32.mrb[0].mxu0
  %1607 = vmatprep.mubr.bf16.mxu0 %v717
  %1608 = vmatmul.mubr.bf16.gmra.mrb[0].mxu0 %v716
  %v1609 = vpop.f32.mrb[0].mxu0
  %v1610 = vadd.f32 %v1321, %v1609
  %v1611 = vpop.f32.mrb[0].mxu0
  %v1612 = vpop.f32.mrb[0].mxu0
  %v1613 = vadd.f32 %v1324, %v1612
  %v1614 = vpop.f32.mrb[0].mxu0
  %1615 = vdwg.mxu0
  %v1616 = vpack.c.bf16 %v1365, %v1362
  %v1617 = vpack.c.bf16 %v1373, %v1370
  %v1618 = vpack.c.bf16 %v1381, %v1378
  %v1619 = vpack.c.bf16 %v1389, %v1386
  %v1620 = vpack.c.bf16 %v1397, %v1394
  %v1621 = vpack.c.bf16 %v1405, %v1402
  %v1622 = vpack.c.bf16 %v1413, %v1410
  %v1623 = vpack.c.bf16 %v1421, %v1418
  %v1624 = vpack.c.bf16 %v1429, %v1426
  %v1625 = vpack.c.bf16 %v1437, %v1434
  %v1626 = vpack.c.bf16 %v1445, %v1442
  %v1627 = vpack.c.bf16 %v1453, %v1450
  %v1628 = vpack.c.bf16 %v1461, %v1458
  %v1629 = vpack.c.bf16 %v1469, %v1466
  %v1630 = vpack.c.bf16 %v1477, %v1474
  %v1631 = vpack.c.bf16 %v1485, %v1482
  %v1632 = vpack.c.bf16 %v1493, %v1490
  %v1633 = vpack.c.bf16 %v1501, %v1498
  %v1634 = vpack.c.bf16 %v1509, %v1506
  %v1635 = vpack.c.bf16 %v1517, %v1514
  %v1636 = vpack.c.bf16 %v1525, %v1522
  %v1637 = vpack.c.bf16 %v1533, %v1530
  %v1638 = vpack.c.bf16 %v1541, %v1538
  %v1639 = vpack.c.bf16 %v1549, %v1546
  %v1640 = vpack.c.bf16 %v1557, %v1554
  %v1641 = vpack.c.bf16 %v1565, %v1562
  %v1642 = vpack.c.bf16 %v1573, %v1570
  %v1643 = vpack.c.bf16 %v1581, %v1578
  %v1644 = vpack.c.bf16 %v1589, %v1586
  %v1645 = vpack.c.bf16 %v1597, %v1594
  %v1646 = vpack.c.bf16 %v1605, %v1602
  %v1647 = vpack.c.bf16 %v1613, %v1610
  %v1680 = vunpack.c.l.b16 %v1616
  %v1681 = vunpack.c.h.b16 %v1616
  %v1682 = vunpack.c.l.b16 %v1617
  %v1683 = vunpack.c.h.b16 %v1617
  %v1684 = vunpack.c.l.b16 %v1618
  %v1685 = vunpack.c.h.b16 %v1618
  %v1686 = vunpack.c.l.b16 %v1619
  %v1687 = vunpack.c.h.b16 %v1619
  %v1688 = vunpack.c.l.b16 %v1620
  %v1689 = vunpack.c.h.b16 %v1620
  %v1690 = vunpack.c.l.b16 %v1621
  %v1691 = vunpack.c.h.b16 %v1621
  %v1692 = vunpack.c.l.b16 %v1622
  %v1693 = vunpack.c.h.b16 %v1622
  %v1694 = vunpack.c.l.b16 %v1623
  %v1695 = vunpack.c.h.b16 %v1623
  %v1696 = vunpack.c.l.b16 %v1624
  %v1697 = vunpack.c.h.b16 %v1624
  %v1698 = vunpack.c.l.b16 %v1625
  %v1699 = vunpack.c.h.b16 %v1625
  %v1700 = vunpack.c.l.b16 %v1626
  %v1701 = vunpack.c.h.b16 %v1626
  %v1702 = vunpack.c.l.b16 %v1627
  %v1703 = vunpack.c.h.b16 %v1627
  %v1704 = vunpack.c.l.b16 %v1628
  %v1705 = vunpack.c.h.b16 %v1628
  %v1706 = vunpack.c.l.b16 %v1629
  %v1707 = vunpack.c.h.b16 %v1629
  %v1708 = vunpack.c.l.b16 %v1630
  %v1709 = vunpack.c.h.b16 %v1630
  %v1710 = vunpack.c.l.b16 %v1631
  %v1711 = vunpack.c.h.b16 %v1631
  %v1712 = vunpack.c.l.b16 %v1632
  %v1713 = vunpack.c.h.b16 %v1632
  %v1714 = vunpack.c.l.b16 %v1633
  %v1715 = vunpack.c.h.b16 %v1633
  %v1716 = vunpack.c.l.b16 %v1634
  %v1717 = vunpack.c.h.b16 %v1634
  %v1718 = vunpack.c.l.b16 %v1635
  %v1719 = vunpack.c.h.b16 %v1635
  %v1720 = vunpack.c.l.b16 %v1636
  %v1721 = vunpack.c.h.b16 %v1636
  %v1722 = vunpack.c.l.b16 %v1637
  %v1723 = vunpack.c.h.b16 %v1637
  %v1724 = vunpack.c.l.b16 %v1638
  %v1725 = vunpack.c.h.b16 %v1638
  %v1726 = vunpack.c.l.b16 %v1639
  %v1727 = vunpack.c.h.b16 %v1639
  %v1728 = vunpack.c.l.b16 %v1640
  %v1729 = vunpack.c.h.b16 %v1640
  %v1730 = vunpack.c.l.b16 %v1641
  %v1731 = vunpack.c.h.b16 %v1641
  %v1732 = vunpack.c.l.b16 %v1642
  %v1733 = vunpack.c.h.b16 %v1642
  %v1734 = vunpack.c.l.b16 %v1643
  %v1735 = vunpack.c.h.b16 %v1643
  %v1736 = vunpack.c.l.b16 %v1644
  %v1737 = vunpack.c.h.b16 %v1644
  %v1738 = vunpack.c.l.b16 %v1645
  %v1739 = vunpack.c.h.b16 %v1645
  %v1740 = vunpack.c.l.b16 %v1646
  %v1741 = vunpack.c.h.b16 %v1646
  %v1742 = vunpack.c.l.b16 %v1647
  %v1743 = vunpack.c.h.b16 %v1647
  %v1744 = vpack.c.b16 %v1680, %v1680
  %v1745 = vpack.c.b16 %v1681, %v1681
  %v1746 = vpack.c.b16 %v1682, %v1682
  %v1747 = vpack.c.b16 %v1683, %v1683
  %v1748 = vpack.c.b16 %v1684, %v1684
  %v1749 = vpack.c.b16 %v1685, %v1685
  %v1750 = vpack.c.b16 %v1686, %v1686
  %v1751 = vpack.c.b16 %v1687, %v1687
  %v1752 = vpack.c.b16 %v1688, %v1688
  %v1753 = vpack.c.b16 %v1689, %v1689
  %v1754 = vpack.c.b16 %v1690, %v1690
  %v1755 = vpack.c.b16 %v1691, %v1691
  %v1756 = vpack.c.b16 %v1692, %v1692
  %v1757 = vpack.c.b16 %v1693, %v1693
  %v1758 = vpack.c.b16 %v1694, %v1694
  %v1759 = vpack.c.b16 %v1695, %v1695
  %v1760 = vpack.c.b16 %v1696, %v1696
  %v1761 = vpack.c.b16 %v1697, %v1697
  %v1762 = vpack.c.b16 %v1698, %v1698
  %v1763 = vpack.c.b16 %v1699, %v1699
  %v1764 = vpack.c.b16 %v1700, %v1700
  %v1765 = vpack.c.b16 %v1701, %v1701
  %v1766 = vpack.c.b16 %v1702, %v1702
  %v1767 = vpack.c.b16 %v1703, %v1703
  %v1768 = vpack.c.b16 %v1704, %v1704
  %v1769 = vpack.c.b16 %v1705, %v1705
  %v1770 = vpack.c.b16 %v1706, %v1706
  %v1771 = vpack.c.b16 %v1707, %v1707
  %v1772 = vpack.c.b16 %v1708, %v1708
  %v1773 = vpack.c.b16 %v1709, %v1709
  %v1774 = vpack.c.b16 %v1710, %v1710
  %v1775 = vpack.c.b16 %v1711, %v1711
  %v1776 = vpack.c.b16 %v1712, %v1712
  %v1777 = vpack.c.b16 %v1713, %v1713
  %v1778 = vpack.c.b16 %v1714, %v1714
  %v1779 = vpack.c.b16 %v1715, %v1715
  %v1780 = vpack.c.b16 %v1716, %v1716
  %v1781 = vpack.c.b16 %v1717, %v1717
  %v1782 = vpack.c.b16 %v1718, %v1718
  %v1783 = vpack.c.b16 %v1719, %v1719
  %v1784 = vpack.c.b16 %v1720, %v1720
  %v1785 = vpack.c.b16 %v1721, %v1721
  %v1786 = vpack.c.b16 %v1722, %v1722
  %v1787 = vpack.c.b16 %v1723, %v1723
  %v1788 = vpack.c.b16 %v1724, %v1724
  %v1789 = vpack.c.b16 %v1725, %v1725
  %v1790 = vpack.c.b16 %v1726, %v1726
  %v1791 = vpack.c.b16 %v1727, %v1727
  %v1792 = vpack.c.b16 %v1728, %v1728
  %v1793 = vpack.c.b16 %v1729, %v1729
  %v1794 = vpack.c.b16 %v1730, %v1730
  %v1795 = vpack.c.b16 %v1731, %v1731
  %v1796 = vpack.c.b16 %v1732, %v1732
  %v1797 = vpack.c.b16 %v1733, %v1733
  %v1798 = vpack.c.b16 %v1734, %v1734
  %v1799 = vpack.c.b16 %v1735, %v1735
  %v1800 = vpack.c.b16 %v1736, %v1736
  %v1801 = vpack.c.b16 %v1737, %v1737
  %v1802 = vpack.c.b16 %v1738, %v1738
  %v1803 = vpack.c.b16 %v1739, %v1739
  %v1804 = vpack.c.b16 %v1740, %v1740
  %v1805 = vpack.c.b16 %v1741, %v1741
  %v1806 = vpack.c.b16 %v1742, %v1742
  %v1807 = vpack.c.b16 %v1743, %v1743
  %1872 = vst [vmem:[%s2] sm:$0xf] %v1744
  %1873 = vst [vmem:[%s2 + $0x4] sm:$0xf] %v1745
  %1874 = vst [vmem:[%s2 + $0x8] sm:$0xf] %v1746
  %1875 = vst [vmem:[%s2 + $0xc] sm:$0xf] %v1747
  %1876 = vst [vmem:[%s2 + $0x10] sm:$0xf] %v1748
  %1877 = vst [vmem:[%s2 + $0x14] sm:$0xf] %v1749
  %1878 = vst [vmem:[%s2 + $0x18] sm:$0xf] %v1750
  %1879 = vst [vmem:[%s2 + $0x1c] sm:$0xf] %v1751
  %1880 = vst [vmem:[%s2 + $0x20] sm:$0xf] %v1752
  %1881 = vst [vmem:[%s2 + $0x24] sm:$0xf] %v1753
  %1882 = vst [vmem:[%s2 + $0x28] sm:$0xf] %v1754
  %1883 = vst [vmem:[%s2 + $0x2c] sm:$0xf] %v1755
  %1884 = vst [vmem:[%s2 + $0x30] sm:$0xf] %v1756
  %1885 = vst [vmem:[%s2 + $0x34] sm:$0xf] %v1757
  %1886 = vst [vmem:[%s2 + $0x38] sm:$0xf] %v1758
  %1887 = vst [vmem:[%s2 + $0x3c] sm:$0xf] %v1759
  %1888 = vst [vmem:[%s2 + $0x40] sm:$0xf] %v1760
  %1889 = vst [vmem:[%s2 + $0x44] sm:$0xf] %v1761
  %1890 = vst [vmem:[%s2 + $0x48] sm:$0xf] %v1762
  %1891 = vst [vmem:[%s2 + $0x4c] sm:$0xf] %v1763
  %1892 = vst [vmem:[%s2 + $0x50] sm:$0xf] %v1764
  %1893 = vst [vmem:[%s2 + $0x54] sm:$0xf] %v1765
  %1894 = vst [vmem:[%s2 + $0x58] sm:$0xf] %v1766
  %1895 = vst [vmem:[%s2 + $0x5c] sm:$0xf] %v1767
  %1896 = vst [vmem:[%s2 + $0x60] sm:$0xf] %v1768
  %1897 = vst [vmem:[%s2 + $0x64] sm:$0xf] %v1769
  %1898 = vst [vmem:[%s2 + $0x68] sm:$0xf] %v1770
  %1899 = vst [vmem:[%s2 + $0x6c] sm:$0xf] %v1771
  %1900 = vst [vmem:[%s2 + $0x70] sm:$0xf] %v1772
  %1901 = vst [vmem:[%s2 + $0x74] sm:$0xf] %v1773
  %1902 = vst [vmem:[%s2 + $0x78] sm:$0xf] %v1774
  %1903 = vst [vmem:[%s2 + $0x7c] sm:$0xf] %v1775
  %1904 = vst [vmem:[%s2 + $0x80] sm:$0xf] %v1776
  %1905 = vst [vmem:[%s2 + $0x84] sm:$0xf] %v1777
  %1906 = vst [vmem:[%s2 + $0x88] sm:$0xf] %v1778
  %1907 = vst [vmem:[%s2 + $0x8c] sm:$0xf] %v1779
  %1908 = vst [vmem:[%s2 + $0x90] sm:$0xf] %v1780
  %1909 = vst [vmem:[%s2 + $0x94] sm:$0xf] %v1781
  %1910 = vst [vmem:[%s2 + $0x98] sm:$0xf] %v1782
  %1911 = vst [vmem:[%s2 + $0x9c] sm:$0xf] %v1783
  %1912 = vst [vmem:[%s2 + $0xa0] sm:$0xf] %v1784
  %1913 = vst [vmem:[%s2 + $0xa4] sm:$0xf] %v1785
  %1914 = vst [vmem:[%s2 + $0xa8] sm:$0xf] %v1786
  %1915 = vst [vmem:[%s2 + $0xac] sm:$0xf] %v1787
  %1916 = vst [vmem:[%s2 + $0xb0] sm:$0xf] %v1788
  %1917 = vst [vmem:[%s2 + $0xb4] sm:$0xf] %v1789
  %1918 = vst [vmem:[%s2 + $0xb8] sm:$0xf] %v1790
  %1919 = vst [vmem:[%s2 + $0xbc] sm:$0xf] %v1791
  %1920 = vst [vmem:[%s2 + $0xc0] sm:$0xf] %v1792
  %1921 = vst [vmem:[%s2 + $0xc4] sm:$0xf] %v1793
  %1922 = vst [vmem:[%s2 + $0xc8] sm:$0xf] %v1794
  %1923 = vst [vmem:[%s2 + $0xcc] sm:$0xf] %v1795
  %1924 = vst [vmem:[%s2 + $0xd0] sm:$0xf] %v1796
  %1925 = vst [vmem:[%s2 + $0xd4] sm:$0xf] %v1797
  %1926 = vst [vmem:[%s2 + $0xd8] sm:$0xf] %v1798
  %1927 = vst [vmem:[%s2 + $0xdc] sm:$0xf] %v1799
  %1928 = vst [vmem:[%s2 + $0xe0] sm:$0xf] %v1800
  %1929 = vst [vmem:[%s2 + $0xe4] sm:$0xf] %v1801
  %1930 = vst [vmem:[%s2 + $0xe8] sm:$0xf] %v1802
  %1931 = vst [vmem:[%s2 + $0xec] sm:$0xf] %v1803
  %1932 = vst [vmem:[%s2 + $0xf0] sm:$0xf] %v1804
  %1933 = vst [vmem:[%s2 + $0xf4] sm:$0xf] %v1805
  %1934 = vst [vmem:[%s2 + $0xf8] sm:$0xf] %v1806
  %1935 = vst [vmem:[%s2 + $0xfc] sm:$0xf] %v1807
  %v1936 = vadd.f32 %v1362, %v1365
  %v1937 = vadd.f32 %v1936, %v1370
  %v1938 = vadd.f32 %v1937, %v1373
  %v1939 = vadd.f32 %v1938, %v1378
  %v1940 = vadd.f32 %v1939, %v1381
  %v1941 = vadd.f32 %v1940, %v1386
  %v1942 = vadd.f32 %v1941, %v1389
  %v1943 = vadd.f32 %v1942, %v1394
  %v1944 = vadd.f32 %v1943, %v1397
  %v1945 = vadd.f32 %v1944, %v1402
  %v1946 = vadd.f32 %v1945, %v1405
  %v1947 = vadd.f32 %v1946, %v1410
  %v1948 = vadd.f32 %v1947, %v1413
  %v1949 = vadd.f32 %v1948, %v1418
  %v1950 = vadd.f32 %v1949, %v1421
  %v1951 = vadd.f32 %v1950, %v1426
  %v1952 = vadd.f32 %v1951, %v1429
  %v1953 = vadd.f32 %v1952, %v1434
  %v1954 = vadd.f32 %v1953, %v1437
  %v1955 = vadd.f32 %v1954, %v1442
  %v1956 = vadd.f32 %v1955, %v1445
  %v1957 = vadd.f32 %v1956, %v1450
  %v1958 = vadd.f32 %v1957, %v1453
  %v1959 = vadd.f32 %v1958, %v1458
  %v1960 = vadd.f32 %v1959, %v1461
  %v1961 = vadd.f32 %v1960, %v1466
  %v1962 = vadd.f32 %v1961, %v1469
  %v1963 = vadd.f32 %v1962, %v1474
  %v1964 = vadd.f32 %v1963, %v1477
  %v1965 = vadd.f32 %v1964, %v1482
  %v1966 = vadd.f32 %v1965, %v1485
  %v1967 = vadd.f32 %v1966, %v1490
  %v1968 = vadd.f32 %v1967, %v1493
  %v1969 = vadd.f32 %v1968, %v1498
  %v1970 = vadd.f32 %v1969, %v1501
  %v1971 = vadd.f32 %v1970, %v1506
  %v1972 = vadd.f32 %v1971, %v1509
  %v1973 = vadd.f32 %v1972, %v1514
  %v1974 = vadd.f32 %v1973, %v1517
  %v1975 = vadd.f32 %v1974, %v1522
  %v1976 = vadd.f32 %v1975, %v1525
  %v1977 = vadd.f32 %v1976, %v1530
  %v1978 = vadd.f32 %v1977, %v1533
  %v1979 = vadd.f32 %v1978, %v1538
  %v1980 = vadd.f32 %v1979, %v1541
  %v1981 = vadd.f32 %v1980, %v1546
  %v1982 = vadd.f32 %v1981, %v1549
  %v1983 = vadd.f32 %v1982, %v1554
  %v1984 = vadd.f32 %v1983, %v1557
  %v1985 = vadd.f32 %v1984, %v1562
  %v1986 = vadd.f32 %v1985, %v1565
  %v1987 = vadd.f32 %v1986, %v1570
  %v1988 = vadd.f32 %v1987, %v1573
  %v1989 = vadd.f32 %v1988, %v1578
  %v1990 = vadd.f32 %v1989, %v1581
  %v1991 = vadd.f32 %v1990, %v1586
  %v1992 = vadd.f32 %v1991, %v1589
  %v1993 = vadd.f32 %v1992, %v1594
  %v1994 = vadd.f32 %v1993, %v1597
  %v1995 = vadd.f32 %v1994, %v1602
  %v1996 = vadd.f32 %v1995, %v1605
  %v1997 = vadd.f32 %v1996, %v1610
  %v1998 = vadd.f32 %v1997, %v1613
  %v1999 = vrot.slane %v1998, 4
  %v2000 = vadd.f32 %v1998, %v1999
  %v2001 = vrot.slane %v2000, 2
  %v2002 = vadd.f32 %v2000, %v2001
  %v2003 = vrot.slane %v2002, 1
  %v2004 = vadd.f32 %v2002, %v2003
  %v2005 = vmul.f32 %v1362, %v1362
  %v2006 = vmul.f32 %v1365, %v1365
  %v2007 = vmul.f32 %v1370, %v1370
  %v2008 = vmul.f32 %v1373, %v1373
  %v2009 = vmul.f32 %v1378, %v1378
  %v2010 = vmul.f32 %v1381, %v1381
  %v2011 = vmul.f32 %v1386, %v1386
  %v2012 = vmul.f32 %v1389, %v1389
  %v2013 = vmul.f32 %v1394, %v1394
  %v2014 = vmul.f32 %v1397, %v1397
  %v2015 = vmul.f32 %v1402, %v1402
  %v2016 = vmul.f32 %v1405, %v1405
  %v2017 = vmul.f32 %v1410, %v1410
  %v2018 = vmul.f32 %v1413, %v1413
  %v2019 = vmul.f32 %v1418, %v1418
  %v2020 = vmul.f32 %v1421, %v1421
  %v2021 = vmul.f32 %v1426, %v1426
  %v2022 = vmul.f32 %v1429, %v1429
  %v2023 = vmul.f32 %v1434, %v1434
  %v2024 = vmul.f32 %v1437, %v1437
  %v2025 = vmul.f32 %v1442, %v1442
  %v2026 = vmul.f32 %v1445, %v1445
  %v2027 = vmul.f32 %v1450, %v1450
  %v2028 = vmul.f32 %v1453, %v1453
  %v2029 = vmul.f32 %v1458, %v1458
  %v2030 = vmul.f32 %v1461, %v1461
  %v2031 = vmul.f32 %v1466, %v1466
  %v2032 = vmul.f32 %v1469, %v1469
  %v2033 = vmul.f32 %v1474, %v1474
  %v2034 = vmul.f32 %v1477, %v1477
  %v2035 = vmul.f32 %v1482, %v1482
  %v2036 = vmul.f32 %v1485, %v1485
  %v2037 = vmul.f32 %v1490, %v1490
  %v2038 = vmul.f32 %v1493, %v1493
  %v2039 = vmul.f32 %v1498, %v1498
  %v2040 = vmul.f32 %v1501, %v1501
  %v2041 = vmul.f32 %v1506, %v1506
  %v2042 = vmul.f32 %v1509, %v1509
  %v2043 = vmul.f32 %v1514, %v1514
  %v2044 = vmul.f32 %v1517, %v1517
  %v2045 = vmul.f32 %v1522, %v1522
  %v2046 = vmul.f32 %v1525, %v1525
  %v2047 = vmul.f32 %v1530, %v1530
  %v2048 = vmul.f32 %v1533, %v1533
  %v2049 = vmul.f32 %v1538, %v1538
  %v2050 = vmul.f32 %v1541, %v1541
  %v2051 = vmul.f32 %v1546, %v1546
  %v2052 = vmul.f32 %v1549, %v1549
  %v2053 = vmul.f32 %v1554, %v1554
  %v2054 = vmul.f32 %v1557, %v1557
  %v2055 = vmul.f32 %v1562, %v1562
  %v2056 = vmul.f32 %v1565, %v1565
  %v2057 = vmul.f32 %v1570, %v1570
  %v2058 = vmul.f32 %v1573, %v1573
  %v2059 = vmul.f32 %v1578, %v1578
  %v2060 = vmul.f32 %v1581, %v1581
  %v2061 = vmul.f32 %v1586, %v1586
  %v2062 = vmul.f32 %v1589, %v1589
  %v2063 = vmul.f32 %v1594, %v1594
  %v2064 = vmul.f32 %v1597, %v1597
  %v2065 = vmul.f32 %v1602, %v1602
  %v2066 = vmul.f32 %v1605, %v1605
  %v2067 = vmul.f32 %v1610, %v1610
  %v2068 = vmul.f32 %v1613, %v1613
  %v2069 = vadd.f32 %v2005, %v2006
  %v2070 = vadd.f32 %v2069, %v2007
  %v2071 = vadd.f32 %v2070, %v2008
  %v2072 = vadd.f32 %v2071, %v2009
  %v2073 = vadd.f32 %v2072, %v2010
  %v2074 = vadd.f32 %v2073, %v2011
  %v2075 = vadd.f32 %v2074, %v2012
  %v2076 = vadd.f32 %v2075, %v2013
  %v2077 = vadd.f32 %v2076, %v2014
  %v2078 = vadd.f32 %v2077, %v2015
  %v2079 = vadd.f32 %v2078, %v2016
  %v2080 = vadd.f32 %v2079, %v2017
  %v2081 = vadd.f32 %v2080, %v2018
  %v2082 = vadd.f32 %v2081, %v2019
  %v2083 = vadd.f32 %v2082, %v2020
  %v2084 = vadd.f32 %v2083, %v2021
  %v2085 = vadd.f32 %v2084, %v2022
  %v2086 = vadd.f32 %v2085, %v2023
  %v2087 = vadd.f32 %v2086, %v2024
  %v2088 = vadd.f32 %v2087, %v2025
  %v2089 = vadd.f32 %v2088, %v2026
  %v2090 = vadd.f32 %v2089, %v2027
  %v2091 = vadd.f32 %v2090, %v2028
  %v2092 = vadd.f32 %v2091, %v2029
  %v2093 = vadd.f32 %v2092, %v2030
  %v2094 = vadd.f32 %v2093, %v2031
  %v2095 = vadd.f32 %v2094, %v2032
  %v2096 = vadd.f32 %v2095, %v2033
  %v2097 = vadd.f32 %v2096, %v2034
  %v2098 = vadd.f32 %v2097, %v2035
  %v2099 = vadd.f32 %v2098, %v2036
  %v2100 = vadd.f32 %v2099, %v2037
  %v2101 = vadd.f32 %v2100, %v2038
  %v2102 = vadd.f32 %v2101, %v2039
  %v2103 = vadd.f32 %v2102, %v2040
  %v2104 = vadd.f32 %v2103, %v2041
  %v2105 = vadd.f32 %v2104, %v2042
  %v2106 = vadd.f32 %v2105, %v2043
  %v2107 = vadd.f32 %v2106, %v2044
  %v2108 = vadd.f32 %v2107, %v2045
  %v2109 = vadd.f32 %v2108, %v2046
  %v2110 = vadd.f32 %v2109, %v2047
  %v2111 = vadd.f32 %v2110, %v2048
  %v2112 = vadd.f32 %v2111, %v2049
  %v2113 = vadd.f32 %v2112, %v2050
  %v2114 = vadd.f32 %v2113, %v2051
  %v2115 = vadd.f32 %v2114, %v2052
  %v2116 = vadd.f32 %v2115, %v2053
  %v2117 = vadd.f32 %v2116, %v2054
  %v2118 = vadd.f32 %v2117, %v2055
  %v2119 = vadd.f32 %v2118, %v2056
  %v2120 = vadd.f32 %v2119, %v2057
  %v2121 = vadd.f32 %v2120, %v2058
  %v2122 = vadd.f32 %v2121, %v2059
  %v2123 = vadd.f32 %v2122, %v2060
  %v2124 = vadd.f32 %v2123, %v2061
  %v2125 = vadd.f32 %v2124, %v2062
  %v2126 = vadd.f32 %v2125, %v2063
  %v2127 = vadd.f32 %v2126, %v2064
  %v2128 = vadd.f32 %v2127, %v2065
  %v2129 = vadd.f32 %v2128, %v2066
  %v2130 = vadd.f32 %v2129, %v2067
  %v2131 = vadd.f32 %v2130, %v2068
  %v2132 = vrot.slane %v2131, 4
  %v2133 = vadd.f32 %v2131, %v2132
  %v2134 = vrot.slane %v2133, 2
  %v2135 = vadd.f32 %v2133, %v2134
  %v2136 = vrot.slane %v2135, 1
  %v2137 = vadd.f32 %v2135, %v2136
  %v2138 = vlaneseq
  %v2139 = vshrl.u32 %v2138, 7
  %vm2140 = vcmp.eq.s32.totalorder %v2139, 0
  %v2141 = vsel %vm2140, %v2004, 0.0
  %vm2142 = vcmp.eq.s32.totalorder %v2139, 1
  %v2143 = vsel %vm2142, %v2137, 0.0
  %v2144 = vadd.f32 %v2141, %v2143
  %2145 = vst [vmem:[%s3] sm:$0xff] %v2144
  // Predicated region
  $region10: #{generator_forward.13} parent=0 // pred_check
    _
  $region11: #{generator_forward.13} parent=0 // pred_check_branch
    %2147 = sbr.rel (0) target = $region13
  $region12: #{generator_forward.13} parent=0 // pred_region
    _
  $region13: #{generator_forward.13} parent=0 // pred_fallthru
    _
  // Predicated region
  $region14: #{generator_forward.13} parent=0 // pred_check
    _
  $region15: #{generator_forward.13} parent=0 // pred_check_branch
    %2149 = sbr.rel (0) target = $region17
  $region16: #{generator_forward.13} parent=0 // pred_region
    _
  $region17: #{generator_forward.13} parent=0 // pred_fallthru
    _
  // Predicated region
  $region18: #{generator_forward.13} parent=0 // pred_check
    _
  $region19: #{generator_forward.13} parent=0 // pred_check_branch
    %2151 = sbr.rel (0) target = $region21
  $region20: #{generator_forward.13} parent=0 // pred_region
    _
  $region21: #{generator_forward.13} parent=0 // pred_fallthru
    _
  // Predicated region
  $region22: #{generator_forward.13} parent=0 // pred_check
    _
  $region23: #{generator_forward.13} parent=0 // pred_check_branch
    %2153 = sbr.rel (0) target = $region25
  $region24: #{generator_forward.13} parent=0 // pred_region
    _
  $region25: #{generator_forward.13} parent=0 // pred_fallthru
    _

// kernel: generator_forward.15
$region0: #{generator_forward.15}
  #allocation0 [shape = 'u32[]', space=smem, size = 0x4, offset = 0x4, fixed_abs, tag = 'smem constant byte address 0x4 - core index']
  #allocation1 [shape = 'u32[144,128]{1,0:T(1,128)}', space=vmem, size = 0x12000, scoped, tag = 'internal scratch']
  %s0 = inlined_call_operand.vmem [shape: bf16[2048,256], index: 0, kind: input, shape index: {}]
  %s1 = inlined_call_operand.vmem [shape: bf16[256,128], index: 1, kind: input, shape index: {}]
  %s2 = inlined_call_operand.vmem [shape: bf16[2048,128], index: 2, kind: output, shape index: {0}]
  %s3 = inlined_call_operand.vmem [shape: f32[32,128], index: 3, kind: output, shape index: {1}]
  %4 = xla_tuple %s2, %s3
  %s5 = sld [smem:[#allocation0]]
  $region49: #{generator_forward.15} parent=0
    _
  %s7 = ssub.s32 1, %s5
  %s8 = scalar_select 0, %s7, %s5
  loop: start=0, step=1, limit=6
  $region2: #{generator_forward.15} parent=0 // loop_pre_header
    _
  $region3: #{generator_forward.15} parent=0 // loop_header
    %s10 = sphi 0, %s14
    %p11 = scmp.ge.s32.totalorder %s10, 6
    %s20 = sphi 0, %s22
    %s23 = sphi 0, %s20
    %s24 = sphi 0, %s23
    %s40 = sphi 0, %s24
    %s44 = sphi 0, %s44
    %s46 = sphi 0, %s44
    %s47 = sphi 0, %s46
    %s61 = sphi 0, %s47
    %s67 = sphi 0, %s69
    %s70 = sphi 0, %s67
    %s71 = sphi 0, %s70
    %s87 = sphi 0, %s71
    %s93 = sphi 0, %s95
    %s96 = sphi 0, %s93
    %s97 = sphi 0, %s96
    %s113 = sphi 0, %s97
  $region4: #{generator_forward.15} parent=0 // loop_header_branch
    %13 = sbr.rel (%p11) target = $region8
  $region5: #{generator_forward.15} parent=0 // loop_body
    %s15 = ssub.s32 %s10, 1
    %s16 = ssub.s32 %s10, 2
    %s17 = sadd.s32 %s10, 1
    %s18 = ssub.s32 %s10, %s17
    %p19 = scmp.eq.s32.totalorder %s18, 0
    %s21 = sadd.s32 %s20, 1
    %s22 = scalar_select %p19, %s20, %s21
    %p25 = pneg %p19
    %p26 = scmp.eq.s32.totalorder %s10, 3
    %p27 = por %p25, %p26
    %p28 = scmp.ne.s32.totalorder %s20, %s23
    %p29 = scmp.eq.s32.totalorder %s10, 0
    %p30 = por %p28, %p29
    %p31 = scmp.ne.s32.totalorder %s20, %s23
    %p32 = scmp.eq.s32.totalorder %s15, 3
    %p33 = por %p31, %p32
    %p34 = scmp.ne.s32.totalorder %s23, %s24
    %p35 = scmp.eq.s32.totalorder %s15, 0
    %p36 = por %p34, %p35
    %p37 = scmp.ne.s32.totalorder %s23, %s24
    %p38 = scmp.eq.s32.totalorder %s16, 3
    %p39 = por %p37, %p38
    %p41 = scmp.ne.s32.totalorder %s24, %s40
    %p42 = scmp.eq.s32.totalorder %s16, 0
    %p43 = por %p41, %p42
    %s45 = sadd.s32 %s44, 1
    %p48 = scmp.eq.s32.totalorder %s10, 3
    %p49 = scmp.ne.s32.totalorder %s44, %s46
    %p50 = scmp.eq.s32.totalorder %s10, 0
    %p51 = por %p49, %p50
    %p52 = scmp.ne.s32.totalorder %s44, %s46
    %p53 = scmp.eq.s32.totalorder %s15, 3
    %p54 = por %p52, %p53
    %p55 = scmp.ne.s32.totalorder %s46, %s47
    %p56 = scmp.eq.s32.totalorder %s15, 0
    %p57 = por %p55, %p56
    %p58 = scmp.ne.s32.totalorder %s46, %s47
    %p59 = scmp.eq.s32.totalorder %s16, 3
    %p60 = por %p58, %p59
    %p62 = scmp.ne.s32.totalorder %s47, %s61
    %p63 = scmp.eq.s32.totalorder %s16, 0
    %p64 = por %p62, %p63
    %s65 = ssub.s32 %s10, %s17
    %p66 = scmp.eq.s32.totalorder %s65, 0
    %s68 = sadd.s32 %s67, 1
    %s69 = scalar_select %p66, %s67, %s68
    %p72 = pneg %p66
    %p73 = scmp.eq.s32.totalorder %s10, 3
    %p74 = por %p72, %p73
    %p75 = scmp.ne.s32.totalorder %s67, %s70
    %p76 = scmp.eq.s32.totalorder %s10, 0
    %p77 = por %p75, %p76
    %p78 = scmp.ne.s32.totalorder %s67, %s70
    %p79 = scmp.eq.s32.totalorder %s15, 3
    %p80 = por %p78, %p79
    %p81 = scmp.ne.s32.totalorder %s70, %s71
    %p82 = scmp.eq.s32.totalorder %s15, 0
    %p83 = por %p81, %p82
    %p84 = scmp.ne.s32.totalorder %s70, %s71
    %p85 = scmp.eq.s32.totalorder %s16, 3
    %p86 = por %p84, %p85
    %p88 = scmp.ne.s32.totalorder %s71, %s87
    %p89 = scmp.eq.s32.totalorder %s16, 0
    %p90 = por %p88, %p89
    %s91 = ssub.s32 %s10, %s17
    %p92 = scmp.eq.s32.totalorder %s91, 0
    %s94 = sadd.s32 %s93, 1
    %s95 = scalar_select %p92, %s93, %s94
    %p98 = pneg %p92
    %p99 = scmp.eq.s32.totalorder %s10, 3
    %p100 = por %p98, %p99
    %p101 = scmp.ne.s32.totalorder %s93, %s96
    %p102 = scmp.eq.s32.totalorder %s10, 0
    %p103 = por %p101, %p102
    %p104 = scmp.ne.s32.totalorder %s93, %s96
    %p105 = scmp.eq.s32.totalorder %s15, 3
    %p106 = por %p104, %p105
    %p107 = scmp.ne.s32.totalorder %s96, %s97
    %p108 = scmp.eq.s32.totalorder %s15, 0
    %p109 = por %p107, %p108
    %p110 = scmp.ne.s32.totalorder %s96, %s97
    %p111 = scmp.eq.s32.totalorder %s16, 3
    %p112 = por %p110, %p111
    %p114 = scmp.ne.s32.totalorder %s97, %s113
    %p115 = scmp.eq.s32.totalorder %s16, 0
    %p116 = por %p114, %p115
    %p117 = scmp.le.s32.totalorder 1, %s10
    %p118 = scmp.lt.s32.totalorder %s10, 5
    %p119 = pnand %p117, %p118
    %p120 = pneg %p119
    // Predicated region
    $region9: #{generator_forward.15} parent=5 // pred_check
      _
    $region10: #{generator_forward.15} parent=5 // pred_check_branch
      %122 = sbr.rel (%p119) target = $region12
    $region11: #{generator_forward.15} parent=5 // pred_region
      %s123 = ssub.s32 %s10, 1
      // Predicated region
      $region13: #{generator_forward.15} parent=11 // pred_check
        %p124 = pneg %p57
      $region14: #{generator_forward.15} parent=11 // pred_check_branch
        %126 = sbr.rel (%p124) target = $region16
      $region15: #{generator_forward.15} parent=11 // pred_region
        _
      $region16: #{generator_forward.15} parent=11 // pred_fallthru
        _
    $region12: #{generator_forward.15} parent=5 // pred_fallthru
      _
    %p127 = scmp.lt.s32.totalorder %s10, 4
    // Predicated region
    $region17: #{generator_forward.15} parent=5 // pred_check
      %p128 = pneg %p127
    $region18: #{generator_forward.15} parent=5 // pred_check_branch
      %130 = sbr.rel (%p128) target = $region20
    $region19: #{generator_forward.15} parent=5 // pred_region
      // Predicated region
      $region21: #{generator_forward.15} parent=19 // pred_check
        %p131 = pneg %p30
      $region22: #{generator_forward.15} parent=19 // pred_check_branch
        %133 = sbr.rel (%p131) target = $region24
      $region23: #{generator_forward.15} parent=19 // pred_region
        %s134 = smul.u32 64, %s10
        %p135 = scmp.lt.s32.totalorder %s134, 255
        %s136 = scalar_select %p135, %s134, 255
        %s137 = smul.addr %s136, 2
        %s138 = smul.addr %s137, 4
        %s139 = scalar_lea.vmem %s0, %s138
        %s140 = smul.u32 64, %s10
      $region24: #{generator_forward.15} parent=19 // pred_fallthru
        _
    $region20: #{generator_forward.15} parent=5 // pred_fallthru
      _
    %p141 = scmp.le.s32.totalorder 1, %s10
    %p142 = scmp.lt.s32.totalorder %s10, 5
    %p143 = pnand %p141, %p142
    %p144 = pneg %p143
    // Predicated region
    $region25: #{generator_forward.15} parent=5 // pred_check
      _
    $region26: #{generator_forward.15} parent=5 // pred_check_branch
      %146 = sbr.rel (%p143) target = $region28
    $region27: #{generator_forward.15} parent=5 // pred_region
      %s147 = ssub.s32 %s10, 1
      %s148 = smul.u32 64, %s15
      %p149 = scmp.lt.s32.totalorder %s148, 255
      %s150 = scalar_select %p149, %s148, 255
      %s151 = smul.addr %s150, 2
      %s152 = smul.addr %s151, 4
      %s153 = scalar_lea.vmem %s0, %s152
      %p154 = pneg %p36
      %p155 = pneg %p33
      %p156 = pneg %p57
      %p157 = pneg %p54
      %p158 = pneg %p83
      %p159 = pneg %p80
      %s160 = smul.u32 64, %s15
      %p161 = scmp.lt.s32.totalorder %s160, 255
      %s162 = scalar_select %p161, %s160, 255
      %s163 = smul.addr %s162, 4
      %s164 = scalar_lea.vmem %s2, %s163
      %p165 = pneg %p109
      %p166 = pneg %p106
      %p167 = scmp.lt.s32.totalorder %s15, 3
      %s168 = scalar_select %p167, %s15, 3
      %s169 = smul.addr %s168, 8
      %s170 = scalar_lea.vmem %s3, %s169
      %s171 = smul.u32 64, %s15
      %p172 = scmp.lt.s32.totalorder %s171, 255
      %s173 = scalar_select %p172, %s171, 255
      %s174 = smul.addr %s173, 2
      %s175 = smul.addr %s174, 4
      %s176 = scalar_lea.vmem %s0, %s175
      %s177 = smul.u32 64, %s15
      %s178 = smul.u32 64, %s15
      %p179 = scmp.lt.s32.totalorder %s178, 255
      %s180 = scalar_select %p179, %s178, 255
      %s181 = smul.addr %s180, 4
      %s182 = scalar_lea.vmem %s2, %s181
      %s183 = smul.u32 64, %s15
      %p184 = scmp.lt.s32.totalorder %s15, 3
      %s185 = scalar_select %p184, %s15, 3
      %s186 = smul.addr %s185, 8
      %s187 = scalar_lea.vmem %s3, %s186
      %v189 = vld [vmem:[%s176] sm:$0xff]
      %v190 = vld [vmem:[%s176 + $0x8] sm:$0xff]
      %v191 = vld [vmem:[%s176 + $0x10] sm:$0xff]
      %v192 = vld [vmem:[%s176 + $0x18] sm:$0xff]
      %v193 = vld [vmem:[%s176 + $0x20] sm:$0xff]
      %v194 = vld [vmem:[%s176 + $0x28] sm:$0xff]
      %v195 = vld [vmem:[%s176 + $0x30] sm:$0xff]
      %v196 = vld [vmem:[%s176 + $0x38] sm:$0xff]
      %v197 = vld [vmem:[%s176 + $0x40] sm:$0xff]
      %v198 = vld [vmem:[%s176 + $0x48] sm:$0xff]
      %v199 = vld [vmem:[%s176 + $0x50] sm:$0xff]
      %v200 = vld [vmem:[%s176 + $0x58] sm:$0xff]
      %v201 = vld [vmem:[%s176 + $0x60] sm:$0xff]
      %v202 = vld [vmem:[%s176 + $0x68] sm:$0xff]
      %v203 = vld [vmem:[%s176 + $0x70] sm:$0xff]
      %v204 = vld [vmem:[%s176 + $0x78] sm:$0xff]
      %v205 = vld [vmem:[%s176 + $0x80] sm:$0xff]
      %v206 = vld [vmem:[%s176 + $0x88] sm:$0xff]
      %v207 = vld [vmem:[%s176 + $0x90] sm:$0xff]
      %v208 = vld [vmem:[%s176 + $0x98] sm:$0xff]
      %v209 = vld [vmem:[%s176 + $0xa0] sm:$0xff]
      %v210 = vld [vmem:[%s176 + $0xa8] sm:$0xff]
      %v211 = vld [vmem:[%s176 + $0xb0] sm:$0xff]
      %v212 = vld [vmem:[%s176 + $0xb8] sm:$0xff]
      %v213 = vld [vmem:[%s176 + $0xc0] sm:$0xff]
      %v214 = vld [vmem:[%s176 + $0xc8] sm:$0xff]
      %v215 = vld [vmem:[%s176 + $0xd0] sm:$0xff]
      %v216 = vld [vmem:[%s176 + $0xd8] sm:$0xff]
      %v217 = vld [vmem:[%s176 + $0xe0] sm:$0xff]
      %v218 = vld [vmem:[%s176 + $0xe8] sm:$0xff]
      %v219 = vld [vmem:[%s176 + $0xf0] sm:$0xff]
      %v220 = vld [vmem:[%s176 + $0xf8] sm:$0xff]
      %v221 = vld [vmem:[%s176 + $0x100] sm:$0xff]
      %v222 = vld [vmem:[%s176 + $0x108] sm:$0xff]
      %v223 = vld [vmem:[%s176 + $0x110] sm:$0xff]
      %v224 = vld [vmem:[%s176 + $0x118] sm:$0xff]
      %v225 = vld [vmem:[%s176 + $0x120] sm:$0xff]
      %v226 = vld [vmem:[%s176 + $0x128] sm:$0xff]
      %v227 = vld [vmem:[%s176 + $0x130] sm:$0xff]
      %v228 = vld [vmem:[%s176 + $0x138] sm:$0xff]
      %v229 = vld [vmem:[%s176 + $0x140] sm:$0xff]
      %v230 = vld [vmem:[%s176 + $0x148] sm:$0xff]
      %v231 = vld [vmem:[%s176 + $0x150] sm:$0xff]
      %v232 = vld [vmem:[%s176 + $0x158] sm:$0xff]
      %v233 = vld [vmem:[%s176 + $0x160] sm:$0xff]
      %v234 = vld [vmem:[%s176 + $0x168] sm:$0xff]
      %v235 = vld [vmem:[%s176 + $0x170] sm:$0xff]
      %v236 = vld [vmem:[%s176 + $0x178] sm:$0xff]
      %v237 = vld [vmem:[%s176 + $0x180] sm:$0xff]
      %v238 = vld [vmem:[%s176 + $0x188] sm:$0xff]
      %v239 = vld [vmem:[%s176 + $0x190] sm:$0xff]
      %v240 = vld [vmem:[%s176 + $0x198] sm:$0xff]
      %v241 = vld [vmem:[%s176 + $0x1a0] sm:$0xff]
      %v242 = vld [vmem:[%s176 + $0x1a8] sm:$0xff]
      %v243 = vld [vmem:[%s176 + $0x1b0] sm:$0xff]
      %v244 = vld [vmem:[%s176 + $0x1b8] sm:$0xff]
      %v245 = vld [vmem:[%s176 + $0x1c0] sm:$0xff]
      %v246 = vld [vmem:[%s176 + $0x1c8] sm:$0xff]
      %v247 = vld [vmem:[%s176 + $0x1d0] sm:$0xff]
      %v248 = vld [vmem:[%s176 + $0x1d8] sm:$0xff]
      %v249 = vld [vmem:[%s176 + $0x1e0] sm:$0xff]
      %v250 = vld [vmem:[%s176 + $0x1e8] sm:$0xff]
      %v251 = vld [vmem:[%s176 + $0x1f0] sm:$0xff]
      %v252 = vld [vmem:[%s176 + $0x1f8] sm:$0xff]
      %v253 = vld [vmem:[%s1] sm:$0xf]
      %v254 = vld [vmem:[%s1 + $0x4] sm:$0xf]
      %v255 = vld [vmem:[%s1 + $0x8] sm:$0xf]
      %v256 = vld [vmem:[%s1 + $0xc] sm:$0xf]
      %v257 = vld [vmem:[%s1 + $0x10] sm:$0xf]
      %v258 = vld [vmem:[%s1 + $0x14] sm:$0xf]
      %v259 = vld [vmem:[%s1 + $0x18] sm:$0xf]
      %v260 = vld [vmem:[%s1 + $0x1c] sm:$0xf]
      %v261 = vld [vmem:[%s1 + $0x20] sm:$0xf]
      %v262 = vld [vmem:[%s1 + $0x24] sm:$0xf]
      %v263 = vld [vmem:[%s1 + $0x28] sm:$0xf]
      %v264 = vld [vmem:[%s1 + $0x2c] sm:$0xf]
      %v265 = vld [vmem:[%s1 + $0x30] sm:$0xf]
      %v266 = vld [vmem:[%s1 + $0x34] sm:$0xf]
      %v267 = vld [vmem:[%s1 + $0x38] sm:$0xf]
      %v268 = vld [vmem:[%s1 + $0x3c] sm:$0xf]
      %v269 = vld [vmem:[%s1 + $0x40] sm:$0xf]
      %v270 = vld [vmem:[%s1 + $0x44] sm:$0xf]
      %v271 = vld [vmem:[%s1 + $0x48] sm:$0xf]
      %v272 = vld [vmem:[%s1 + $0x4c] sm:$0xf]
      %v273 = vld [vmem:[%s1 + $0x50] sm:$0xf]
      %v274 = vld [vmem:[%s1 + $0x54] sm:$0xf]
      %v275 = vld [vmem:[%s1 + $0x58] sm:$0xf]
      %v276 = vld [vmem:[%s1 + $0x5c] sm:$0xf]
      %v277 = vld [vmem:[%s1 + $0x60] sm:$0xf]
      %v278 = vld [vmem:[%s1 + $0x64] sm:$0xf]
      %v279 = vld [vmem:[%s1 + $0x68] sm:$0xf]
      %v280 = vld [vmem:[%s1 + $0x6c] sm:$0xf]
      %v281 = vld [vmem:[%s1 + $0x70] sm:$0xf]
      %v282 = vld [vmem:[%s1 + $0x74] sm:$0xf]
      %v283 = vld [vmem:[%s1 + $0x78] sm:$0xf]
      %v284 = vld [vmem:[%s1 + $0x7c] sm:$0xf]
      %v349 = vunpack.c.l.b16 %v189
      %v350 = vunpack.c.h.b16 %v189
      %v351 = vunpack.c.l.b16 %v190
      %v352 = vunpack.c.h.b16 %v190
      %v353 = vunpack.c.l.b16 %v191
      %v354 = vunpack.c.h.b16 %v191
      %v355 = vunpack.c.l.b16 %v192
      %v356 = vunpack.c.h.b16 %v192
      %v357 = vunpack.c.l.b16 %v193
      %v358 = vunpack.c.h.b16 %v193
      %v359 = vunpack.c.l.b16 %v194
      %v360 = vunpack.c.h.b16 %v194
      %v361 = vunpack.c.l.b16 %v195
      %v362 = vunpack.c.h.b16 %v195
      %v363 = vunpack.c.l.b16 %v196
      %v364 = vunpack.c.h.b16 %v196
      %v365 = vunpack.c.l.b16 %v197
      %v366 = vunpack.c.h.b16 %v197
      %v367 = vunpack.c.l.b16 %v198
      %v368 = vunpack.c.h.b16 %v198
      %v369 = vunpack.c.l.b16 %v199
      %v370 = vunpack.c.h.b16 %v199
      %v371 = vunpack.c.l.b16 %v200
      %v372 = vunpack.c.h.b16 %v200
      %v373 = vunpack.c.l.b16 %v201
      %v374 = vunpack.c.h.b16 %v201
      %v375 = vunpack.c.l.b16 %v202
      %v376 = vunpack.c.h.b16 %v202
      %v377 = vunpack.c.l.b16 %v203
      %v378 = vunpack.c.h.b16 %v203
      %v379 = vunpack.c.l.b16 %v204
      %v380 = vunpack.c.h.b16 %v204
      %v381 = vunpack.c.l.b16 %v205
      %v382 = vunpack.c.h.b16 %v205
      %v383 = vunpack.c.l.b16 %v206
      %v384 = vunpack.c.h.b16 %v206
      %v385 = vunpack.c.l.b16 %v207
      %v386 = vunpack.c.h.b16 %v207
      %v387 = vunpack.c.l.b16 %v208
      %v388 = vunpack.c.h.b16 %v208
      %v389 = vunpack.c.l.b16 %v209
      %v390 = vunpack.c.h.b16 %v209
      %v391 = vunpack.c.l.b16 %v210
      %v392 = vunpack.c.h.b16 %v210
      %v393 = vunpack.c.l.b16 %v211
      %v394 = vunpack.c.h.b16 %v211
      %v395 = vunpack.c.l.b16 %v212
      %v396 = vunpack.c.h.b16 %v212
      %v397 = vunpack.c.l.b16 %v213
      %v398 = vunpack.c.h.b16 %v213
      %v399 = vunpack.c.l.b16 %v214
      %v400 = vunpack.c.h.b16 %v214
      %v401 = vunpack.c.l.b16 %v215
      %v402 = vunpack.c.h.b16 %v215
      %v403 = vunpack.c.l.b16 %v216
      %v404 = vunpack.c.h.b16 %v216
      %v405 = vunpack.c.l.b16 %v217
      %v406 = vunpack.c.h.b16 %v217
      %v407 = vunpack.c.l.b16 %v218
      %v408 = vunpack.c.h.b16 %v218
      %v409 = vunpack.c.l.b16 %v219
      %v410 = vunpack.c.h.b16 %v219
      %v411 = vunpack.c.l.b16 %v220
      %v412 = vunpack.c.h.b16 %v220
      %v413 = vunpack.c.l.b16 %v221
      %v414 = vunpack.c.h.b16 %v221
      %v415 = vunpack.c.l.b16 %v222
      %v416 = vunpack.c.h.b16 %v222
      %v417 = vunpack.c.l.b16 %v223
      %v418 = vunpack.c.h.b16 %v223
      %v419 = vunpack.c.l.b16 %v224
      %v420 = vunpack.c.h.b16 %v224
      %v421 = vunpack.c.l.b16 %v225
      %v422 = vunpack.c.h.b16 %v225
      %v423 = vunpack.c.l.b16 %v226
      %v424 = vunpack.c.h.b16 %v226
      %v425 = vunpack.c.l.b16 %v227
      %v426 = vunpack.c.h.b16 %v227
      %v427 = vunpack.c.l.b16 %v228
      %v428 = vunpack.c.h.b16 %v228
      %v429 = vunpack.c.l.b16 %v229
      %v430 = vunpack.c.h.b16 %v229
      %v431 = vunpack.c.l.b16 %v230
      %v432 = vunpack.c.h.b16 %v230
      %v433 = vunpack.c.l.b16 %v231
      %v434 = vunpack.c.h.b16 %v231
      %v435 = vunpack.c.l.b16 %v232
      %v436 = vunpack.c.h.b16 %v232
      %v437 = vunpack.c.l.b16 %v233
      %v438 = vunpack.c.h.b16 %v233
      %v439 = vunpack.c.l.b16 %v234
      %v440 = vunpack.c.h.b16 %v234
      %v441 = vunpack.c.l.b16 %v235
      %v442 = vunpack.c.h.b16 %v235
      %v443 = vunpack.c.l.b16 %v236
      %v444 = vunpack.c.h.b16 %v236
      %v445 = vunpack.c.l.b16 %v237
      %v446 = vunpack.c.h.b16 %v237
      %v447 = vunpack.c.l.b16 %v238
      %v448 = vunpack.c.h.b16 %v238
      %v449 = vunpack.c.l.b16 %v239
      %v450 = vunpack.c.h.b16 %v239
      %v451 = vunpack.c.l.b16 %v240
      %v452 = vunpack.c.h.b16 %v240
      %v453 = vunpack.c.l.b16 %v241
      %v454 = vunpack.c.h.b16 %v241
      %v455 = vunpack.c.l.b16 %v242
      %v456 = vunpack.c.h.b16 %v242
      %v457 = vunpack.c.l.b16 %v243
      %v458 = vunpack.c.h.b16 %v243
      %v459 = vunpack.c.l.b16 %v244
      %v460 = vunpack.c.h.b16 %v244
      %v461 = vunpack.c.l.b16 %v245
      %v462 = vunpack.c.h.b16 %v245
      %v463 = vunpack.c.l.b16 %v246
      %v464 = vunpack.c.h.b16 %v246
      %v465 = vunpack.c.l.b16 %v247
      %v466 = vunpack.c.h.b16 %v247
      %v467 = vunpack.c.l.b16 %v248
      %v468 = vunpack.c.h.b16 %v248
      %v469 = vunpack.c.l.b16 %v249
      %v470 = vunpack.c.h.b16 %v249
      %v471 = vunpack.c.l.b16 %v250
      %v472 = vunpack.c.h.b16 %v250
      %v473 = vunpack.c.l.b16 %v251
      %v474 = vunpack.c.h.b16 %v251
      %v475 = vunpack.c.l.b16 %v252
      %v476 = vunpack.c.h.b16 %v252
      %v477 = vpack.c.b16 %v351, %v349
      %v478 = vpack.c.b16 %v352, %v350
      %v479 = vpack.c.b16 %v355, %v353
      %v480 = vpack.c.b16 %v356, %v354
      %v481 = vpack.c.b16 %v359, %v357
      %v482 = vpack.c.b16 %v360, %v358
      %v483 = vpack.c.b16 %v363, %v361
      %v484 = vpack.c.b16 %v364, %v362
      %v485 = vpack.c.b16 %v367, %v365
      %v486 = vpack.c.b16 %v368, %v366
      %v487 = vpack.c.b16 %v371, %v369
      %v488 = vpack.c.b16 %v372, %v370
      %v489 = vpack.c.b16 %v375, %v373
      %v490 = vpack.c.b16 %v376, %v374
      %v491 = vpack.c.b16 %v379, %v377
      %v492 = vpack.c.b16 %v380, %v378
      %v493 = vpack.c.b16 %v383, %v381
      %v494 = vpack.c.b16 %v384, %v382
      %v495 = vpack.c.b16 %v387, %v385
      %v496 = vpack.c.b16 %v388, %v386
      %v497 = vpack.c.b16 %v391, %v389
      %v498 = vpack.c.b16 %v392, %v390
      %v499 = vpack.c.b16 %v395, %v393
      %v500 = vpack.c.b16 %v396, %v394
      %v501 = vpack.c.b16 %v399, %v397
      %v502 = vpack.c.b16 %v400, %v398
      %v503 = vpack.c.b16 %v403, %v401
      %v504 = vpack.c.b16 %v404, %v402
      %v505 = vpack.c.b16 %v407, %v405
      %v506 = vpack.c.b16 %v408, %v406
      %v507 = vpack.c.b16 %v411, %v409
      %v508 = vpack.c.b16 %v412, %v410
      %v509 = vpack.c.b16 %v415, %v413
      %v510 = vpack.c.b16 %v416, %v414
      %v511 = vpack.c.b16 %v419, %v417
      %v512 = vpack.c.b16 %v420, %v418
      %v513 = vpack.c.b16 %v423, %v421
      %v514 = vpack.c.b16 %v424, %v422
      %v515 = vpack.c.b16 %v427, %v425
      %v516 = vpack.c.b16 %v428, %v426
      %v517 = vpack.c.b16 %v431, %v429
      %v518 = vpack.c.b16 %v432, %v430
      %v519 = vpack.c.b16 %v435, %v433
      %v520 = vpack.c.b16 %v436, %v434
      %v521 = vpack.c.b16 %v439, %v437
      %v522 = vpack.c.b16 %v440, %v438
      %v523 = vpack.c.b16 %v443, %v441
      %v524 = vpack.c.b16 %v444, %v442
      %v525 = vpack.c.b16 %v447, %v445
      %v526 = vpack.c.b16 %v448, %v446
      %v527 = vpack.c.b16 %v451, %v449
      %v528 = vpack.c.b16 %v452, %v450
      %v529 = vpack.c.b16 %v455, %v453
      %v530 = vpack.c.b16 %v456, %v454
      %v531 = vpack.c.b16 %v459, %v457
      %v532 = vpack.c.b16 %v460, %v458
      %v533 = vpack.c.b16 %v463, %v461
      %v534 = vpack.c.b16 %v464, %v462
      %v535 = vpack.c.b16 %v467, %v465
      %v536 = vpack.c.b16 %v468, %v466
      %v537 = vpack.c.b16 %v471, %v469
      %v538 = vpack.c.b16 %v472, %v470
      %v539 = vpack.c.b16 %v475, %v473
      %v540 = vpack.c.b16 %v476, %v474
      %v637 = vunpack.c.l.b16 %v253
      %v638 = vunpack.c.l.b16 %v254
      %v639 = vunpack.c.l.b16 %v255
      %v640 = vunpack.c.l.b16 %v256
      %v641 = vunpack.c.l.b16 %v257
      %v642 = vunpack.c.l.b16 %v258
      %v643 = vunpack.c.l.b16 %v259
      %v644 = vunpack.c.l.b16 %v260
      %v645 = vunpack.c.l.b16 %v261
      %v646 = vunpack.c.l.b16 %v262
      %v647 = vunpack.c.l.b16 %v263
      %v648 = vunpack.c.l.b16 %v264
      %v649 = vunpack.c.l.b16 %v265
      %v650 = vunpack.c.l.b16 %v266
      %v651 = vunpack.c.l.b16 %v267
      %v652 = vunpack.c.l.b16 %v268
      %v653 = vunpack.c.l.b16 %v269
      %v654 = vunpack.c.l.b16 %v270
      %v655 = vunpack.c.l.b16 %v271
      %v656 = vunpack.c.l.b16 %v272
      %v657 = vunpack.c.l.b16 %v273
      %v658 = vunpack.c.l.b16 %v274
      %v659 = vunpack.c.l.b16 %v275
      %v660 = vunpack.c.l.b16 %v276
      %v661 = vunpack.c.l.b16 %v277
      %v662 = vunpack.c.l.b16 %v278
      %v663 = vunpack.c.l.b16 %v279
      %v664 = vunpack.c.l.b16 %v280
      %v665 = vunpack.c.l.b16 %v281
      %v666 = vunpack.c.l.b16 %v282
      %v667 = vunpack.c.l.b16 %v283
      %v668 = vunpack.c.l.b16 %v284
      %v669 = vpack.c.b16 %v638, %v637
      %v670 = vpack.c.b16 %v640, %v639
      %v671 = vpack.c.b16 %v642, %v641
      %v672 = vpack.c.b16 %v644, %v643
      %v673 = vpack.c.b16 %v646, %v645
      %v674 = vpack.c.b16 %v648, %v647
      %v675 = vpack.c.b16 %v650, %v649
      %v676 = vpack.c.b16 %v652, %v651
      %v677 = vpack.c.b16 %v654, %v653
      %v678 = vpack.c.b16 %v656, %v655
      %v679 = vpack.c.b16 %v658, %v657
      %v680 = vpack.c.b16 %v660, %v659
      %v681 = vpack.c.b16 %v662, %v661
      %v682 = vpack.c.b16 %v664, %v663
      %v683 = vpack.c.b16 %v666, %v665
      %v684 = vpack.c.b16 %v668, %v667
      %701 = vmatprep.subr.bf16.mxu0 0
      %702 = vmatpush1.bf16.msra.mxu0 %v669
      %703 = vmatprep.subr.bf16.mxu0 0
      %704 = vmatpush1.bf16.msra.mxu0 %v670
      %705 = vmatprep.subr.bf16.mxu0 0
      %706 = vmatpush1.bf16.msra.mxu0 %v671
      %707 = vmatprep.subr.bf16.mxu0 0
      %708 = vmatpush1.bf16.msra.mxu0 %v672
      %709 = vmatprep.subr.bf16.mxu0 0
      %710 = vmatpush1.bf16.msra.mxu0 %v673
      %711 = vmatprep.subr.bf16.mxu0 0
      %712 = vmatpush1.bf16.msra.mxu0 %v674
      %713 = vmatprep.subr.bf16.mxu0 0
      %714 = vmatpush1.bf16.msra.mxu0 %v675
      %715 = vmatprep.subr.bf16.mxu0 0
      %716 = vmatpush1.bf16.msra.mxu0 %v676
      %717 = vmatprep.subr.bf16.mxu0 0
      %718 = vmatpush1.bf16.msra.mxu0 %v677
      %719 = vmatprep.subr.bf16.mxu0 0
      %720 = vmatpush1.bf16.msra.mxu0 %v678
      %721 = vmatprep.subr.bf16.mxu0 0
      %722 = vmatpush1.bf16.msra.mxu0 %v679
      %723 = vmatprep.subr.bf16.mxu0 0
      %724 = vmatpush1.bf16.msra.mxu0 %v680
      %725 = vmatprep.subr.bf16.mxu0 0
      %726 = vmatpush1.bf16.msra.mxu0 %v681
      %727 = vmatprep.subr.bf16.mxu0 0
      %728 = vmatpush1.bf16.msra.mxu0 %v682
      %729 = vmatprep.subr.bf16.mxu0 0
      %730 = vmatpush1.bf16.msra.mxu0 %v683
      %731 = vmatprep.subr.bf16.mxu0 0
      %732 = vmatpush1.bf16.msra.mxu0 %v684
      %733 = vmatprep.mubr.bf16.mxu0 %v478
      %734 = vmatmul.mubr.bf16.gmra.mrb[0].mxu0 %v477
      %v735 = vpop.f32.mrb[0].mxu0
      %v736 = vadd.f32 0.0, %v735
      %v737 = vpop.f32.mrb[0].mxu0
      %v738 = vpop.f32.mrb[0].mxu0
      %v739 = vadd.f32 0.0, %v738
      %v740 = vpop.f32.mrb[0].mxu0
      %741 = vmatprep.mubr.bf16.mxu0 %v480
      %742 = vmatmul.mubr.bf16.gmra.mrb[0].mxu0 %v479
      %v743 = vpop.f32.mrb[0].mxu0
      %v744 = vadd.f32 0.0, %v743
      %v745 = vpop.f32.mrb[0].mxu0
      %v746 = vpop.f32.mrb[0].mxu0
      %v747 = vadd.f32 0.0, %v746
      %v748 = vpop.f32.mrb[0].mxu0
      %749 = vmatprep.mubr.bf16.mxu0 %v482
      %750 = vmatmul.mubr.bf16.gmra.mrb[0].mxu0 %v481
      %v751 = vpop.f32.mrb[0].mxu0
      %v752 = vadd.f32 0.0, %v751
      %v753 = vpop.f32.mrb[0].mxu0
      %v754 = vpop.f32.mrb[0].mxu0
      %v755 = vadd.f32 0.0, %v754
      %v756 = vpop.f32.mrb[0].mxu0
      %757 = vmatprep.mubr.bf16.mxu0 %v484
      %758 = vmatmul.mubr.bf16.gmra.mrb[0].mxu0 %v483
      %v759 = vpop.f32.mrb[0].mxu0
      %v760 = vadd.f32 0.0, %v759
      %v761 = vpop.f32.mrb[0].mxu0
      %v762 = vpop.f32.mrb[0].mxu0
      %v763 = vadd.f32 0.0, %v762
      %v764 = vpop.f32.mrb[0].mxu0
      %765 = vmatprep.mubr.bf16.mxu0 %v486
      %766 = vmatmul.mubr.bf16.gmra.mrb[0].mxu0 %v485
      %v767 = vpop.f32.mrb[0].mxu0
      %v768 = vadd.f32 0.0, %v767
      %v769 = vpop.f32.mrb[0].mxu0
      %v770 = vpop.f32.mrb[0].mxu0
      %v771 = vadd.f32 0.0, %v770
      %v772 = vpop.f32.mrb[0].mxu0
      %773 = vmatprep.mubr.bf16.mxu0 %v488
      %774 = vmatmul.mubr.bf16.gmra.mrb[0].mxu0 %v487
      %v775 = vpop.f32.mrb[0].mxu0
      %v776 = vadd.f32 0.0, %v775
      %v777 = vpop.f32.mrb[0].mxu0
      %v778 = vpop.f32.mrb[0].mxu0
      %v779 = vadd.f32 0.0, %v778
      %v780 = vpop.f32.mrb[0].mxu0
      %781 = vmatprep.mubr.bf16.mxu0 %v490
      %782 = vmatmul.mubr.bf16.gmra.mrb[0].mxu0 %v489
      %v783 = vpop.f32.mrb[0].mxu0
      %v784 = vadd.f32 0.0, %v783
      %v785 = vpop.f32.mrb[0].mxu0
      %v786 = vpop.f32.mrb[0].mxu0
      %v787 = vadd.f32 0.0, %v786
      %v788 = vpop.f32.mrb[0].mxu0
      %789 = vmatprep.mubr.bf16.mxu0 %v492
      %790 = vmatmul.mubr.bf16.gmra.mrb[0].mxu0 %v491
      %v791 = vpop.f32.mrb[0].mxu0
      %v792 = vadd.f32 0.0, %v791
      %v793 = vpop.f32.mrb[0].mxu0
      %v794 = vpop.f32.mrb[0].mxu0
      %v795 = vadd.f32 0.0, %v794
      %v796 = vpop.f32.mrb[0].mxu0
      %797 = vmatprep.mubr.bf16.mxu0 %v494
      %798 = vmatmul.mubr.bf16.gmra.mrb[0].mxu0 %v493
      %v799 = vpop.f32.mrb[0].mxu0
      %v800 = vadd.f32 0.0, %v799
      %v801 = vpop.f32.mrb[0].mxu0
      %v802 = vpop.f32.mrb[0].mxu0
      %v803 = vadd.f32 0.0, %v802
      %v804 = vpop.f32.mrb[0].mxu0
      %805 = vmatprep.mubr.bf16.mxu0 %v496
      %806 = vmatmul.mubr.bf16.gmra.mrb[0].mxu0 %v495
      %v807 = vpop.f32.mrb[0].mxu0
      %v808 = vadd.f32 0.0, %v807
      %v809 = vpop.f32.mrb[0].mxu0
      %v810 = vpop.f32.mrb[0].mxu0
      %v811 = vadd.f32 0.0, %v810
      %v812 = vpop.f32.mrb[0].mxu0
      %813 = vmatprep.mubr.bf16.mxu0 %v498
      %814 = vmatmul.mubr.bf16.gmra.mrb[0].mxu0 %v497
      %v815 = vpop.f32.mrb[0].mxu0
      %v816 = vadd.f32 0.0, %v815
      %v817 = vpop.f32.mrb[0].mxu0
      %v818 = vpop.f32.mrb[0].mxu0
      %v819 = vadd.f32 0.0, %v818
      %v820 = vpop.f32.mrb[0].mxu0
      %821 = vmatprep.mubr.bf16.mxu0 %v500
      %822 = vmatmul.mubr.bf16.gmra.mrb[0].mxu0 %v499
      %v823 = vpop.f32.mrb[0].mxu0
      %v824 = vadd.f32 0.0, %v823
      %v825 = vpop.f32.mrb[0].mxu0
      %v826 = vpop.f32.mrb[0].mxu0
      %v827 = vadd.f32 0.0, %v826
      %v828 = vpop.f32.mrb[0].mxu0
      %829 = vmatprep.mubr.bf16.mxu0 %v502
      %830 = vmatmul.mubr.bf16.gmra.mrb[0].mxu0 %v501
      %v831 = vpop.f32.mrb[0].mxu0
      %v832 = vadd.f32 0.0, %v831
      %v833 = vpop.f32.mrb[0].mxu0
      %v834 = vpop.f32.mrb[0].mxu0
      %v835 = vadd.f32 0.0, %v834
      %v836 = vpop.f32.mrb[0].mxu0
      %837 = vmatprep.mubr.bf16.mxu0 %v504
      %838 = vmatmul.mubr.bf16.gmra.mrb[0].mxu0 %v503
      %v839 = vpop.f32.mrb[0].mxu0
      %v840 = vadd.f32 0.0, %v839
      %v841 = vpop.f32.mrb[0].mxu0
      %v842 = vpop.f32.mrb[0].mxu0
      %v843 = vadd.f32 0.0, %v842
      %v844 = vpop.f32.mrb[0].mxu0
      %845 = vmatprep.mubr.bf16.mxu0 %v506
      %846 = vmatmul.mubr.bf16.gmra.mrb[0].mxu0 %v505
      %v847 = vpop.f32.mrb[0].mxu0
      %v848 = vadd.f32 0.0, %v847
      %v849 = vpop.f32.mrb[0].mxu0
      %v850 = vpop.f32.mrb[0].mxu0
      %v851 = vadd.f32 0.0, %v850
      %v852 = vpop.f32.mrb[0].mxu0
      %853 = vmatprep.mubr.bf16.mxu0 %v508
      %854 = vmatmul.mubr.bf16.gmra.mrb[0].mxu0 %v507
      %v855 = vpop.f32.mrb[0].mxu0
      %v856 = vadd.f32 0.0, %v855
      %v857 = vpop.f32.mrb[0].mxu0
      %v858 = vpop.f32.mrb[0].mxu0
      %v859 = vadd.f32 0.0, %v858
      %v860 = vpop.f32.mrb[0].mxu0
      %861 = vmatprep.mubr.bf16.mxu0 %v510
      %862 = vmatmul.mubr.bf16.gmra.mrb[0].mxu0 %v509
      %v863 = vpop.f32.mrb[0].mxu0
      %v864 = vadd.f32 0.0, %v863
      %v865 = vpop.f32.mrb[0].mxu0
      %v866 = vpop.f32.mrb[0].mxu0
      %v867 = vadd.f32 0.0, %v866
      %v868 = vpop.f32.mrb[0].mxu0
      %869 = vmatprep.mubr.bf16.mxu0 %v512
      %870 = vmatmul.mubr.bf16.gmra.mrb[0].mxu0 %v511
      %v871 = vpop.f32.mrb[0].mxu0
      %v872 = vadd.f32 0.0, %v871
      %v873 = vpop.f32.mrb[0].mxu0
      %v874 = vpop.f32.mrb[0].mxu0
      %v875 = vadd.f32 0.0, %v874
      %v876 = vpop.f32.mrb[0].mxu0
      %877 = vmatprep.mubr.bf16.mxu0 %v514
      %878 = vmatmul.mubr.bf16.gmra.mrb[0].mxu0 %v513
      %v879 = vpop.f32.mrb[0].mxu0
      %v880 = vadd.f32 0.0, %v879
      %v881 = vpop.f32.mrb[0].mxu0
      %v882 = vpop.f32.mrb[0].mxu0
      %v883 = vadd.f32 0.0, %v882
      %v884 = vpop.f32.mrb[0].mxu0
      %885 = vmatprep.mubr.bf16.mxu0 %v516
      %886 = vmatmul.mubr.bf16.gmra.mrb[0].mxu0 %v515
      %v887 = vpop.f32.mrb[0].mxu0
      %v888 = vadd.f32 0.0, %v887
      %v889 = vpop.f32.mrb[0].mxu0
      %v890 = vpop.f32.mrb[0].mxu0
      %v891 = vadd.f32 0.0, %v890
      %v892 = vpop.f32.mrb[0].mxu0
      %893 = vmatprep.mubr.bf16.mxu0 %v518
      %894 = vmatmul.mubr.bf16.gmra.mrb[0].mxu0 %v517
      %v895 = vpop.f32.mrb[0].mxu0
      %v896 = vadd.f32 0.0, %v895
      %v897 = vpop.f32.mrb[0].mxu0
      %v898 = vpop.f32.mrb[0].mxu0
      %v899 = vadd.f32 0.0, %v898
      %v900 = vpop.f32.mrb[0].mxu0
      %901 = vmatprep.mubr.bf16.mxu0 %v520
      %902 = vmatmul.mubr.bf16.gmra.mrb[0].mxu0 %v519
      %v903 = vpop.f32.mrb[0].mxu0
      %v904 = vadd.f32 0.0, %v903
      %v905 = vpop.f32.mrb[0].mxu0
      %v906 = vpop.f32.mrb[0].mxu0
      %v907 = vadd.f32 0.0, %v906
      %v908 = vpop.f32.mrb[0].mxu0
      %909 = vmatprep.mubr.bf16.mxu0 %v522
      %910 = vmatmul.mubr.bf16.gmra.mrb[0].mxu0 %v521
      %v911 = vpop.f32.mrb[0].mxu0
      %v912 = vadd.f32 0.0, %v911
      %v913 = vpop.f32.mrb[0].mxu0
      %v914 = vpop.f32.mrb[0].mxu0
      %v915 = vadd.f32 0.0, %v914
      %v916 = vpop.f32.mrb[0].mxu0
      %917 = vmatprep.mubr.bf16.mxu0 %v524
      %918 = vmatmul.mubr.bf16.gmra.mrb[0].mxu0 %v523
      %v919 = vpop.f32.mrb[0].mxu0
      %v920 = vadd.f32 0.0, %v919
      %v921 = vpop.f32.mrb[0].mxu0
      %v922 = vpop.f32.mrb[0].mxu0
      %v923 = vadd.f32 0.0, %v922
      %v924 = vpop.f32.mrb[0].mxu0
      %925 = vmatprep.mubr.bf16.mxu0 %v526
      %926 = vmatmul.mubr.bf16.gmra.mrb[0].mxu0 %v525
      %v927 = vpop.f32.mrb[0].mxu0
      %v928 = vadd.f32 0.0, %v927
      %v929 = vpop.f32.mrb[0].mxu0
      %v930 = vpop.f32.mrb[0].mxu0
      %v931 = vadd.f32 0.0, %v930
      %v932 = vpop.f32.mrb[0].mxu0
      %933 = vmatprep.mubr.bf16.mxu0 %v528
      %934 = vmatmul.mubr.bf16.gmra.mrb[0].mxu0 %v527
      %v935 = vpop.f32.mrb[0].mxu0
      %v936 = vadd.f32 0.0, %v935
      %v937 = vpop.f32.mrb[0].mxu0
      %v938 = vpop.f32.mrb[0].mxu0
      %v939 = vadd.f32 0.0, %v938
      %v940 = vpop.f32.mrb[0].mxu0
      %941 = vmatprep.mubr.bf16.mxu0 %v530
      %942 = vmatmul.mubr.bf16.gmra.mrb[0].mxu0 %v529
      %v943 = vpop.f32.mrb[0].mxu0
      %v944 = vadd.f32 0.0, %v943
      %v945 = vpop.f32.mrb[0].mxu0
      %v946 = vpop.f32.mrb[0].mxu0
      %v947 = vadd.f32 0.0, %v946
      %v948 = vpop.f32.mrb[0].mxu0
      %949 = vmatprep.mubr.bf16.mxu0 %v532
      %950 = vmatmul.mubr.bf16.gmra.mrb[0].mxu0 %v531
      %v951 = vpop.f32.mrb[0].mxu0
      %v952 = vadd.f32 0.0, %v951
      %v953 = vpop.f32.mrb[0].mxu0
      %v954 = vpop.f32.mrb[0].mxu0
      %v955 = vadd.f32 0.0, %v954
      %v956 = vpop.f32.mrb[0].mxu0
      %957 = vmatprep.mubr.bf16.mxu0 %v534
      %958 = vmatmul.mubr.bf16.gmra.mrb[0].mxu0 %v533
      %v959 = vpop.f32.mrb[0].mxu0
      %v960 = vadd.f32 0.0, %v959
      %v961 = vpop.f32.mrb[0].mxu0
      %v962 = vpop.f32.mrb[0].mxu0
      %v963 = vadd.f32 0.0, %v962
      %v964 = vpop.f32.mrb[0].mxu0
      %965 = vmatprep.mubr.bf16.mxu0 %v536
      %966 = vmatmul.mubr.bf16.gmra.mrb[0].mxu0 %v535
      %v967 = vpop.f32.mrb[0].mxu0
      %v968 = vadd.f32 0.0, %v967
      %v969 = vpop.f32.mrb[0].mxu0
      %v970 = vpop.f32.mrb[0].mxu0
      %v971 = vadd.f32 0.0, %v970
      %v972 = vpop.f32.mrb[0].mxu0
      %973 = vmatprep.mubr.bf16.mxu0 %v538
      %974 = vmatmul.mubr.bf16.gmra.mrb[0].mxu0 %v537
      %v975 = vpop.f32.mrb[0].mxu0
      %v976 = vadd.f32 0.0, %v975
      %v977 = vpop.f32.mrb[0].mxu0
      %v978 = vpop.f32.mrb[0].mxu0
      %v979 = vadd.f32 0.0, %v978
      %v980 = vpop.f32.mrb[0].mxu0
      %981 = vmatprep.mubr.bf16.mxu0 %v540
      %982 = vmatmul.mubr.bf16.gmra.mrb[0].mxu0 %v539
      %v983 = vpop.f32.mrb[0].mxu0
      %v984 = vadd.f32 0.0, %v983
      %v985 = vpop.f32.mrb[0].mxu0
      %v986 = vpop.f32.mrb[0].mxu0
      %v987 = vadd.f32 0.0, %v986
      %v988 = vpop.f32.mrb[0].mxu0
      %989 = vdwg.mxu0
      %v990 = vpack.c.bf16 %v739, %v736
      %v991 = vpack.c.bf16 %v747, %v744
      %v992 = vpack.c.bf16 %v755, %v752
      %v993 = vpack.c.bf16 %v763, %v760
      %v994 = vpack.c.bf16 %v771, %v768
      %v995 = vpack.c.bf16 %v779, %v776
      %v996 = vpack.c.bf16 %v787, %v784
      %v997 = vpack.c.bf16 %v795, %v792
      %v998 = vpack.c.bf16 %v803, %v800
      %v999 = vpack.c.bf16 %v811, %v808
      %v1000 = vpack.c.bf16 %v819, %v816
      %v1001 = vpack.c.bf16 %v827, %v824
      %v1002 = vpack.c.bf16 %v835, %v832
      %v1003 = vpack.c.bf16 %v843, %v840
      %v1004 = vpack.c.bf16 %v851, %v848
      %v1005 = vpack.c.bf16 %v859, %v856
      %v1006 = vpack.c.bf16 %v867, %v864
      %v1007 = vpack.c.bf16 %v875, %v872
      %v1008 = vpack.c.bf16 %v883, %v880
      %v1009 = vpack.c.bf16 %v891, %v888
      %v1010 = vpack.c.bf16 %v899, %v896
      %v1011 = vpack.c.bf16 %v907, %v904
      %v1012 = vpack.c.bf16 %v915, %v912
      %v1013 = vpack.c.bf16 %v923, %v920
      %v1014 = vpack.c.bf16 %v931, %v928
      %v1015 = vpack.c.bf16 %v939, %v936
      %v1016 = vpack.c.bf16 %v947, %v944
      %v1017 = vpack.c.bf16 %v955, %v952
      %v1018 = vpack.c.bf16 %v963, %v960
      %v1019 = vpack.c.bf16 %v971, %v968
      %v1020 = vpack.c.bf16 %v979, %v976
      %v1021 = vpack.c.bf16 %v987, %v984
      %v1054 = vunpack.c.l.b16 %v990
      %v1055 = vunpack.c.h.b16 %v990
      %v1056 = vunpack.c.l.b16 %v991
      %v1057 = vunpack.c.h.b16 %v991
      %v1058 = vunpack.c.l.b16 %v992
      %v1059 = vunpack.c.h.b16 %v992
      %v1060 = vunpack.c.l.b16 %v993
      %v1061 = vunpack.c.h.b16 %v993
      %v1062 = vunpack.c.l.b16 %v994
      %v1063 = vunpack.c.h.b16 %v994
      %v1064 = vunpack.c.l.b16 %v995
      %v1065 = vunpack.c.h.b16 %v995
      %v1066 = vunpack.c.l.b16 %v996
      %v1067 = vunpack.c.h.b16 %v996
      %v1068 = vunpack.c.l.b16 %v997
      %v1069 = vunpack.c.h.b16 %v997
      %v1070 = vunpack.c.l.b16 %v998
      %v1071 = vunpack.c.h.b16 %v998
      %v1072 = vunpack.c.l.b16 %v999
      %v1073 = vunpack.c.h.b16 %v999
      %v1074 = vunpack.c.l.b16 %v1000
      %v1075 = vunpack.c.h.b16 %v1000
      %v1076 = vunpack.c.l.b16 %v1001
      %v1077 = vunpack.c.h.b16 %v1001
      %v1078 = vunpack.c.l.b16 %v1002
      %v1079 = vunpack.c.h.b16 %v1002
      %v1080 = vunpack.c.l.b16 %v1003
      %v1081 = vunpack.c.h.b16 %v1003
      %v1082 = vunpack.c.l.b16 %v1004
      %v1083 = vunpack.c.h.b16 %v1004
      %v1084 = vunpack.c.l.b16 %v1005
      %v1085 = vunpack.c.h.b16 %v1005
      %v1086 = vunpack.c.l.b16 %v1006
      %v1087 = vunpack.c.h.b16 %v1006
      %v1088 = vunpack.c.l.b16 %v1007
      %v1089 = vunpack.c.h.b16 %v1007
      %v1090 = vunpack.c.l.b16 %v1008
      %v1091 = vunpack.c.h.b16 %v1008
      %v1092 = vunpack.c.l.b16 %v1009
      %v1093 = vunpack.c.h.b16 %v1009
      %v1094 = vunpack.c.l.b16 %v1010
      %v1095 = vunpack.c.h.b16 %v1010
      %v1096 = vunpack.c.l.b16 %v1011
      %v1097 = vunpack.c.h.b16 %v1011
      %v1098 = vunpack.c.l.b16 %v1012
      %v1099 = vunpack.c.h.b16 %v1012
      %v1100 = vunpack.c.l.b16 %v1013
      %v1101 = vunpack.c.h.b16 %v1013
      %v1102 = vunpack.c.l.b16 %v1014
      %v1103 = vunpack.c.h.b16 %v1014
      %v1104 = vunpack.c.l.b16 %v1015
      %v1105 = vunpack.c.h.b16 %v1015
      %v1106 = vunpack.c.l.b16 %v1016
      %v1107 = vunpack.c.h.b16 %v1016
      %v1108 = vunpack.c.l.b16 %v1017
      %v1109 = vunpack.c.h.b16 %v1017
      %v1110 = vunpack.c.l.b16 %v1018
      %v1111 = vunpack.c.h.b16 %v1018
      %v1112 = vunpack.c.l.b16 %v1019
      %v1113 = vunpack.c.h.b16 %v1019
      %v1114 = vunpack.c.l.b16 %v1020
      %v1115 = vunpack.c.h.b16 %v1020
      %v1116 = vunpack.c.l.b16 %v1021
      %v1117 = vunpack.c.h.b16 %v1021
      %v1118 = vpack.c.b16 %v1054, %v1054
      %v1119 = vpack.c.b16 %v1055, %v1055
      %v1120 = vpack.c.b16 %v1056, %v1056
      %v1121 = vpack.c.b16 %v1057, %v1057
      %v1122 = vpack.c.b16 %v1058, %v1058
      %v1123 = vpack.c.b16 %v1059, %v1059
      %v1124 = vpack.c.b16 %v1060, %v1060
      %v1125 = vpack.c.b16 %v1061, %v1061
      %v1126 = vpack.c.b16 %v1062, %v1062
      %v1127 = vpack.c.b16 %v1063, %v1063
      %v1128 = vpack.c.b16 %v1064, %v1064
      %v1129 = vpack.c.b16 %v1065, %v1065
      %v1130 = vpack.c.b16 %v1066, %v1066
      %v1131 = vpack.c.b16 %v1067, %v1067
      %v1132 = vpack.c.b16 %v1068, %v1068
      %v1133 = vpack.c.b16 %v1069, %v1069
      %v1134 = vpack.c.b16 %v1070, %v1070
      %v1135 = vpack.c.b16 %v1071, %v1071
      %v1136 = vpack.c.b16 %v1072, %v1072
      %v1137 = vpack.c.b16 %v1073, %v1073
      %v1138 = vpack.c.b16 %v1074, %v1074
      %v1139 = vpack.c.b16 %v1075, %v1075
      %v1140 = vpack.c.b16 %v1076, %v1076
      %v1141 = vpack.c.b16 %v1077, %v1077
      %v1142 = vpack.c.b16 %v1078, %v1078
      %v1143 = vpack.c.b16 %v1079, %v1079
      %v1144 = vpack.c.b16 %v1080, %v1080
      %v1145 = vpack.c.b16 %v1081, %v1081
      %v1146 = vpack.c.b16 %v1082, %v1082
      %v1147 = vpack.c.b16 %v1083, %v1083
      %v1148 = vpack.c.b16 %v1084, %v1084
      %v1149 = vpack.c.b16 %v1085, %v1085
      %v1150 = vpack.c.b16 %v1086, %v1086
      %v1151 = vpack.c.b16 %v1087, %v1087
      %v1152 = vpack.c.b16 %v1088, %v1088
      %v1153 = vpack.c.b16 %v1089, %v1089
      %v1154 = vpack.c.b16 %v1090, %v1090
      %v1155 = vpack.c.b16 %v1091, %v1091
      %v1156 = vpack.c.b16 %v1092, %v1092
      %v1157 = vpack.c.b16 %v1093, %v1093
      %v1158 = vpack.c.b16 %v1094, %v1094
      %v1159 = vpack.c.b16 %v1095, %v1095
      %v1160 = vpack.c.b16 %v1096, %v1096
      %v1161 = vpack.c.b16 %v1097, %v1097
      %v1162 = vpack.c.b16 %v1098, %v1098
      %v1163 = vpack.c.b16 %v1099, %v1099
      %v1164 = vpack.c.b16 %v1100, %v1100
      %v1165 = vpack.c.b16 %v1101, %v1101
      %v1166 = vpack.c.b16 %v1102, %v1102
      %v1167 = vpack.c.b16 %v1103, %v1103
      %v1168 = vpack.c.b16 %v1104, %v1104
      %v1169 = vpack.c.b16 %v1105, %v1105
      %v1170 = vpack.c.b16 %v1106, %v1106
      %v1171 = vpack.c.b16 %v1107, %v1107
      %v1172 = vpack.c.b16 %v1108, %v1108
      %v1173 = vpack.c.b16 %v1109, %v1109
      %v1174 = vpack.c.b16 %v1110, %v1110
      %v1175 = vpack.c.b16 %v1111, %v1111
      %v1176 = vpack.c.b16 %v1112, %v1112
      %v1177 = vpack.c.b16 %v1113, %v1113
      %v1178 = vpack.c.b16 %v1114, %v1114
      %v1179 = vpack.c.b16 %v1115, %v1115
      %v1180 = vpack.c.b16 %v1116, %v1116
      %v1181 = vpack.c.b16 %v1117, %v1117
      %1246 = vst [vmem:[%s182] sm:$0xf] %v1118
      %1247 = vst [vmem:[%s182 + $0x4] sm:$0xf] %v1119
      %1248 = vst [vmem:[%s182 + $0x8] sm:$0xf] %v1120
      %1249 = vst [vmem:[%s182 + $0xc] sm:$0xf] %v1121
      %1250 = vst [vmem:[%s182 + $0x10] sm:$0xf] %v1122
      %1251 = vst [vmem:[%s182 + $0x14] sm:$0xf] %v1123
      %1252 = vst [vmem:[%s182 + $0x18] sm:$0xf] %v1124
      %1253 = vst [vmem:[%s182 + $0x1c] sm:$0xf] %v1125
      %1254 = vst [vmem:[%s182 + $0x20] sm:$0xf] %v1126
      %1255 = vst [vmem:[%s182 + $0x24] sm:$0xf] %v1127
      %1256 = vst [vmem:[%s182 + $0x28] sm:$0xf] %v1128
      %1257 = vst [vmem:[%s182 + $0x2c] sm:$0xf] %v1129
      %1258 = vst [vmem:[%s182 + $0x30] sm:$0xf] %v1130
      %1259 = vst [vmem:[%s182 + $0x34] sm:$0xf] %v1131
      %1260 = vst [vmem:[%s182 + $0x38] sm:$0xf] %v1132
      %1261 = vst [vmem:[%s182 + $0x3c] sm:$0xf] %v1133
      %1262 = vst [vmem:[%s182 + $0x40] sm:$0xf] %v1134
      %1263 = vst [vmem:[%s182 + $0x44] sm:$0xf] %v1135
      %1264 = vst [vmem:[%s182 + $0x48] sm:$0xf] %v1136
      %1265 = vst [vmem:[%s182 + $0x4c] sm:$0xf] %v1137
      %1266 = vst [vmem:[%s182 + $0x50] sm:$0xf] %v1138
      %1267 = vst [vmem:[%s182 + $0x54] sm:$0xf] %v1139
      %1268 = vst [vmem:[%s182 + $0x58] sm:$0xf] %v1140
      %1269 = vst [vmem:[%s182 + $0x5c] sm:$0xf] %v1141
      %1270 = vst [vmem:[%s182 + $0x60] sm:$0xf] %v1142
      %1271 = vst [vmem:[%s182 + $0x64] sm:$0xf] %v1143
      %1272 = vst [vmem:[%s182 + $0x68] sm:$0xf] %v1144
      %1273 = vst [vmem:[%s182 + $0x6c] sm:$0xf] %v1145
      %1274 = vst [vmem:[%s182 + $0x70] sm:$0xf] %v1146
      %1275 = vst [vmem:[%s182 + $0x74] sm:$0xf] %v1147
      %1276 = vst [vmem:[%s182 + $0x78] sm:$0xf] %v1148
      %1277 = vst [vmem:[%s182 + $0x7c] sm:$0xf] %v1149
      %1278 = vst [vmem:[%s182 + $0x80] sm:$0xf] %v1150
      %1279 = vst [vmem:[%s182 + $0x84] sm:$0xf] %v1151
      %1280 = vst [vmem:[%s182 + $0x88] sm:$0xf] %v1152
      %1281 = vst [vmem:[%s182 + $0x8c] sm:$0xf] %v1153
      %1282 = vst [vmem:[%s182 + $0x90] sm:$0xf] %v1154
      %1283 = vst [vmem:[%s182 + $0x94] sm:$0xf] %v1155
      %1284 = vst [vmem:[%s182 + $0x98] sm:$0xf] %v1156
      %1285 = vst [vmem:[%s182 + $0x9c] sm:$0xf] %v1157
      %1286 = vst [vmem:[%s182 + $0xa0] sm:$0xf] %v1158
      %1287 = vst [vmem:[%s182 + $0xa4] sm:$0xf] %v1159
      %1288 = vst [vmem:[%s182 + $0xa8] sm:$0xf] %v1160
      %1289 = vst [vmem:[%s182 + $0xac] sm:$0xf] %v1161
      %1290 = vst [vmem:[%s182 + $0xb0] sm:$0xf] %v1162
      %1291 = vst [vmem:[%s182 + $0xb4] sm:$0xf] %v1163
      %1292 = vst [vmem:[%s182 + $0xb8] sm:$0xf] %v1164
      %1293 = vst [vmem:[%s182 + $0xbc] sm:$0xf] %v1165
      %1294 = vst [vmem:[%s182 + $0xc0] sm:$0xf] %v1166
      %1295 = vst [vmem:[%s182 + $0xc4] sm:$0xf] %v1167
      %1296 = vst [vmem:[%s182 + $0xc8] sm:$0xf] %v1168
      %1297 = vst [vmem:[%s182 + $0xcc] sm:$0xf] %v1169
      %1298 = vst [vmem:[%s182 + $0xd0] sm:$0xf] %v1170
      %1299 = vst [vmem:[%s182 + $0xd4] sm:$0xf] %v1171
      %1300 = vst [vmem:[%s182 + $0xd8] sm:$0xf] %v1172
      %1301 = vst [vmem:[%s182 + $0xdc] sm:$0xf] %v1173
      %1302 = vst [vmem:[%s182 + $0xe0] sm:$0xf] %v1174
      %1303 = vst [vmem:[%s182 + $0xe4] sm:$0xf] %v1175
      %1304 = vst [vmem:[%s182 + $0xe8] sm:$0xf] %v1176
      %1305 = vst [vmem:[%s182 + $0xec] sm:$0xf] %v1177
      %1306 = vst [vmem:[%s182 + $0xf0] sm:$0xf] %v1178
      %1307 = vst [vmem:[%s182 + $0xf4] sm:$0xf] %v1179
      %1308 = vst [vmem:[%s182 + $0xf8] sm:$0xf] %v1180
      %1309 = vst [vmem:[%s182 + $0xfc] sm:$0xf] %v1181
      %v1310 = vadd.f32 %v736, %v739
      %v1311 = vadd.f32 %v1310, %v744
      %v1312 = vadd.f32 %v1311, %v747
      %v1313 = vadd.f32 %v1312, %v752
      %v1314 = vadd.f32 %v1313, %v755
      %v1315 = vadd.f32 %v1314, %v760
      %v1316 = vadd.f32 %v1315, %v763
      %v1317 = vadd.f32 %v1316, %v768
      %v1318 = vadd.f32 %v1317, %v771
      %v1319 = vadd.f32 %v1318, %v776
      %v1320 = vadd.f32 %v1319, %v779
      %v1321 = vadd.f32 %v1320, %v784
      %v1322 = vadd.f32 %v1321, %v787
      %v1323 = vadd.f32 %v1322, %v792
      %v1324 = vadd.f32 %v1323, %v795
      %v1325 = vadd.f32 %v1324, %v800
      %v1326 = vadd.f32 %v1325, %v803
      %v1327 = vadd.f32 %v1326, %v808
      %v1328 = vadd.f32 %v1327, %v811
      %v1329 = vadd.f32 %v1328, %v816
      %v1330 = vadd.f32 %v1329, %v819
      %v1331 = vadd.f32 %v1330, %v824
      %v1332 = vadd.f32 %v1331, %v827
      %v1333 = vadd.f32 %v1332, %v832
      %v1334 = vadd.f32 %v1333, %v835
      %v1335 = vadd.f32 %v1334, %v840
      %v1336 = vadd.f32 %v1335, %v843
      %v1337 = vadd.f32 %v1336, %v848
      %v1338 = vadd.f32 %v1337, %v851
      %v1339 = vadd.f32 %v1338, %v856
      %v1340 = vadd.f32 %v1339, %v859
      %v1341 = vadd.f32 %v1340, %v864
      %v1342 = vadd.f32 %v1341, %v867
      %v1343 = vadd.f32 %v1342, %v872
      %v1344 = vadd.f32 %v1343, %v875
      %v1345 = vadd.f32 %v1344, %v880
      %v1346 = vadd.f32 %v1345, %v883
      %v1347 = vadd.f32 %v1346, %v888
      %v1348 = vadd.f32 %v1347, %v891
      %v1349 = vadd.f32 %v1348, %v896
      %v1350 = vadd.f32 %v1349, %v899
      %v1351 = vadd.f32 %v1350, %v904
      %v1352 = vadd.f32 %v1351, %v907
      %v1353 = vadd.f32 %v1352, %v912
      %v1354 = vadd.f32 %v1353, %v915
      %v1355 = vadd.f32 %v1354, %v920
      %v1356 = vadd.f32 %v1355, %v923
      %v1357 = vadd.f32 %v1356, %v928
      %v1358 = vadd.f32 %v1357, %v931
      %v1359 = vadd.f32 %v1358, %v936
      %v1360 = vadd.f32 %v1359, %v939
      %v1361 = vadd.f32 %v1360, %v944
      %v1362 = vadd.f32 %v1361, %v947
      %v1363 = vadd.f32 %v1362, %v952
      %v1364 = vadd.f32 %v1363, %v955
      %v1365 = vadd.f32 %v1364, %v960
      %v1366 = vadd.f32 %v1365, %v963
      %v1367 = vadd.f32 %v1366, %v968
      %v1368 = vadd.f32 %v1367, %v971
      %v1369 = vadd.f32 %v1368, %v976
      %v1370 = vadd.f32 %v1369, %v979
      %v1371 = vadd.f32 %v1370, %v984
      %v1372 = vadd.f32 %v1371, %v987
      %v1373 = vrot.slane %v1372, 4
      %v1374 = vadd.f32 %v1372, %v1373
      %v1375 = vrot.slane %v1374, 2
      %v1376 = vadd.f32 %v1374, %v1375
      %v1377 = vrot.slane %v1376, 1
      %v1378 = vadd.f32 %v1376, %v1377
      %v1379 = vmul.f32 %v736, %v736
      %v1380 = vmul.f32 %v739, %v739
      %v1381 = vmul.f32 %v744, %v744
      %v1382 = vmul.f32 %v747, %v747
      %v1383 = vmul.f32 %v752, %v752
      %v1384 = vmul.f32 %v755, %v755
      %v1385 = vmul.f32 %v760, %v760
      %v1386 = vmul.f32 %v763, %v763
      %v1387 = vmul.f32 %v768, %v768
      %v1388 = vmul.f32 %v771, %v771
      %v1389 = vmul.f32 %v776, %v776
      %v1390 = vmul.f32 %v779, %v779
      %v1391 = vmul.f32 %v784, %v784
      %v1392 = vmul.f32 %v787, %v787
      %v1393 = vmul.f32 %v792, %v792
      %v1394 = vmul.f32 %v795, %v795
      %v1395 = vmul.f32 %v800, %v800
      %v1396 = vmul.f32 %v803, %v803
      %v1397 = vmul.f32 %v808, %v808
      %v1398 = vmul.f32 %v811, %v811
      %v1399 = vmul.f32 %v816, %v816
      %v1400 = vmul.f32 %v819, %v819
      %v1401 = vmul.f32 %v824, %v824
      %v1402 = vmul.f32 %v827, %v827
      %v1403 = vmul.f32 %v832, %v832
      %v1404 = vmul.f32 %v835, %v835
      %v1405 = vmul.f32 %v840, %v840
      %v1406 = vmul.f32 %v843, %v843
      %v1407 = vmul.f32 %v848, %v848
      %v1408 = vmul.f32 %v851, %v851
      %v1409 = vmul.f32 %v856, %v856
      %v1410 = vmul.f32 %v859, %v859
      %v1411 = vmul.f32 %v864, %v864
      %v1412 = vmul.f32 %v867, %v867
      %v1413 = vmul.f32 %v872, %v872
      %v1414 = vmul.f32 %v875, %v875
      %v1415 = vmul.f32 %v880, %v880
      %v1416 = vmul.f32 %v883, %v883
      %v1417 = vmul.f32 %v888, %v888
      %v1418 = vmul.f32 %v891, %v891
      %v1419 = vmul.f32 %v896, %v896
      %v1420 = vmul.f32 %v899, %v899
      %v1421 = vmul.f32 %v904, %v904
      %v1422 = vmul.f32 %v907, %v907
      %v1423 = vmul.f32 %v912, %v912
      %v1424 = vmul.f32 %v915, %v915
      %v1425 = vmul.f32 %v920, %v920
      %v1426 = vmul.f32 %v923, %v923
      %v1427 = vmul.f32 %v928, %v928
      %v1428 = vmul.f32 %v931, %v931
      %v1429 = vmul.f32 %v936, %v936
      %v1430 = vmul.f32 %v939, %v939
      %v1431 = vmul.f32 %v944, %v944
      %v1432 = vmul.f32 %v947, %v947
      %v1433 = vmul.f32 %v952, %v952
      %v1434 = vmul.f32 %v955, %v955
      %v1435 = vmul.f32 %v960, %v960
      %v1436 = vmul.f32 %v963, %v963
      %v1437 = vmul.f32 %v968, %v968
      %v1438 = vmul.f32 %v971, %v971
      %v1439 = vmul.f32 %v976, %v976
      %v1440 = vmul.f32 %v979, %v979
      %v1441 = vmul.f32 %v984, %v984
      %v1442 = vmul.f32 %v987, %v987
      %v1443 = vadd.f32 %v1379, %v1380
      %v1444 = vadd.f32 %v1443, %v1381
      %v1445 = vadd.f32 %v1444, %v1382
      %v1446 = vadd.f32 %v1445, %v1383
      %v1447 = vadd.f32 %v1446, %v1384
      %v1448 = vadd.f32 %v1447, %v1385
      %v1449 = vadd.f32 %v1448, %v1386
      %v1450 = vadd.f32 %v1449, %v1387
      %v1451 = vadd.f32 %v1450, %v1388
      %v1452 = vadd.f32 %v1451, %v1389
      %v1453 = vadd.f32 %v1452, %v1390
      %v1454 = vadd.f32 %v1453, %v1391
      %v1455 = vadd.f32 %v1454, %v1392
      %v1456 = vadd.f32 %v1455, %v1393
      %v1457 = vadd.f32 %v1456, %v1394
      %v1458 = vadd.f32 %v1457, %v1395
      %v1459 = vadd.f32 %v1458, %v1396
      %v1460 = vadd.f32 %v1459, %v1397
      %v1461 = vadd.f32 %v1460, %v1398
      %v1462 = vadd.f32 %v1461, %v1399
      %v1463 = vadd.f32 %v1462, %v1400
      %v1464 = vadd.f32 %v1463, %v1401
      %v1465 = vadd.f32 %v1464, %v1402
      %v1466 = vadd.f32 %v1465, %v1403
      %v1467 = vadd.f32 %v1466, %v1404
      %v1468 = vadd.f32 %v1467, %v1405
      %v1469 = vadd.f32 %v1468, %v1406
      %v1470 = vadd.f32 %v1469, %v1407
      %v1471 = vadd.f32 %v1470, %v1408
      %v1472 = vadd.f32 %v1471, %v1409
      %v1473 = vadd.f32 %v1472, %v1410
      %v1474 = vadd.f32 %v1473, %v1411
      %v1475 = vadd.f32 %v1474, %v1412
      %v1476 = vadd.f32 %v1475, %v1413
      %v1477 = vadd.f32 %v1476, %v1414
      %v1478 = vadd.f32 %v1477, %v1415
      %v1479 = vadd.f32 %v1478, %v1416
      %v1480 = vadd.f32 %v1479, %v1417
      %v1481 = vadd.f32 %v1480, %v1418
      %v1482 = vadd.f32 %v1481, %v1419
      %v1483 = vadd.f32 %v1482, %v1420
      %v1484 = vadd.f32 %v1483, %v1421
      %v1485 = vadd.f32 %v1484, %v1422
      %v1486 = vadd.f32 %v1485, %v1423
      %v1487 = vadd.f32 %v1486, %v1424
      %v1488 = vadd.f32 %v1487, %v1425
      %v1489 = vadd.f32 %v1488, %v1426
      %v1490 = vadd.f32 %v1489, %v1427
      %v1491 = vadd.f32 %v1490, %v1428
      %v1492 = vadd.f32 %v1491, %v1429
      %v1493 = vadd.f32 %v1492, %v1430
      %v1494 = vadd.f32 %v1493, %v1431
      %v1495 = vadd.f32 %v1494, %v1432
      %v1496 = vadd.f32 %v1495, %v1433
      %v1497 = vadd.f32 %v1496, %v1434
      %v1498 = vadd.f32 %v1497, %v1435
      %v1499 = vadd.f32 %v1498, %v1436
      %v1500 = vadd.f32 %v1499, %v1437
      %v1501 = vadd.f32 %v1500, %v1438
      %v1502 = vadd.f32 %v1501, %v1439
      %v1503 = vadd.f32 %v1502, %v1440
      %v1504 = vadd.f32 %v1503, %v1441
      %v1505 = vadd.f32 %v1504, %v1442
      %v1506 = vrot.slane %v1505, 4
      %v1507 = vadd.f32 %v1505, %v1506
      %v1508 = vrot.slane %v1507, 2
      %v1509 = vadd.f32 %v1507, %v1508
      %v1510 = vrot.slane %v1509, 1
      %v1511 = vadd.f32 %v1509, %v1510
      %v1512 = vlaneseq
      %v1513 = vshrl.u32 %v1512, 7
      %vm1514 = vcmp.eq.s32.totalorder %v1513, 0
      %v1515 = vsel %vm1514, %v1378, 0.0
      %vm1516 = vcmp.eq.s32.totalorder %v1513, 1
      %v1517 = vsel %vm1516, %v1511, 0.0
      %v1518 = vadd.f32 %v1515, %v1517
      %1519 = vst [vmem:[%s187] sm:$0xff] %v1518
      %s1520 = smul.u32 64, %s15
      %p1521 = scmp.lt.s32.totalorder %s1520, 255
      %s1522 = scalar_select %p1521, %s1520, 255
      %s1523 = smul.addr %s1522, 4
      %s1524 = scalar_lea.vmem %s2, %s1523
      %p1525 = scmp.lt.s32.totalorder %s15, 3
      %s1526 = scalar_select %p1525, %s15, 3
      %s1527 = smul.addr %s1526, 8
      %s1528 = scalar_lea.vmem %s3, %s1527
      // Predicated region
      $region29: #{generator_forward.15} parent=27 // pred_check
        %p1529 = pneg %p80
      $region30: #{generator_forward.15} parent=27 // pred_check_branch
        %1531 = sbr.rel (%p1529) target = $region32
      $region31: #{generator_forward.15} parent=27 // pred_region
        %s1532 = smul.u32 64, %s15
      $region32: #{generator_forward.15} parent=27 // pred_fallthru
        _
      // Predicated region
      $region33: #{generator_forward.15} parent=27 // pred_check
        %p1533 = pneg %p106
      $region34: #{generator_forward.15} parent=27 // pred_check_branch
        %1535 = sbr.rel (%p1533) target = $region36
      $region35: #{generator_forward.15} parent=27 // pred_region
        _
      $region36: #{generator_forward.15} parent=27 // pred_fallthru
        _
    $region28: #{generator_forward.15} parent=5 // pred_fallthru
      _
    %p1536 = scmp.le.s32.totalorder 2, %s10
    // Predicated region
    $region37: #{generator_forward.15} parent=5 // pred_check
      %p1537 = pneg %p1536
    $region38: #{generator_forward.15} parent=5 // pred_check_branch
      %1539 = sbr.rel (%p1537) target = $region40
    $region39: #{generator_forward.15} parent=5 // pred_region
      %s1540 = ssub.s32 %s10, 2
      // Predicated region
      $region41: #{generator_forward.15} parent=39 // pred_check
        %p1541 = pneg %p86
      $region42: #{generator_forward.15} parent=39 // pred_check_branch
        %1543 = sbr.rel (%p1541) target = $region44
      $region43: #{generator_forward.15} parent=39 // pred_region
        %s1544 = smul.u32 64, %s16
        %p1545 = scmp.lt.s32.totalorder %s1544, 255
        %s1546 = scalar_select %p1545, %s1544, 255
        %s1547 = smul.addr %s1546, 4
        %s1548 = scalar_lea.vmem %s2, %s1547
      $region44: #{generator_forward.15} parent=39 // pred_fallthru
        _
      // Predicated region
      $region45: #{generator_forward.15} parent=39 // pred_check
        %p1549 = pneg %p112
      $region46: #{generator_forward.15} parent=39 // pred_check_branch
        %1551 = sbr.rel (%p1549) target = $region48
      $region47: #{generator_forward.15} parent=39 // pred_region
        %p1552 = scmp.lt.s32.totalorder %s16, 3
        %s1553 = scalar_select %p1552, %s16, 3
        %s1554 = smul.addr %s1553, 8
        %s1555 = scalar_lea.vmem %s3, %s1554
      $region48: #{generator_forward.15} parent=39 // pred_fallthru
        _
    $region40: #{generator_forward.15} parent=5 // pred_fallthru
      _
  $region6: #{generator_forward.15} parent=0 // loop_footer
    %s14 = sadd.s32 1, %s10
  $region7: #{generator_forward.15} parent=0 // loop_footer_branch
    %9 = sbr.rel target = $region3
  $region8: #{generator_forward.15} parent=0 // loop_exit
    _

// kernel: generator_forward.16
$region0: #{generator_forward.16}
  #allocation0 [shape = 'u32[]', space=smem, size = 0x4, offset = 0x4, fixed_abs, tag = 'smem constant byte address 0x4 - core index']
  #allocation1 [shape = 'u32[144,128]{1,0:T(1,128)}', space=vmem, size = 0x12000, scoped, tag = 'internal scratch']
  %s0 = inlined_call_operand.vmem [shape: bf16[2048,128], index: 0, kind: input, shape index: {}]
  %s1 = inlined_call_operand.vmem [shape: f32[1,128], index: 1, kind: input, shape index: {}]
  %s2 = inlined_call_operand.vmem [shape: f32[1,128], index: 2, kind: input, shape index: {}]
  %s3 = inlined_call_operand.vmem [shape: bf16[2048,128], index: 3, kind: output, shape index: {}]
  %s4 = sld [smem:[#allocation0]]
  $region45: #{generator_forward.16} parent=0
    _
  %s6 = ssub.s32 1, %s4
  %s7 = scalar_select 0, %s6, %s4
  loop: start=0, step=1, limit=6
  $region2: #{generator_forward.16} parent=0 // loop_pre_header
    _
  $region3: #{generator_forward.16} parent=0 // loop_header
    %s9 = sphi 0, %s13
    %p10 = scmp.ge.s32.totalorder %s9, 6
    %s19 = sphi 0, %s21
    %s22 = sphi 0, %s19
    %s23 = sphi 0, %s22
    %s39 = sphi 0, %s23
    %s43 = sphi 0, %s43
    %s45 = sphi 0, %s43
    %s46 = sphi 0, %s45
    %s60 = sphi 0, %s46
    %s64 = sphi 0, %s64
    %s66 = sphi 0, %s64
    %s67 = sphi 0, %s66
    %s81 = sphi 0, %s67
    %s87 = sphi 0, %s89
    %s90 = sphi 0, %s87
    %s91 = sphi 0, %s90
    %s107 = sphi 0, %s91
  $region4: #{generator_forward.16} parent=0 // loop_header_branch
    %12 = sbr.rel (%p10) target = $region8
  $region5: #{generator_forward.16} parent=0 // loop_body
    %s14 = ssub.s32 %s9, 1
    %s15 = ssub.s32 %s9, 2
    %s16 = sadd.s32 %s9, 1
    %s17 = ssub.s32 %s9, %s16
    %p18 = scmp.eq.s32.totalorder %s17, 0
    %s20 = sadd.s32 %s19, 1
    %s21 = scalar_select %p18, %s19, %s20
    %p24 = pneg %p18
    %p25 = scmp.eq.s32.totalorder %s9, 3
    %p26 = por %p24, %p25
    %p27 = scmp.ne.s32.totalorder %s19, %s22
    %p28 = scmp.eq.s32.totalorder %s9, 0
    %p29 = por %p27, %p28
    %p30 = scmp.ne.s32.totalorder %s19, %s22
    %p31 = scmp.eq.s32.totalorder %s14, 3
    %p32 = por %p30, %p31
    %p33 = scmp.ne.s32.totalorder %s22, %s23
    %p34 = scmp.eq.s32.totalorder %s14, 0
    %p35 = por %p33, %p34
    %p36 = scmp.ne.s32.totalorder %s22, %s23
    %p37 = scmp.eq.s32.totalorder %s15, 3
    %p38 = por %p36, %p37
    %p40 = scmp.ne.s32.totalorder %s23, %s39
    %p41 = scmp.eq.s32.totalorder %s15, 0
    %p42 = por %p40, %p41
    %s44 = sadd.s32 %s43, 1
    %p47 = scmp.eq.s32.totalorder %s9, 3
    %p48 = scmp.ne.s32.totalorder %s43, %s45
    %p49 = scmp.eq.s32.totalorder %s9, 0
    %p50 = por %p48, %p49
    %p51 = scmp.ne.s32.totalorder %s43, %s45
    %p52 = scmp.eq.s32.totalorder %s14, 3
    %p53 = por %p51, %p52
    %p54 = scmp.ne.s32.totalorder %s45, %s46
    %p55 = scmp.eq.s32.totalorder %s14, 0
    %p56 = por %p54, %p55
    %p57 = scmp.ne.s32.totalorder %s45, %s46
    %p58 = scmp.eq.s32.totalorder %s15, 3
    %p59 = por %p57, %p58
    %p61 = scmp.ne.s32.totalorder %s46, %s60
    %p62 = scmp.eq.s32.totalorder %s15, 0
    %p63 = por %p61, %p62
    %s65 = sadd.s32 %s64, 1
    %p68 = scmp.eq.s32.totalorder %s9, 3
    %p69 = scmp.ne.s32.totalorder %s64, %s66
    %p70 = scmp.eq.s32.totalorder %s9, 0
    %p71 = por %p69, %p70
    %p72 = scmp.ne.s32.totalorder %s64, %s66
    %p73 = scmp.eq.s32.totalorder %s14, 3
    %p74 = por %p72, %p73
    %p75 = scmp.ne.s32.totalorder %s66, %s67
    %p76 = scmp.eq.s32.totalorder %s14, 0
    %p77 = por %p75, %p76
    %p78 = scmp.ne.s32.totalorder %s66, %s67
    %p79 = scmp.eq.s32.totalorder %s15, 3
    %p80 = por %p78, %p79
    %p82 = scmp.ne.s32.totalorder %s67, %s81
    %p83 = scmp.eq.s32.totalorder %s15, 0
    %p84 = por %p82, %p83
    %s85 = ssub.s32 %s9, %s16
    %p86 = scmp.eq.s32.totalorder %s85, 0
    %s88 = sadd.s32 %s87, 1
    %s89 = scalar_select %p86, %s87, %s88
    %p92 = pneg %p86
    %p93 = scmp.eq.s32.totalorder %s9, 3
    %p94 = por %p92, %p93
    %p95 = scmp.ne.s32.totalorder %s87, %s90
    %p96 = scmp.eq.s32.totalorder %s9, 0
    %p97 = por %p95, %p96
    %p98 = scmp.ne.s32.totalorder %s87, %s90
    %p99 = scmp.eq.s32.totalorder %s14, 3
    %p100 = por %p98, %p99
    %p101 = scmp.ne.s32.totalorder %s90, %s91
    %p102 = scmp.eq.s32.totalorder %s14, 0
    %p103 = por %p101, %p102
    %p104 = scmp.ne.s32.totalorder %s90, %s91
    %p105 = scmp.eq.s32.totalorder %s15, 3
    %p106 = por %p104, %p105
    %p108 = scmp.ne.s32.totalorder %s91, %s107
    %p109 = scmp.eq.s32.totalorder %s15, 0
    %p110 = por %p108, %p109
    %p111 = scmp.le.s32.totalorder 1, %s9
    %p112 = scmp.lt.s32.totalorder %s9, 5
    %p113 = pnand %p111, %p112
    %p114 = pneg %p113
    // Predicated region
    $region9: #{generator_forward.16} parent=5 // pred_check
      _
    $region10: #{generator_forward.16} parent=5 // pred_check_branch
      %116 = sbr.rel (%p113) target = $region12
    $region11: #{generator_forward.16} parent=5 // pred_region
      %s117 = ssub.s32 %s9, 1
      // Predicated region
      $region13: #{generator_forward.16} parent=11 // pred_check
        %p118 = pneg %p56
      $region14: #{generator_forward.16} parent=11 // pred_check_branch
        %120 = sbr.rel (%p118) target = $region16
      $region15: #{generator_forward.16} parent=11 // pred_region
        _
      $region16: #{generator_forward.16} parent=11 // pred_fallthru
        _
      // Predicated region
      $region17: #{generator_forward.16} parent=11 // pred_check
        %p121 = pneg %p77
      $region18: #{generator_forward.16} parent=11 // pred_check_branch
        %123 = sbr.rel (%p121) target = $region20
      $region19: #{generator_forward.16} parent=11 // pred_region
        _
      $region20: #{generator_forward.16} parent=11 // pred_fallthru
        _
    $region12: #{generator_forward.16} parent=5 // pred_fallthru
      _
    %p124 = scmp.lt.s32.totalorder %s9, 4
    // Predicated region
    $region21: #{generator_forward.16} parent=5 // pred_check
      %p125 = pneg %p124
    $region22: #{generator_forward.16} parent=5 // pred_check_branch
      %127 = sbr.rel (%p125) target = $region24
    $region23: #{generator_forward.16} parent=5 // pred_region
      // Predicated region
      $region25: #{generator_forward.16} parent=23 // pred_check
        %p128 = pneg %p29
      $region26: #{generator_forward.16} parent=23 // pred_check_branch
        %130 = sbr.rel (%p128) target = $region28
      $region27: #{generator_forward.16} parent=23 // pred_region
        %s131 = smul.u32 64, %s9
        %p132 = scmp.lt.s32.totalorder %s131, 255
        %s133 = scalar_select %p132, %s131, 255
        %s134 = smul.addr %s133, 4
        %s135 = scalar_lea.vmem %s0, %s134
        %s136 = smul.u32 64, %s9
      $region28: #{generator_forward.16} parent=23 // pred_fallthru
        _
    $region24: #{generator_forward.16} parent=5 // pred_fallthru
      _
    %p137 = scmp.le.s32.totalorder 1, %s9
    %p138 = scmp.lt.s32.totalorder %s9, 5
    %p139 = pnand %p137, %p138
    %p140 = pneg %p139
    // Predicated region
    $region29: #{generator_forward.16} parent=5 // pred_check
      _
    $region30: #{generator_forward.16} parent=5 // pred_check_branch
      %142 = sbr.rel (%p139) target = $region32
    $region31: #{generator_forward.16} parent=5 // pred_region
      %s143 = ssub.s32 %s9, 1
      %s144 = smul.u32 64, %s14
      %p145 = scmp.lt.s32.totalorder %s144, 255
      %s146 = scalar_select %p145, %s144, 255
      %s147 = smul.addr %s146, 4
      %s148 = scalar_lea.vmem %s0, %s147
      %p149 = pneg %p35
      %p150 = pneg %p32
      %p151 = pneg %p56
      %p152 = pneg %p53
      %p153 = pneg %p77
      %p154 = pneg %p74
      %p155 = pneg %p103
      %p156 = pneg %p100
      %s157 = smul.u32 64, %s14
      %p158 = scmp.lt.s32.totalorder %s157, 255
      %s159 = scalar_select %p158, %s157, 255
      %s160 = smul.addr %s159, 4
      %s161 = scalar_lea.vmem %s3, %s160
      %s162 = smul.u32 64, %s14
      %p163 = scmp.lt.s32.totalorder %s162, 255
      %s164 = scalar_select %p163, %s162, 255
      %s165 = smul.addr %s164, 4
      %s166 = scalar_lea.vmem %s0, %s165
      %s167 = smul.u32 64, %s14
      %s168 = smul.u32 64, %s14
      %p169 = scmp.lt.s32.totalorder %s168, 255
      %s170 = scalar_select %p169, %s168, 255
      %s171 = smul.addr %s170, 4
      %s172 = scalar_lea.vmem %s3, %s171
      %s173 = smul.u32 64, %s14
      %v174 = vld [vmem:[%s166] sm:$0xf]
      %v175 = vld [vmem:[%s166 + $0x4] sm:$0xf]
      %v176 = vld [vmem:[%s166 + $0x8] sm:$0xf]
      %v177 = vld [vmem:[%s166 + $0xc] sm:$0xf]
      %v178 = vld [vmem:[%s166 + $0x10] sm:$0xf]
      %v179 = vld [vmem:[%s166 + $0x14] sm:$0xf]
      %v180 = vld [vmem:[%s166 + $0x18] sm:$0xf]
      %v181 = vld [vmem:[%s166 + $0x1c] sm:$0xf]
      %v182 = vld [vmem:[%s166 + $0x20] sm:$0xf]
      %v183 = vld [vmem:[%s166 + $0x24] sm:$0xf]
      %v184 = vld [vmem:[%s166 + $0x28] sm:$0xf]
      %v185 = vld [vmem:[%s166 + $0x2c] sm:$0xf]
      %v186 = vld [vmem:[%s166 + $0x30] sm:$0xf]
      %v187 = vld [vmem:[%s166 + $0x34] sm:$0xf]
      %v188 = vld [vmem:[%s166 + $0x38] sm:$0xf]
      %v189 = vld [vmem:[%s166 + $0x3c] sm:$0xf]
      %v190 = vld [vmem:[%s166 + $0x40] sm:$0xf]
      %v191 = vld [vmem:[%s166 + $0x44] sm:$0xf]
      %v192 = vld [vmem:[%s166 + $0x48] sm:$0xf]
      %v193 = vld [vmem:[%s166 + $0x4c] sm:$0xf]
      %v194 = vld [vmem:[%s166 + $0x50] sm:$0xf]
      %v195 = vld [vmem:[%s166 + $0x54] sm:$0xf]
      %v196 = vld [vmem:[%s166 + $0x58] sm:$0xf]
      %v197 = vld [vmem:[%s166 + $0x5c] sm:$0xf]
      %v198 = vld [vmem:[%s166 + $0x60] sm:$0xf]
      %v199 = vld [vmem:[%s166 + $0x64] sm:$0xf]
      %v200 = vld [vmem:[%s166 + $0x68] sm:$0xf]
      %v201 = vld [vmem:[%s166 + $0x6c] sm:$0xf]
      %v202 = vld [vmem:[%s166 + $0x70] sm:$0xf]
      %v203 = vld [vmem:[%s166 + $0x74] sm:$0xf]
      %v204 = vld [vmem:[%s166 + $0x78] sm:$0xf]
      %v205 = vld [vmem:[%s166 + $0x7c] sm:$0xf]
      %v206 = vld [vmem:[%s166 + $0x80] sm:$0xf]
      %v207 = vld [vmem:[%s166 + $0x84] sm:$0xf]
      %v208 = vld [vmem:[%s166 + $0x88] sm:$0xf]
      %v209 = vld [vmem:[%s166 + $0x8c] sm:$0xf]
      %v210 = vld [vmem:[%s166 + $0x90] sm:$0xf]
      %v211 = vld [vmem:[%s166 + $0x94] sm:$0xf]
      %v212 = vld [vmem:[%s166 + $0x98] sm:$0xf]
      %v213 = vld [vmem:[%s166 + $0x9c] sm:$0xf]
      %v214 = vld [vmem:[%s166 + $0xa0] sm:$0xf]
      %v215 = vld [vmem:[%s166 + $0xa4] sm:$0xf]
      %v216 = vld [vmem:[%s166 + $0xa8] sm:$0xf]
      %v217 = vld [vmem:[%s166 + $0xac] sm:$0xf]
      %v218 = vld [vmem:[%s166 + $0xb0] sm:$0xf]
      %v219 = vld [vmem:[%s166 + $0xb4] sm:$0xf]
      %v220 = vld [vmem:[%s166 + $0xb8] sm:$0xf]
      %v221 = vld [vmem:[%s166 + $0xbc] sm:$0xf]
      %v222 = vld [vmem:[%s166 + $0xc0] sm:$0xf]
      %v223 = vld [vmem:[%s166 + $0xc4] sm:$0xf]
      %v224 = vld [vmem:[%s166 + $0xc8] sm:$0xf]
      %v225 = vld [vmem:[%s166 + $0xcc] sm:$0xf]
      %v226 = vld [vmem:[%s166 + $0xd0] sm:$0xf]
      %v227 = vld [vmem:[%s166 + $0xd4] sm:$0xf]
      %v228 = vld [vmem:[%s166 + $0xd8] sm:$0xf]
      %v229 = vld [vmem:[%s166 + $0xdc] sm:$0xf]
      %v230 = vld [vmem:[%s166 + $0xe0] sm:$0xf]
      %v231 = vld [vmem:[%s166 + $0xe4] sm:$0xf]
      %v232 = vld [vmem:[%s166 + $0xe8] sm:$0xf]
      %v233 = vld [vmem:[%s166 + $0xec] sm:$0xf]
      %v234 = vld [vmem:[%s166 + $0xf0] sm:$0xf]
      %v235 = vld [vmem:[%s166 + $0xf4] sm:$0xf]
      %v236 = vld [vmem:[%s166 + $0xf8] sm:$0xf]
      %v237 = vld [vmem:[%s166 + $0xfc] sm:$0xf]
      %v238 = vunpack.c.l.bf16 %v174
      %v239 = vunpack.c.l.bf16 %v175
      %v240 = vunpack.c.l.bf16 %v176
      %v241 = vunpack.c.l.bf16 %v177
      %v242 = vunpack.c.l.bf16 %v178
      %v243 = vunpack.c.l.bf16 %v179
      %v244 = vunpack.c.l.bf16 %v180
      %v245 = vunpack.c.l.bf16 %v181
      %v246 = vunpack.c.l.bf16 %v182
      %v247 = vunpack.c.l.bf16 %v183
      %v248 = vunpack.c.l.bf16 %v184
      %v249 = vunpack.c.l.bf16 %v185
      %v250 = vunpack.c.l.bf16 %v186
      %v251 = vunpack.c.l.bf16 %v187
      %v252 = vunpack.c.l.bf16 %v188
      %v253 = vunpack.c.l.bf16 %v189
      %v254 = vunpack.c.l.bf16 %v190
      %v255 = vunpack.c.l.bf16 %v191
      %v256 = vunpack.c.l.bf16 %v192
      %v257 = vunpack.c.l.bf16 %v193
      %v258 = vunpack.c.l.bf16 %v194
      %v259 = vunpack.c.l.bf16 %v195
      %v260 = vunpack.c.l.bf16 %v196
      %v261 = vunpack.c.l.bf16 %v197
      %v262 = vunpack.c.l.bf16 %v198
      %v263 = vunpack.c.l.bf16 %v199
      %v264 = vunpack.c.l.bf16 %v200
      %v265 = vunpack.c.l.bf16 %v201
      %v266 = vunpack.c.l.bf16 %v202
      %v267 = vunpack.c.l.bf16 %v203
      %v268 = vunpack.c.l.bf16 %v204
      %v269 = vunpack.c.l.bf16 %v205
      %v270 = vunpack.c.l.bf16 %v206
      %v271 = vunpack.c.l.bf16 %v207
      %v272 = vunpack.c.l.bf16 %v208
      %v273 = vunpack.c.l.bf16 %v209
      %v274 = vunpack.c.l.bf16 %v210
      %v275 = vunpack.c.l.bf16 %v211
      %v276 = vunpack.c.l.bf16 %v212
      %v277 = vunpack.c.l.bf16 %v213
      %v278 = vunpack.c.l.bf16 %v214
      %v279 = vunpack.c.l.bf16 %v215
      %v280 = vunpack.c.l.bf16 %v216
      %v281 = vunpack.c.l.bf16 %v217
      %v282 = vunpack.c.l.bf16 %v218
      %v283 = vunpack.c.l.bf16 %v219
      %v284 = vunpack.c.l.bf16 %v220
      %v285 = vunpack.c.l.bf16 %v221
      %v286 = vunpack.c.l.bf16 %v222
      %v287 = vunpack.c.l.bf16 %v223
      %v288 = vunpack.c.l.bf16 %v224
      %v289 = vunpack.c.l.bf16 %v225
      %v290 = vunpack.c.l.bf16 %v226
      %v291 = vunpack.c.l.bf16 %v227
      %v292 = vunpack.c.l.bf16 %v228
      %v293 = vunpack.c.l.bf16 %v229
      %v294 = vunpack.c.l.bf16 %v230
      %v295 = vunpack.c.l.bf16 %v231
      %v296 = vunpack.c.l.bf16 %v232
      %v297 = vunpack.c.l.bf16 %v233
      %v298 = vunpack.c.l.bf16 %v234
      %v299 = vunpack.c.l.bf16 %v235
      %v300 = vunpack.c.l.bf16 %v236
      %v301 = vunpack.c.l.bf16 %v237
      %v302 = vld [vmem:[%s1] sm:$0x1]
      %v304 = vlaneseq
      %v305 = vshrl.u32 %v304, 7
      %v306 = vsub.s32 0, %v305
      %v307 = vrot.slane %v302, %v306
      %v309 = vmul.f32 %v238, %v307
      %v310 = vmul.f32 %v239, %v307
      %v311 = vmul.f32 %v240, %v307
      %v312 = vmul.f32 %v241, %v307
      %v313 = vmul.f32 %v242, %v307
      %v314 = vmul.f32 %v243, %v307
      %v315 = vmul.f32 %v244, %v307
      %v316 = vmul.f32 %v245, %v307
      %v317 = vmul.f32 %v246, %v307
      %v318 = vmul.f32 %v247, %v307
      %v319 = vmul.f32 %v248, %v307
      %v320 = vmul.f32 %v249, %v307
      %v321 = vmul.f32 %v250, %v307
      %v322 = vmul.f32 %v251, %v307
      %v323 = vmul.f32 %v252, %v307
      %v324 = vmul.f32 %v253, %v307
      %v325 = vmul.f32 %v254, %v307
      %v326 = vmul.f32 %v255, %v307
      %v327 = vmul.f32 %v256, %v307
      %v328 = vmul.f32 %v257, %v307
      %v329 = vmul.f32 %v258, %v307
      %v330 = vmul.f32 %v259, %v307
      %v331 = vmul.f32 %v260, %v307
      %v332 = vmul.f32 %v261, %v307
      %v333 = vmul.f32 %v262, %v307
      %v334 = vmul.f32 %v263, %v307
      %v335 = vmul.f32 %v264, %v307
      %v336 = vmul.f32 %v265, %v307
      %v337 = vmul.f32 %v266, %v307
      %v338 = vmul.f32 %v267, %v307
      %v339 = vmul.f32 %v268, %v307
      %v340 = vmul.f32 %v269, %v307
      %v341 = vmul.f32 %v270, %v307
      %v342 = vmul.f32 %v271, %v307
      %v343 = vmul.f32 %v272, %v307
      %v344 = vmul.f32 %v273, %v307
      %v345 = vmul.f32 %v274, %v307
      %v346 = vmul.f32 %v275, %v307
      %v347 = vmul.f32 %v276, %v307
      %v348 = vmul.f32 %v277, %v307
      %v349 = vmul.f32 %v278, %v307
      %v350 = vmul.f32 %v279, %v307
      %v351 = vmul.f32 %v280, %v307
      %v352 = vmul.f32 %v281, %v307
      %v353 = vmul.f32 %v282, %v307
      %v354 = vmul.f32 %v283, %v307
      %v355 = vmul.f32 %v284, %v307
      %v356 = vmul.f32 %v285, %v307
      %v357 = vmul.f32 %v286, %v307
      %v358 = vmul.f32 %v287, %v307
      %v359 = vmul.f32 %v288, %v307
      %v360 = vmul.f32 %v289, %v307
      %v361 = vmul.f32 %v290, %v307
      %v362 = vmul.f32 %v291, %v307
      %v363 = vmul.f32 %v292, %v307
      %v364 = vmul.f32 %v293, %v307
      %v365 = vmul.f32 %v294, %v307
      %v366 = vmul.f32 %v295, %v307
      %v367 = vmul.f32 %v296, %v307
      %v368 = vmul.f32 %v297, %v307
      %v369 = vmul.f32 %v298, %v307
      %v370 = vmul.f32 %v299, %v307
      %v371 = vmul.f32 %v300, %v307
      %v372 = vmul.f32 %v301, %v307
      %v373 = vld [vmem:[%s2] sm:$0x1]
      %v375 = vlaneseq
      %v376 = vshrl.u32 %v375, 7
      %v377 = vsub.s32 0, %v376
      %v378 = vrot.slane %v373, %v377
      %v380 = vadd.f32 %v309, %v378
      %v381 = vadd.f32 %v310, %v378
      %v382 = vadd.f32 %v311, %v378
      %v383 = vadd.f32 %v312, %v378
      %v384 = vadd.f32 %v313, %v378
      %v385 = vadd.f32 %v314, %v378
      %v386 = vadd.f32 %v315, %v378
      %v387 = vadd.f32 %v316, %v378
      %v388 = vadd.f32 %v317, %v378
      %v389 = vadd.f32 %v318, %v378
      %v390 = vadd.f32 %v319, %v378
      %v391 = vadd.f32 %v320, %v378
      %v392 = vadd.f32 %v321, %v378
      %v393 = vadd.f32 %v322, %v378
      %v394 = vadd.f32 %v323, %v378
      %v395 = vadd.f32 %v324, %v378
      %v396 = vadd.f32 %v325, %v378
      %v397 = vadd.f32 %v326, %v378
      %v398 = vadd.f32 %v327, %v378
      %v399 = vadd.f32 %v328, %v378
      %v400 = vadd.f32 %v329, %v378
      %v401 = vadd.f32 %v330, %v378
      %v402 = vadd.f32 %v331, %v378
      %v403 = vadd.f32 %v332, %v378
      %v404 = vadd.f32 %v333, %v378
      %v405 = vadd.f32 %v334, %v378
      %v406 = vadd.f32 %v335, %v378
      %v407 = vadd.f32 %v336, %v378
      %v408 = vadd.f32 %v337, %v378
      %v409 = vadd.f32 %v338, %v378
      %v410 = vadd.f32 %v339, %v378
      %v411 = vadd.f32 %v340, %v378
      %v412 = vadd.f32 %v341, %v378
      %v413 = vadd.f32 %v342, %v378
      %v414 = vadd.f32 %v343, %v378
      %v415 = vadd.f32 %v344, %v378
      %v416 = vadd.f32 %v345, %v378
      %v417 = vadd.f32 %v346, %v378
      %v418 = vadd.f32 %v347, %v378
      %v419 = vadd.f32 %v348, %v378
      %v420 = vadd.f32 %v349, %v378
      %v421 = vadd.f32 %v350, %v378
      %v422 = vadd.f32 %v351, %v378
      %v423 = vadd.f32 %v352, %v378
      %v424 = vadd.f32 %v353, %v378
      %v425 = vadd.f32 %v354, %v378
      %v426 = vadd.f32 %v355, %v378
      %v427 = vadd.f32 %v356, %v378
      %v428 = vadd.f32 %v357, %v378
      %v429 = vadd.f32 %v358, %v378
      %v430 = vadd.f32 %v359, %v378
      %v431 = vadd.f32 %v360, %v378
      %v432 = vadd.f32 %v361, %v378
      %v433 = vadd.f32 %v362, %v378
      %v434 = vadd.f32 %v363, %v378
      %v435 = vadd.f32 %v364, %v378
      %v436 = vadd.f32 %v365, %v378
      %v437 = vadd.f32 %v366, %v378
      %v438 = vadd.f32 %v367, %v378
      %v439 = vadd.f32 %v368, %v378
      %v440 = vadd.f32 %v369, %v378
      %v441 = vadd.f32 %v370, %v378
      %v442 = vadd.f32 %v371, %v378
      %v443 = vadd.f32 %v372, %v378
      %v444 = vmax.f32 %v380, 0.0
      %v445 = vmax.f32 %v381, 0.0
      %v446 = vmax.f32 %v382, 0.0
      %v447 = vmax.f32 %v383, 0.0
      %v448 = vmax.f32 %v384, 0.0
      %v449 = vmax.f32 %v385, 0.0
      %v450 = vmax.f32 %v386, 0.0
      %v451 = vmax.f32 %v387, 0.0
      %v452 = vmax.f32 %v388, 0.0
      %v453 = vmax.f32 %v389, 0.0
      %v454 = vmax.f32 %v390, 0.0
      %v455 = vmax.f32 %v391, 0.0
      %v456 = vmax.f32 %v392, 0.0
      %v457 = vmax.f32 %v393, 0.0
      %v458 = vmax.f32 %v394, 0.0
      %v459 = vmax.f32 %v395, 0.0
      %v460 = vmax.f32 %v396, 0.0
      %v461 = vmax.f32 %v397, 0.0
      %v462 = vmax.f32 %v398, 0.0
      %v463 = vmax.f32 %v399, 0.0
      %v464 = vmax.f32 %v400, 0.0
      %v465 = vmax.f32 %v401, 0.0
      %v466 = vmax.f32 %v402, 0.0
      %v467 = vmax.f32 %v403, 0.0
      %v468 = vmax.f32 %v404, 0.0
      %v469 = vmax.f32 %v405, 0.0
      %v470 = vmax.f32 %v406, 0.0
      %v471 = vmax.f32 %v407, 0.0
      %v472 = vmax.f32 %v408, 0.0
      %v473 = vmax.f32 %v409, 0.0
      %v474 = vmax.f32 %v410, 0.0
      %v475 = vmax.f32 %v411, 0.0
      %v476 = vmax.f32 %v412, 0.0
      %v477 = vmax.f32 %v413, 0.0
      %v478 = vmax.f32 %v414, 0.0
      %v479 = vmax.f32 %v415, 0.0
      %v480 = vmax.f32 %v416, 0.0
      %v481 = vmax.f32 %v417, 0.0
      %v482 = vmax.f32 %v418, 0.0
      %v483 = vmax.f32 %v419, 0.0
      %v484 = vmax.f32 %v420, 0.0
      %v485 = vmax.f32 %v421, 0.0
      %v486 = vmax.f32 %v422, 0.0
      %v487 = vmax.f32 %v423, 0.0
      %v488 = vmax.f32 %v424, 0.0
      %v489 = vmax.f32 %v425, 0.0
      %v490 = vmax.f32 %v426, 0.0
      %v491 = vmax.f32 %v427, 0.0
      %v492 = vmax.f32 %v428, 0.0
      %v493 = vmax.f32 %v429, 0.0
      %v494 = vmax.f32 %v430, 0.0
      %v495 = vmax.f32 %v431, 0.0
      %v496 = vmax.f32 %v432, 0.0
      %v497 = vmax.f32 %v433, 0.0
      %v498 = vmax.f32 %v434, 0.0
      %v499 = vmax.f32 %v435, 0.0
      %v500 = vmax.f32 %v436, 0.0
      %v501 = vmax.f32 %v437, 0.0
      %v502 = vmax.f32 %v438, 0.0
      %v503 = vmax.f32 %v439, 0.0
      %v504 = vmax.f32 %v440, 0.0
      %v505 = vmax.f32 %v441, 0.0
      %v506 = vmax.f32 %v442, 0.0
      %v507 = vmax.f32 %v443, 0.0
      %v508 = vpack.c.bf16 %v445, %v444
      %v509 = vpack.c.bf16 %v447, %v446
      %v510 = vpack.c.bf16 %v449, %v448
      %v511 = vpack.c.bf16 %v451, %v450
      %v512 = vpack.c.bf16 %v453, %v452
      %v513 = vpack.c.bf16 %v455, %v454
      %v514 = vpack.c.bf16 %v457, %v456
      %v515 = vpack.c.bf16 %v459, %v458
      %v516 = vpack.c.bf16 %v461, %v460
      %v517 = vpack.c.bf16 %v463, %v462
      %v518 = vpack.c.bf16 %v465, %v464
      %v519 = vpack.c.bf16 %v467, %v466
      %v520 = vpack.c.bf16 %v469, %v468
      %v521 = vpack.c.bf16 %v471, %v470
      %v522 = vpack.c.bf16 %v473, %v472
      %v523 = vpack.c.bf16 %v475, %v474
      %v524 = vpack.c.bf16 %v477, %v476
      %v525 = vpack.c.bf16 %v479, %v478
      %v526 = vpack.c.bf16 %v481, %v480
      %v527 = vpack.c.bf16 %v483, %v482
      %v528 = vpack.c.bf16 %v485, %v484
      %v529 = vpack.c.bf16 %v487, %v486
      %v530 = vpack.c.bf16 %v489, %v488
      %v531 = vpack.c.bf16 %v491, %v490
      %v532 = vpack.c.bf16 %v493, %v492
      %v533 = vpack.c.bf16 %v495, %v494
      %v534 = vpack.c.bf16 %v497, %v496
      %v535 = vpack.c.bf16 %v499, %v498
      %v536 = vpack.c.bf16 %v501, %v500
      %v537 = vpack.c.bf16 %v503, %v502
      %v538 = vpack.c.bf16 %v505, %v504
      %v539 = vpack.c.bf16 %v507, %v506
      %v572 = vunpack.c.l.b16 %v508
      %v573 = vunpack.c.h.b16 %v508
      %v574 = vunpack.c.l.b16 %v509
      %v575 = vunpack.c.h.b16 %v509
      %v576 = vunpack.c.l.b16 %v510
      %v577 = vunpack.c.h.b16 %v510
      %v578 = vunpack.c.l.b16 %v511
      %v579 = vunpack.c.h.b16 %v511
      %v580 = vunpack.c.l.b16 %v512
      %v581 = vunpack.c.h.b16 %v512
      %v582 = vunpack.c.l.b16 %v513
      %v583 = vunpack.c.h.b16 %v513
      %v584 = vunpack.c.l.b16 %v514
      %v585 = vunpack.c.h.b16 %v514
      %v586 = vunpack.c.l.b16 %v515
      %v587 = vunpack.c.h.b16 %v515
      %v588 = vunpack.c.l.b16 %v516
      %v589 = vunpack.c.h.b16 %v516
      %v590 = vunpack.c.l.b16 %v517
      %v591 = vunpack.c.h.b16 %v517
      %v592 = vunpack.c.l.b16 %v518
      %v593 = vunpack.c.h.b16 %v518
      %v594 = vunpack.c.l.b16 %v519
      %v595 = vunpack.c.h.b16 %v519
      %v596 = vunpack.c.l.b16 %v520
      %v597 = vunpack.c.h.b16 %v520
      %v598 = vunpack.c.l.b16 %v521
      %v599 = vunpack.c.h.b16 %v521
      %v600 = vunpack.c.l.b16 %v522
      %v601 = vunpack.c.h.b16 %v522
      %v602 = vunpack.c.l.b16 %v523
      %v603 = vunpack.c.h.b16 %v523
      %v604 = vunpack.c.l.b16 %v524
      %v605 = vunpack.c.h.b16 %v524
      %v606 = vunpack.c.l.b16 %v525
      %v607 = vunpack.c.h.b16 %v525
      %v608 = vunpack.c.l.b16 %v526
      %v609 = vunpack.c.h.b16 %v526
      %v610 = vunpack.c.l.b16 %v527
      %v611 = vunpack.c.h.b16 %v527
      %v612 = vunpack.c.l.b16 %v528
      %v613 = vunpack.c.h.b16 %v528
      %v614 = vunpack.c.l.b16 %v529
      %v615 = vunpack.c.h.b16 %v529
      %v616 = vunpack.c.l.b16 %v530
      %v617 = vunpack.c.h.b16 %v530
      %v618 = vunpack.c.l.b16 %v531
      %v619 = vunpack.c.h.b16 %v531
      %v620 = vunpack.c.l.b16 %v532
      %v621 = vunpack.c.h.b16 %v532
      %v622 = vunpack.c.l.b16 %v533
      %v623 = vunpack.c.h.b16 %v533
      %v624 = vunpack.c.l.b16 %v534
      %v625 = vunpack.c.h.b16 %v534
      %v626 = vunpack.c.l.b16 %v535
      %v627 = vunpack.c.h.b16 %v535
      %v628 = vunpack.c.l.b16 %v536
      %v629 = vunpack.c.h.b16 %v536
      %v630 = vunpack.c.l.b16 %v537
      %v631 = vunpack.c.h.b16 %v537
      %v632 = vunpack.c.l.b16 %v538
      %v633 = vunpack.c.h.b16 %v538
      %v634 = vunpack.c.l.b16 %v539
      %v635 = vunpack.c.h.b16 %v539
      %v636 = vpack.c.b16 %v572, %v572
      %v637 = vpack.c.b16 %v573, %v573
      %v638 = vpack.c.b16 %v574, %v574
      %v639 = vpack.c.b16 %v575, %v575
      %v640 = vpack.c.b16 %v576, %v576
      %v641 = vpack.c.b16 %v577, %v577
      %v642 = vpack.c.b16 %v578, %v578
      %v643 = vpack.c.b16 %v579, %v579
      %v644 = vpack.c.b16 %v580, %v580
      %v645 = vpack.c.b16 %v581, %v581
      %v646 = vpack.c.b16 %v582, %v582
      %v647 = vpack.c.b16 %v583, %v583
      %v648 = vpack.c.b16 %v584, %v584
      %v649 = vpack.c.b16 %v585, %v585
      %v650 = vpack.c.b16 %v586, %v586
      %v651 = vpack.c.b16 %v587, %v587
      %v652 = vpack.c.b16 %v588, %v588
      %v653 = vpack.c.b16 %v589, %v589
      %v654 = vpack.c.b16 %v590, %v590
      %v655 = vpack.c.b16 %v591, %v591
      %v656 = vpack.c.b16 %v592, %v592
      %v657 = vpack.c.b16 %v593, %v593
      %v658 = vpack.c.b16 %v594, %v594
      %v659 = vpack.c.b16 %v595, %v595
      %v660 = vpack.c.b16 %v596, %v596
      %v661 = vpack.c.b16 %v597, %v597
      %v662 = vpack.c.b16 %v598, %v598
      %v663 = vpack.c.b16 %v599, %v599
      %v664 = vpack.c.b16 %v600, %v600
      %v665 = vpack.c.b16 %v601, %v601
      %v666 = vpack.c.b16 %v602, %v602
      %v667 = vpack.c.b16 %v603, %v603
      %v668 = vpack.c.b16 %v604, %v604
      %v669 = vpack.c.b16 %v605, %v605
      %v670 = vpack.c.b16 %v606, %v606
      %v671 = vpack.c.b16 %v607, %v607
      %v672 = vpack.c.b16 %v608, %v608
      %v673 = vpack.c.b16 %v609, %v609
      %v674 = vpack.c.b16 %v610, %v610
      %v675 = vpack.c.b16 %v611, %v611
      %v676 = vpack.c.b16 %v612, %v612
      %v677 = vpack.c.b16 %v613, %v613
      %v678 = vpack.c.b16 %v614, %v614
      %v679 = vpack.c.b16 %v615, %v615
      %v680 = vpack.c.b16 %v616, %v616
      %v681 = vpack.c.b16 %v617, %v617
      %v682 = vpack.c.b16 %v618, %v618
      %v683 = vpack.c.b16 %v619, %v619
      %v684 = vpack.c.b16 %v620, %v620
      %v685 = vpack.c.b16 %v621, %v621
      %v686 = vpack.c.b16 %v622, %v622
      %v687 = vpack.c.b16 %v623, %v623
      %v688 = vpack.c.b16 %v624, %v624
      %v689 = vpack.c.b16 %v625, %v625
      %v690 = vpack.c.b16 %v626, %v626
      %v691 = vpack.c.b16 %v627, %v627
      %v692 = vpack.c.b16 %v628, %v628
      %v693 = vpack.c.b16 %v629, %v629
      %v694 = vpack.c.b16 %v630, %v630
      %v695 = vpack.c.b16 %v631, %v631
      %v696 = vpack.c.b16 %v632, %v632
      %v697 = vpack.c.b16 %v633, %v633
      %v698 = vpack.c.b16 %v634, %v634
      %v699 = vpack.c.b16 %v635, %v635
      %764 = vst [vmem:[%s172] sm:$0xf] %v636
      %765 = vst [vmem:[%s172 + $0x4] sm:$0xf] %v637
      %766 = vst [vmem:[%s172 + $0x8] sm:$0xf] %v638
      %767 = vst [vmem:[%s172 + $0xc] sm:$0xf] %v639
      %768 = vst [vmem:[%s172 + $0x10] sm:$0xf] %v640
      %769 = vst [vmem:[%s172 + $0x14] sm:$0xf] %v641
      %770 = vst [vmem:[%s172 + $0x18] sm:$0xf] %v642
      %771 = vst [vmem:[%s172 + $0x1c] sm:$0xf] %v643
      %772 = vst [vmem:[%s172 + $0x20] sm:$0xf] %v644
      %773 = vst [vmem:[%s172 + $0x24] sm:$0xf] %v645
      %774 = vst [vmem:[%s172 + $0x28] sm:$0xf] %v646
      %775 = vst [vmem:[%s172 + $0x2c] sm:$0xf] %v647
      %776 = vst [vmem:[%s172 + $0x30] sm:$0xf] %v648
      %777 = vst [vmem:[%s172 + $0x34] sm:$0xf] %v649
      %778 = vst [vmem:[%s172 + $0x38] sm:$0xf] %v650
      %779 = vst [vmem:[%s172 + $0x3c] sm:$0xf] %v651
      %780 = vst [vmem:[%s172 + $0x40] sm:$0xf] %v652
      %781 = vst [vmem:[%s172 + $0x44] sm:$0xf] %v653
      %782 = vst [vmem:[%s172 + $0x48] sm:$0xf] %v654
      %783 = vst [vmem:[%s172 + $0x4c] sm:$0xf] %v655
      %784 = vst [vmem:[%s172 + $0x50] sm:$0xf] %v656
      %785 = vst [vmem:[%s172 + $0x54] sm:$0xf] %v657
      %786 = vst [vmem:[%s172 + $0x58] sm:$0xf] %v658
      %787 = vst [vmem:[%s172 + $0x5c] sm:$0xf] %v659
      %788 = vst [vmem:[%s172 + $0x60] sm:$0xf] %v660
      %789 = vst [vmem:[%s172 + $0x64] sm:$0xf] %v661
      %790 = vst [vmem:[%s172 + $0x68] sm:$0xf] %v662
      %791 = vst [vmem:[%s172 + $0x6c] sm:$0xf] %v663
      %792 = vst [vmem:[%s172 + $0x70] sm:$0xf] %v664
      %793 = vst [vmem:[%s172 + $0x74] sm:$0xf] %v665
      %794 = vst [vmem:[%s172 + $0x78] sm:$0xf] %v666
      %795 = vst [vmem:[%s172 + $0x7c] sm:$0xf] %v667
      %796 = vst [vmem:[%s172 + $0x80] sm:$0xf] %v668
      %797 = vst [vmem:[%s172 + $0x84] sm:$0xf] %v669
      %798 = vst [vmem:[%s172 + $0x88] sm:$0xf] %v670
      %799 = vst [vmem:[%s172 + $0x8c] sm:$0xf] %v671
      %800 = vst [vmem:[%s172 + $0x90] sm:$0xf] %v672
      %801 = vst [vmem:[%s172 + $0x94] sm:$0xf] %v673
      %802 = vst [vmem:[%s172 + $0x98] sm:$0xf] %v674
      %803 = vst [vmem:[%s172 + $0x9c] sm:$0xf] %v675
      %804 = vst [vmem:[%s172 + $0xa0] sm:$0xf] %v676
      %805 = vst [vmem:[%s172 + $0xa4] sm:$0xf] %v677
      %806 = vst [vmem:[%s172 + $0xa8] sm:$0xf] %v678
      %807 = vst [vmem:[%s172 + $0xac] sm:$0xf] %v679
      %808 = vst [vmem:[%s172 + $0xb0] sm:$0xf] %v680
      %809 = vst [vmem:[%s172 + $0xb4] sm:$0xf] %v681
      %810 = vst [vmem:[%s172 + $0xb8] sm:$0xf] %v682
      %811 = vst [vmem:[%s172 + $0xbc] sm:$0xf] %v683
      %812 = vst [vmem:[%s172 + $0xc0] sm:$0xf] %v684
      %813 = vst [vmem:[%s172 + $0xc4] sm:$0xf] %v685
      %814 = vst [vmem:[%s172 + $0xc8] sm:$0xf] %v686
      %815 = vst [vmem:[%s172 + $0xcc] sm:$0xf] %v687
      %816 = vst [vmem:[%s172 + $0xd0] sm:$0xf] %v688
      %817 = vst [vmem:[%s172 + $0xd4] sm:$0xf] %v689
      %818 = vst [vmem:[%s172 + $0xd8] sm:$0xf] %v690
      %819 = vst [vmem:[%s172 + $0xdc] sm:$0xf] %v691
      %820 = vst [vmem:[%s172 + $0xe0] sm:$0xf] %v692
      %821 = vst [vmem:[%s172 + $0xe4] sm:$0xf] %v693
      %822 = vst [vmem:[%s172 + $0xe8] sm:$0xf] %v694
      %823 = vst [vmem:[%s172 + $0xec] sm:$0xf] %v695
      %824 = vst [vmem:[%s172 + $0xf0] sm:$0xf] %v696
      %825 = vst [vmem:[%s172 + $0xf4] sm:$0xf] %v697
      %826 = vst [vmem:[%s172 + $0xf8] sm:$0xf] %v698
      %827 = vst [vmem:[%s172 + $0xfc] sm:$0xf] %v699
      %s828 = smul.u32 64, %s14
      %p829 = scmp.lt.s32.totalorder %s828, 255
      %s830 = scalar_select %p829, %s828, 255
      %s831 = smul.addr %s830, 4
      %s832 = scalar_lea.vmem %s3, %s831
      // Predicated region
      $region33: #{generator_forward.16} parent=31 // pred_check
        %p833 = pneg %p100
      $region34: #{generator_forward.16} parent=31 // pred_check_branch
        %835 = sbr.rel (%p833) target = $region36
      $region35: #{generator_forward.16} parent=31 // pred_region
        %s836 = smul.u32 64, %s14
      $region36: #{generator_forward.16} parent=31 // pred_fallthru
        _
    $region32: #{generator_forward.16} parent=5 // pred_fallthru
      _
    %p837 = scmp.le.s32.totalorder 2, %s9
    // Predicated region
    $region37: #{generator_forward.16} parent=5 // pred_check
      %p838 = pneg %p837
    $region38: #{generator_forward.16} parent=5 // pred_check_branch
      %840 = sbr.rel (%p838) target = $region40
    $region39: #{generator_forward.16} parent=5 // pred_region
      %s841 = ssub.s32 %s9, 2
      // Predicated region
      $region41: #{generator_forward.16} parent=39 // pred_check
        %p842 = pneg %p106
      $region42: #{generator_forward.16} parent=39 // pred_check_branch
        %844 = sbr.rel (%p842) target = $region44
      $region43: #{generator_forward.16} parent=39 // pred_region
        %s845 = smul.u32 64, %s15
        %p846 = scmp.lt.s32.totalorder %s845, 255
        %s847 = scalar_select %p846, %s845, 255
        %s848 = smul.addr %s847, 4
        %s849 = scalar_lea.vmem %s3, %s848
      $region44: #{generator_forward.16} parent=39 // pred_fallthru
        _
    $region40: #{generator_forward.16} parent=5 // pred_fallthru
      _
  $region6: #{generator_forward.16} parent=0 // loop_footer
    %s13 = sadd.s32 1, %s9
  $region7: #{generator_forward.16} parent=0 // loop_footer_branch
    %8 = sbr.rel target = $region3
  $region8: #{generator_forward.16} parent=0 // loop_exit
    _

// kernel: generator_forward.17
$region0: #{generator_forward.17}
  #allocation0 [shape = 'u32[]', space=smem, size = 0x4, offset = 0x4, fixed_abs, tag = 'smem constant byte address 0x4 - core index']
  #allocation1 [shape = 'u32[144,128]{1,0:T(1,128)}', space=vmem, size = 0x12000, scoped, tag = 'internal scratch']
  %s0 = inlined_call_operand.vmem [shape: bf16[8192,128], index: 0, kind: input, shape index: {}]
  %s1 = inlined_call_operand.vmem [shape: bf16[128,128], index: 1, kind: input, shape index: {}]
  %s2 = inlined_call_operand.vmem [shape: f32[8192,128], index: 2, kind: output, shape index: {}]
  %s3 = sld [smem:[#allocation0]]
  $region41: #{generator_forward.17} parent=0
    _
  %s5 = ssub.s32 1, %s3
  %s6 = scalar_select 0, %s5, %s3
  loop: start=0, step=1, limit=18
  $region2: #{generator_forward.17} parent=0 // loop_pre_header
    _
  $region3: #{generator_forward.17} parent=0 // loop_header
    %s8 = sphi 0, %s12
    %p9 = scmp.ge.s32.totalorder %s8, 18
    %s18 = sphi 0, %s20
    %s21 = sphi 0, %s18
    %s22 = sphi 0, %s21
    %s38 = sphi 0, %s22
    %s42 = sphi 0, %s42
    %s44 = sphi 0, %s42
    %s45 = sphi 0, %s44
    %s59 = sphi 0, %s45
    %s65 = sphi 0, %s67
    %s68 = sphi 0, %s65
    %s69 = sphi 0, %s68
    %s85 = sphi 0, %s69
  $region4: #{generator_forward.17} parent=0 // loop_header_branch
    %11 = sbr.rel (%p9) target = $region8
  $region5: #{generator_forward.17} parent=0 // loop_body
    %s13 = ssub.s32 %s8, 1
    %s14 = ssub.s32 %s8, 2
    %s15 = sadd.s32 %s8, 1
    %s16 = ssub.s32 %s8, %s15
    %p17 = scmp.eq.s32.totalorder %s16, 0
    %s19 = sadd.s32 %s18, 1
    %s20 = scalar_select %p17, %s18, %s19
    %p23 = pneg %p17
    %p24 = scmp.eq.s32.totalorder %s8, 15
    %p25 = por %p23, %p24
    %p26 = scmp.ne.s32.totalorder %s18, %s21
    %p27 = scmp.eq.s32.totalorder %s8, 0
    %p28 = por %p26, %p27
    %p29 = scmp.ne.s32.totalorder %s18, %s21
    %p30 = scmp.eq.s32.totalorder %s13, 15
    %p31 = por %p29, %p30
    %p32 = scmp.ne.s32.totalorder %s21, %s22
    %p33 = scmp.eq.s32.totalorder %s13, 0
    %p34 = por %p32, %p33
    %p35 = scmp.ne.s32.totalorder %s21, %s22
    %p36 = scmp.eq.s32.totalorder %s14, 15
    %p37 = por %p35, %p36
    %p39 = scmp.ne.s32.totalorder %s22, %s38
    %p40 = scmp.eq.s32.totalorder %s14, 0
    %p41 = por %p39, %p40
    %s43 = sadd.s32 %s42, 1
    %p46 = scmp.eq.s32.totalorder %s8, 15
    %p47 = scmp.ne.s32.totalorder %s42, %s44
    %p48 = scmp.eq.s32.totalorder %s8, 0
    %p49 = por %p47, %p48
    %p50 = scmp.ne.s32.totalorder %s42, %s44
    %p51 = scmp.eq.s32.totalorder %s13, 15
    %p52 = por %p50, %p51
    %p53 = scmp.ne.s32.totalorder %s44, %s45
    %p54 = scmp.eq.s32.totalorder %s13, 0
    %p55 = por %p53, %p54
    %p56 = scmp.ne.s32.totalorder %s44, %s45
    %p57 = scmp.eq.s32.totalorder %s14, 15
    %p58 = por %p56, %p57
    %p60 = scmp.ne.s32.totalorder %s45, %s59
    %p61 = scmp.eq.s32.totalorder %s14, 0
    %p62 = por %p60, %p61
    %s63 = ssub.s32 %s8, %s15
    %p64 = scmp.eq.s32.totalorder %s63, 0
    %s66 = sadd.s32 %s65, 1
    %s67 = scalar_select %p64, %s65, %s66
    %p70 = pneg %p64
    %p71 = scmp.eq.s32.totalorder %s8, 15
    %p72 = por %p70, %p71
    %p73 = scmp.ne.s32.totalorder %s65, %s68
    %p74 = scmp.eq.s32.totalorder %s8, 0
    %p75 = por %p73, %p74
    %p76 = scmp.ne.s32.totalorder %s65, %s68
    %p77 = scmp.eq.s32.totalorder %s13, 15
    %p78 = por %p76, %p77
    %p79 = scmp.ne.s32.totalorder %s68, %s69
    %p80 = scmp.eq.s32.totalorder %s13, 0
    %p81 = por %p79, %p80
    %p82 = scmp.ne.s32.totalorder %s68, %s69
    %p83 = scmp.eq.s32.totalorder %s14, 15
    %p84 = por %p82, %p83
    %p86 = scmp.ne.s32.totalorder %s69, %s85
    %p87 = scmp.eq.s32.totalorder %s14, 0
    %p88 = por %p86, %p87
    %p89 = scmp.le.s32.totalorder 1, %s8
    %p90 = scmp.lt.s32.totalorder %s8, 17
    %p91 = pnand %p89, %p90
    %p92 = pneg %p91
    // Predicated region
    $region9: #{generator_forward.17} parent=5 // pred_check
      _
    $region10: #{generator_forward.17} parent=5 // pred_check_branch
      %94 = sbr.rel (%p91) target = $region12
    $region11: #{generator_forward.17} parent=5 // pred_region
      %s95 = ssub.s32 %s8, 1
      // Predicated region
      $region13: #{generator_forward.17} parent=11 // pred_check
        %p96 = pneg %p55
      $region14: #{generator_forward.17} parent=11 // pred_check_branch
        %98 = sbr.rel (%p96) target = $region16
      $region15: #{generator_forward.17} parent=11 // pred_region
        _
      $region16: #{generator_forward.17} parent=11 // pred_fallthru
        _
    $region12: #{generator_forward.17} parent=5 // pred_fallthru
      _
    %p99 = scmp.lt.s32.totalorder %s8, 16
    // Predicated region
    $region17: #{generator_forward.17} parent=5 // pred_check
      %p100 = pneg %p99
    $region18: #{generator_forward.17} parent=5 // pred_check_branch
      %102 = sbr.rel (%p100) target = $region20
    $region19: #{generator_forward.17} parent=5 // pred_region
      // Predicated region
      $region21: #{generator_forward.17} parent=19 // pred_check
        %p103 = pneg %p28
      $region22: #{generator_forward.17} parent=19 // pred_check_branch
        %105 = sbr.rel (%p103) target = $region24
      $region23: #{generator_forward.17} parent=19 // pred_region
        %s106 = smul.u32 64, %s8
        %p107 = scmp.lt.s32.totalorder %s106, 1023
        %s108 = scalar_select %p107, %s106, 1023
        %s109 = smul.addr %s108, 4
        %s110 = scalar_lea.vmem %s0, %s109
        %s111 = smul.u32 64, %s8
      $region24: #{generator_forward.17} parent=19 // pred_fallthru
        _
    $region20: #{generator_forward.17} parent=5 // pred_fallthru
      _
    %p112 = scmp.le.s32.totalorder 1, %s8
    %p113 = scmp.lt.s32.totalorder %s8, 17
    %p114 = pnand %p112, %p113
    %p115 = pneg %p114
    // Predicated region
    $region25: #{generator_forward.17} parent=5 // pred_check
      _
    $region26: #{generator_forward.17} parent=5 // pred_check_branch
      %117 = sbr.rel (%p114) target = $region28
    $region27: #{generator_forward.17} parent=5 // pred_region
      %s118 = ssub.s32 %s8, 1
      %s119 = smul.u32 64, %s13
      %p120 = scmp.lt.s32.totalorder %s119, 1023
      %s121 = scalar_select %p120, %s119, 1023
      %s122 = smul.addr %s121, 4
      %s123 = scalar_lea.vmem %s0, %s122
      %p124 = pneg %p34
      %p125 = pneg %p31
      %p126 = pneg %p55
      %p127 = pneg %p52
      %p128 = pneg %p81
      %p129 = pneg %p78
      %s130 = smul.u32 64, %s13
      %p131 = scmp.lt.s32.totalorder %s130, 1023
      %s132 = scalar_select %p131, %s130, 1023
      %s133 = smul.addr %s132, 8
      %s134 = scalar_lea.vmem %s2, %s133
      %s135 = smul.u32 64, %s13
      %p136 = scmp.lt.s32.totalorder %s135, 1023
      %s137 = scalar_select %p136, %s135, 1023
      %s138 = smul.addr %s137, 4
      %s139 = scalar_lea.vmem %s0, %s138
      %s140 = smul.u32 64, %s13
      %s141 = smul.u32 64, %s13
      %p142 = scmp.lt.s32.totalorder %s141, 1023
      %s143 = scalar_select %p142, %s141, 1023
      %s144 = smul.addr %s143, 8
      %s145 = scalar_lea.vmem %s2, %s144
      %s146 = smul.u32 64, %s13
      %v148 = vld [vmem:[%s139] sm:$0xf]
      %v149 = vld [vmem:[%s139 + $0x4] sm:$0xf]
      %v150 = vld [vmem:[%s139 + $0x8] sm:$0xf]
      %v151 = vld [vmem:[%s139 + $0xc] sm:$0xf]
      %v152 = vld [vmem:[%s139 + $0x10] sm:$0xf]
      %v153 = vld [vmem:[%s139 + $0x14] sm:$0xf]
      %v154 = vld [vmem:[%s139 + $0x18] sm:$0xf]
      %v155 = vld [vmem:[%s139 + $0x1c] sm:$0xf]
      %v156 = vld [vmem:[%s139 + $0x20] sm:$0xf]
      %v157 = vld [vmem:[%s139 + $0x24] sm:$0xf]
      %v158 = vld [vmem:[%s139 + $0x28] sm:$0xf]
      %v159 = vld [vmem:[%s139 + $0x2c] sm:$0xf]
      %v160 = vld [vmem:[%s139 + $0x30] sm:$0xf]
      %v161 = vld [vmem:[%s139 + $0x34] sm:$0xf]
      %v162 = vld [vmem:[%s139 + $0x38] sm:$0xf]
      %v163 = vld [vmem:[%s139 + $0x3c] sm:$0xf]
      %v164 = vld [vmem:[%s139 + $0x40] sm:$0xf]
      %v165 = vld [vmem:[%s139 + $0x44] sm:$0xf]
      %v166 = vld [vmem:[%s139 + $0x48] sm:$0xf]
      %v167 = vld [vmem:[%s139 + $0x4c] sm:$0xf]
      %v168 = vld [vmem:[%s139 + $0x50] sm:$0xf]
      %v169 = vld [vmem:[%s139 + $0x54] sm:$0xf]
      %v170 = vld [vmem:[%s139 + $0x58] sm:$0xf]
      %v171 = vld [vmem:[%s139 + $0x5c] sm:$0xf]
      %v172 = vld [vmem:[%s139 + $0x60] sm:$0xf]
      %v173 = vld [vmem:[%s139 + $0x64] sm:$0xf]
      %v174 = vld [vmem:[%s139 + $0x68] sm:$0xf]
      %v175 = vld [vmem:[%s139 + $0x6c] sm:$0xf]
      %v176 = vld [vmem:[%s139 + $0x70] sm:$0xf]
      %v177 = vld [vmem:[%s139 + $0x74] sm:$0xf]
      %v178 = vld [vmem:[%s139 + $0x78] sm:$0xf]
      %v179 = vld [vmem:[%s139 + $0x7c] sm:$0xf]
      %v180 = vld [vmem:[%s139 + $0x80] sm:$0xf]
      %v181 = vld [vmem:[%s139 + $0x84] sm:$0xf]
      %v182 = vld [vmem:[%s139 + $0x88] sm:$0xf]
      %v183 = vld [vmem:[%s139 + $0x8c] sm:$0xf]
      %v184 = vld [vmem:[%s139 + $0x90] sm:$0xf]
      %v185 = vld [vmem:[%s139 + $0x94] sm:$0xf]
      %v186 = vld [vmem:[%s139 + $0x98] sm:$0xf]
      %v187 = vld [vmem:[%s139 + $0x9c] sm:$0xf]
      %v188 = vld [vmem:[%s139 + $0xa0] sm:$0xf]
      %v189 = vld [vmem:[%s139 + $0xa4] sm:$0xf]
      %v190 = vld [vmem:[%s139 + $0xa8] sm:$0xf]
      %v191 = vld [vmem:[%s139 + $0xac] sm:$0xf]
      %v192 = vld [vmem:[%s139 + $0xb0] sm:$0xf]
      %v193 = vld [vmem:[%s139 + $0xb4] sm:$0xf]
      %v194 = vld [vmem:[%s139 + $0xb8] sm:$0xf]
      %v195 = vld [vmem:[%s139 + $0xbc] sm:$0xf]
      %v196 = vld [vmem:[%s139 + $0xc0] sm:$0xf]
      %v197 = vld [vmem:[%s139 + $0xc4] sm:$0xf]
      %v198 = vld [vmem:[%s139 + $0xc8] sm:$0xf]
      %v199 = vld [vmem:[%s139 + $0xcc] sm:$0xf]
      %v200 = vld [vmem:[%s139 + $0xd0] sm:$0xf]
      %v201 = vld [vmem:[%s139 + $0xd4] sm:$0xf]
      %v202 = vld [vmem:[%s139 + $0xd8] sm:$0xf]
      %v203 = vld [vmem:[%s139 + $0xdc] sm:$0xf]
      %v204 = vld [vmem:[%s139 + $0xe0] sm:$0xf]
      %v205 = vld [vmem:[%s139 + $0xe4] sm:$0xf]
      %v206 = vld [vmem:[%s139 + $0xe8] sm:$0xf]
      %v207 = vld [vmem:[%s139 + $0xec] sm:$0xf]
      %v208 = vld [vmem:[%s139 + $0xf0] sm:$0xf]
      %v209 = vld [vmem:[%s139 + $0xf4] sm:$0xf]
      %v210 = vld [vmem:[%s139 + $0xf8] sm:$0xf]
      %v211 = vld [vmem:[%s139 + $0xfc] sm:$0xf]
      %v212 = vld [vmem:[%s1] sm:$0xf]
      %v213 = vld [vmem:[%s1 + $0x4] sm:$0xf]
      %v214 = vld [vmem:[%s1 + $0x8] sm:$0xf]
      %v215 = vld [vmem:[%s1 + $0xc] sm:$0xf]
      %v216 = vld [vmem:[%s1 + $0x10] sm:$0xf]
      %v217 = vld [vmem:[%s1 + $0x14] sm:$0xf]
      %v218 = vld [vmem:[%s1 + $0x18] sm:$0xf]
      %v219 = vld [vmem:[%s1 + $0x1c] sm:$0xf]
      %v220 = vld [vmem:[%s1 + $0x20] sm:$0xf]
      %v221 = vld [vmem:[%s1 + $0x24] sm:$0xf]
      %v222 = vld [vmem:[%s1 + $0x28] sm:$0xf]
      %v223 = vld [vmem:[%s1 + $0x2c] sm:$0xf]
      %v224 = vld [vmem:[%s1 + $0x30] sm:$0xf]
      %v225 = vld [vmem:[%s1 + $0x34] sm:$0xf]
      %v226 = vld [vmem:[%s1 + $0x38] sm:$0xf]
      %v227 = vld [vmem:[%s1 + $0x3c] sm:$0xf]
      %v292 = vunpack.c.l.b16 %v148
      %v293 = vunpack.c.l.b16 %v149
      %v294 = vunpack.c.l.b16 %v150
      %v295 = vunpack.c.l.b16 %v151
      %v296 = vunpack.c.l.b16 %v152
      %v297 = vunpack.c.l.b16 %v153
      %v298 = vunpack.c.l.b16 %v154
      %v299 = vunpack.c.l.b16 %v155
      %v300 = vunpack.c.l.b16 %v156
      %v301 = vunpack.c.l.b16 %v157
      %v302 = vunpack.c.l.b16 %v158
      %v303 = vunpack.c.l.b16 %v159
      %v304 = vunpack.c.l.b16 %v160
      %v305 = vunpack.c.l.b16 %v161
      %v306 = vunpack.c.l.b16 %v162
      %v307 = vunpack.c.l.b16 %v163
      %v308 = vunpack.c.l.b16 %v164
      %v309 = vunpack.c.l.b16 %v165
      %v310 = vunpack.c.l.b16 %v166
      %v311 = vunpack.c.l.b16 %v167
      %v312 = vunpack.c.l.b16 %v168
      %v313 = vunpack.c.l.b16 %v169
      %v314 = vunpack.c.l.b16 %v170
      %v315 = vunpack.c.l.b16 %v171
      %v316 = vunpack.c.l.b16 %v172
      %v317 = vunpack.c.l.b16 %v173
      %v318 = vunpack.c.l.b16 %v174
      %v319 = vunpack.c.l.b16 %v175
      %v320 = vunpack.c.l.b16 %v176
      %v321 = vunpack.c.l.b16 %v177
      %v322 = vunpack.c.l.b16 %v178
      %v323 = vunpack.c.l.b16 %v179
      %v324 = vunpack.c.l.b16 %v180
      %v325 = vunpack.c.l.b16 %v181
      %v326 = vunpack.c.l.b16 %v182
      %v327 = vunpack.c.l.b16 %v183
      %v328 = vunpack.c.l.b16 %v184
      %v329 = vunpack.c.l.b16 %v185
      %v330 = vunpack.c.l.b16 %v186
      %v331 = vunpack.c.l.b16 %v187
      %v332 = vunpack.c.l.b16 %v188
      %v333 = vunpack.c.l.b16 %v189
      %v334 = vunpack.c.l.b16 %v190
      %v335 = vunpack.c.l.b16 %v191
      %v336 = vunpack.c.l.b16 %v192
      %v337 = vunpack.c.l.b16 %v193
      %v338 = vunpack.c.l.b16 %v194
      %v339 = vunpack.c.l.b16 %v195
      %v340 = vunpack.c.l.b16 %v196
      %v341 = vunpack.c.l.b16 %v197
      %v342 = vunpack.c.l.b16 %v198
      %v343 = vunpack.c.l.b16 %v199
      %v344 = vunpack.c.l.b16 %v200
      %v345 = vunpack.c.l.b16 %v201
      %v346 = vunpack.c.l.b16 %v202
      %v347 = vunpack.c.l.b16 %v203
      %v348 = vunpack.c.l.b16 %v204
      %v349 = vunpack.c.l.b16 %v205
      %v350 = vunpack.c.l.b16 %v206
      %v351 = vunpack.c.l.b16 %v207
      %v352 = vunpack.c.l.b16 %v208
      %v353 = vunpack.c.l.b16 %v209
      %v354 = vunpack.c.l.b16 %v210
      %v355 = vunpack.c.l.b16 %v211
      %v356 = vpack.c.b16 %v293, %v292
      %v357 = vpack.c.b16 %v295, %v294
      %v358 = vpack.c.b16 %v297, %v296
      %v359 = vpack.c.b16 %v299, %v298
      %v360 = vpack.c.b16 %v301, %v300
      %v361 = vpack.c.b16 %v303, %v302
      %v362 = vpack.c.b16 %v305, %v304
      %v363 = vpack.c.b16 %v307, %v306
      %v364 = vpack.c.b16 %v309, %v308
      %v365 = vpack.c.b16 %v311, %v310
      %v366 = vpack.c.b16 %v313, %v312
      %v367 = vpack.c.b16 %v315, %v314
      %v368 = vpack.c.b16 %v317, %v316
      %v369 = vpack.c.b16 %v319, %v318
      %v370 = vpack.c.b16 %v321, %v320
      %v371 = vpack.c.b16 %v323, %v322
      %v372 = vpack.c.b16 %v325, %v324
      %v373 = vpack.c.b16 %v327, %v326
      %v374 = vpack.c.b16 %v329, %v328
      %v375 = vpack.c.b16 %v331, %v330
      %v376 = vpack.c.b16 %v333, %v332
      %v377 = vpack.c.b16 %v335, %v334
      %v378 = vpack.c.b16 %v337, %v336
      %v379 = vpack.c.b16 %v339, %v338
      %v380 = vpack.c.b16 %v341, %v340
      %v381 = vpack.c.b16 %v343, %v342
      %v382 = vpack.c.b16 %v345, %v344
      %v383 = vpack.c.b16 %v347, %v346
      %v384 = vpack.c.b16 %v349, %v348
      %v385 = vpack.c.b16 %v351, %v350
      %v386 = vpack.c.b16 %v353, %v352
      %v387 = vpack.c.b16 %v355, %v354
      %v436 = vunpack.c.l.b16 %v212
      %v437 = vunpack.c.l.b16 %v213
      %v438 = vunpack.c.l.b16 %v214
      %v439 = vunpack.c.l.b16 %v215
      %v440 = vunpack.c.l.b16 %v216
      %v441 = vunpack.c.l.b16 %v217
      %v442 = vunpack.c.l.b16 %v218
      %v443 = vunpack.c.l.b16 %v219
      %v444 = vunpack.c.l.b16 %v220
      %v445 = vunpack.c.l.b16 %v221
      %v446 = vunpack.c.l.b16 %v222
      %v447 = vunpack.c.l.b16 %v223
      %v448 = vunpack.c.l.b16 %v224
      %v449 = vunpack.c.l.b16 %v225
      %v450 = vunpack.c.l.b16 %v226
      %v451 = vunpack.c.l.b16 %v227
      %v452 = vpack.c.b16 %v437, %v436
      %v453 = vpack.c.b16 %v439, %v438
      %v454 = vpack.c.b16 %v441, %v440
      %v455 = vpack.c.b16 %v443, %v442
      %v456 = vpack.c.b16 %v445, %v444
      %v457 = vpack.c.b16 %v447, %v446
      %v458 = vpack.c.b16 %v449, %v448
      %v459 = vpack.c.b16 %v451, %v450
      %468 = vmatprep.subr.bf16.mxu0 0
      %469 = vmatpush1.bf16.msra.mxu0 %v452
      %470 = vmatprep.subr.bf16.mxu0 0
      %471 = vmatpush1.bf16.msra.mxu0 %v453
      %472 = vmatprep.subr.bf16.mxu0 0
      %473 = vmatpush1.bf16.msra.mxu0 %v454
      %474 = vmatprep.subr.bf16.mxu0 0
      %475 = vmatpush1.bf16.msra.mxu0 %v455
      %476 = vmatprep.subr.bf16.mxu0 0
      %477 = vmatpush1.bf16.msra.mxu0 %v456
      %478 = vmatprep.subr.bf16.mxu0 0
      %479 = vmatpush1.bf16.msra.mxu0 %v457
      %480 = vmatprep.subr.bf16.mxu0 0
      %481 = vmatpush1.bf16.msra.mxu0 %v458
      %482 = vmatprep.subr.bf16.mxu0 0
      %483 = vmatpush1.bf16.msra.mxu0 %v459
      %484 = vmatprep.subr.bf16.mxu0 0
      %485 = vmatpush1.bf16.msra.mxu0 0
      %486 = vmatprep.subr.bf16.mxu0 0
      %487 = vmatpush1.bf16.msra.mxu0 0
      %488 = vmatprep.subr.bf16.mxu0 0
      %489 = vmatpush1.bf16.msra.mxu0 0
      %490 = vmatprep.subr.bf16.mxu0 0
      %491 = vmatpush1.bf16.msra.mxu0 0
      %492 = vmatprep.subr.bf16.mxu0 0
      %493 = vmatpush1.bf16.msra.mxu0 0
      %494 = vmatprep.subr.bf16.mxu0 0
      %495 = vmatpush1.bf16.msra.mxu0 0
      %496 = vmatprep.subr.bf16.mxu0 0
      %497 = vmatpush1.bf16.msra.mxu0 0
      %498 = vmatprep.subr.bf16.mxu0 0
      %499 = vmatpush1.bf16.msra.mxu0 0
      %500 = vmatprep.mubr.bf16.mxu0 0
      %501 = vmatmul.mubr.bf16.gmra.mrb[0].mxu0 %v356
      %v502 = vpop.f32.mrb[0].mxu0
      %v503 = vadd.f32 0.0, %v502
      %v504 = vpop.f32.mrb[0].mxu0
      %v505 = vpop.f32.mrb[0].mxu0
      %v506 = vadd.f32 0.0, %v505
      %v507 = vpop.f32.mrb[0].mxu0
      %508 = vmatprep.mubr.bf16.mxu0 0
      %509 = vmatmul.mubr.bf16.gmra.mrb[0].mxu0 %v357
      %v510 = vpop.f32.mrb[0].mxu0
      %v511 = vadd.f32 0.0, %v510
      %v512 = vpop.f32.mrb[0].mxu0
      %v513 = vpop.f32.mrb[0].mxu0
      %v514 = vadd.f32 0.0, %v513
      %v515 = vpop.f32.mrb[0].mxu0
      %516 = vmatprep.mubr.bf16.mxu0 0
      %517 = vmatmul.mubr.bf16.gmra.mrb[0].mxu0 %v358
      %v518 = vpop.f32.mrb[0].mxu0
      %v519 = vadd.f32 0.0, %v518
      %v520 = vpop.f32.mrb[0].mxu0
      %v521 = vpop.f32.mrb[0].mxu0
      %v522 = vadd.f32 0.0, %v521
      %v523 = vpop.f32.mrb[0].mxu0
      %524 = vmatprep.mubr.bf16.mxu0 0
      %525 = vmatmul.mubr.bf16.gmra.mrb[0].mxu0 %v359
      %v526 = vpop.f32.mrb[0].mxu0
      %v527 = vadd.f32 0.0, %v526
      %v528 = vpop.f32.mrb[0].mxu0
      %v529 = vpop.f32.mrb[0].mxu0
      %v530 = vadd.f32 0.0, %v529
      %v531 = vpop.f32.mrb[0].mxu0
      %532 = vmatprep.mubr.bf16.mxu0 0
      %533 = vmatmul.mubr.bf16.gmra.mrb[0].mxu0 %v360
      %v534 = vpop.f32.mrb[0].mxu0
      %v535 = vadd.f32 0.0, %v534
      %v536 = vpop.f32.mrb[0].mxu0
      %v537 = vpop.f32.mrb[0].mxu0
      %v538 = vadd.f32 0.0, %v537
      %v539 = vpop.f32.mrb[0].mxu0
      %540 = vmatprep.mubr.bf16.mxu0 0
      %541 = vmatmul.mubr.bf16.gmra.mrb[0].mxu0 %v361
      %v542 = vpop.f32.mrb[0].mxu0
      %v543 = vadd.f32 0.0, %v542
      %v544 = vpop.f32.mrb[0].mxu0
      %v545 = vpop.f32.mrb[0].mxu0
      %v546 = vadd.f32 0.0, %v545
      %v547 = vpop.f32.mrb[0].mxu0
      %548 = vmatprep.mubr.bf16.mxu0 0
      %549 = vmatmul.mubr.bf16.gmra.mrb[0].mxu0 %v362
      %v550 = vpop.f32.mrb[0].mxu0
      %v551 = vadd.f32 0.0, %v550
      %v552 = vpop.f32.mrb[0].mxu0
      %v553 = vpop.f32.mrb[0].mxu0
      %v554 = vadd.f32 0.0, %v553
      %v555 = vpop.f32.mrb[0].mxu0
      %556 = vmatprep.mubr.bf16.mxu0 0
      %557 = vmatmul.mubr.bf16.gmra.mrb[0].mxu0 %v363
      %v558 = vpop.f32.mrb[0].mxu0
      %v559 = vadd.f32 0.0, %v558
      %v560 = vpop.f32.mrb[0].mxu0
      %v561 = vpop.f32.mrb[0].mxu0
      %v562 = vadd.f32 0.0, %v561
      %v563 = vpop.f32.mrb[0].mxu0
      %564 = vmatprep.mubr.bf16.mxu0 0
      %565 = vmatmul.mubr.bf16.gmra.mrb[0].mxu0 %v364
      %v566 = vpop.f32.mrb[0].mxu0
      %v567 = vadd.f32 0.0, %v566
      %v568 = vpop.f32.mrb[0].mxu0
      %v569 = vpop.f32.mrb[0].mxu0
      %v570 = vadd.f32 0.0, %v569
      %v571 = vpop.f32.mrb[0].mxu0
      %572 = vmatprep.mubr.bf16.mxu0 0
      %573 = vmatmul.mubr.bf16.gmra.mrb[0].mxu0 %v365
      %v574 = vpop.f32.mrb[0].mxu0
      %v575 = vadd.f32 0.0, %v574
      %v576 = vpop.f32.mrb[0].mxu0
      %v577 = vpop.f32.mrb[0].mxu0
      %v578 = vadd.f32 0.0, %v577
      %v579 = vpop.f32.mrb[0].mxu0
      %580 = vmatprep.mubr.bf16.mxu0 0
      %581 = vmatmul.mubr.bf16.gmra.mrb[0].mxu0 %v366
      %v582 = vpop.f32.mrb[0].mxu0
      %v583 = vadd.f32 0.0, %v582
      %v584 = vpop.f32.mrb[0].mxu0
      %v585 = vpop.f32.mrb[0].mxu0
      %v586 = vadd.f32 0.0, %v585
      %v587 = vpop.f32.mrb[0].mxu0
      %588 = vmatprep.mubr.bf16.mxu0 0
      %589 = vmatmul.mubr.bf16.gmra.mrb[0].mxu0 %v367
      %v590 = vpop.f32.mrb[0].mxu0
      %v591 = vadd.f32 0.0, %v590
      %v592 = vpop.f32.mrb[0].mxu0
      %v593 = vpop.f32.mrb[0].mxu0
      %v594 = vadd.f32 0.0, %v593
      %v595 = vpop.f32.mrb[0].mxu0
      %596 = vmatprep.mubr.bf16.mxu0 0
      %597 = vmatmul.mubr.bf16.gmra.mrb[0].mxu0 %v368
      %v598 = vpop.f32.mrb[0].mxu0
      %v599 = vadd.f32 0.0, %v598
      %v600 = vpop.f32.mrb[0].mxu0
      %v601 = vpop.f32.mrb[0].mxu0
      %v602 = vadd.f32 0.0, %v601
      %v603 = vpop.f32.mrb[0].mxu0
      %604 = vmatprep.mubr.bf16.mxu0 0
      %605 = vmatmul.mubr.bf16.gmra.mrb[0].mxu0 %v369
      %v606 = vpop.f32.mrb[0].mxu0
      %v607 = vadd.f32 0.0, %v606
      %v608 = vpop.f32.mrb[0].mxu0
      %v609 = vpop.f32.mrb[0].mxu0
      %v610 = vadd.f32 0.0, %v609
      %v611 = vpop.f32.mrb[0].mxu0
      %612 = vmatprep.mubr.bf16.mxu0 0
      %613 = vmatmul.mubr.bf16.gmra.mrb[0].mxu0 %v370
      %v614 = vpop.f32.mrb[0].mxu0
      %v615 = vadd.f32 0.0, %v614
      %v616 = vpop.f32.mrb[0].mxu0
      %v617 = vpop.f32.mrb[0].mxu0
      %v618 = vadd.f32 0.0, %v617
      %v619 = vpop.f32.mrb[0].mxu0
      %620 = vmatprep.mubr.bf16.mxu0 0
      %621 = vmatmul.mubr.bf16.gmra.mrb[0].mxu0 %v371
      %v622 = vpop.f32.mrb[0].mxu0
      %v623 = vadd.f32 0.0, %v622
      %v624 = vpop.f32.mrb[0].mxu0
      %v625 = vpop.f32.mrb[0].mxu0
      %v626 = vadd.f32 0.0, %v625
      %v627 = vpop.f32.mrb[0].mxu0
      %628 = vmatprep.mubr.bf16.mxu0 0
      %629 = vmatmul.mubr.bf16.gmra.mrb[0].mxu0 %v372
      %v630 = vpop.f32.mrb[0].mxu0
      %v631 = vadd.f32 0.0, %v630
      %v632 = vpop.f32.mrb[0].mxu0
      %v633 = vpop.f32.mrb[0].mxu0
      %v634 = vadd.f32 0.0, %v633
      %v635 = vpop.f32.mrb[0].mxu0
      %636 = vmatprep.mubr.bf16.mxu0 0
      %637 = vmatmul.mubr.bf16.gmra.mrb[0].mxu0 %v373
      %v638 = vpop.f32.mrb[0].mxu0
      %v639 = vadd.f32 0.0, %v638
      %v640 = vpop.f32.mrb[0].mxu0
      %v641 = vpop.f32.mrb[0].mxu0
      %v642 = vadd.f32 0.0, %v641
      %v643 = vpop.f32.mrb[0].mxu0
      %644 = vmatprep.mubr.bf16.mxu0 0
      %645 = vmatmul.mubr.bf16.gmra.mrb[0].mxu0 %v374
      %v646 = vpop.f32.mrb[0].mxu0
      %v647 = vadd.f32 0.0, %v646
      %v648 = vpop.f32.mrb[0].mxu0
      %v649 = vpop.f32.mrb[0].mxu0
      %v650 = vadd.f32 0.0, %v649
      %v651 = vpop.f32.mrb[0].mxu0
      %652 = vmatprep.mubr.bf16.mxu0 0
      %653 = vmatmul.mubr.bf16.gmra.mrb[0].mxu0 %v375
      %v654 = vpop.f32.mrb[0].mxu0
      %v655 = vadd.f32 0.0, %v654
      %v656 = vpop.f32.mrb[0].mxu0
      %v657 = vpop.f32.mrb[0].mxu0
      %v658 = vadd.f32 0.0, %v657
      %v659 = vpop.f32.mrb[0].mxu0
      %660 = vmatprep.mubr.bf16.mxu0 0
      %661 = vmatmul.mubr.bf16.gmra.mrb[0].mxu0 %v376
      %v662 = vpop.f32.mrb[0].mxu0
      %v663 = vadd.f32 0.0, %v662
      %v664 = vpop.f32.mrb[0].mxu0
      %v665 = vpop.f32.mrb[0].mxu0
      %v666 = vadd.f32 0.0, %v665
      %v667 = vpop.f32.mrb[0].mxu0
      %668 = vmatprep.mubr.bf16.mxu0 0
      %669 = vmatmul.mubr.bf16.gmra.mrb[0].mxu0 %v377
      %v670 = vpop.f32.mrb[0].mxu0
      %v671 = vadd.f32 0.0, %v670
      %v672 = vpop.f32.mrb[0].mxu0
      %v673 = vpop.f32.mrb[0].mxu0
      %v674 = vadd.f32 0.0, %v673
      %v675 = vpop.f32.mrb[0].mxu0
      %676 = vmatprep.mubr.bf16.mxu0 0
      %677 = vmatmul.mubr.bf16.gmra.mrb[0].mxu0 %v378
      %v678 = vpop.f32.mrb[0].mxu0
      %v679 = vadd.f32 0.0, %v678
      %v680 = vpop.f32.mrb[0].mxu0
      %v681 = vpop.f32.mrb[0].mxu0
      %v682 = vadd.f32 0.0, %v681
      %v683 = vpop.f32.mrb[0].mxu0
      %684 = vmatprep.mubr.bf16.mxu0 0
      %685 = vmatmul.mubr.bf16.gmra.mrb[0].mxu0 %v379
      %v686 = vpop.f32.mrb[0].mxu0
      %v687 = vadd.f32 0.0, %v686
      %v688 = vpop.f32.mrb[0].mxu0
      %v689 = vpop.f32.mrb[0].mxu0
      %v690 = vadd.f32 0.0, %v689
      %v691 = vpop.f32.mrb[0].mxu0
      %692 = vmatprep.mubr.bf16.mxu0 0
      %693 = vmatmul.mubr.bf16.gmra.mrb[0].mxu0 %v380
      %v694 = vpop.f32.mrb[0].mxu0
      %v695 = vadd.f32 0.0, %v694
      %v696 = vpop.f32.mrb[0].mxu0
      %v697 = vpop.f32.mrb[0].mxu0
      %v698 = vadd.f32 0.0, %v697
      %v699 = vpop.f32.mrb[0].mxu0
      %700 = vmatprep.mubr.bf16.mxu0 0
      %701 = vmatmul.mubr.bf16.gmra.mrb[0].mxu0 %v381
      %v702 = vpop.f32.mrb[0].mxu0
      %v703 = vadd.f32 0.0, %v702
      %v704 = vpop.f32.mrb[0].mxu0
      %v705 = vpop.f32.mrb[0].mxu0
      %v706 = vadd.f32 0.0, %v705
      %v707 = vpop.f32.mrb[0].mxu0
      %708 = vmatprep.mubr.bf16.mxu0 0
      %709 = vmatmul.mubr.bf16.gmra.mrb[0].mxu0 %v382
      %v710 = vpop.f32.mrb[0].mxu0
      %v711 = vadd.f32 0.0, %v710
      %v712 = vpop.f32.mrb[0].mxu0
      %v713 = vpop.f32.mrb[0].mxu0
      %v714 = vadd.f32 0.0, %v713
      %v715 = vpop.f32.mrb[0].mxu0
      %716 = vmatprep.mubr.bf16.mxu0 0
      %717 = vmatmul.mubr.bf16.gmra.mrb[0].mxu0 %v383
      %v718 = vpop.f32.mrb[0].mxu0
      %v719 = vadd.f32 0.0, %v718
      %v720 = vpop.f32.mrb[0].mxu0
      %v721 = vpop.f32.mrb[0].mxu0
      %v722 = vadd.f32 0.0, %v721
      %v723 = vpop.f32.mrb[0].mxu0
      %724 = vmatprep.mubr.bf16.mxu0 0
      %725 = vmatmul.mubr.bf16.gmra.mrb[0].mxu0 %v384
      %v726 = vpop.f32.mrb[0].mxu0
      %v727 = vadd.f32 0.0, %v726
      %v728 = vpop.f32.mrb[0].mxu0
      %v729 = vpop.f32.mrb[0].mxu0
      %v730 = vadd.f32 0.0, %v729
      %v731 = vpop.f32.mrb[0].mxu0
      %732 = vmatprep.mubr.bf16.mxu0 0
      %733 = vmatmul.mubr.bf16.gmra.mrb[0].mxu0 %v385
      %v734 = vpop.f32.mrb[0].mxu0
      %v735 = vadd.f32 0.0, %v734
      %v736 = vpop.f32.mrb[0].mxu0
      %v737 = vpop.f32.mrb[0].mxu0
      %v738 = vadd.f32 0.0, %v737
      %v739 = vpop.f32.mrb[0].mxu0
      %740 = vmatprep.mubr.bf16.mxu0 0
      %741 = vmatmul.mubr.bf16.gmra.mrb[0].mxu0 %v386
      %v742 = vpop.f32.mrb[0].mxu0
      %v743 = vadd.f32 0.0, %v742
      %v744 = vpop.f32.mrb[0].mxu0
      %v745 = vpop.f32.mrb[0].mxu0
      %v746 = vadd.f32 0.0, %v745
      %v747 = vpop.f32.mrb[0].mxu0
      %748 = vmatprep.mubr.bf16.mxu0 0
      %749 = vmatmul.mubr.bf16.gmra.mrb[0].mxu0 %v387
      %v750 = vpop.f32.mrb[0].mxu0
      %v751 = vadd.f32 0.0, %v750
      %v752 = vpop.f32.mrb[0].mxu0
      %v753 = vpop.f32.mrb[0].mxu0
      %v754 = vadd.f32 0.0, %v753
      %v755 = vpop.f32.mrb[0].mxu0
      %756 = vdwg.mxu0
      %v757 = vtanh.pop %v503
      %v758 = vtanh.pop %v506
      %v759 = vtanh.pop %v511
      %v760 = vtanh.pop %v514
      %v761 = vtanh.pop %v519
      %v762 = vtanh.pop %v522
      %v763 = vtanh.pop %v527
      %v764 = vtanh.pop %v530
      %v765 = vtanh.pop %v535
      %v766 = vtanh.pop %v538
      %v767 = vtanh.pop %v543
      %v768 = vtanh.pop %v546
      %v769 = vtanh.pop %v551
      %v770 = vtanh.pop %v554
      %v771 = vtanh.pop %v559
      %v772 = vtanh.pop %v562
      %v773 = vtanh.pop %v567
      %v774 = vtanh.pop %v570
      %v775 = vtanh.pop %v575
      %v776 = vtanh.pop %v578
      %v777 = vtanh.pop %v583
      %v778 = vtanh.pop %v586
      %v779 = vtanh.pop %v591
      %v780 = vtanh.pop %v594
      %v781 = vtanh.pop %v599
      %v782 = vtanh.pop %v602
      %v783 = vtanh.pop %v607
      %v784 = vtanh.pop %v610
      %v785 = vtanh.pop %v615
      %v786 = vtanh.pop %v618
      %v787 = vtanh.pop %v623
      %v788 = vtanh.pop %v626
      %v789 = vtanh.pop %v631
      %v790 = vtanh.pop %v634
      %v791 = vtanh.pop %v639
      %v792 = vtanh.pop %v642
      %v793 = vtanh.pop %v647
      %v794 = vtanh.pop %v650
      %v795 = vtanh.pop %v655
      %v796 = vtanh.pop %v658
      %v797 = vtanh.pop %v663
      %v798 = vtanh.pop %v666
      %v799 = vtanh.pop %v671
      %v800 = vtanh.pop %v674
      %v801 = vtanh.pop %v679
      %v802 = vtanh.pop %v682
      %v803 = vtanh.pop %v687
      %v804 = vtanh.pop %v690
      %v805 = vtanh.pop %v695
      %v806 = vtanh.pop %v698
      %v807 = vtanh.pop %v703
      %v808 = vtanh.pop %v706
      %v809 = vtanh.pop %v711
      %v810 = vtanh.pop %v714
      %v811 = vtanh.pop %v719
      %v812 = vtanh.pop %v722
      %v813 = vtanh.pop %v727
      %v814 = vtanh.pop %v730
      %v815 = vtanh.pop %v735
      %v816 = vtanh.pop %v738
      %v817 = vtanh.pop %v743
      %v818 = vtanh.pop %v746
      %v819 = vtanh.pop %v751
      %v820 = vtanh.pop %v754
      %821 = vst [vmem:[%s145] sm:$0xff] %v757
      %822 = vst [vmem:[%s145 + $0x8] sm:$0xff] %v758
      %823 = vst [vmem:[%s145 + $0x10] sm:$0xff] %v759
      %824 = vst [vmem:[%s145 + $0x18] sm:$0xff] %v760
      %825 = vst [vmem:[%s145 + $0x20] sm:$0xff] %v761
      %826 = vst [vmem:[%s145 + $0x28] sm:$0xff] %v762
      %827 = vst [vmem:[%s145 + $0x30] sm:$0xff] %v763
      %828 = vst [vmem:[%s145 + $0x38] sm:$0xff] %v764
      %829 = vst [vmem:[%s145 + $0x40] sm:$0xff] %v765
      %830 = vst [vmem:[%s145 + $0x48] sm:$0xff] %v766
      %831 = vst [vmem:[%s145 + $0x50] sm:$0xff] %v767
      %832 = vst [vmem:[%s145 + $0x58] sm:$0xff] %v768
      %833 = vst [vmem:[%s145 + $0x60] sm:$0xff] %v769
      %834 = vst [vmem:[%s145 + $0x68] sm:$0xff] %v770
      %835 = vst [vmem:[%s145 + $0x70] sm:$0xff] %v771
      %836 = vst [vmem:[%s145 + $0x78] sm:$0xff] %v772
      %837 = vst [vmem:[%s145 + $0x80] sm:$0xff] %v773
      %838 = vst [vmem:[%s145 + $0x88] sm:$0xff] %v774
      %839 = vst [vmem:[%s145 + $0x90] sm:$0xff] %v775
      %840 = vst [vmem:[%s145 + $0x98] sm:$0xff] %v776
      %841 = vst [vmem:[%s145 + $0xa0] sm:$0xff] %v777
      %842 = vst [vmem:[%s145 + $0xa8] sm:$0xff] %v778
      %843 = vst [vmem:[%s145 + $0xb0] sm:$0xff] %v779
      %844 = vst [vmem:[%s145 + $0xb8] sm:$0xff] %v780
      %845 = vst [vmem:[%s145 + $0xc0] sm:$0xff] %v781
      %846 = vst [vmem:[%s145 + $0xc8] sm:$0xff] %v782
      %847 = vst [vmem:[%s145 + $0xd0] sm:$0xff] %v783
      %848 = vst [vmem:[%s145 + $0xd8] sm:$0xff] %v784
      %849 = vst [vmem:[%s145 + $0xe0] sm:$0xff] %v785
      %850 = vst [vmem:[%s145 + $0xe8] sm:$0xff] %v786
      %851 = vst [vmem:[%s145 + $0xf0] sm:$0xff] %v787
      %852 = vst [vmem:[%s145 + $0xf8] sm:$0xff] %v788
      %853 = vst [vmem:[%s145 + $0x100] sm:$0xff] %v789
      %854 = vst [vmem:[%s145 + $0x108] sm:$0xff] %v790
      %855 = vst [vmem:[%s145 + $0x110] sm:$0xff] %v791
      %856 = vst [vmem:[%s145 + $0x118] sm:$0xff] %v792
      %857 = vst [vmem:[%s145 + $0x120] sm:$0xff] %v793
      %858 = vst [vmem:[%s145 + $0x128] sm:$0xff] %v794
      %859 = vst [vmem:[%s145 + $0x130] sm:$0xff] %v795
      %860 = vst [vmem:[%s145 + $0x138] sm:$0xff] %v796
      %861 = vst [vmem:[%s145 + $0x140] sm:$0xff] %v797
      %862 = vst [vmem:[%s145 + $0x148] sm:$0xff] %v798
      %863 = vst [vmem:[%s145 + $0x150] sm:$0xff] %v799
      %864 = vst [vmem:[%s145 + $0x158] sm:$0xff] %v800
      %865 = vst [vmem:[%s145 + $0x160] sm:$0xff] %v801
      %866 = vst [vmem:[%s145 + $0x168] sm:$0xff] %v802
      %867 = vst [vmem:[%s145 + $0x170] sm:$0xff] %v803
      %868 = vst [vmem:[%s145 + $0x178] sm:$0xff] %v804
      %869 = vst [vmem:[%s145 + $0x180] sm:$0xff] %v805
      %870 = vst [vmem:[%s145 + $0x188] sm:$0xff] %v806
      %871 = vst [vmem:[%s145 + $0x190] sm:$0xff] %v807
      %872 = vst [vmem:[%s145 + $0x198] sm:$0xff] %v808
      %873 = vst [vmem:[%s145 + $0x1a0] sm:$0xff] %v809
      %874 = vst [vmem:[%s145 + $0x1a8] sm:$0xff] %v810
      %875 = vst [vmem:[%s145 + $0x1b0] sm:$0xff] %v811
      %876 = vst [vmem:[%s145 + $0x1b8] sm:$0xff] %v812
      %877 = vst [vmem:[%s145 + $0x1c0] sm:$0xff] %v813
      %878 = vst [vmem:[%s145 + $0x1c8] sm:$0xff] %v814
      %879 = vst [vmem:[%s145 + $0x1d0] sm:$0xff] %v815
      %880 = vst [vmem:[%s145 + $0x1d8] sm:$0xff] %v816
      %881 = vst [vmem:[%s145 + $0x1e0] sm:$0xff] %v817
      %882 = vst [vmem:[%s145 + $0x1e8] sm:$0xff] %v818
      %883 = vst [vmem:[%s145 + $0x1f0] sm:$0xff] %v819
      %884 = vst [vmem:[%s145 + $0x1f8] sm:$0xff] %v820
      %s885 = smul.u32 64, %s13
      %p886 = scmp.lt.s32.totalorder %s885, 1023
      %s887 = scalar_select %p886, %s885, 1023
      %s888 = smul.addr %s887, 8
      %s889 = scalar_lea.vmem %s2, %s888
      // Predicated region
      $region29: #{generator_forward.17} parent=27 // pred_check
        %p890 = pneg %p78
      $region30: #{generator_forward.17} parent=27 // pred_check_branch
        %892 = sbr.rel (%p890) target = $region32
      $region31: #{generator_forward.17} parent=27 // pred_region
        %s893 = smul.u32 64, %s13
      $region32: #{generator_forward.17} parent=27 // pred_fallthru
        _
    $region28: #{generator_forward.17} parent=5 // pred_fallthru
      _
    %p894 = scmp.le.s32.totalorder 2, %s8
    // Predicated region
    $region33: #{generator_forward.17} parent=5 // pred_check
      %p895 = pneg %p894
    $region34: #{generator_forward.17} parent=5 // pred_check_branch
      %897 = sbr.rel (%p895) target = $region36
    $region35: #{generator_forward.17} parent=5 // pred_region
      %s898 = ssub.s32 %s8, 2
      // Predicated region
      $region37: #{generator_forward.17} parent=35 // pred_check
        %p899 = pneg %p84
      $region38: #{generator_forward.17} parent=35 // pred_check_branch
        %901 = sbr.rel (%p899) target = $region40
      $region39: #{generator_forward.17} parent=35 // pred_region
        %s902 = smul.u32 64, %s14
        %p903 = scmp.lt.s32.totalorder %s902, 1023
        %s904 = scalar_select %p903, %s902, 1023
        %s905 = smul.addr %s904, 8
        %s906 = scalar_lea.vmem %s2, %s905
      $region40: #{generator_forward.17} parent=35 // pred_fallthru
        _
    $region36: #{generator_forward.17} parent=5 // pred_fallthru
      _
  $region6: #{generator_forward.17} parent=0 // loop_footer
    %s12 = sadd.s32 1, %s8
  $region7: #{generator_forward.17} parent=0 // loop_footer_branch
    %7 = sbr.rel target = $region3
  $region8: #{generator_forward.17} parent=0 // loop_exit
    _

</llo_original>
